<compile_context>
chip_gen: v7x
topology: tpu7x:2x2x1
jax: 0.10.0
libtpu: 0.0.40
codegen_flags: <defaults>
</compile_context>

<pallas_src>
import numpy as np
import jax
import jax.numpy as jnp
from jax.experimental import pallas as pl
from jax.experimental.pallas import tpu as pltpu

# ---------------- synthetic "params" for the module ----------------
BATCH = 4
ENC_IN = 8
LAG = 3
SEQ_LEN = 12            # params.seq_len  (pred_start)
PRED_LEN = 4            # params.pred_len
LSTM_HIDDEN = 32        # params.lstm_hidden_size
LSTM_LAYERS = 2         # params.lstm_layers
NUM_SPLINE = 20         # params.num_spline
ALGORITHM_TYPE = "1+2"
_LAMBDA = -0.001

FEAT = ENC_IN + LAG                                   # last column of the batch is the label
D_RAW = FEAT - 1                                      # = enc_in + lag - 1 (pre-CNN feature size)
L_CONV = D_RAW + 2 * 2 - (3 - 1) - 1 + 1              # circular conv output length
D_CNN = (L_CONV + 2 * 1 - (3 - 1) - 1) // 2 + 1       # maxpool output length == lstm_input_size
TRAIN_WINDOW = SEQ_LEN + PRED_LEN

ROWS_PER_STEP = 8        # batch rows per timestep padded to a full sublane tile
OUT_PAD = 128            # lane-dense output width (>= 2*NUM_SPLINE)


# ---------------- Pallas kernel ----------------
def _make_kernel(T, RB, Lc, Dp, H, L):
    def softplus(v):
        return jnp.where(v > 20.0, v, jnp.log(1.0 + jnp.exp(jnp.minimum(v, 20.0))))

    def kernel(*refs):
        (x_ref, cmat_ref, sc_ref, gavg_ref, pw_ref, pb_ref,
         wih0_ref, b0_ref, whh0_ref) = refs[:9]
        idx = 9
        upper = []                                     # (wih_l, whh_l, b_l) for layers 1..L-1
        for _ in range(L - 1):
            upper.append(refs[idx:idx + 3])
            idx += 3
        wh_ref, bh_ref = refs[idx:idx + 2]
        ge_ref = refs[idx + 2]
        hid_scr = refs[idx + 3]

        bn_w = sc_ref[0]
        bn_b = sc_ref[1]

        # ---- ConvLayer front-end, batched over all T*RB rows ------------------------------
        # circular Conv1d(1->1, k=3, pad=2) as one matmul (conv bias dropped: cancelled by BN)
        x = x_ref[...]                                                     # (R, D)
        conv = jnp.dot(x, cmat_ref[...], preferred_element_type=jnp.float32)   # (R, Lc)

        # BatchNorm1d(1) training-mode stats per timestep group, biased variance.
        # One block-averaging matmul yields E[x] and E[x^2]; var = E[x^2] - mu^2.
        stat = jnp.dot(gavg_ref[...],
                       jnp.concatenate([conv, conv * conv], axis=1),
                       preferred_element_type=jnp.float32)                 # (R, 2*Lc)
        mu = jnp.sum(stat[:, :Lc], axis=1, keepdims=True)                  # (R, 1)
        ex2 = jnp.sum(stat[:, Lc:], axis=1, keepdims=True)                 # (R, 1)
        var = ex2 - mu * mu
        y = (conv - mu) * jax.lax.rsqrt(var + 1e-5) * bn_w + bn_b

        # ELU
        act = jnp.where(y > 0.0, y, jnp.exp(jnp.minimum(y, 0.0)) - 1.0)

        # MaxPool1d(k=3, s=2, p=1): fused selection matmul, -1e30 bias emulates the padding
        # (safe while BN+ELU outputs stay O(1); every window has >= 1 valid element).
        pall = jnp.dot(act, pw_ref[...], preferred_element_type=jnp.float32) + pb_ref[...]
        pooled = jnp.maximum(jnp.maximum(pall[:, 0:Dp], pall[:, Dp:2 * Dp]),
                             pall[:, 2 * Dp:3 * Dp])                       # (R, Dp)

        # ---- layer-0 input projection hoisted out of the recurrence ------------------------
        # (bias folded; the tanh-gate columns were pre-scaled by 2 on the host)
        xg0 = jnp.dot(pooled, wih0_ref[...],
                      preferred_element_type=jnp.float32) + b0_ref[...]    # (R, 4H)

        # ---- loop-invariant weight loads / bias broadcasts ----------------------------------
        whh0 = whh0_ref[...]
        ups = [(wr[...], hr[...], jnp.broadcast_to(br[...], (RB, 4 * H)))
               for (wr, hr, br) in upper]

        h = [jnp.zeros((RB, H), jnp.float32) for _ in range(L)]
        c = [jnp.zeros((RB, H), jnp.float32) for _ in range(L)]

        def gates_to_state(g, c_prev):
            # single EUP pass: g-gate columns carry 2x pre-activation, tanh = 2*sigmoid(2x)-1
            s = jax.nn.sigmoid(g)
            i_g = s[:, 0 * H:1 * H]
            f_g = s[:, 1 * H:2 * H]
            g_g = 2.0 * s[:, 2 * H:3 * H] - 1.0
            o_g = s[:, 3 * H:4 * H]
            c_new = f_g * c_prev + i_g * g_g
            return o_g * jnp.tanh(c_new), c_new

        # ---- stacked LSTM recurrence, fully unrolled over T; state lives in vregs ----------
        for t in range(T):
            g0 = xg0[t * RB:(t + 1) * RB, :] + jnp.dot(
                h[0], whh0, preferred_element_type=jnp.float32)
            h[0], c[0] = gates_to_state(g0, c[0])
            hid_scr[t * RB:(t + 1) * RB, 0:H] = h[0]           # sublane-aligned, static store
            for l in range(1, L):
                wih_l, whh_l, b_l = ups[l - 1]
                gl = (jnp.dot(h[l - 1], wih_l, preferred_element_type=jnp.float32)
                      + jnp.dot(h[l], whh_l, preferred_element_type=jnp.float32) + b_l)
                h[l], c[l] = gates_to_state(gl, c[l])
                hid_scr[t * RB:(t + 1) * RB, l * H:(l + 1) * H] = h[l]

        # ---- deferred QSQM heads: one matmul + softplus + one lane-dense (R, 128) store ----
        logits = jnp.dot(hid_scr[...], wh_ref[...],
                         preferred_element_type=jnp.float32) + bh_ref[...]
        ge_ref[...] = softplus(logits)

    return kernel


@jax.jit
def run_kernel(x_tm, kp):
    T, B, D = x_tm.shape
    RB = ROWS_PER_STEP
    Lc, Dp, H, L, K = L_CONV, D_CNN, LSTM_HIDDEN, LSTM_LAYERS, NUM_SPLINE

    # pad each timestep's batch to a full 8-sublane tile; the zero rows are inert
    # (BN statistics ignore them via gavg and all downstream ops are row-independent)
    xp = jnp.zeros((T, RB, D), jnp.float32).at[:, :B, :].set(x_tm)
    x2 = jnp.reshape(xp, (T * RB, D))

    def vmem():
        return pl.BlockSpec(memory_space=pltpu.MemorySpace.VMEM)

    smem = pl.BlockSpec(memory_space=pltpu.MemorySpace.SMEM)

    args = [x2, kp['cmat'], kp['scalars'], kp['gavg'], kp['pool_w'], kp['pool_b'],
            kp['wih0'], kp['b0'], kp['whh0']]
    in_specs = [vmem(), vmem(), smem, vmem(), vmem(), vmem(), vmem(), vmem(), vmem()]
    for (wih_l, whh_l, b_l) in kp['upper']:
        args += [wih_l, whh_l, b_l]
        in_specs += [vmem(), vmem(), vmem()]
    args += [kp['w_head'], kp['b_head']]
    in_specs += [vmem(), vmem()]

    kernel = _make_kernel(T, RB, Lc, Dp, H, L)
    ge = pl.pallas_call(
        kernel,
        out_shape=jax.ShapeDtypeStruct((T * RB, OUT_PAD), jnp.float32),
        in_specs=in_specs,
        out_specs=pl.BlockSpec(memory_space=pltpu.MemorySpace.VMEM),
        scratch_shapes=[pltpu.VMEM((T * RB, L * H), jnp.float32)],
    )(*args)

    ge = jnp.reshape(ge, (T, RB, OUT_PAD))[:, :B, :2 * K]      # drop pad rows / pad lanes
    return ge[..., :K], ge[..., K:]                            # gamma, eta  (T, B, K) each


# ---------------- deterministic parameter init (mirrors Model.__init__ shapes) ----------------
def init_params(key):
    ks = jax.random.split(key, 20)

    def u(k, shape, bound):
        return jax.random.uniform(k, shape, jnp.float32, -bound, bound)

    p = {}
    p['conv_w'] = u(ks[0], (3,), 1.0 / np.sqrt(3.0))       # Conv1d(1,1,3) weight (flattened)
    p['conv_b'] = u(ks[1], (), 1.0 / np.sqrt(3.0))         # (cancelled by BN; kept for fidelity)
    p['bn_w'] = jnp.ones(())                               # BatchNorm1d(1) affine
    p['bn_b'] = jnp.zeros(())

    H, L = LSTM_HIDDEN, LSTM_LAYERS
    bound = 1.0 / np.sqrt(H)
    wih, whh, bih, bhh = [], [], [], []
    kidx = 2
    for l in range(L):
        in_l = D_CNN if l == 0 else H
        wih.append(u(ks[kidx], (4 * H, in_l), bound)); kidx += 1
        whh.append(u(ks[kidx], (4 * H, H), bound)); kidx += 1
        b_i = u(ks[kidx], (4 * H,), bound); kidx += 1
        b_h = u(ks[kidx], (4 * H,), bound); kidx += 1
        # forget-gate biases filled with 1.0 (in BOTH biases), as in the module __init__
        b_i = b_i.at[H:2 * H].set(1.0)
        b_h = b_h.at[H:2 * H].set(1.0)
        bih.append(b_i); bhh.append(b_h)
    p['wih'], p['whh'], p['bih'], p['bhh'] = wih, whh, bih, bhh

    K = NUM_SPLINE
    hb = 1.0 / np.sqrt(H * L)
    p['wg'] = u(ks[kidx], (K, H * L), hb); kidx += 1        # linear_gamma ('1+2' -> num_spline)
    p['bg'] = u(ks[kidx], (K,), hb); kidx += 1
    p['we'] = u(ks[kidx], (K, H * L), hb); kidx += 1        # linear_eta_k
    p['be'] = u(ks[kidx], (K,), hb); kidx += 1
    return p


# -------- glue: raw module weights -> kernel-friendly matrices (built ONCE, not per call) -----
def build_kernel_params(p):
    D, Lc, Dp, H, L, K = D_RAW, L_CONV, D_CNN, LSTM_HIDDEN, LSTM_LAYERS, NUM_SPLINE
    T, B, RB = TRAIN_WINDOW, BATCH, ROWS_PER_STEP
    conv_w = np.asarray(p['conv_w'])

    # circulant matrix for circular Conv1d(k=3, pad=2): conv = x @ cmat
    cmat = np.zeros((D, Lc), np.float32)
    for i in range(Lc):
        for k in range(3):
            cmat[(i + k - 2) % D, i] += conv_w[k]

    # fused selection matrix + pad bias for MaxPool1d(k=3, s=2, p=1): (Lc, 3*Dp)
    pool_w = np.zeros((Lc, 3 * Dp), np.float32)
    pool_b = np.zeros((1, 3 * Dp), np.float32)
    for i in range(Dp):
        for k in range(3):
            j = 2 * i + k - 1
            col = k * Dp + i
            if 0 <= j < Lc:
                pool_w[j, col] = 1.0
            else:
                pool_b[0, col] = -1e30

    # block-averaging matrix for per-timestep BatchNorm stats; pad rows get the same group
    # mean/var (finite) but contribute nothing as source columns.
    gavg = np.zeros((T * RB, T * RB), np.float32)
    for t in range(T):
        gavg[t * RB:(t + 1) * RB, t * RB:t * RB + B] = 1.0 / (B * Lc)

    # pre-scale the tanh ('g') gate columns by 2 so the kernel needs only one sigmoid pass
    gscale = jnp.concatenate([jnp.ones(2 * H), jnp.full((H,), 2.0),
                              jnp.ones(H)]).astype(jnp.float32)

    def prep_w(w):                                  # torch (4H, in) -> (in, 4H), g-cols doubled
        return jnp.transpose(w) * gscale[None, :]

    def prep_b(b_i, b_h):
        return jnp.reshape((b_i + b_h) * gscale, (1, 4 * H))

    wih0 = prep_w(p['wih'][0])                       # (Dp, 4H)
    whh0 = prep_w(p['whh'][0])                       # (H, 4H)
    b0 = prep_b(p['bih'][0], p['bhh'][0])            # (1, 4H)
    upper = []
    for l in range(1, L):
        upper.append((prep_w(p['wih'][l]), prep_w(p['whh'][l]),
                      prep_b(p['bih'][l], p['bhh'][l])))

    def reorder_head(w):   # (K, H*L) acting on hidden[b, h*L + l] -> (L*H, K) row l*H + h
        wt = jnp.transpose(w)                        # (H*L, K), row = h*L + l
        return jnp.reshape(jnp.transpose(jnp.reshape(wt, (H, L, K)), (1, 0, 2)), (L * H, K))

    assert 2 * K <= OUT_PAD
    w_head = jnp.concatenate([reorder_head(p['wg']), reorder_head(p['we'])], axis=1)  # (L*H, 2K)
    b_head = jnp.reshape(jnp.concatenate([p['bg'], p['be']]), (1, 2 * K))
    w_head = jnp.pad(w_head, ((0, 0), (0, OUT_PAD - 2 * K)))   # lane-dense 128-wide output
    b_head = jnp.pad(b_head, ((0, 0), (0, OUT_PAD - 2 * K)))

    kp = {
        'cmat': jnp.asarray(cmat),
        'scalars': jnp.stack([p['bn_w'], p['bn_b']]).astype(jnp.float32),
        'gavg': jnp.asarray(gavg),
        'pool_w': jnp.asarray(pool_w),
        'pool_b': jnp.asarray(pool_b),
        'wih0': wih0, 'b0': b0, 'whh0': whh0,
        'upper': upper,
        'w_head': w_head, 'b_head': b_head,
    }
    return kp


# ---------------- Model.forward (probability_forecast training path) ----------------
def model_forward(x_enc, y_enc, kp):
    batch = jnp.concatenate([x_enc, y_enc[:, -PRED_LEN:, :]], axis=1).astype(jnp.float32)
    train_batch = batch[:, :, :-1]                         # (B, T, D_RAW)
    labels_batch = batch[:, :, -1]                         # (B, T)
    x_tm = jnp.transpose(train_batch, (1, 0, 2))           # (T, B, D_RAW)
    labels_tm = jnp.transpose(labels_batch, (1, 0))        # (T, B)

    gamma, eta = run_kernel(x_tm, kp)                      # (T, B, K) each

    alpha_prime_k = jnp.ones((x_enc.shape[0], NUM_SPLINE), jnp.float32) / NUM_SPLINE  # 'uniform'
    loss_list = [(alpha_prime_k, _LAMBDA, gamma[t], eta[t], labels_tm[t], ALGORITHM_TYPE)
                 for t in range(TRAIN_WINDOW)]
    # TODO(synk): the torch.isnan early-exit / stop_flag logic is skipped (inputs are finite).
    return loss_list, False


# ---------------- pure-JAX reference (for correctness check) ----------------
def _hdot(a, b):
    return jnp.dot(a, b, precision=jax.lax.Precision.HIGHEST)


def reference_forward(x_tm, p):
    T, B, D = x_tm.shape
    H, L, K = LSTM_HIDDEN, LSTM_LAYERS, NUM_SPLINE
    Lc, Dp = L_CONV, D_CNN
    h = jnp.zeros((L, B, H)); c = jnp.zeros((L, B, H))
    gammas, etas = [], []
    sp = lambda v: jnp.where(v > 20.0, v, jnp.log1p(jnp.exp(jnp.minimum(v, 20.0))))
    for t in range(T):
        x = x_tm[t]
        padded = jnp.concatenate([x[:, -2:], x, x[:, :2]], axis=1)
        conv = sum(p['conv_w'][k] * padded[:, k:k + Lc] for k in range(3)) + p['conv_b']
        mu = jnp.mean(conv); var = jnp.mean((conv - mu) ** 2)
        y = (conv - mu) / jnp.sqrt(var + 1e-5) * p['bn_w'] + p['bn_b']
        act = jnp.where(y > 0, y, jnp.exp(y) - 1.0)
        neg = jnp.full((B, 1), -jnp.inf)
        actp = jnp.concatenate([neg, act, neg], axis=1)
        inp = jnp.stack([jnp.max(actp[:, 2 * i:2 * i + 3], axis=1) for i in range(Dp)], axis=1)
        hs = []
        for l in range(L):
            gates = (_hdot(inp, p['wih'][l].T) + _hdot(h[l], p['whh'][l].T)
                     + p['bih'][l] + p['bhh'][l])
            i_g = jax.nn.sigmoid(gates[:, :H]); f_g = jax.nn.sigmoid(gates[:, H:2 * H])
            g_g = jnp.tanh(gates[:, 2 * H:3 * H]); o_g = jax.nn.sigmoid(gates[:, 3 * H:])
            c_new = f_g * c[l] + i_g * g_g
            h_new = o_g * jnp.tanh(c_new)
            h = h.at[l].set(h_new); c = c.at[l].set(c_new)
            hs.append(h_new)
            inp = h_new
        hp = jnp.reshape(jnp.transpose(jnp.stack(hs, 0), (1, 2, 0)), (B, H * L))
        gammas.append(sp(_hdot(hp, p['wg'].T) + p['bg']))
        etas.append(sp(_hdot(hp, p['we'].T) + p['be']))
    return jnp.stack(gammas), jnp.stack(etas)


if __name__ == "__main__":
    key = jax.random.PRNGKey(0)
    k_par, k_x, k_y = jax.random.split(key, 3)
    params = init_params(k_par)

    # host-side matrix construction done ONCE (not per forward call)
    kp = build_kernel_params(params)

    x_enc = jax.random.normal(k_x, (BATCH, SEQ_LEN, FEAT), jnp.float32)
    y_enc = jax.random.normal(k_y, (BATCH, PRED_LEN, FEAT), jnp.float32)

    loss_list, stop_flag = model_forward(x_enc, y_enc, kp)
    gamma_k = jnp.stack([item[2] for item in loss_list])
    eta_k = jnp.stack([item[3] for item in loss_list])
    jax.block_until_ready((gamma_k, eta_k))

    # validate against a pure-JAX reference of the same forward pass
    batch = jnp.concatenate([x_enc, y_enc[:, -PRED_LEN:, :]], axis=1)
    train_tm = jnp.transpose(batch[:, :, :-1], (1, 0, 2))
    g_ref, e_ref = reference_forward(train_tm, params)

    assert np.allclose(np.asarray(gamma_k), np.asarray(g_ref), atol=1e-3, rtol=1e-3)
    assert np.allclose(np.asarray(eta_k), np.asarray(e_ref), atol=1e-3, rtol=1e-3)
    assert stop_flag is False
    print("KERNEL_OK")
</pallas_src>

<mosaic_0001>
module attributes {stable_mosaic.version = 11 : i64} {
  func.func @kernel(%arg0: memref<128x10xf32, #tpu.memory_space<vmem>>, %arg1: memref<10x12xf32, #tpu.memory_space<vmem>>, %arg2: memref<2xf32, #tpu.memory_space<smem>>, %arg3: memref<128x128xf32, #tpu.memory_space<vmem>>, %arg4: memref<12x18xf32, #tpu.memory_space<vmem>>, %arg5: memref<1x18xf32, #tpu.memory_space<vmem>>, %arg6: memref<6x128xf32, #tpu.memory_space<vmem>>, %arg7: memref<1x128xf32, #tpu.memory_space<vmem>>, %arg8: memref<32x128xf32, #tpu.memory_space<vmem>>, %arg9: memref<32x128xf32, #tpu.memory_space<vmem>>, %arg10: memref<32x128xf32, #tpu.memory_space<vmem>>, %arg11: memref<1x128xf32, #tpu.memory_space<vmem>>, %arg12: memref<64x128xf32, #tpu.memory_space<vmem>>, %arg13: memref<1x128xf32, #tpu.memory_space<vmem>>, %arg14: memref<128x128xf32, #tpu.memory_space<vmem>>, %arg15: memref<128x64xf32, #tpu.memory_space<vmem>>) attributes {dimension_semantics = [], scalar_prefetch = 0 : i64, scratch_operands = 1 : i64, tpu.core_type = #tpu.core_type<tc>} {
    %c0 = arith.constant 0 : index
    %0 = memref.load %arg2[%c0] : memref<2xf32, #tpu.memory_space<smem>>
    %c1 = arith.constant 1 : index
    %1 = memref.load %arg2[%c1] : memref<2xf32, #tpu.memory_space<smem>>
    %c0_0 = arith.constant 0 : index
    %c0_1 = arith.constant 0 : index
    %2 = vector.load %arg0[%c0_0, %c0_1] : memref<128x10xf32, #tpu.memory_space<vmem>>, vector<128x10xf32>
    %c0_2 = arith.constant 0 : index
    %c0_3 = arith.constant 0 : index
    %3 = vector.load %arg1[%c0_2, %c0_3] : memref<10x12xf32, #tpu.memory_space<vmem>>, vector<10x12xf32>
    %cst = arith.constant dense<0.000000e+00> : vector<128x12xf32>
    %4 = tpu.matmul %2, %3, %cst {dimension_numbers = #tpu.dot_dimension_numbers<[1], [0], [0], [1], [0, 0, 1, 1], [], []>} : vector<128x10xf32>, vector<10x12xf32>, vector<128x12xf32> -> vector<128x12xf32>
    %c0_4 = arith.constant 0 : index
    %c0_5 = arith.constant 0 : index
    %5 = vector.load %arg3[%c0_4, %c0_5] : memref<128x128xf32, #tpu.memory_space<vmem>>, vector<128x128xf32>
    %6 = arith.mulf %4, %4 : vector<128x12xf32>
    %7 = tpu.concatenate %4, %6 in 1 : vector<128x12xf32>, vector<128x12xf32> -> vector<128x24xf32>
    %cst_6 = arith.constant dense<0.000000e+00> : vector<128x24xf32>
    %8 = tpu.matmul %5, %7, %cst_6 {dimension_numbers = #tpu.dot_dimension_numbers<[1], [0], [0], [1], [0, 0, 1, 1], [], []>} : vector<128x128xf32>, vector<128x24xf32>, vector<128x24xf32> -> vector<128x24xf32>
    %9 = vector.extract_strided_slice %8 {offsets = [0, 0], sizes = [128, 12], strides = [1, 1]} : vector<128x24xf32> to vector<128x12xf32>
    %cst_7 = arith.constant dense<0.000000e+00> : vector<128xf32>
    %10 = vector.multi_reduction <add>, %9, %cst_7 [1] : vector<128x12xf32> to vector<128xf32>
    %11 = vector.shape_cast %10 : vector<128xf32> to vector<128x1xf32>
    %12 = vector.extract_strided_slice %8 {offsets = [0, 12], sizes = [128, 12], strides = [1, 1]} : vector<128x24xf32> to vector<128x12xf32>
    %cst_8 = arith.constant dense<0.000000e+00> : vector<128xf32>
    %13 = vector.multi_reduction <add>, %12, %cst_8 [1] : vector<128x12xf32> to vector<128xf32>
    %14 = vector.shape_cast %13 : vector<128xf32> to vector<128x1xf32>
    %15 = arith.mulf %11, %11 : vector<128x1xf32>
    %16 = arith.subf %14, %15 : vector<128x1xf32>
    %17 = vector.broadcast %11 : vector<128x1xf32> to vector<128x12xf32>
    %18 = arith.subf %4, %17 : vector<128x12xf32>
    %cst_9 = arith.constant 9.99999974E-6 : f32
    %19 = vector.broadcast %cst_9 : f32 to vector<128x1xf32>
    %20 = arith.addf %16, %19 : vector<128x1xf32>
    %21 = math.rsqrt %20 : vector<128x1xf32>
    %22 = vector.broadcast %21 : vector<128x1xf32> to vector<128x12xf32>
    %23 = arith.mulf %18, %22 : vector<128x12xf32>
    %24 = vector.broadcast %0 : f32 to vector<128x12xf32>
    %25 = arith.mulf %23, %24 : vector<128x12xf32>
    %26 = vector.broadcast %1 : f32 to vector<128x12xf32>
    %27 = arith.addf %25, %26 : vector<128x12xf32>
    %cst_10 = arith.constant 0.000000e+00 : f32
    %28 = vector.broadcast %cst_10 : f32 to vector<128x12xf32>
    %29 = arith.cmpf ogt, %27, %28 : vector<128x12xf32>
    %cst_11 = arith.constant 0.000000e+00 : f32
    %30 = vector.broadcast %cst_11 : f32 to vector<128x12xf32>
    %31 = arith.minimumf %27, %30 : vector<128x12xf32>
    %32 = math.exp %31 : vector<128x12xf32>
    %cst_12 = arith.constant 1.000000e+00 : f32
    %33 = vector.broadcast %cst_12 : f32 to vector<128x12xf32>
    %34 = arith.subf %32, %33 : vector<128x12xf32>
    %35 = arith.select %29, %27, %34 : vector<128x12xi1>, vector<128x12xf32>
    %c0_13 = arith.constant 0 : index
    %c0_14 = arith.constant 0 : index
    %36 = vector.load %arg4[%c0_13, %c0_14] : memref<12x18xf32, #tpu.memory_space<vmem>>, vector<12x18xf32>
    %cst_15 = arith.constant dense<0.000000e+00> : vector<128x18xf32>
    %37 = tpu.matmul %35, %36, %cst_15 {dimension_numbers = #tpu.dot_dimension_numbers<[1], [0], [0], [1], [0, 0, 1, 1], [], []>} : vector<128x12xf32>, vector<12x18xf32>, vector<128x18xf32> -> vector<128x18xf32>
    %c0_16 = arith.constant 0 : index
    %c0_17 = arith.constant 0 : index
    %38 = vector.load %arg5[%c0_16, %c0_17] : memref<1x18xf32, #tpu.memory_space<vmem>>, vector<1x18xf32>
    %39 = vector.broadcast %38 : vector<1x18xf32> to vector<128x18xf32>
    %40 = arith.addf %37, %39 : vector<128x18xf32>
    %41 = vector.extract_strided_slice %40 {offsets = [0, 0], sizes = [128, 6], strides = [1, 1]} : vector<128x18xf32> to vector<128x6xf32>
    %42 = vector.extract_strided_slice %40 {offsets = [0, 6], sizes = [128, 6], strides = [1, 1]} : vector<128x18xf32> to vector<128x6xf32>
    %43 = arith.maximumf %41, %42 : vector<128x6xf32>
    %44 = vector.extract_strided_slice %40 {offsets = [0, 12], sizes = [128, 6], strides = [1, 1]} : vector<128x18xf32> to vector<128x6xf32>
    %45 = arith.maximumf %43, %44 : vector<128x6xf32>
    %c0_18 = arith.constant 0 : index
    %c0_19 = arith.constant 0 : index
    %46 = vector.load %arg6[%c0_18, %c0_19] : memref<6x128xf32, #tpu.memory_space<vmem>>, vector<6x128xf32>
    %cst_20 = arith.constant dense<0.000000e+00> : vector<128x128xf32>
    %47 = tpu.matmul %45, %46, %cst_20 {dimension_numbers = #tpu.dot_dimension_numbers<[1], [0], [0], [1], [0, 0, 1, 1], [], []>} : vector<128x6xf32>, vector<6x128xf32>, vector<128x128xf32> -> vector<128x128xf32>
    %c0_21 = arith.constant 0 : index
    %c0_22 = arith.constant 0 : index
    %48 = vector.load %arg7[%c0_21, %c0_22] : memref<1x128xf32, #tpu.memory_space<vmem>>, vector<1x128xf32>
    %49 = vector.broadcast %48 : vector<1x128xf32> to vector<128x128xf32>
    %50 = arith.addf %47, %49 : vector<128x128xf32>
    %c0_23 = arith.constant 0 : index
    %c0_24 = arith.constant 0 : index
    %51 = vector.load %arg8[%c0_23, %c0_24] : memref<32x128xf32, #tpu.memory_space<vmem>>, vector<32x128xf32>
    %c0_25 = arith.constant 0 : index
    %c0_26 = arith.constant 0 : index
    %52 = vector.load %arg9[%c0_25, %c0_26] : memref<32x128xf32, #tpu.memory_space<vmem>>, vector<32x128xf32>
    %c0_27 = arith.constant 0 : index
    %c0_28 = arith.constant 0 : index
    %53 = vector.load %arg10[%c0_27, %c0_28] : memref<32x128xf32, #tpu.memory_space<vmem>>, vector<32x128xf32>
    %c0_29 = arith.constant 0 : index
    %c0_30 = arith.constant 0 : index
    %54 = vector.load %arg11[%c0_29, %c0_30] : memref<1x128xf32, #tpu.memory_space<vmem>>, vector<1x128xf32>
    %55 = vector.shape_cast %54 : vector<1x128xf32> to vector<1x128xf32>
    %56 = vector.broadcast %55 : vector<1x128xf32> to vector<8x128xf32>
    %cst_31 = arith.constant 0.000000e+00 : f32
    %57 = vector.broadcast %cst_31 : f32 to vector<8x32xf32>
    %cst_32 = arith.constant 0.000000e+00 : f32
    %58 = vector.broadcast %cst_32 : f32 to vector<8x32xf32>
    %cst_33 = arith.constant 0.000000e+00 : f32
    %59 = vector.broadcast %cst_33 : f32 to vector<8x32xf32>
    %cst_34 = arith.constant 0.000000e+00 : f32
    %60 = vector.broadcast %cst_34 : f32 to vector<8x32xf32>
    %61 = vector.extract_strided_slice %50 {offsets = [0, 0], sizes = [8, 128], strides = [1, 1]} : vector<128x128xf32> to vector<8x128xf32>
    %cst_35 = arith.constant dense<0.000000e+00> : vector<8x128xf32>
    %62 = tpu.matmul %57, %51, %cst_35 {dimension_numbers = #tpu.dot_dimension_numbers<[1], [0], [0], [1], [0, 0, 1, 1], [], []>} : vector<8x32xf32>, vector<32x128xf32>, vector<8x128xf32> -> vector<8x128xf32>
    %63 = arith.addf %61, %62 : vector<8x128xf32>
    %64 = arith.negf %63 : vector<8x128xf32>
    %65 = math.exp %64 : vector<8x128xf32>
    %cst_36 = arith.constant 1.000000e+00 : f32
    %66 = vector.broadcast %cst_36 : f32 to vector<8x128xf32>
    %67 = arith.addf %66, %65 : vector<8x128xf32>
    %68 = arith.divf %66, %67 : vector<8x128xf32>
    %69 = vector.extract_strided_slice %68 {offsets = [0, 0], sizes = [8, 32], strides = [1, 1]} : vector<8x128xf32> to vector<8x32xf32>
    %70 = vector.extract_strided_slice %68 {offsets = [0, 32], sizes = [8, 32], strides = [1, 1]} : vector<8x128xf32> to vector<8x32xf32>
    %71 = vector.extract_strided_slice %68 {offsets = [0, 64], sizes = [8, 32], strides = [1, 1]} : vector<8x128xf32> to vector<8x32xf32>
    %cst_37 = arith.constant 2.000000e+00 : f32
    %72 = vector.broadcast %cst_37 : f32 to vector<8x32xf32>
    %73 = arith.mulf %72, %71 : vector<8x32xf32>
    %cst_38 = arith.constant 1.000000e+00 : f32
    %74 = vector.broadcast %cst_38 : f32 to vector<8x32xf32>
    %75 = arith.subf %73, %74 : vector<8x32xf32>
    %76 = vector.extract_strided_slice %68 {offsets = [0, 96], sizes = [8, 32], strides = [1, 1]} : vector<8x128xf32> to vector<8x32xf32>
    %77 = arith.mulf %70, %59 : vector<8x32xf32>
    %78 = arith.mulf %69, %75 : vector<8x32xf32>
    %79 = arith.addf %77, %78 : vector<8x32xf32>
    %80 = math.tanh %79 : vector<8x32xf32>
    %81 = arith.mulf %76, %80 : vector<8x32xf32>
    %c0_39 = arith.constant 0 : index
    %c0_40 = arith.constant 0 : index
    %82 = vector.load %arg15[%c0_39, %c0_40] : memref<128x64xf32, #tpu.memory_space<vmem>>, vector<8x32xf32>
    tpu.vector_store %arg15[%c0_39, %c0_40], %81 {strides = array<i32>} : memref<128x64xf32, #tpu.memory_space<vmem>>, vector<8x32xf32>,
    %cst_41 = arith.constant dense<0.000000e+00> : vector<8x128xf32>
    %83 = tpu.matmul %81, %52, %cst_41 {dimension_numbers = #tpu.dot_dimension_numbers<[1], [0], [0], [1], [0, 0, 1, 1], [], []>} : vector<8x32xf32>, vector<32x128xf32>, vector<8x128xf32> -> vector<8x128xf32>
    %cst_42 = arith.constant dense<0.000000e+00> : vector<8x128xf32>
    %84 = tpu.matmul %58, %53, %cst_42 {dimension_numbers = #tpu.dot_dimension_numbers<[1], [0], [0], [1], [0, 0, 1, 1], [], []>} : vector<8x32xf32>, vector<32x128xf32>, vector<8x128xf32> -> vector<8x128xf32>
    %85 = arith.addf %83, %84 : vector<8x128xf32>
    %86 = arith.addf %85, %56 : vector<8x128xf32>
    %87 = arith.negf %86 : vector<8x128xf32>
    %88 = math.exp %87 : vector<8x128xf32>
    %cst_43 = arith.constant 1.000000e+00 : f32
    %89 = vector.broadcast %cst_43 : f32 to vector<8x128xf32>
    %90 = arith.addf %89, %88 : vector<8x128xf32>
    %91 = arith.divf %89, %90 : vector<8x128xf32>
    %92 = vector.extract_strided_slice %91 {offsets = [0, 0], sizes = [8, 32], strides = [1, 1]} : vector<8x128xf32> to vector<8x32xf32>
    %93 = vector.extract_strided_slice %91 {offsets = [0, 32], sizes = [8, 32], strides = [1, 1]} : vector<8x128xf32> to vector<8x32xf32>
    %94 = vector.extract_strided_slice %91 {offsets = [0, 64], sizes = [8, 32], strides = [1, 1]} : vector<8x128xf32> to vector<8x32xf32>
    %cst_44 = arith.constant 2.000000e+00 : f32
    %95 = vector.broadcast %cst_44 : f32 to vector<8x32xf32>
    %96 = arith.mulf %95, %94 : vector<8x32xf32>
    %cst_45 = arith.constant 1.000000e+00 : f32
    %97 = vector.broadcast %cst_45 : f32 to vector<8x32xf32>
    %98 = arith.subf %96, %97 : vector<8x32xf32>
    %99 = vector.extract_strided_slice %91 {offsets = [0, 96], sizes = [8, 32], strides = [1, 1]} : vector<8x128xf32> to vector<8x32xf32>
    %100 = arith.mulf %93, %60 : vector<8x32xf32>
    %101 = arith.mulf %92, %98 : vector<8x32xf32>
    %102 = arith.addf %100, %101 : vector<8x32xf32>
    %103 = math.tanh %102 : vector<8x32xf32>
    %104 = arith.mulf %99, %103 : vector<8x32xf32>
    %c0_46 = arith.constant 0 : index
    %c32 = arith.constant 32 : index
    %105 = vector.load %arg15[%c0_46, %c32] : memref<128x64xf32, #tpu.memory_space<vmem>>, vector<8x32xf32>
    tpu.vector_store %arg15[%c0_46, %c32], %104 {strides = array<i32>} : memref<128x64xf32, #tpu.memory_space<vmem>>, vector<8x32xf32>,
    %106 = vector.extract_strided_slice %50 {offsets = [8, 0], sizes = [8, 128], strides = [1, 1]} : vector<128x128xf32> to vector<8x128xf32>
    %cst_47 = arith.constant dense<0.000000e+00> : vector<8x128xf32>
    %107 = tpu.matmul %81, %51, %cst_47 {dimension_numbers = #tpu.dot_dimension_numbers<[1], [0], [0], [1], [0, 0, 1, 1], [], []>} : vector<8x32xf32>, vector<32x128xf32>, vector<8x128xf32> -> vector<8x128xf32>
    %108 = arith.addf %106, %107 : vector<8x128xf32>
    %109 = arith.negf %108 : vector<8x128xf32>
    %110 = math.exp %109 : vector<8x128xf32>
    %cst_48 = arith.constant 1.000000e+00 : f32
    %111 = vector.broadcast %cst_48 : f32 to vector<8x128xf32>
    %112 = arith.addf %111, %110 : vector<8x128xf32>
    %113 = arith.divf %111, %112 : vector<8x128xf32>
    %114 = vector.extract_strided_slice %113 {offsets = [0, 0], sizes = [8, 32], strides = [1, 1]} : vector<8x128xf32> to vector<8x32xf32>
    %115 = vector.extract_strided_slice %113 {offsets = [0, 32], sizes = [8, 32], strides = [1, 1]} : vector<8x128xf32> to vector<8x32xf32>
    %116 = vector.extract_strided_slice %113 {offsets = [0, 64], sizes = [8, 32], strides = [1, 1]} : vector<8x128xf32> to vector<8x32xf32>
    %cst_49 = arith.constant 2.000000e+00 : f32
    %117 = vector.broadcast %cst_49 : f32 to vector<8x32xf32>
    %118 = arith.mulf %117, %116 : vector<8x32xf32>
    %cst_50 = arith.constant 1.000000e+00 : f32
    %119 = vector.broadcast %cst_50 : f32 to vector<8x32xf32>
    %120 = arith.subf %118, %119 : vector<8x32xf32>
    %121 = vector.extract_strided_slice %113 {offsets = [0, 96], sizes = [8, 32], strides = [1, 1]} : vector<8x128xf32> to vector<8x32xf32>
    %122 = arith.mulf %115, %79 : vector<8x32xf32>
    %123 = arith.mulf %114, %120 : vector<8x32xf32>
    %124 = arith.addf %122, %123 : vector<8x32xf32>
    %125 = math.tanh %124 : vector<8x32xf32>
    %126 = arith.mulf %121, %125 : vector<8x32xf32>
    %c8 = arith.constant 8 : index
    %c0_51 = arith.constant 0 : index
    %127 = vector.load %arg15[%c8, %c0_51] : memref<128x64xf32, #tpu.memory_space<vmem>>, vector<8x32xf32>
    tpu.vector_store %arg15[%c8, %c0_51], %126 {strides = array<i32>} : memref<128x64xf32, #tpu.memory_space<vmem>>, vector<8x32xf32>,
    %cst_52 = arith.constant dense<0.000000e+00> : vector<8x128xf32>
    %128 = tpu.matmul %126, %52, %cst_52 {dimension_numbers = #tpu.dot_dimension_numbers<[1], [0], [0], [1], [0, 0, 1, 1], [], []>} : vector<8x32xf32>, vector<32x128xf32>, vector<8x128xf32> -> vector<8x128xf32>
    %cst_53 = arith.constant dense<0.000000e+00> : vector<8x128xf32>
    %129 = tpu.matmul %104, %53, %cst_53 {dimension_numbers = #tpu.dot_dimension_numbers<[1], [0], [0], [1], [0, 0, 1, 1], [], []>} : vector<8x32xf32>, vector<32x128xf32>, vector<8x128xf32> -> vector<8x128xf32>
    %130 = arith.addf %128, %129 : vector<8x128xf32>
    %131 = arith.addf %130, %56 : vector<8x128xf32>
    %132 = arith.negf %131 : vector<8x128xf32>
    %133 = math.exp %132 : vector<8x128xf32>
    %cst_54 = arith.constant 1.000000e+00 : f32
    %134 = vector.broadcast %cst_54 : f32 to vector<8x128xf32>
    %135 = arith.addf %134, %133 : vector<8x128xf32>
    %136 = arith.divf %134, %135 : vector<8x128xf32>
    %137 = vector.extract_strided_slice %136 {offsets = [0, 0], sizes = [8, 32], strides = [1, 1]} : vector<8x128xf32> to vector<8x32xf32>
    %138 = vector.extract_strided_slice %136 {offsets = [0, 32], sizes = [8, 32], strides = [1, 1]} : vector<8x128xf32> to vector<8x32xf32>
    %139 = vector.extract_strided_slice %136 {offsets = [0, 64], sizes = [8, 32], strides = [1, 1]} : vector<8x128xf32> to vector<8x32xf32>
    %cst_55 = arith.constant 2.000000e+00 : f32
    %140 = vector.broadcast %cst_55 : f32 to vector<8x32xf32>
    %141 = arith.mulf %140, %139 : vector<8x32xf32>
    %cst_56 = arith.constant 1.000000e+00 : f32
    %142 = vector.broadcast %cst_56 : f32 to vector<8x32xf32>
    %143 = arith.subf %141, %142 : vector<8x32xf32>
    %144 = vector.extract_strided_slice %136 {offsets = [0, 96], sizes = [8, 32], strides = [1, 1]} : vector<8x128xf32> to vector<8x32xf32>
    %145 = arith.mulf %138, %102 : vector<8x32xf32>
    %146 = arith.mulf %137, %143 : vector<8x32xf32>
    %147 = arith.addf %145, %146 : vector<8x32xf32>
    %148 = math.tanh %147 : vector<8x32xf32>
    %149 = arith.mulf %144, %148 : vector<8x32xf32>
    %c8_57 = arith.constant 8 : index
    %c32_58 = arith.constant 32 : index
    %150 = vector.load %arg15[%c8_57, %c32_58] : memref<128x64xf32, #tpu.memory_space<vmem>>, vector<8x32xf32>
    tpu.vector_store %arg15[%c8_57, %c32_58], %149 {strides = array<i32>} : memref<128x64xf32, #tpu.memory_space<vmem>>, vector<8x32xf32>,
    %151 = vector.extract_strided_slice %50 {offsets = [16, 0], sizes = [8, 128], strides = [1, 1]} : vector<128x128xf32> to vector<8x128xf32>
    %cst_59 = arith.constant dense<0.000000e+00> : vector<8x128xf32>
    %152 = tpu.matmul %126, %51, %cst_59 {dimension_numbers = #tpu.dot_dimension_numbers<[1], [0], [0], [1], [0, 0, 1, 1], [], []>} : vector<8x32xf32>, vector<32x128xf32>, vector<8x128xf32> -> vector<8x128xf32>
    %153 = arith.addf %151, %152 : vector<8x128xf32>
    %154 = arith.negf %153 : vector<8x128xf32>
    %155 = math.exp %154 : vector<8x128xf32>
    %cst_60 = arith.constant 1.000000e+00 : f32
    %156 = vector.broadcast %cst_60 : f32 to vector<8x128xf32>
    %157 = arith.addf %156, %155 : vector<8x128xf32>
    %158 = arith.divf %156, %157 : vector<8x128xf32>
    %159 = vector.extract_strided_slice %158 {offsets = [0, 0], sizes = [8, 32], strides = [1, 1]} : vector<8x128xf32> to vector<8x32xf32>
    %160 = vector.extract_strided_slice %158 {offsets = [0, 32], sizes = [8, 32], strides = [1, 1]} : vector<8x128xf32> to vector<8x32xf32>
    %161 = vector.extract_strided_slice %158 {offsets = [0, 64], sizes = [8, 32], strides = [1, 1]} : vector<8x128xf32> to vector<8x32xf32>
    %cst_61 = arith.constant 2.000000e+00 : f32
    %162 = vector.broadcast %cst_61 : f32 to vector<8x32xf32>
    %163 = arith.mulf %162, %161 : vector<8x32xf32>
    %cst_62 = arith.constant 1.000000e+00 : f32
    %164 = vector.broadcast %cst_62 : f32 to vector<8x32xf32>
    %165 = arith.subf %163, %164 : vector<8x32xf32>
    %166 = vector.extract_strided_slice %158 {offsets = [0, 96], sizes = [8, 32], strides = [1, 1]} : vector<8x128xf32> to vector<8x32xf32>
    %167 = arith.mulf %160, %124 : vector<8x32xf32>
    %168 = arith.mulf %159, %165 : vector<8x32xf32>
    %169 = arith.addf %167, %168 : vector<8x32xf32>
    %170 = math.tanh %169 : vector<8x32xf32>
    %171 = arith.mulf %166, %170 : vector<8x32xf32>
    %c16 = arith.constant 16 : index
    %c0_63 = arith.constant 0 : index
    %172 = vector.load %arg15[%c16, %c0_63] : memref<128x64xf32, #tpu.memory_space<vmem>>, vector<8x32xf32>
    tpu.vector_store %arg15[%c16, %c0_63], %171 {strides = array<i32>} : memref<128x64xf32, #tpu.memory_space<vmem>>, vector<8x32xf32>,
    %cst_64 = arith.constant dense<0.000000e+00> : vector<8x128xf32>
    %173 = tpu.matmul %171, %52, %cst_64 {dimension_numbers = #tpu.dot_dimension_numbers<[1], [0], [0], [1], [0, 0, 1, 1], [], []>} : vector<8x32xf32>, vector<32x128xf32>, vector<8x128xf32> -> vector<8x128xf32>
    %cst_65 = arith.constant dense<0.000000e+00> : vector<8x128xf32>
    %174 = tpu.matmul %149, %53, %cst_65 {dimension_numbers = #tpu.dot_dimension_numbers<[1], [0], [0], [1], [0, 0, 1, 1], [], []>} : vector<8x32xf32>, vector<32x128xf32>, vector<8x128xf32> -> vector<8x128xf32>
    %175 = arith.addf %173, %174 : vector<8x128xf32>
    %176 = arith.addf %175, %56 : vector<8x128xf32>
    %177 = arith.negf %176 : vector<8x128xf32>
    %178 = math.exp %177 : vector<8x128xf32>
    %cst_66 = arith.constant 1.000000e+00 : f32
    %179 = vector.broadcast %cst_66 : f32 to vector<8x128xf32>
    %180 = arith.addf %179, %178 : vector<8x128xf32>
    %181 = arith.divf %179, %180 : vector<8x128xf32>
    %182 = vector.extract_strided_slice %181 {offsets = [0, 0], sizes = [8, 32], strides = [1, 1]} : vector<8x128xf32> to vector<8x32xf32>
    %183 = vector.extract_strided_slice %181 {offsets = [0, 32], sizes = [8, 32], strides = [1, 1]} : vector<8x128xf32> to vector<8x32xf32>
    %184 = vector.extract_strided_slice %181 {offsets = [0, 64], sizes = [8, 32], strides = [1, 1]} : vector<8x128xf32> to vector<8x32xf32>
    %cst_67 = arith.constant 2.000000e+00 : f32
    %185 = vector.broadcast %cst_67 : f32 to vector<8x32xf32>
    %186 = arith.mulf %185, %184 : vector<8x32xf32>
    %cst_68 = arith.constant 1.000000e+00 : f32
    %187 = vector.broadcast %cst_68 : f32 to vector<8x32xf32>
    %188 = arith.subf %186, %187 : vector<8x32xf32>
    %189 = vector.extract_strided_slice %181 {offsets = [0, 96], sizes = [8, 32], strides = [1, 1]} : vector<8x128xf32> to vector<8x32xf32>
    %190 = arith.mulf %183, %147 : vector<8x32xf32>
    %191 = arith.mulf %182, %188 : vector<8x32xf32>
    %192 = arith.addf %190, %191 : vector<8x32xf32>
    %193 = math.tanh %192 : vector<8x32xf32>
    %194 = arith.mulf %189, %193 : vector<8x32xf32>
    %c16_69 = arith.constant 16 : index
    %c32_70 = arith.constant 32 : index
    %195 = vector.load %arg15[%c16_69, %c32_70] : memref<128x64xf32, #tpu.memory_space<vmem>>, vector<8x32xf32>
    tpu.vector_store %arg15[%c16_69, %c32_70], %194 {strides = array<i32>} : memref<128x64xf32, #tpu.memory_space<vmem>>, vector<8x32xf32>,
    %196 = vector.extract_strided_slice %50 {offsets = [24, 0], sizes = [8, 128], strides = [1, 1]} : vector<128x128xf32> to vector<8x128xf32>
    %cst_71 = arith.constant dense<0.000000e+00> : vector<8x128xf32>
    %197 = tpu.matmul %171, %51, %cst_71 {dimension_numbers = #tpu.dot_dimension_numbers<[1], [0], [0], [1], [0, 0, 1, 1], [], []>} : vector<8x32xf32>, vector<32x128xf32>, vector<8x128xf32> -> vector<8x128xf32>
    %198 = arith.addf %196, %197 : vector<8x128xf32>
    %199 = arith.negf %198 : vector<8x128xf32>
    %200 = math.exp %199 : vector<8x128xf32>
    %cst_72 = arith.constant 1.000000e+00 : f32
    %201 = vector.broadcast %cst_72 : f32 to vector<8x128xf32>
    %202 = arith.addf %201, %200 : vector<8x128xf32>
    %203 = arith.divf %201, %202 : vector<8x128xf32>
    %204 = vector.extract_strided_slice %203 {offsets = [0, 0], sizes = [8, 32], strides = [1, 1]} : vector<8x128xf32> to vector<8x32xf32>
    %205 = vector.extract_strided_slice %203 {offsets = [0, 32], sizes = [8, 32], strides = [1, 1]} : vector<8x128xf32> to vector<8x32xf32>
    %206 = vector.extract_strided_slice %203 {offsets = [0, 64], sizes = [8, 32], strides = [1, 1]} : vector<8x128xf32> to vector<8x32xf32>
    %cst_73 = arith.constant 2.000000e+00 : f32
    %207 = vector.broadcast %cst_73 : f32 to vector<8x32xf32>
    %208 = arith.mulf %207, %206 : vector<8x32xf32>
    %cst_74 = arith.constant 1.000000e+00 : f32
    %209 = vector.broadcast %cst_74 : f32 to vector<8x32xf32>
    %210 = arith.subf %208, %209 : vector<8x32xf32>
    %211 = vector.extract_strided_slice %203 {offsets = [0, 96], sizes = [8, 32], strides = [1, 1]} : vector<8x128xf32> to vector<8x32xf32>
    %212 = arith.mulf %205, %169 : vector<8x32xf32>
    %213 = arith.mulf %204, %210 : vector<8x32xf32>
    %214 = arith.addf %212, %213 : vector<8x32xf32>
    %215 = math.tanh %214 : vector<8x32xf32>
    %216 = arith.mulf %211, %215 : vector<8x32xf32>
    %c24 = arith.constant 24 : index
    %c0_75 = arith.constant 0 : index
    %217 = vector.load %arg15[%c24, %c0_75] : memref<128x64xf32, #tpu.memory_space<vmem>>, vector<8x32xf32>
    tpu.vector_store %arg15[%c24, %c0_75], %216 {strides = array<i32>} : memref<128x64xf32, #tpu.memory_space<vmem>>, vector<8x32xf32>,
    %cst_76 = arith.constant dense<0.000000e+00> : vector<8x128xf32>
    %218 = tpu.matmul %216, %52, %cst_76 {dimension_numbers = #tpu.dot_dimension_numbers<[1], [0], [0], [1], [0, 0, 1, 1], [], []>} : vector<8x32xf32>, vector<32x128xf32>, vector<8x128xf32> -> vector<8x128xf32>
    %cst_77 = arith.constant dense<0.000000e+00> : vector<8x128xf32>
    %219 = tpu.matmul %194, %53, %cst_77 {dimension_numbers = #tpu.dot_dimension_numbers<[1], [0], [0], [1], [0, 0, 1, 1], [], []>} : vector<8x32xf32>, vector<32x128xf32>, vector<8x128xf32> -> vector<8x128xf32>
    %220 = arith.addf %218, %219 : vector<8x128xf32>
    %221 = arith.addf %220, %56 : vector<8x128xf32>
    %222 = arith.negf %221 : vector<8x128xf32>
    %223 = math.exp %222 : vector<8x128xf32>
    %cst_78 = arith.constant 1.000000e+00 : f32
    %224 = vector.broadcast %cst_78 : f32 to vector<8x128xf32>
    %225 = arith.addf %224, %223 : vector<8x128xf32>
    %226 = arith.divf %224, %225 : vector<8x128xf32>
    %227 = vector.extract_strided_slice %226 {offsets = [0, 0], sizes = [8, 32], strides = [1, 1]} : vector<8x128xf32> to vector<8x32xf32>
    %228 = vector.extract_strided_slice %226 {offsets = [0, 32], sizes = [8, 32], strides = [1, 1]} : vector<8x128xf32> to vector<8x32xf32>
    %229 = vector.extract_strided_slice %226 {offsets = [0, 64], sizes = [8, 32], strides = [1, 1]} : vector<8x128xf32> to vector<8x32xf32>
    %cst_79 = arith.constant 2.000000e+00 : f32
    %230 = vector.broadcast %cst_79 : f32 to vector<8x32xf32>
    %231 = arith.mulf %230, %229 : vector<8x32xf32>
    %cst_80 = arith.constant 1.000000e+00 : f32
    %232 = vector.broadcast %cst_80 : f32 to vector<8x32xf32>
    %233 = arith.subf %231, %232 : vector<8x32xf32>
    %234 = vector.extract_strided_slice %226 {offsets = [0, 96], sizes = [8, 32], strides = [1, 1]} : vector<8x128xf32> to vector<8x32xf32>
    %235 = arith.mulf %228, %192 : vector<8x32xf32>
    %236 = arith.mulf %227, %233 : vector<8x32xf32>
    %237 = arith.addf %235, %236 : vector<8x32xf32>
    %238 = math.tanh %237 : vector<8x32xf32>
    %239 = arith.mulf %234, %238 : vector<8x32xf32>
    %c24_81 = arith.constant 24 : index
    %c32_82 = arith.constant 32 : index
    %240 = vector.load %arg15[%c24_81, %c32_82] : memref<128x64xf32, #tpu.memory_space<vmem>>, vector<8x32xf32>
    tpu.vector_store %arg15[%c24_81, %c32_82], %239 {strides = array<i32>} : memref<128x64xf32, #tpu.memory_space<vmem>>, vector<8x32xf32>,
    %241 = vector.extract_strided_slice %50 {offsets = [32, 0], sizes = [8, 128], strides = [1, 1]} : vector<128x128xf32> to vector<8x128xf32>
    %cst_83 = arith.constant dense<0.000000e+00> : vector<8x128xf32>
    %242 = tpu.matmul %216, %51, %cst_83 {dimension_numbers = #tpu.dot_dimension_numbers<[1], [0], [0], [1], [0, 0, 1, 1], [], []>} : vector<8x32xf32>, vector<32x128xf32>, vector<8x128xf32> -> vector<8x128xf32>
    %243 = arith.addf %241, %242 : vector<8x128xf32>
    %244 = arith.negf %243 : vector<8x128xf32>
    %245 = math.exp %244 : vector<8x128xf32>
    %cst_84 = arith.constant 1.000000e+00 : f32
    %246 = vector.broadcast %cst_84 : f32 to vector<8x128xf32>
    %247 = arith.addf %246, %245 : vector<8x128xf32>
    %248 = arith.divf %246, %247 : vector<8x128xf32>
    %249 = vector.extract_strided_slice %248 {offsets = [0, 0], sizes = [8, 32], strides = [1, 1]} : vector<8x128xf32> to vector<8x32xf32>
    %250 = vector.extract_strided_slice %248 {offsets = [0, 32], sizes = [8, 32], strides = [1, 1]} : vector<8x128xf32> to vector<8x32xf32>
    %251 = vector.extract_strided_slice %248 {offsets = [0, 64], sizes = [8, 32], strides = [1, 1]} : vector<8x128xf32> to vector<8x32xf32>
    %cst_85 = arith.constant 2.000000e+00 : f32
    %252 = vector.broadcast %cst_85 : f32 to vector<8x32xf32>
    %253 = arith.mulf %252, %251 : vector<8x32xf32>
    %cst_86 = arith.constant 1.000000e+00 : f32
    %254 = vector.broadcast %cst_86 : f32 to vector<8x32xf32>
    %255 = arith.subf %253, %254 : vector<8x32xf32>
    %256 = vector.extract_strided_slice %248 {offsets = [0, 96], sizes = [8, 32], strides = [1, 1]} : vector<8x128xf32> to vector<8x32xf32>
    %257 = arith.mulf %250, %214 : vector<8x32xf32>
    %258 = arith.mulf %249, %255 : vector<8x32xf32>
    %259 = arith.addf %257, %258 : vector<8x32xf32>
    %260 = math.tanh %259 : vector<8x32xf32>
    %261 = arith.mulf %256, %260 : vector<8x32xf32>
    %c32_87 = arith.constant 32 : index
    %c0_88 = arith.constant 0 : index
    %262 = vector.load %arg15[%c32_87, %c0_88] : memref<128x64xf32, #tpu.memory_space<vmem>>, vector<8x32xf32>
    tpu.vector_store %arg15[%c32_87, %c0_88], %261 {strides = array<i32>} : memref<128x64xf32, #tpu.memory_space<vmem>>, vector<8x32xf32>,
    %cst_89 = arith.constant dense<0.000000e+00> : vector<8x128xf32>
    %263 = tpu.matmul %261, %52, %cst_89 {dimension_numbers = #tpu.dot_dimension_numbers<[1], [0], [0], [1], [0, 0, 1, 1], [], []>} : vector<8x32xf32>, vector<32x128xf32>, vector<8x128xf32> -> vector<8x128xf32>
    %cst_90 = arith.constant dense<0.000000e+00> : vector<8x128xf32>
    %264 = tpu.matmul %239, %53, %cst_90 {dimension_numbers = #tpu.dot_dimension_numbers<[1], [0], [0], [1], [0, 0, 1, 1], [], []>} : vector<8x32xf32>, vector<32x128xf32>, vector<8x128xf32> -> vector<8x128xf32>
    %265 = arith.addf %263, %264 : vector<8x128xf32>
    %266 = arith.addf %265, %56 : vector<8x128xf32>
    %267 = arith.negf %266 : vector<8x128xf32>
    %268 = math.exp %267 : vector<8x128xf32>
    %cst_91 = arith.constant 1.000000e+00 : f32
    %269 = vector.broadcast %cst_91 : f32 to vector<8x128xf32>
    %270 = arith.addf %269, %268 : vector<8x128xf32>
    %271 = arith.divf %269, %270 : vector<8x128xf32>
    %272 = vector.extract_strided_slice %271 {offsets = [0, 0], sizes = [8, 32], strides = [1, 1]} : vector<8x128xf32> to vector<8x32xf32>
    %273 = vector.extract_strided_slice %271 {offsets = [0, 32], sizes = [8, 32], strides = [1, 1]} : vector<8x128xf32> to vector<8x32xf32>
    %274 = vector.extract_strided_slice %271 {offsets = [0, 64], sizes = [8, 32], strides = [1, 1]} : vector<8x128xf32> to vector<8x32xf32>
    %cst_92 = arith.constant 2.000000e+00 : f32
    %275 = vector.broadcast %cst_92 : f32 to vector<8x32xf32>
    %276 = arith.mulf %275, %274 : vector<8x32xf32>
    %cst_93 = arith.constant 1.000000e+00 : f32
    %277 = vector.broadcast %cst_93 : f32 to vector<8x32xf32>
    %278 = arith.subf %276, %277 : vector<8x32xf32>
    %279 = vector.extract_strided_slice %271 {offsets = [0, 96], sizes = [8, 32], strides = [1, 1]} : vector<8x128xf32> to vector<8x32xf32>
    %280 = arith.mulf %273, %237 : vector<8x32xf32>
    %281 = arith.mulf %272, %278 : vector<8x32xf32>
    %282 = arith.addf %280, %281 : vector<8x32xf32>
    %283 = math.tanh %282 : vector<8x32xf32>
    %284 = arith.mulf %279, %283 : vector<8x32xf32>
    %c32_94 = arith.constant 32 : index
    %c32_95 = arith.constant 32 : index
    %285 = vector.load %arg15[%c32_94, %c32_95] : memref<128x64xf32, #tpu.memory_space<vmem>>, vector<8x32xf32>
    tpu.vector_store %arg15[%c32_94, %c32_95], %284 {strides = array<i32>} : memref<128x64xf32, #tpu.memory_space<vmem>>, vector<8x32xf32>,
    %286 = vector.extract_strided_slice %50 {offsets = [40, 0], sizes = [8, 128], strides = [1, 1]} : vector<128x128xf32> to vector<8x128xf32>
    %cst_96 = arith.constant dense<0.000000e+00> : vector<8x128xf32>
    %287 = tpu.matmul %261, %51, %cst_96 {dimension_numbers = #tpu.dot_dimension_numbers<[1], [0], [0], [1], [0, 0, 1, 1], [], []>} : vector<8x32xf32>, vector<32x128xf32>, vector<8x128xf32> -> vector<8x128xf32>
    %288 = arith.addf %286, %287 : vector<8x128xf32>
    %289 = arith.negf %288 : vector<8x128xf32>
    %290 = math.exp %289 : vector<8x128xf32>
    %cst_97 = arith.constant 1.000000e+00 : f32
    %291 = vector.broadcast %cst_97 : f32 to vector<8x128xf32>
    %292 = arith.addf %291, %290 : vector<8x128xf32>
    %293 = arith.divf %291, %292 : vector<8x128xf32>
    %294 = vector.extract_strided_slice %293 {offsets = [0, 0], sizes = [8, 32], strides = [1, 1]} : vector<8x128xf32> to vector<8x32xf32>
    %295 = vector.extract_strided_slice %293 {offsets = [0, 32], sizes = [8, 32], strides = [1, 1]} : vector<8x128xf32> to vector<8x32xf32>
    %296 = vector.extract_strided_slice %293 {offsets = [0, 64], sizes = [8, 32], strides = [1, 1]} : vector<8x128xf32> to vector<8x32xf32>
    %cst_98 = arith.constant 2.000000e+00 : f32
    %297 = vector.broadcast %cst_98 : f32 to vector<8x32xf32>
    %298 = arith.mulf %297, %296 : vector<8x32xf32>
    %cst_99 = arith.constant 1.000000e+00 : f32
    %299 = vector.broadcast %cst_99 : f32 to vector<8x32xf32>
    %300 = arith.subf %298, %299 : vector<8x32xf32>
    %301 = vector.extract_strided_slice %293 {offsets = [0, 96], sizes = [8, 32], strides = [1, 1]} : vector<8x128xf32> to vector<8x32xf32>
    %302 = arith.mulf %295, %259 : vector<8x32xf32>
    %303 = arith.mulf %294, %300 : vector<8x32xf32>
    %304 = arith.addf %302, %303 : vector<8x32xf32>
    %305 = math.tanh %304 : vector<8x32xf32>
    %306 = arith.mulf %301, %305 : vector<8x32xf32>
    %c40 = arith.constant 40 : index
    %c0_100 = arith.constant 0 : index
    %307 = vector.load %arg15[%c40, %c0_100] : memref<128x64xf32, #tpu.memory_space<vmem>>, vector<8x32xf32>
    tpu.vector_store %arg15[%c40, %c0_100], %306 {strides = array<i32>} : memref<128x64xf32, #tpu.memory_space<vmem>>, vector<8x32xf32>,
    %cst_101 = arith.constant dense<0.000000e+00> : vector<8x128xf32>
    %308 = tpu.matmul %306, %52, %cst_101 {dimension_numbers = #tpu.dot_dimension_numbers<[1], [0], [0], [1], [0, 0, 1, 1], [], []>} : vector<8x32xf32>, vector<32x128xf32>, vector<8x128xf32> -> vector<8x128xf32>
    %cst_102 = arith.constant dense<0.000000e+00> : vector<8x128xf32>
    %309 = tpu.matmul %284, %53, %cst_102 {dimension_numbers = #tpu.dot_dimension_numbers<[1], [0], [0], [1], [0, 0, 1, 1], [], []>} : vector<8x32xf32>, vector<32x128xf32>, vector<8x128xf32> -> vector<8x128xf32>
    %310 = arith.addf %308, %309 : vector<8x128xf32>
    %311 = arith.addf %310, %56 : vector<8x128xf32>
    %312 = arith.negf %311 : vector<8x128xf32>
    %313 = math.exp %312 : vector<8x128xf32>
    %cst_103 = arith.constant 1.000000e+00 : f32
    %314 = vector.broadcast %cst_103 : f32 to vector<8x128xf32>
    %315 = arith.addf %314, %313 : vector<8x128xf32>
    %316 = arith.divf %314, %315 : vector<8x128xf32>
    %317 = vector.extract_strided_slice %316 {offsets = [0, 0], sizes = [8, 32], strides = [1, 1]} : vector<8x128xf32> to vector<8x32xf32>
    %318 = vector.extract_strided_slice %316 {offsets = [0, 32], sizes = [8, 32], strides = [1, 1]} : vector<8x128xf32> to vector<8x32xf32>
    %319 = vector.extract_strided_slice %316 {offsets = [0, 64], sizes = [8, 32], strides = [1, 1]} : vector<8x128xf32> to vector<8x32xf32>
    %cst_104 = arith.constant 2.000000e+00 : f32
    %320 = vector.broadcast %cst_104 : f32 to vector<8x32xf32>
    %321 = arith.mulf %320, %319 : vector<8x32xf32>
    %cst_105 = arith.constant 1.000000e+00 : f32
    %322 = vector.broadcast %cst_105 : f32 to vector<8x32xf32>
    %323 = arith.subf %321, %322 : vector<8x32xf32>
    %324 = vector.extract_strided_slice %316 {offsets = [0, 96], sizes = [8, 32], strides = [1, 1]} : vector<8x128xf32> to vector<8x32xf32>
    %325 = arith.mulf %318, %282 : vector<8x32xf32>
    %326 = arith.mulf %317, %323 : vector<8x32xf32>
    %327 = arith.addf %325, %326 : vector<8x32xf32>
    %328 = math.tanh %327 : vector<8x32xf32>
    %329 = arith.mulf %324, %328 : vector<8x32xf32>
    %c40_106 = arith.constant 40 : index
    %c32_107 = arith.constant 32 : index
    %330 = vector.load %arg15[%c40_106, %c32_107] : memref<128x64xf32, #tpu.memory_space<vmem>>, vector<8x32xf32>
    tpu.vector_store %arg15[%c40_106, %c32_107], %329 {strides = array<i32>} : memref<128x64xf32, #tpu.memory_space<vmem>>, vector<8x32xf32>,
    %331 = vector.extract_strided_slice %50 {offsets = [48, 0], sizes = [8, 128], strides = [1, 1]} : vector<128x128xf32> to vector<8x128xf32>
    %cst_108 = arith.constant dense<0.000000e+00> : vector<8x128xf32>
    %332 = tpu.matmul %306, %51, %cst_108 {dimension_numbers = #tpu.dot_dimension_numbers<[1], [0], [0], [1], [0, 0, 1, 1], [], []>} : vector<8x32xf32>, vector<32x128xf32>, vector<8x128xf32> -> vector<8x128xf32>
    %333 = arith.addf %331, %332 : vector<8x128xf32>
    %334 = arith.negf %333 : vector<8x128xf32>
    %335 = math.exp %334 : vector<8x128xf32>
    %cst_109 = arith.constant 1.000000e+00 : f32
    %336 = vector.broadcast %cst_109 : f32 to vector<8x128xf32>
    %337 = arith.addf %336, %335 : vector<8x128xf32>
    %338 = arith.divf %336, %337 : vector<8x128xf32>
    %339 = vector.extract_strided_slice %338 {offsets = [0, 0], sizes = [8, 32], strides = [1, 1]} : vector<8x128xf32> to vector<8x32xf32>
    %340 = vector.extract_strided_slice %338 {offsets = [0, 32], sizes = [8, 32], strides = [1, 1]} : vector<8x128xf32> to vector<8x32xf32>
    %341 = vector.extract_strided_slice %338 {offsets = [0, 64], sizes = [8, 32], strides = [1, 1]} : vector<8x128xf32> to vector<8x32xf32>
    %cst_110 = arith.constant 2.000000e+00 : f32
    %342 = vector.broadcast %cst_110 : f32 to vector<8x32xf32>
    %343 = arith.mulf %342, %341 : vector<8x32xf32>
    %cst_111 = arith.constant 1.000000e+00 : f32
    %344 = vector.broadcast %cst_111 : f32 to vector<8x32xf32>
    %345 = arith.subf %343, %344 : vector<8x32xf32>
    %346 = vector.extract_strided_slice %338 {offsets = [0, 96], sizes = [8, 32], strides = [1, 1]} : vector<8x128xf32> to vector<8x32xf32>
    %347 = arith.mulf %340, %304 : vector<8x32xf32>
    %348 = arith.mulf %339, %345 : vector<8x32xf32>
    %349 = arith.addf %347, %348 : vector<8x32xf32>
    %350 = math.tanh %349 : vector<8x32xf32>
    %351 = arith.mulf %346, %350 : vector<8x32xf32>
    %c48 = arith.constant 48 : index
    %c0_112 = arith.constant 0 : index
    %352 = vector.load %arg15[%c48, %c0_112] : memref<128x64xf32, #tpu.memory_space<vmem>>, vector<8x32xf32>
    tpu.vector_store %arg15[%c48, %c0_112], %351 {strides = array<i32>} : memref<128x64xf32, #tpu.memory_space<vmem>>, vector<8x32xf32>,
    %cst_113 = arith.constant dense<0.000000e+00> : vector<8x128xf32>
    %353 = tpu.matmul %351, %52, %cst_113 {dimension_numbers = #tpu.dot_dimension_numbers<[1], [0], [0], [1], [0, 0, 1, 1], [], []>} : vector<8x32xf32>, vector<32x128xf32>, vector<8x128xf32> -> vector<8x128xf32>
    %cst_114 = arith.constant dense<0.000000e+00> : vector<8x128xf32>
    %354 = tpu.matmul %329, %53, %cst_114 {dimension_numbers = #tpu.dot_dimension_numbers<[1], [0], [0], [1], [0, 0, 1, 1], [], []>} : vector<8x32xf32>, vector<32x128xf32>, vector<8x128xf32> -> vector<8x128xf32>
    %355 = arith.addf %353, %354 : vector<8x128xf32>
    %356 = arith.addf %355, %56 : vector<8x128xf32>
    %357 = arith.negf %356 : vector<8x128xf32>
    %358 = math.exp %357 : vector<8x128xf32>
    %cst_115 = arith.constant 1.000000e+00 : f32
    %359 = vector.broadcast %cst_115 : f32 to vector<8x128xf32>
    %360 = arith.addf %359, %358 : vector<8x128xf32>
    %361 = arith.divf %359, %360 : vector<8x128xf32>
    %362 = vector.extract_strided_slice %361 {offsets = [0, 0], sizes = [8, 32], strides = [1, 1]} : vector<8x128xf32> to vector<8x32xf32>
    %363 = vector.extract_strided_slice %361 {offsets = [0, 32], sizes = [8, 32], strides = [1, 1]} : vector<8x128xf32> to vector<8x32xf32>
    %364 = vector.extract_strided_slice %361 {offsets = [0, 64], sizes = [8, 32], strides = [1, 1]} : vector<8x128xf32> to vector<8x32xf32>
    %cst_116 = arith.constant 2.000000e+00 : f32
    %365 = vector.broadcast %cst_116 : f32 to vector<8x32xf32>
    %366 = arith.mulf %365, %364 : vector<8x32xf32>
    %cst_117 = arith.constant 1.000000e+00 : f32
    %367 = vector.broadcast %cst_117 : f32 to vector<8x32xf32>
    %368 = arith.subf %366, %367 : vector<8x32xf32>
    %369 = vector.extract_strided_slice %361 {offsets = [0, 96], sizes = [8, 32], strides = [1, 1]} : vector<8x128xf32> to vector<8x32xf32>
    %370 = arith.mulf %363, %327 : vector<8x32xf32>
    %371 = arith.mulf %362, %368 : vector<8x32xf32>
    %372 = arith.addf %370, %371 : vector<8x32xf32>
    %373 = math.tanh %372 : vector<8x32xf32>
    %374 = arith.mulf %369, %373 : vector<8x32xf32>
    %c48_118 = arith.constant 48 : index
    %c32_119 = arith.constant 32 : index
    %375 = vector.load %arg15[%c48_118, %c32_119] : memref<128x64xf32, #tpu.memory_space<vmem>>, vector<8x32xf32>
    tpu.vector_store %arg15[%c48_118, %c32_119], %374 {strides = array<i32>} : memref<128x64xf32, #tpu.memory_space<vmem>>, vector<8x32xf32>,
    %376 = vector.extract_strided_slice %50 {offsets = [56, 0], sizes = [8, 128], strides = [1, 1]} : vector<128x128xf32> to vector<8x128xf32>
    %cst_120 = arith.constant dense<0.000000e+00> : vector<8x128xf32>
    %377 = tpu.matmul %351, %51, %cst_120 {dimension_numbers = #tpu.dot_dimension_numbers<[1], [0], [0], [1], [0, 0, 1, 1], [], []>} : vector<8x32xf32>, vector<32x128xf32>, vector<8x128xf32> -> vector<8x128xf32>
    %378 = arith.addf %376, %377 : vector<8x128xf32>
    %379 = arith.negf %378 : vector<8x128xf32>
    %380 = math.exp %379 : vector<8x128xf32>
    %cst_121 = arith.constant 1.000000e+00 : f32
    %381 = vector.broadcast %cst_121 : f32 to vector<8x128xf32>
    %382 = arith.addf %381, %380 : vector<8x128xf32>
    %383 = arith.divf %381, %382 : vector<8x128xf32>
    %384 = vector.extract_strided_slice %383 {offsets = [0, 0], sizes = [8, 32], strides = [1, 1]} : vector<8x128xf32> to vector<8x32xf32>
    %385 = vector.extract_strided_slice %383 {offsets = [0, 32], sizes = [8, 32], strides = [1, 1]} : vector<8x128xf32> to vector<8x32xf32>
    %386 = vector.extract_strided_slice %383 {offsets = [0, 64], sizes = [8, 32], strides = [1, 1]} : vector<8x128xf32> to vector<8x32xf32>
    %cst_122 = arith.constant 2.000000e+00 : f32
    %387 = vector.broadcast %cst_122 : f32 to vector<8x32xf32>
    %388 = arith.mulf %387, %386 : vector<8x32xf32>
    %cst_123 = arith.constant 1.000000e+00 : f32
    %389 = vector.broadcast %cst_123 : f32 to vector<8x32xf32>
    %390 = arith.subf %388, %389 : vector<8x32xf32>
    %391 = vector.extract_strided_slice %383 {offsets = [0, 96], sizes = [8, 32], strides = [1, 1]} : vector<8x128xf32> to vector<8x32xf32>
    %392 = arith.mulf %385, %349 : vector<8x32xf32>
    %393 = arith.mulf %384, %390 : vector<8x32xf32>
    %394 = arith.addf %392, %393 : vector<8x32xf32>
    %395 = math.tanh %394 : vector<8x32xf32>
    %396 = arith.mulf %391, %395 : vector<8x32xf32>
    %c56 = arith.constant 56 : index
    %c0_124 = arith.constant 0 : index
    %397 = vector.load %arg15[%c56, %c0_124] : memref<128x64xf32, #tpu.memory_space<vmem>>, vector<8x32xf32>
    tpu.vector_store %arg15[%c56, %c0_124], %396 {strides = array<i32>} : memref<128x64xf32, #tpu.memory_space<vmem>>, vector<8x32xf32>,
    %cst_125 = arith.constant dense<0.000000e+00> : vector<8x128xf32>
    %398 = tpu.matmul %396, %52, %cst_125 {dimension_numbers = #tpu.dot_dimension_numbers<[1], [0], [0], [1], [0, 0, 1, 1], [], []>} : vector<8x32xf32>, vector<32x128xf32>, vector<8x128xf32> -> vector<8x128xf32>
    %cst_126 = arith.constant dense<0.000000e+00> : vector<8x128xf32>
    %399 = tpu.matmul %374, %53, %cst_126 {dimension_numbers = #tpu.dot_dimension_numbers<[1], [0], [0], [1], [0, 0, 1, 1], [], []>} : vector<8x32xf32>, vector<32x128xf32>, vector<8x128xf32> -> vector<8x128xf32>
    %400 = arith.addf %398, %399 : vector<8x128xf32>
    %401 = arith.addf %400, %56 : vector<8x128xf32>
    %402 = arith.negf %401 : vector<8x128xf32>
    %403 = math.exp %402 : vector<8x128xf32>
    %cst_127 = arith.constant 1.000000e+00 : f32
    %404 = vector.broadcast %cst_127 : f32 to vector<8x128xf32>
    %405 = arith.addf %404, %403 : vector<8x128xf32>
    %406 = arith.divf %404, %405 : vector<8x128xf32>
    %407 = vector.extract_strided_slice %406 {offsets = [0, 0], sizes = [8, 32], strides = [1, 1]} : vector<8x128xf32> to vector<8x32xf32>
    %408 = vector.extract_strided_slice %406 {offsets = [0, 32], sizes = [8, 32], strides = [1, 1]} : vector<8x128xf32> to vector<8x32xf32>
    %409 = vector.extract_strided_slice %406 {offsets = [0, 64], sizes = [8, 32], strides = [1, 1]} : vector<8x128xf32> to vector<8x32xf32>
    %cst_128 = arith.constant 2.000000e+00 : f32
    %410 = vector.broadcast %cst_128 : f32 to vector<8x32xf32>
    %411 = arith.mulf %410, %409 : vector<8x32xf32>
    %cst_129 = arith.constant 1.000000e+00 : f32
    %412 = vector.broadcast %cst_129 : f32 to vector<8x32xf32>
    %413 = arith.subf %411, %412 : vector<8x32xf32>
    %414 = vector.extract_strided_slice %406 {offsets = [0, 96], sizes = [8, 32], strides = [1, 1]} : vector<8x128xf32> to vector<8x32xf32>
    %415 = arith.mulf %408, %372 : vector<8x32xf32>
    %416 = arith.mulf %407, %413 : vector<8x32xf32>
    %417 = arith.addf %415, %416 : vector<8x32xf32>
    %418 = math.tanh %417 : vector<8x32xf32>
    %419 = arith.mulf %414, %418 : vector<8x32xf32>
    %c56_130 = arith.constant 56 : index
    %c32_131 = arith.constant 32 : index
    %420 = vector.load %arg15[%c56_130, %c32_131] : memref<128x64xf32, #tpu.memory_space<vmem>>, vector<8x32xf32>
    tpu.vector_store %arg15[%c56_130, %c32_131], %419 {strides = array<i32>} : memref<128x64xf32, #tpu.memory_space<vmem>>, vector<8x32xf32>,
    %421 = vector.extract_strided_slice %50 {offsets = [64, 0], sizes = [8, 128], strides = [1, 1]} : vector<128x128xf32> to vector<8x128xf32>
    %cst_132 = arith.constant dense<0.000000e+00> : vector<8x128xf32>
    %422 = tpu.matmul %396, %51, %cst_132 {dimension_numbers = #tpu.dot_dimension_numbers<[1], [0], [0], [1], [0, 0, 1, 1], [], []>} : vector<8x32xf32>, vector<32x128xf32>, vector<8x128xf32> -> vector<8x128xf32>
    %423 = arith.addf %421, %422 : vector<8x128xf32>
    %424 = arith.negf %423 : vector<8x128xf32>
    %425 = math.exp %424 : vector<8x128xf32>
    %cst_133 = arith.constant 1.000000e+00 : f32
    %426 = vector.broadcast %cst_133 : f32 to vector<8x128xf32>
    %427 = arith.addf %426, %425 : vector<8x128xf32>
    %428 = arith.divf %426, %427 : vector<8x128xf32>
    %429 = vector.extract_strided_slice %428 {offsets = [0, 0], sizes = [8, 32], strides = [1, 1]} : vector<8x128xf32> to vector<8x32xf32>
    %430 = vector.extract_strided_slice %428 {offsets = [0, 32], sizes = [8, 32], strides = [1, 1]} : vector<8x128xf32> to vector<8x32xf32>
    %431 = vector.extract_strided_slice %428 {offsets = [0, 64], sizes = [8, 32], strides = [1, 1]} : vector<8x128xf32> to vector<8x32xf32>
    %cst_134 = arith.constant 2.000000e+00 : f32
    %432 = vector.broadcast %cst_134 : f32 to vector<8x32xf32>
    %433 = arith.mulf %432, %431 : vector<8x32xf32>
    %cst_135 = arith.constant 1.000000e+00 : f32
    %434 = vector.broadcast %cst_135 : f32 to vector<8x32xf32>
    %435 = arith.subf %433, %434 : vector<8x32xf32>
    %436 = vector.extract_strided_slice %428 {offsets = [0, 96], sizes = [8, 32], strides = [1, 1]} : vector<8x128xf32> to vector<8x32xf32>
    %437 = arith.mulf %430, %394 : vector<8x32xf32>
    %438 = arith.mulf %429, %435 : vector<8x32xf32>
    %439 = arith.addf %437, %438 : vector<8x32xf32>
    %440 = math.tanh %439 : vector<8x32xf32>
    %441 = arith.mulf %436, %440 : vector<8x32xf32>
    %c64 = arith.constant 64 : index
    %c0_136 = arith.constant 0 : index
    %442 = vector.load %arg15[%c64, %c0_136] : memref<128x64xf32, #tpu.memory_space<vmem>>, vector<8x32xf32>
    tpu.vector_store %arg15[%c64, %c0_136], %441 {strides = array<i32>} : memref<128x64xf32, #tpu.memory_space<vmem>>, vector<8x32xf32>,
    %cst_137 = arith.constant dense<0.000000e+00> : vector<8x128xf32>
    %443 = tpu.matmul %441, %52, %cst_137 {dimension_numbers = #tpu.dot_dimension_numbers<[1], [0], [0], [1], [0, 0, 1, 1], [], []>} : vector<8x32xf32>, vector<32x128xf32>, vector<8x128xf32> -> vector<8x128xf32>
    %cst_138 = arith.constant dense<0.000000e+00> : vector<8x128xf32>
    %444 = tpu.matmul %419, %53, %cst_138 {dimension_numbers = #tpu.dot_dimension_numbers<[1], [0], [0], [1], [0, 0, 1, 1], [], []>} : vector<8x32xf32>, vector<32x128xf32>, vector<8x128xf32> -> vector<8x128xf32>
    %445 = arith.addf %443, %444 : vector<8x128xf32>
    %446 = arith.addf %445, %56 : vector<8x128xf32>
    %447 = arith.negf %446 : vector<8x128xf32>
    %448 = math.exp %447 : vector<8x128xf32>
    %cst_139 = arith.constant 1.000000e+00 : f32
    %449 = vector.broadcast %cst_139 : f32 to vector<8x128xf32>
    %450 = arith.addf %449, %448 : vector<8x128xf32>
    %451 = arith.divf %449, %450 : vector<8x128xf32>
    %452 = vector.extract_strided_slice %451 {offsets = [0, 0], sizes = [8, 32], strides = [1, 1]} : vector<8x128xf32> to vector<8x32xf32>
    %453 = vector.extract_strided_slice %451 {offsets = [0, 32], sizes = [8, 32], strides = [1, 1]} : vector<8x128xf32> to vector<8x32xf32>
    %454 = vector.extract_strided_slice %451 {offsets = [0, 64], sizes = [8, 32], strides = [1, 1]} : vector<8x128xf32> to vector<8x32xf32>
    %cst_140 = arith.constant 2.000000e+00 : f32
    %455 = vector.broadcast %cst_140 : f32 to vector<8x32xf32>
    %456 = arith.mulf %455, %454 : vector<8x32xf32>
    %cst_141 = arith.constant 1.000000e+00 : f32
    %457 = vector.broadcast %cst_141 : f32 to vector<8x32xf32>
    %458 = arith.subf %456, %457 : vector<8x32xf32>
    %459 = vector.extract_strided_slice %451 {offsets = [0, 96], sizes = [8, 32], strides = [1, 1]} : vector<8x128xf32> to vector<8x32xf32>
    %460 = arith.mulf %453, %417 : vector<8x32xf32>
    %461 = arith.mulf %452, %458 : vector<8x32xf32>
    %462 = arith.addf %460, %461 : vector<8x32xf32>
    %463 = math.tanh %462 : vector<8x32xf32>
    %464 = arith.mulf %459, %463 : vector<8x32xf32>
    %c64_142 = arith.constant 64 : index
    %c32_143 = arith.constant 32 : index
    %465 = vector.load %arg15[%c64_142, %c32_143] : memref<128x64xf32, #tpu.memory_space<vmem>>, vector<8x32xf32>
    tpu.vector_store %arg15[%c64_142, %c32_143], %464 {strides = array<i32>} : memref<128x64xf32, #tpu.memory_space<vmem>>, vector<8x32xf32>,
    %466 = vector.extract_strided_slice %50 {offsets = [72, 0], sizes = [8, 128], strides = [1, 1]} : vector<128x128xf32> to vector<8x128xf32>
    %cst_144 = arith.constant dense<0.000000e+00> : vector<8x128xf32>
    %467 = tpu.matmul %441, %51, %cst_144 {dimension_numbers = #tpu.dot_dimension_numbers<[1], [0], [0], [1], [0, 0, 1, 1], [], []>} : vector<8x32xf32>, vector<32x128xf32>, vector<8x128xf32> -> vector<8x128xf32>
    %468 = arith.addf %466, %467 : vector<8x128xf32>
    %469 = arith.negf %468 : vector<8x128xf32>
    %470 = math.exp %469 : vector<8x128xf32>
    %cst_145 = arith.constant 1.000000e+00 : f32
    %471 = vector.broadcast %cst_145 : f32 to vector<8x128xf32>
    %472 = arith.addf %471, %470 : vector<8x128xf32>
    %473 = arith.divf %471, %472 : vector<8x128xf32>
    %474 = vector.extract_strided_slice %473 {offsets = [0, 0], sizes = [8, 32], strides = [1, 1]} : vector<8x128xf32> to vector<8x32xf32>
    %475 = vector.extract_strided_slice %473 {offsets = [0, 32], sizes = [8, 32], strides = [1, 1]} : vector<8x128xf32> to vector<8x32xf32>
    %476 = vector.extract_strided_slice %473 {offsets = [0, 64], sizes = [8, 32], strides = [1, 1]} : vector<8x128xf32> to vector<8x32xf32>
    %cst_146 = arith.constant 2.000000e+00 : f32
    %477 = vector.broadcast %cst_146 : f32 to vector<8x32xf32>
    %478 = arith.mulf %477, %476 : vector<8x32xf32>
    %cst_147 = arith.constant 1.000000e+00 : f32
    %479 = vector.broadcast %cst_147 : f32 to vector<8x32xf32>
    %480 = arith.subf %478, %479 : vector<8x32xf32>
    %481 = vector.extract_strided_slice %473 {offsets = [0, 96], sizes = [8, 32], strides = [1, 1]} : vector<8x128xf32> to vector<8x32xf32>
    %482 = arith.mulf %475, %439 : vector<8x32xf32>
    %483 = arith.mulf %474, %480 : vector<8x32xf32>
    %484 = arith.addf %482, %483 : vector<8x32xf32>
    %485 = math.tanh %484 : vector<8x32xf32>
    %486 = arith.mulf %481, %485 : vector<8x32xf32>
    %c72 = arith.constant 72 : index
    %c0_148 = arith.constant 0 : index
    %487 = vector.load %arg15[%c72, %c0_148] : memref<128x64xf32, #tpu.memory_space<vmem>>, vector<8x32xf32>
    tpu.vector_store %arg15[%c72, %c0_148], %486 {strides = array<i32>} : memref<128x64xf32, #tpu.memory_space<vmem>>, vector<8x32xf32>,
    %cst_149 = arith.constant dense<0.000000e+00> : vector<8x128xf32>
    %488 = tpu.matmul %486, %52, %cst_149 {dimension_numbers = #tpu.dot_dimension_numbers<[1], [0], [0], [1], [0, 0, 1, 1], [], []>} : vector<8x32xf32>, vector<32x128xf32>, vector<8x128xf32> -> vector<8x128xf32>
    %cst_150 = arith.constant dense<0.000000e+00> : vector<8x128xf32>
    %489 = tpu.matmul %464, %53, %cst_150 {dimension_numbers = #tpu.dot_dimension_numbers<[1], [0], [0], [1], [0, 0, 1, 1], [], []>} : vector<8x32xf32>, vector<32x128xf32>, vector<8x128xf32> -> vector<8x128xf32>
    %490 = arith.addf %488, %489 : vector<8x128xf32>
    %491 = arith.addf %490, %56 : vector<8x128xf32>
    %492 = arith.negf %491 : vector<8x128xf32>
    %493 = math.exp %492 : vector<8x128xf32>
    %cst_151 = arith.constant 1.000000e+00 : f32
    %494 = vector.broadcast %cst_151 : f32 to vector<8x128xf32>
    %495 = arith.addf %494, %493 : vector<8x128xf32>
    %496 = arith.divf %494, %495 : vector<8x128xf32>
    %497 = vector.extract_strided_slice %496 {offsets = [0, 0], sizes = [8, 32], strides = [1, 1]} : vector<8x128xf32> to vector<8x32xf32>
    %498 = vector.extract_strided_slice %496 {offsets = [0, 32], sizes = [8, 32], strides = [1, 1]} : vector<8x128xf32> to vector<8x32xf32>
    %499 = vector.extract_strided_slice %496 {offsets = [0, 64], sizes = [8, 32], strides = [1, 1]} : vector<8x128xf32> to vector<8x32xf32>
    %cst_152 = arith.constant 2.000000e+00 : f32
    %500 = vector.broadcast %cst_152 : f32 to vector<8x32xf32>
    %501 = arith.mulf %500, %499 : vector<8x32xf32>
    %cst_153 = arith.constant 1.000000e+00 : f32
    %502 = vector.broadcast %cst_153 : f32 to vector<8x32xf32>
    %503 = arith.subf %501, %502 : vector<8x32xf32>
    %504 = vector.extract_strided_slice %496 {offsets = [0, 96], sizes = [8, 32], strides = [1, 1]} : vector<8x128xf32> to vector<8x32xf32>
    %505 = arith.mulf %498, %462 : vector<8x32xf32>
    %506 = arith.mulf %497, %503 : vector<8x32xf32>
    %507 = arith.addf %505, %506 : vector<8x32xf32>
    %508 = math.tanh %507 : vector<8x32xf32>
    %509 = arith.mulf %504, %508 : vector<8x32xf32>
    %c72_154 = arith.constant 72 : index
    %c32_155 = arith.constant 32 : index
    %510 = vector.load %arg15[%c72_154, %c32_155] : memref<128x64xf32, #tpu.memory_space<vmem>>, vector<8x32xf32>
    tpu.vector_store %arg15[%c72_154, %c32_155], %509 {strides = array<i32>} : memref<128x64xf32, #tpu.memory_space<vmem>>, vector<8x32xf32>,
    %511 = vector.extract_strided_slice %50 {offsets = [80, 0], sizes = [8, 128], strides = [1, 1]} : vector<128x128xf32> to vector<8x128xf32>
    %cst_156 = arith.constant dense<0.000000e+00> : vector<8x128xf32>
    %512 = tpu.matmul %486, %51, %cst_156 {dimension_numbers = #tpu.dot_dimension_numbers<[1], [0], [0], [1], [0, 0, 1, 1], [], []>} : vector<8x32xf32>, vector<32x128xf32>, vector<8x128xf32> -> vector<8x128xf32>
    %513 = arith.addf %511, %512 : vector<8x128xf32>
    %514 = arith.negf %513 : vector<8x128xf32>
    %515 = math.exp %514 : vector<8x128xf32>
    %cst_157 = arith.constant 1.000000e+00 : f32
    %516 = vector.broadcast %cst_157 : f32 to vector<8x128xf32>
    %517 = arith.addf %516, %515 : vector<8x128xf32>
    %518 = arith.divf %516, %517 : vector<8x128xf32>
    %519 = vector.extract_strided_slice %518 {offsets = [0, 0], sizes = [8, 32], strides = [1, 1]} : vector<8x128xf32> to vector<8x32xf32>
    %520 = vector.extract_strided_slice %518 {offsets = [0, 32], sizes = [8, 32], strides = [1, 1]} : vector<8x128xf32> to vector<8x32xf32>
    %521 = vector.extract_strided_slice %518 {offsets = [0, 64], sizes = [8, 32], strides = [1, 1]} : vector<8x128xf32> to vector<8x32xf32>
    %cst_158 = arith.constant 2.000000e+00 : f32
    %522 = vector.broadcast %cst_158 : f32 to vector<8x32xf32>
    %523 = arith.mulf %522, %521 : vector<8x32xf32>
    %cst_159 = arith.constant 1.000000e+00 : f32
    %524 = vector.broadcast %cst_159 : f32 to vector<8x32xf32>
    %525 = arith.subf %523, %524 : vector<8x32xf32>
    %526 = vector.extract_strided_slice %518 {offsets = [0, 96], sizes = [8, 32], strides = [1, 1]} : vector<8x128xf32> to vector<8x32xf32>
    %527 = arith.mulf %520, %484 : vector<8x32xf32>
    %528 = arith.mulf %519, %525 : vector<8x32xf32>
    %529 = arith.addf %527, %528 : vector<8x32xf32>
    %530 = math.tanh %529 : vector<8x32xf32>
    %531 = arith.mulf %526, %530 : vector<8x32xf32>
    %c80 = arith.constant 80 : index
    %c0_160 = arith.constant 0 : index
    %532 = vector.load %arg15[%c80, %c0_160] : memref<128x64xf32, #tpu.memory_space<vmem>>, vector<8x32xf32>
    tpu.vector_store %arg15[%c80, %c0_160], %531 {strides = array<i32>} : memref<128x64xf32, #tpu.memory_space<vmem>>, vector<8x32xf32>,
    %cst_161 = arith.constant dense<0.000000e+00> : vector<8x128xf32>
    %533 = tpu.matmul %531, %52, %cst_161 {dimension_numbers = #tpu.dot_dimension_numbers<[1], [0], [0], [1], [0, 0, 1, 1], [], []>} : vector<8x32xf32>, vector<32x128xf32>, vector<8x128xf32> -> vector<8x128xf32>
    %cst_162 = arith.constant dense<0.000000e+00> : vector<8x128xf32>
    %534 = tpu.matmul %509, %53, %cst_162 {dimension_numbers = #tpu.dot_dimension_numbers<[1], [0], [0], [1], [0, 0, 1, 1], [], []>} : vector<8x32xf32>, vector<32x128xf32>, vector<8x128xf32> -> vector<8x128xf32>
    %535 = arith.addf %533, %534 : vector<8x128xf32>
    %536 = arith.addf %535, %56 : vector<8x128xf32>
    %537 = arith.negf %536 : vector<8x128xf32>
    %538 = math.exp %537 : vector<8x128xf32>
    %cst_163 = arith.constant 1.000000e+00 : f32
    %539 = vector.broadcast %cst_163 : f32 to vector<8x128xf32>
    %540 = arith.addf %539, %538 : vector<8x128xf32>
    %541 = arith.divf %539, %540 : vector<8x128xf32>
    %542 = vector.extract_strided_slice %541 {offsets = [0, 0], sizes = [8, 32], strides = [1, 1]} : vector<8x128xf32> to vector<8x32xf32>
    %543 = vector.extract_strided_slice %541 {offsets = [0, 32], sizes = [8, 32], strides = [1, 1]} : vector<8x128xf32> to vector<8x32xf32>
    %544 = vector.extract_strided_slice %541 {offsets = [0, 64], sizes = [8, 32], strides = [1, 1]} : vector<8x128xf32> to vector<8x32xf32>
    %cst_164 = arith.constant 2.000000e+00 : f32
    %545 = vector.broadcast %cst_164 : f32 to vector<8x32xf32>
    %546 = arith.mulf %545, %544 : vector<8x32xf32>
    %cst_165 = arith.constant 1.000000e+00 : f32
    %547 = vector.broadcast %cst_165 : f32 to vector<8x32xf32>
    %548 = arith.subf %546, %547 : vector<8x32xf32>
    %549 = vector.extract_strided_slice %541 {offsets = [0, 96], sizes = [8, 32], strides = [1, 1]} : vector<8x128xf32> to vector<8x32xf32>
    %550 = arith.mulf %543, %507 : vector<8x32xf32>
    %551 = arith.mulf %542, %548 : vector<8x32xf32>
    %552 = arith.addf %550, %551 : vector<8x32xf32>
    %553 = math.tanh %552 : vector<8x32xf32>
    %554 = arith.mulf %549, %553 : vector<8x32xf32>
    %c80_166 = arith.constant 80 : index
    %c32_167 = arith.constant 32 : index
    %555 = vector.load %arg15[%c80_166, %c32_167] : memref<128x64xf32, #tpu.memory_space<vmem>>, vector<8x32xf32>
    tpu.vector_store %arg15[%c80_166, %c32_167], %554 {strides = array<i32>} : memref<128x64xf32, #tpu.memory_space<vmem>>, vector<8x32xf32>,
    %556 = vector.extract_strided_slice %50 {offsets = [88, 0], sizes = [8, 128], strides = [1, 1]} : vector<128x128xf32> to vector<8x128xf32>
    %cst_168 = arith.constant dense<0.000000e+00> : vector<8x128xf32>
    %557 = tpu.matmul %531, %51, %cst_168 {dimension_numbers = #tpu.dot_dimension_numbers<[1], [0], [0], [1], [0, 0, 1, 1], [], []>} : vector<8x32xf32>, vector<32x128xf32>, vector<8x128xf32> -> vector<8x128xf32>
    %558 = arith.addf %556, %557 : vector<8x128xf32>
    %559 = arith.negf %558 : vector<8x128xf32>
    %560 = math.exp %559 : vector<8x128xf32>
    %cst_169 = arith.constant 1.000000e+00 : f32
    %561 = vector.broadcast %cst_169 : f32 to vector<8x128xf32>
    %562 = arith.addf %561, %560 : vector<8x128xf32>
    %563 = arith.divf %561, %562 : vector<8x128xf32>
    %564 = vector.extract_strided_slice %563 {offsets = [0, 0], sizes = [8, 32], strides = [1, 1]} : vector<8x128xf32> to vector<8x32xf32>
    %565 = vector.extract_strided_slice %563 {offsets = [0, 32], sizes = [8, 32], strides = [1, 1]} : vector<8x128xf32> to vector<8x32xf32>
    %566 = vector.extract_strided_slice %563 {offsets = [0, 64], sizes = [8, 32], strides = [1, 1]} : vector<8x128xf32> to vector<8x32xf32>
    %cst_170 = arith.constant 2.000000e+00 : f32
    %567 = vector.broadcast %cst_170 : f32 to vector<8x32xf32>
    %568 = arith.mulf %567, %566 : vector<8x32xf32>
    %cst_171 = arith.constant 1.000000e+00 : f32
    %569 = vector.broadcast %cst_171 : f32 to vector<8x32xf32>
    %570 = arith.subf %568, %569 : vector<8x32xf32>
    %571 = vector.extract_strided_slice %563 {offsets = [0, 96], sizes = [8, 32], strides = [1, 1]} : vector<8x128xf32> to vector<8x32xf32>
    %572 = arith.mulf %565, %529 : vector<8x32xf32>
    %573 = arith.mulf %564, %570 : vector<8x32xf32>
    %574 = arith.addf %572, %573 : vector<8x32xf32>
    %575 = math.tanh %574 : vector<8x32xf32>
    %576 = arith.mulf %571, %575 : vector<8x32xf32>
    %c88 = arith.constant 88 : index
    %c0_172 = arith.constant 0 : index
    %577 = vector.load %arg15[%c88, %c0_172] : memref<128x64xf32, #tpu.memory_space<vmem>>, vector<8x32xf32>
    tpu.vector_store %arg15[%c88, %c0_172], %576 {strides = array<i32>} : memref<128x64xf32, #tpu.memory_space<vmem>>, vector<8x32xf32>,
    %cst_173 = arith.constant dense<0.000000e+00> : vector<8x128xf32>
    %578 = tpu.matmul %576, %52, %cst_173 {dimension_numbers = #tpu.dot_dimension_numbers<[1], [0], [0], [1], [0, 0, 1, 1], [], []>} : vector<8x32xf32>, vector<32x128xf32>, vector<8x128xf32> -> vector<8x128xf32>
    %cst_174 = arith.constant dense<0.000000e+00> : vector<8x128xf32>
    %579 = tpu.matmul %554, %53, %cst_174 {dimension_numbers = #tpu.dot_dimension_numbers<[1], [0], [0], [1], [0, 0, 1, 1], [], []>} : vector<8x32xf32>, vector<32x128xf32>, vector<8x128xf32> -> vector<8x128xf32>
    %580 = arith.addf %578, %579 : vector<8x128xf32>
    %581 = arith.addf %580, %56 : vector<8x128xf32>
    %582 = arith.negf %581 : vector<8x128xf32>
    %583 = math.exp %582 : vector<8x128xf32>
    %cst_175 = arith.constant 1.000000e+00 : f32
    %584 = vector.broadcast %cst_175 : f32 to vector<8x128xf32>
    %585 = arith.addf %584, %583 : vector<8x128xf32>
    %586 = arith.divf %584, %585 : vector<8x128xf32>
    %587 = vector.extract_strided_slice %586 {offsets = [0, 0], sizes = [8, 32], strides = [1, 1]} : vector<8x128xf32> to vector<8x32xf32>
    %588 = vector.extract_strided_slice %586 {offsets = [0, 32], sizes = [8, 32], strides = [1, 1]} : vector<8x128xf32> to vector<8x32xf32>
    %589 = vector.extract_strided_slice %586 {offsets = [0, 64], sizes = [8, 32], strides = [1, 1]} : vector<8x128xf32> to vector<8x32xf32>
    %cst_176 = arith.constant 2.000000e+00 : f32
    %590 = vector.broadcast %cst_176 : f32 to vector<8x32xf32>
    %591 = arith.mulf %590, %589 : vector<8x32xf32>
    %cst_177 = arith.constant 1.000000e+00 : f32
    %592 = vector.broadcast %cst_177 : f32 to vector<8x32xf32>
    %593 = arith.subf %591, %592 : vector<8x32xf32>
    %594 = vector.extract_strided_slice %586 {offsets = [0, 96], sizes = [8, 32], strides = [1, 1]} : vector<8x128xf32> to vector<8x32xf32>
    %595 = arith.mulf %588, %552 : vector<8x32xf32>
    %596 = arith.mulf %587, %593 : vector<8x32xf32>
    %597 = arith.addf %595, %596 : vector<8x32xf32>
    %598 = math.tanh %597 : vector<8x32xf32>
    %599 = arith.mulf %594, %598 : vector<8x32xf32>
    %c88_178 = arith.constant 88 : index
    %c32_179 = arith.constant 32 : index
    %600 = vector.load %arg15[%c88_178, %c32_179] : memref<128x64xf32, #tpu.memory_space<vmem>>, vector<8x32xf32>
    tpu.vector_store %arg15[%c88_178, %c32_179], %599 {strides = array<i32>} : memref<128x64xf32, #tpu.memory_space<vmem>>, vector<8x32xf32>,
    %601 = vector.extract_strided_slice %50 {offsets = [96, 0], sizes = [8, 128], strides = [1, 1]} : vector<128x128xf32> to vector<8x128xf32>
    %cst_180 = arith.constant dense<0.000000e+00> : vector<8x128xf32>
    %602 = tpu.matmul %576, %51, %cst_180 {dimension_numbers = #tpu.dot_dimension_numbers<[1], [0], [0], [1], [0, 0, 1, 1], [], []>} : vector<8x32xf32>, vector<32x128xf32>, vector<8x128xf32> -> vector<8x128xf32>
    %603 = arith.addf %601, %602 : vector<8x128xf32>
    %604 = arith.negf %603 : vector<8x128xf32>
    %605 = math.exp %604 : vector<8x128xf32>
    %cst_181 = arith.constant 1.000000e+00 : f32
    %606 = vector.broadcast %cst_181 : f32 to vector<8x128xf32>
    %607 = arith.addf %606, %605 : vector<8x128xf32>
    %608 = arith.divf %606, %607 : vector<8x128xf32>
    %609 = vector.extract_strided_slice %608 {offsets = [0, 0], sizes = [8, 32], strides = [1, 1]} : vector<8x128xf32> to vector<8x32xf32>
    %610 = vector.extract_strided_slice %608 {offsets = [0, 32], sizes = [8, 32], strides = [1, 1]} : vector<8x128xf32> to vector<8x32xf32>
    %611 = vector.extract_strided_slice %608 {offsets = [0, 64], sizes = [8, 32], strides = [1, 1]} : vector<8x128xf32> to vector<8x32xf32>
    %cst_182 = arith.constant 2.000000e+00 : f32
    %612 = vector.broadcast %cst_182 : f32 to vector<8x32xf32>
    %613 = arith.mulf %612, %611 : vector<8x32xf32>
    %cst_183 = arith.constant 1.000000e+00 : f32
    %614 = vector.broadcast %cst_183 : f32 to vector<8x32xf32>
    %615 = arith.subf %613, %614 : vector<8x32xf32>
    %616 = vector.extract_strided_slice %608 {offsets = [0, 96], sizes = [8, 32], strides = [1, 1]} : vector<8x128xf32> to vector<8x32xf32>
    %617 = arith.mulf %610, %574 : vector<8x32xf32>
    %618 = arith.mulf %609, %615 : vector<8x32xf32>
    %619 = arith.addf %617, %618 : vector<8x32xf32>
    %620 = math.tanh %619 : vector<8x32xf32>
    %621 = arith.mulf %616, %620 : vector<8x32xf32>
    %c96 = arith.constant 96 : index
    %c0_184 = arith.constant 0 : index
    %622 = vector.load %arg15[%c96, %c0_184] : memref<128x64xf32, #tpu.memory_space<vmem>>, vector<8x32xf32>
    tpu.vector_store %arg15[%c96, %c0_184], %621 {strides = array<i32>} : memref<128x64xf32, #tpu.memory_space<vmem>>, vector<8x32xf32>,
    %cst_185 = arith.constant dense<0.000000e+00> : vector<8x128xf32>
    %623 = tpu.matmul %621, %52, %cst_185 {dimension_numbers = #tpu.dot_dimension_numbers<[1], [0], [0], [1], [0, 0, 1, 1], [], []>} : vector<8x32xf32>, vector<32x128xf32>, vector<8x128xf32> -> vector<8x128xf32>
    %cst_186 = arith.constant dense<0.000000e+00> : vector<8x128xf32>
    %624 = tpu.matmul %599, %53, %cst_186 {dimension_numbers = #tpu.dot_dimension_numbers<[1], [0], [0], [1], [0, 0, 1, 1], [], []>} : vector<8x32xf32>, vector<32x128xf32>, vector<8x128xf32> -> vector<8x128xf32>
    %625 = arith.addf %623, %624 : vector<8x128xf32>
    %626 = arith.addf %625, %56 : vector<8x128xf32>
    %627 = arith.negf %626 : vector<8x128xf32>
    %628 = math.exp %627 : vector<8x128xf32>
    %cst_187 = arith.constant 1.000000e+00 : f32
    %629 = vector.broadcast %cst_187 : f32 to vector<8x128xf32>
    %630 = arith.addf %629, %628 : vector<8x128xf32>
    %631 = arith.divf %629, %630 : vector<8x128xf32>
    %632 = vector.extract_strided_slice %631 {offsets = [0, 0], sizes = [8, 32], strides = [1, 1]} : vector<8x128xf32> to vector<8x32xf32>
    %633 = vector.extract_strided_slice %631 {offsets = [0, 32], sizes = [8, 32], strides = [1, 1]} : vector<8x128xf32> to vector<8x32xf32>
    %634 = vector.extract_strided_slice %631 {offsets = [0, 64], sizes = [8, 32], strides = [1, 1]} : vector<8x128xf32> to vector<8x32xf32>
    %cst_188 = arith.constant 2.000000e+00 : f32
    %635 = vector.broadcast %cst_188 : f32 to vector<8x32xf32>
    %636 = arith.mulf %635, %634 : vector<8x32xf32>
    %cst_189 = arith.constant 1.000000e+00 : f32
    %637 = vector.broadcast %cst_189 : f32 to vector<8x32xf32>
    %638 = arith.subf %636, %637 : vector<8x32xf32>
    %639 = vector.extract_strided_slice %631 {offsets = [0, 96], sizes = [8, 32], strides = [1, 1]} : vector<8x128xf32> to vector<8x32xf32>
    %640 = arith.mulf %633, %597 : vector<8x32xf32>
    %641 = arith.mulf %632, %638 : vector<8x32xf32>
    %642 = arith.addf %640, %641 : vector<8x32xf32>
    %643 = math.tanh %642 : vector<8x32xf32>
    %644 = arith.mulf %639, %643 : vector<8x32xf32>
    %c96_190 = arith.constant 96 : index
    %c32_191 = arith.constant 32 : index
    %645 = vector.load %arg15[%c96_190, %c32_191] : memref<128x64xf32, #tpu.memory_space<vmem>>, vector<8x32xf32>
    tpu.vector_store %arg15[%c96_190, %c32_191], %644 {strides = array<i32>} : memref<128x64xf32, #tpu.memory_space<vmem>>, vector<8x32xf32>,
    %646 = vector.extract_strided_slice %50 {offsets = [104, 0], sizes = [8, 128], strides = [1, 1]} : vector<128x128xf32> to vector<8x128xf32>
    %cst_192 = arith.constant dense<0.000000e+00> : vector<8x128xf32>
    %647 = tpu.matmul %621, %51, %cst_192 {dimension_numbers = #tpu.dot_dimension_numbers<[1], [0], [0], [1], [0, 0, 1, 1], [], []>} : vector<8x32xf32>, vector<32x128xf32>, vector<8x128xf32> -> vector<8x128xf32>
    %648 = arith.addf %646, %647 : vector<8x128xf32>
    %649 = arith.negf %648 : vector<8x128xf32>
    %650 = math.exp %649 : vector<8x128xf32>
    %cst_193 = arith.constant 1.000000e+00 : f32
    %651 = vector.broadcast %cst_193 : f32 to vector<8x128xf32>
    %652 = arith.addf %651, %650 : vector<8x128xf32>
    %653 = arith.divf %651, %652 : vector<8x128xf32>
    %654 = vector.extract_strided_slice %653 {offsets = [0, 0], sizes = [8, 32], strides = [1, 1]} : vector<8x128xf32> to vector<8x32xf32>
    %655 = vector.extract_strided_slice %653 {offsets = [0, 32], sizes = [8, 32], strides = [1, 1]} : vector<8x128xf32> to vector<8x32xf32>
    %656 = vector.extract_strided_slice %653 {offsets = [0, 64], sizes = [8, 32], strides = [1, 1]} : vector<8x128xf32> to vector<8x32xf32>
    %cst_194 = arith.constant 2.000000e+00 : f32
    %657 = vector.broadcast %cst_194 : f32 to vector<8x32xf32>
    %658 = arith.mulf %657, %656 : vector<8x32xf32>
    %cst_195 = arith.constant 1.000000e+00 : f32
    %659 = vector.broadcast %cst_195 : f32 to vector<8x32xf32>
    %660 = arith.subf %658, %659 : vector<8x32xf32>
    %661 = vector.extract_strided_slice %653 {offsets = [0, 96], sizes = [8, 32], strides = [1, 1]} : vector<8x128xf32> to vector<8x32xf32>
    %662 = arith.mulf %655, %619 : vector<8x32xf32>
    %663 = arith.mulf %654, %660 : vector<8x32xf32>
    %664 = arith.addf %662, %663 : vector<8x32xf32>
    %665 = math.tanh %664 : vector<8x32xf32>
    %666 = arith.mulf %661, %665 : vector<8x32xf32>
    %c104 = arith.constant 104 : index
    %c0_196 = arith.constant 0 : index
    %667 = vector.load %arg15[%c104, %c0_196] : memref<128x64xf32, #tpu.memory_space<vmem>>, vector<8x32xf32>
    tpu.vector_store %arg15[%c104, %c0_196], %666 {strides = array<i32>} : memref<128x64xf32, #tpu.memory_space<vmem>>, vector<8x32xf32>,
    %cst_197 = arith.constant dense<0.000000e+00> : vector<8x128xf32>
    %668 = tpu.matmul %666, %52, %cst_197 {dimension_numbers = #tpu.dot_dimension_numbers<[1], [0], [0], [1], [0, 0, 1, 1], [], []>} : vector<8x32xf32>, vector<32x128xf32>, vector<8x128xf32> -> vector<8x128xf32>
    %cst_198 = arith.constant dense<0.000000e+00> : vector<8x128xf32>
    %669 = tpu.matmul %644, %53, %cst_198 {dimension_numbers = #tpu.dot_dimension_numbers<[1], [0], [0], [1], [0, 0, 1, 1], [], []>} : vector<8x32xf32>, vector<32x128xf32>, vector<8x128xf32> -> vector<8x128xf32>
    %670 = arith.addf %668, %669 : vector<8x128xf32>
    %671 = arith.addf %670, %56 : vector<8x128xf32>
    %672 = arith.negf %671 : vector<8x128xf32>
    %673 = math.exp %672 : vector<8x128xf32>
    %cst_199 = arith.constant 1.000000e+00 : f32
    %674 = vector.broadcast %cst_199 : f32 to vector<8x128xf32>
    %675 = arith.addf %674, %673 : vector<8x128xf32>
    %676 = arith.divf %674, %675 : vector<8x128xf32>
    %677 = vector.extract_strided_slice %676 {offsets = [0, 0], sizes = [8, 32], strides = [1, 1]} : vector<8x128xf32> to vector<8x32xf32>
    %678 = vector.extract_strided_slice %676 {offsets = [0, 32], sizes = [8, 32], strides = [1, 1]} : vector<8x128xf32> to vector<8x32xf32>
    %679 = vector.extract_strided_slice %676 {offsets = [0, 64], sizes = [8, 32], strides = [1, 1]} : vector<8x128xf32> to vector<8x32xf32>
    %cst_200 = arith.constant 2.000000e+00 : f32
    %680 = vector.broadcast %cst_200 : f32 to vector<8x32xf32>
    %681 = arith.mulf %680, %679 : vector<8x32xf32>
    %cst_201 = arith.constant 1.000000e+00 : f32
    %682 = vector.broadcast %cst_201 : f32 to vector<8x32xf32>
    %683 = arith.subf %681, %682 : vector<8x32xf32>
    %684 = vector.extract_strided_slice %676 {offsets = [0, 96], sizes = [8, 32], strides = [1, 1]} : vector<8x128xf32> to vector<8x32xf32>
    %685 = arith.mulf %678, %642 : vector<8x32xf32>
    %686 = arith.mulf %677, %683 : vector<8x32xf32>
    %687 = arith.addf %685, %686 : vector<8x32xf32>
    %688 = math.tanh %687 : vector<8x32xf32>
    %689 = arith.mulf %684, %688 : vector<8x32xf32>
    %c104_202 = arith.constant 104 : index
    %c32_203 = arith.constant 32 : index
    %690 = vector.load %arg15[%c104_202, %c32_203] : memref<128x64xf32, #tpu.memory_space<vmem>>, vector<8x32xf32>
    tpu.vector_store %arg15[%c104_202, %c32_203], %689 {strides = array<i32>} : memref<128x64xf32, #tpu.memory_space<vmem>>, vector<8x32xf32>,
    %691 = vector.extract_strided_slice %50 {offsets = [112, 0], sizes = [8, 128], strides = [1, 1]} : vector<128x128xf32> to vector<8x128xf32>
    %cst_204 = arith.constant dense<0.000000e+00> : vector<8x128xf32>
    %692 = tpu.matmul %666, %51, %cst_204 {dimension_numbers = #tpu.dot_dimension_numbers<[1], [0], [0], [1], [0, 0, 1, 1], [], []>} : vector<8x32xf32>, vector<32x128xf32>, vector<8x128xf32> -> vector<8x128xf32>
    %693 = arith.addf %691, %692 : vector<8x128xf32>
    %694 = arith.negf %693 : vector<8x128xf32>
    %695 = math.exp %694 : vector<8x128xf32>
    %cst_205 = arith.constant 1.000000e+00 : f32
    %696 = vector.broadcast %cst_205 : f32 to vector<8x128xf32>
    %697 = arith.addf %696, %695 : vector<8x128xf32>
    %698 = arith.divf %696, %697 : vector<8x128xf32>
    %699 = vector.extract_strided_slice %698 {offsets = [0, 0], sizes = [8, 32], strides = [1, 1]} : vector<8x128xf32> to vector<8x32xf32>
    %700 = vector.extract_strided_slice %698 {offsets = [0, 32], sizes = [8, 32], strides = [1, 1]} : vector<8x128xf32> to vector<8x32xf32>
    %701 = vector.extract_strided_slice %698 {offsets = [0, 64], sizes = [8, 32], strides = [1, 1]} : vector<8x128xf32> to vector<8x32xf32>
    %cst_206 = arith.constant 2.000000e+00 : f32
    %702 = vector.broadcast %cst_206 : f32 to vector<8x32xf32>
    %703 = arith.mulf %702, %701 : vector<8x32xf32>
    %cst_207 = arith.constant 1.000000e+00 : f32
    %704 = vector.broadcast %cst_207 : f32 to vector<8x32xf32>
    %705 = arith.subf %703, %704 : vector<8x32xf32>
    %706 = vector.extract_strided_slice %698 {offsets = [0, 96], sizes = [8, 32], strides = [1, 1]} : vector<8x128xf32> to vector<8x32xf32>
    %707 = arith.mulf %700, %664 : vector<8x32xf32>
    %708 = arith.mulf %699, %705 : vector<8x32xf32>
    %709 = arith.addf %707, %708 : vector<8x32xf32>
    %710 = math.tanh %709 : vector<8x32xf32>
    %711 = arith.mulf %706, %710 : vector<8x32xf32>
    %c112 = arith.constant 112 : index
    %c0_208 = arith.constant 0 : index
    %712 = vector.load %arg15[%c112, %c0_208] : memref<128x64xf32, #tpu.memory_space<vmem>>, vector<8x32xf32>
    tpu.vector_store %arg15[%c112, %c0_208], %711 {strides = array<i32>} : memref<128x64xf32, #tpu.memory_space<vmem>>, vector<8x32xf32>,
    %cst_209 = arith.constant dense<0.000000e+00> : vector<8x128xf32>
    %713 = tpu.matmul %711, %52, %cst_209 {dimension_numbers = #tpu.dot_dimension_numbers<[1], [0], [0], [1], [0, 0, 1, 1], [], []>} : vector<8x32xf32>, vector<32x128xf32>, vector<8x128xf32> -> vector<8x128xf32>
    %cst_210 = arith.constant dense<0.000000e+00> : vector<8x128xf32>
    %714 = tpu.matmul %689, %53, %cst_210 {dimension_numbers = #tpu.dot_dimension_numbers<[1], [0], [0], [1], [0, 0, 1, 1], [], []>} : vector<8x32xf32>, vector<32x128xf32>, vector<8x128xf32> -> vector<8x128xf32>
    %715 = arith.addf %713, %714 : vector<8x128xf32>
    %716 = arith.addf %715, %56 : vector<8x128xf32>
    %717 = arith.negf %716 : vector<8x128xf32>
    %718 = math.exp %717 : vector<8x128xf32>
    %cst_211 = arith.constant 1.000000e+00 : f32
    %719 = vector.broadcast %cst_211 : f32 to vector<8x128xf32>
    %720 = arith.addf %719, %718 : vector<8x128xf32>
    %721 = arith.divf %719, %720 : vector<8x128xf32>
    %722 = vector.extract_strided_slice %721 {offsets = [0, 0], sizes = [8, 32], strides = [1, 1]} : vector<8x128xf32> to vector<8x32xf32>
    %723 = vector.extract_strided_slice %721 {offsets = [0, 32], sizes = [8, 32], strides = [1, 1]} : vector<8x128xf32> to vector<8x32xf32>
    %724 = vector.extract_strided_slice %721 {offsets = [0, 64], sizes = [8, 32], strides = [1, 1]} : vector<8x128xf32> to vector<8x32xf32>
    %cst_212 = arith.constant 2.000000e+00 : f32
    %725 = vector.broadcast %cst_212 : f32 to vector<8x32xf32>
    %726 = arith.mulf %725, %724 : vector<8x32xf32>
    %cst_213 = arith.constant 1.000000e+00 : f32
    %727 = vector.broadcast %cst_213 : f32 to vector<8x32xf32>
    %728 = arith.subf %726, %727 : vector<8x32xf32>
    %729 = vector.extract_strided_slice %721 {offsets = [0, 96], sizes = [8, 32], strides = [1, 1]} : vector<8x128xf32> to vector<8x32xf32>
    %730 = arith.mulf %723, %687 : vector<8x32xf32>
    %731 = arith.mulf %722, %728 : vector<8x32xf32>
    %732 = arith.addf %730, %731 : vector<8x32xf32>
    %733 = math.tanh %732 : vector<8x32xf32>
    %734 = arith.mulf %729, %733 : vector<8x32xf32>
    %c112_214 = arith.constant 112 : index
    %c32_215 = arith.constant 32 : index
    %735 = vector.load %arg15[%c112_214, %c32_215] : memref<128x64xf32, #tpu.memory_space<vmem>>, vector<8x32xf32>
    tpu.vector_store %arg15[%c112_214, %c32_215], %734 {strides = array<i32>} : memref<128x64xf32, #tpu.memory_space<vmem>>, vector<8x32xf32>,
    %736 = vector.extract_strided_slice %50 {offsets = [120, 0], sizes = [8, 128], strides = [1, 1]} : vector<128x128xf32> to vector<8x128xf32>
    %cst_216 = arith.constant dense<0.000000e+00> : vector<8x128xf32>
    %737 = tpu.matmul %711, %51, %cst_216 {dimension_numbers = #tpu.dot_dimension_numbers<[1], [0], [0], [1], [0, 0, 1, 1], [], []>} : vector<8x32xf32>, vector<32x128xf32>, vector<8x128xf32> -> vector<8x128xf32>
    %738 = arith.addf %736, %737 : vector<8x128xf32>
    %739 = arith.negf %738 : vector<8x128xf32>
    %740 = math.exp %739 : vector<8x128xf32>
    %cst_217 = arith.constant 1.000000e+00 : f32
    %741 = vector.broadcast %cst_217 : f32 to vector<8x128xf32>
    %742 = arith.addf %741, %740 : vector<8x128xf32>
    %743 = arith.divf %741, %742 : vector<8x128xf32>
    %744 = vector.extract_strided_slice %743 {offsets = [0, 0], sizes = [8, 32], strides = [1, 1]} : vector<8x128xf32> to vector<8x32xf32>
    %745 = vector.extract_strided_slice %743 {offsets = [0, 32], sizes = [8, 32], strides = [1, 1]} : vector<8x128xf32> to vector<8x32xf32>
    %746 = vector.extract_strided_slice %743 {offsets = [0, 64], sizes = [8, 32], strides = [1, 1]} : vector<8x128xf32> to vector<8x32xf32>
    %cst_218 = arith.constant 2.000000e+00 : f32
    %747 = vector.broadcast %cst_218 : f32 to vector<8x32xf32>
    %748 = arith.mulf %747, %746 : vector<8x32xf32>
    %cst_219 = arith.constant 1.000000e+00 : f32
    %749 = vector.broadcast %cst_219 : f32 to vector<8x32xf32>
    %750 = arith.subf %748, %749 : vector<8x32xf32>
    %751 = vector.extract_strided_slice %743 {offsets = [0, 96], sizes = [8, 32], strides = [1, 1]} : vector<8x128xf32> to vector<8x32xf32>
    %752 = arith.mulf %745, %709 : vector<8x32xf32>
    %753 = arith.mulf %744, %750 : vector<8x32xf32>
    %754 = arith.addf %752, %753 : vector<8x32xf32>
    %755 = math.tanh %754 : vector<8x32xf32>
    %756 = arith.mulf %751, %755 : vector<8x32xf32>
    %c120 = arith.constant 120 : index
    %c0_220 = arith.constant 0 : index
    %757 = vector.load %arg15[%c120, %c0_220] : memref<128x64xf32, #tpu.memory_space<vmem>>, vector<8x32xf32>
    tpu.vector_store %arg15[%c120, %c0_220], %756 {strides = array<i32>} : memref<128x64xf32, #tpu.memory_space<vmem>>, vector<8x32xf32>,
    %cst_221 = arith.constant dense<0.000000e+00> : vector<8x128xf32>
    %758 = tpu.matmul %756, %52, %cst_221 {dimension_numbers = #tpu.dot_dimension_numbers<[1], [0], [0], [1], [0, 0, 1, 1], [], []>} : vector<8x32xf32>, vector<32x128xf32>, vector<8x128xf32> -> vector<8x128xf32>
    %cst_222 = arith.constant dense<0.000000e+00> : vector<8x128xf32>
    %759 = tpu.matmul %734, %53, %cst_222 {dimension_numbers = #tpu.dot_dimension_numbers<[1], [0], [0], [1], [0, 0, 1, 1], [], []>} : vector<8x32xf32>, vector<32x128xf32>, vector<8x128xf32> -> vector<8x128xf32>
    %760 = arith.addf %758, %759 : vector<8x128xf32>
    %761 = arith.addf %760, %56 : vector<8x128xf32>
    %762 = arith.negf %761 : vector<8x128xf32>
    %763 = math.exp %762 : vector<8x128xf32>
    %cst_223 = arith.constant 1.000000e+00 : f32
    %764 = vector.broadcast %cst_223 : f32 to vector<8x128xf32>
    %765 = arith.addf %764, %763 : vector<8x128xf32>
    %766 = arith.divf %764, %765 : vector<8x128xf32>
    %767 = vector.extract_strided_slice %766 {offsets = [0, 0], sizes = [8, 32], strides = [1, 1]} : vector<8x128xf32> to vector<8x32xf32>
    %768 = vector.extract_strided_slice %766 {offsets = [0, 32], sizes = [8, 32], strides = [1, 1]} : vector<8x128xf32> to vector<8x32xf32>
    %769 = vector.extract_strided_slice %766 {offsets = [0, 64], sizes = [8, 32], strides = [1, 1]} : vector<8x128xf32> to vector<8x32xf32>
    %cst_224 = arith.constant 2.000000e+00 : f32
    %770 = vector.broadcast %cst_224 : f32 to vector<8x32xf32>
    %771 = arith.mulf %770, %769 : vector<8x32xf32>
    %cst_225 = arith.constant 1.000000e+00 : f32
    %772 = vector.broadcast %cst_225 : f32 to vector<8x32xf32>
    %773 = arith.subf %771, %772 : vector<8x32xf32>
    %774 = vector.extract_strided_slice %766 {offsets = [0, 96], sizes = [8, 32], strides = [1, 1]} : vector<8x128xf32> to vector<8x32xf32>
    %775 = arith.mulf %768, %732 : vector<8x32xf32>
    %776 = arith.mulf %767, %773 : vector<8x32xf32>
    %777 = arith.addf %775, %776 : vector<8x32xf32>
    %778 = math.tanh %777 : vector<8x32xf32>
    %779 = arith.mulf %774, %778 : vector<8x32xf32>
    %c120_226 = arith.constant 120 : index
    %c32_227 = arith.constant 32 : index
    %780 = vector.load %arg15[%c120_226, %c32_227] : memref<128x64xf32, #tpu.memory_space<vmem>>, vector<8x32xf32>
    tpu.vector_store %arg15[%c120_226, %c32_227], %779 {strides = array<i32>} : memref<128x64xf32, #tpu.memory_space<vmem>>, vector<8x32xf32>,
    %c0_228 = arith.constant 0 : index
    %c0_229 = arith.constant 0 : index
    %781 = vector.load %arg15[%c0_228, %c0_229] : memref<128x64xf32, #tpu.memory_space<vmem>>, vector<128x64xf32>
    %c0_230 = arith.constant 0 : index
    %c0_231 = arith.constant 0 : index
    %782 = vector.load %arg12[%c0_230, %c0_231] : memref<64x128xf32, #tpu.memory_space<vmem>>, vector<64x128xf32>
    %cst_232 = arith.constant dense<0.000000e+00> : vector<128x128xf32>
    %783 = tpu.matmul %781, %782, %cst_232 {dimension_numbers = #tpu.dot_dimension_numbers<[1], [0], [0], [1], [0, 0, 1, 1], [], []>} : vector<128x64xf32>, vector<64x128xf32>, vector<128x128xf32> -> vector<128x128xf32>
    %c0_233 = arith.constant 0 : index
    %c0_234 = arith.constant 0 : index
    %784 = vector.load %arg13[%c0_233, %c0_234] : memref<1x128xf32, #tpu.memory_space<vmem>>, vector<1x128xf32>
    %785 = vector.broadcast %784 : vector<1x128xf32> to vector<128x128xf32>
    %786 = arith.addf %783, %785 : vector<128x128xf32>
    %cst_235 = arith.constant 2.000000e+01 : f32
    %787 = vector.broadcast %cst_235 : f32 to vector<128x128xf32>
    %788 = arith.cmpf ogt, %786, %787 : vector<128x128xf32>
    %cst_236 = arith.constant 2.000000e+01 : f32
    %789 = vector.broadcast %cst_236 : f32 to vector<128x128xf32>
    %790 = arith.minimumf %786, %789 : vector<128x128xf32>
    %791 = math.exp %790 : vector<128x128xf32>
    %cst_237 = arith.constant 1.000000e+00 : f32
    %792 = vector.broadcast %cst_237 : f32 to vector<128x128xf32>
    %793 = arith.addf %792, %791 : vector<128x128xf32>
    %794 = math.log %793 : vector<128x128xf32>
    %795 = arith.select %788, %786, %794 : vector<128x128xi1>, vector<128x128xf32>
    %c0_238 = arith.constant 0 : index
    %c0_239 = arith.constant 0 : index
    %796 = vector.load %arg14[%c0_238, %c0_239] : memref<128x128xf32, #tpu.memory_space<vmem>>, vector<128x128xf32>
    tpu.vector_store %arg14[%c0_238, %c0_239], %795 {strides = array<i32>} : memref<128x128xf32, #tpu.memory_space<vmem>>, vector<128x128xf32>,
    return
  }
}

</mosaic_0001>

<llo_original>
// kernel: run_kernel.1
$region0: #{run_kernel.1}
  #allocation0 [shape = 'u32[]', space=smem, size = 0x4, offset = 0x4, fixed_abs, tag = 'smem constant byte address 0x4 - core index']
  #allocation1 [shape = 'u32[144,128]{1,0:T(1,128)}', space=vmem, size = 0x12000, scoped, tag = 'internal scratch']
  #allocation2 [shape = 'f32[128,64]{1,0:T(8,128)}', space=vmem, size = 0x10000, scoped, tag = 'scratch operand']
  %s0 = inlined_call_operand.vmem [shape: f32[128,10], index: 0, kind: input, shape index: {}]
  %s1 = inlined_call_operand.vmem [shape: f32[10,12], index: 1, kind: input, shape index: {}]
  %s2 = inlined_call_operand.vmem [shape: f32[2], index: 2, kind: input, shape index: {}]
  %s3 = inlined_call_operand.vmem [shape: f32[128,128], index: 3, kind: input, shape index: {}]
  %s4 = inlined_call_operand.hbm [shape: f32[12,18], index: 4, kind: input, shape index: {}]
  %s5 = inlined_call_operand.vmem [shape: f32[1,18], index: 5, kind: input, shape index: {}]
  %s6 = inlined_call_operand.vmem [shape: f32[6,128], index: 6, kind: input, shape index: {}]
  %s7 = inlined_call_operand.hbm [shape: f32[1,128], index: 7, kind: input, shape index: {}]
  %s8 = inlined_call_operand.vmem [shape: f32[32,128], index: 8, kind: input, shape index: {}]
  %s9 = inlined_call_operand.vmem [shape: f32[32,128], index: 9, kind: input, shape index: {}]
  %s10 = inlined_call_operand.vmem [shape: f32[32,128], index: 10, kind: input, shape index: {}]
  %s11 = inlined_call_operand.vmem [shape: f32[1,128], index: 11, kind: input, shape index: {}]
  %s12 = inlined_call_operand.vmem [shape: f32[64,128], index: 12, kind: input, shape index: {}]
  %s13 = inlined_call_operand.hbm [shape: f32[1,128], index: 13, kind: input, shape index: {}]
  %s14 = inlined_call_operand.vmem [shape: f32[128,128], index: 14, kind: output, shape index: {}]
  %s15 = sld [smem:[#allocation0]]
  $region82: #{run_kernel.1} parent=0
    _
  %s17 = ssub.s32 1, %s15
  %s18 = scalar_select 0, %s17, %s15
  $region1: #{run_kernel.1} parent=0
    #allocation3 [shape = 'u8[512]{0}', space=smem, size = 0x200, scoped, tag = 'input window, operand 2, single buffered']
    #allocation4 [shape = 's32[1]{0}', space=sflag, size = 0x4, scoped, tag = 'scoped memory for run_kernel.1']
    #allocation5 [shape = 's32[1]{0}', space=sflag, size = 0x4, scoped, tag = 'scoped memory for run_kernel.1']
    #allocation6 [shape = 'u8[8192]{0}', space=vmem, size = 0x2000, scoped, tag = 'input window, operand 4, single buffered']
    #allocation7 [shape = 'u8[512]{0}', space=vmem, size = 0x400, scoped, tag = 'input window, operand 7, single buffered']
    #allocation8 [shape = 's32[1]{0}', space=sflag, size = 0x4, scoped, tag = 'scoped memory for run_kernel.1']
    #allocation9 [shape = 'u8[512]{0}', space=vmem, size = 0x400, scoped, tag = 'input window, operand 13, single buffered']
    %19 = vsyncpa [#allocation5], 0
    %20 = vsyncpa [#allocation4], 0
    %21 = vsyncpa [#allocation8], 0
    // Predicated region
    $region2: #{run_kernel.1} parent=1 // pred_check
      _
    $region3: #{run_kernel.1} parent=1 // pred_check_branch
      %23 = sbr.rel (0) target = $region5
    $region4: #{run_kernel.1} parent=1 // pred_region
      _
    $region5: #{run_kernel.1} parent=1 // pred_fallthru
      _
    // Predicated region
    $region6: #{run_kernel.1} parent=1 // pred_check
      _
    $region7: #{run_kernel.1} parent=1 // pred_check_branch
      %25 = sbr.rel (0) target = $region9
    $region8: #{run_kernel.1} parent=1 // pred_region
      _
    $region9: #{run_kernel.1} parent=1 // pred_fallthru
      _
    // Predicated region
    $region10: #{run_kernel.1} parent=1 // pred_check
      _
    $region11: #{run_kernel.1} parent=1 // pred_check_branch
      %27 = sbr.rel (0) target = $region13
    $region12: #{run_kernel.1} parent=1 // pred_region
      %s29 = ssub.s32 16, 16
      %30 = vsyncadd [#allocation5], %s29
      %s32 = sshll.u32 %s2, 4
      %s33 = int_to_ptr.vmem [resolvable:$true] %s32
      %35 = dma.vmem_to_smem %s33, 16, [#allocation3], [#allocation5]
    $region13: #{run_kernel.1} parent=1 // pred_fallthru
      _
    // Predicated region
    $region14: #{run_kernel.1} parent=1 // pred_check
      _
    $region15: #{run_kernel.1} parent=1 // pred_check_branch
      %37 = sbr.rel (0) target = $region17
    $region16: #{run_kernel.1} parent=1 // pred_region
      _
    $region17: #{run_kernel.1} parent=1 // pred_fallthru
      _
    // Predicated region
    $region18: #{run_kernel.1} parent=1 // pred_check
      _
    $region19: #{run_kernel.1} parent=1 // pred_check_branch
      %39 = sbr.rel (0) target = $region21
    $region20: #{run_kernel.1} parent=1 // pred_region
      %s41 = ssub.s32 256, 256
      %42 = vsyncadd [#allocation4], %s41
      %s43 = sshll.u32 [#allocation6], 4
      %s44 = int_to_ptr.vmem [resolvable:$true] %s43
      %49 = dma.hbm_to_vmem [thread:$0]  %s4, 256, %s44, [#allocation4], 128, 128, 8
    $region21: #{run_kernel.1} parent=1 // pred_fallthru
      _
    // Predicated region
    $region22: #{run_kernel.1} parent=1 // pred_check
      _
    $region23: #{run_kernel.1} parent=1 // pred_check_branch
      %51 = sbr.rel (0) target = $region25
    $region24: #{run_kernel.1} parent=1 // pred_region
      _
    $region25: #{run_kernel.1} parent=1 // pred_fallthru
      _
    // Predicated region
    $region26: #{run_kernel.1} parent=1 // pred_check
      _
    $region27: #{run_kernel.1} parent=1 // pred_check_branch
      %53 = sbr.rel (0) target = $region29
    $region28: #{run_kernel.1} parent=1 // pred_region
      _
    $region29: #{run_kernel.1} parent=1 // pred_fallthru
      _
    // Predicated region
    $region30: #{run_kernel.1} parent=1 // pred_check
      _
    $region31: #{run_kernel.1} parent=1 // pred_check_branch
      %55 = sbr.rel (0) target = $region33
    $region32: #{run_kernel.1} parent=1 // pred_region
      %s57 = ssub.s32 16, 16
      %58 = vsyncadd [#allocation8], %s57
      %s60 = sshll.u32 [#allocation7], 4
      %s61 = int_to_ptr.vmem [resolvable:$true] %s60
      %63 = dma.hbm_to_vmem [thread:$0]  %s7, 16, %s61, [#allocation8]
    $region33: #{run_kernel.1} parent=1 // pred_fallthru
      _
    // Predicated region
    $region34: #{run_kernel.1} parent=1 // pred_check
      _
    $region35: #{run_kernel.1} parent=1 // pred_check_branch
      %65 = sbr.rel (0) target = $region37
    $region36: #{run_kernel.1} parent=1 // pred_region
      _
    $region37: #{run_kernel.1} parent=1 // pred_fallthru
      _
    // Predicated region
    $region38: #{run_kernel.1} parent=1 // pred_check
      _
    $region39: #{run_kernel.1} parent=1 // pred_check_branch
      %67 = sbr.rel (0) target = $region41
    $region40: #{run_kernel.1} parent=1 // pred_region
      _
    $region41: #{run_kernel.1} parent=1 // pred_fallthru
      _
    // Predicated region
    $region42: #{run_kernel.1} parent=1 // pred_check
      _
    $region43: #{run_kernel.1} parent=1 // pred_check_branch
      %69 = sbr.rel (0) target = $region45
    $region44: #{run_kernel.1} parent=1 // pred_region
      _
    $region45: #{run_kernel.1} parent=1 // pred_fallthru
      _
    // Predicated region
    $region46: #{run_kernel.1} parent=1 // pred_check
      _
    $region47: #{run_kernel.1} parent=1 // pred_check_branch
      %71 = sbr.rel (0) target = $region49
    $region48: #{run_kernel.1} parent=1 // pred_region
      _
    $region49: #{run_kernel.1} parent=1 // pred_fallthru
      _
    // Predicated region
    $region50: #{run_kernel.1} parent=1 // pred_check
      _
    $region51: #{run_kernel.1} parent=1 // pred_check_branch
      %73 = sbr.rel (0) target = $region53
    $region52: #{run_kernel.1} parent=1 // pred_region
      _
    $region53: #{run_kernel.1} parent=1 // pred_fallthru
      _
    // Predicated region
    $region54: #{run_kernel.1} parent=1 // pred_check
      _
    $region55: #{run_kernel.1} parent=1 // pred_check_branch
      %75 = sbr.rel (0) target = $region57
    $region56: #{run_kernel.1} parent=1 // pred_region
      %s77 = ssub.s32 16, 16
      %78 = vsyncadd [#allocation8], %s77
      %s80 = sshll.u32 [#allocation9], 4
      %s81 = int_to_ptr.vmem [resolvable:$true] %s80
      %83 = dma.hbm_to_vmem [thread:$0]  %s13, 16, %s81, [#allocation8]
    $region57: #{run_kernel.1} parent=1 // pred_fallthru
      _
    // Predicated region
    $region58: #{run_kernel.1} parent=1 // pred_check
      _
    $region59: #{run_kernel.1} parent=1 // pred_check_branch
      %85 = sbr.rel (0) target = $region61
    $region60: #{run_kernel.1} parent=1 // pred_region
      %86 = dma.done [#allocation5], 16
    $region61: #{run_kernel.1} parent=1 // pred_fallthru
      _
    // Predicated region
    $region62: #{run_kernel.1} parent=1 // pred_check
      _
    $region63: #{run_kernel.1} parent=1 // pred_check_branch
      %88 = sbr.rel (0) target = $region65
    $region64: #{run_kernel.1} parent=1 // pred_region
      %89 = dma.done [#allocation4], 256
    $region65: #{run_kernel.1} parent=1 // pred_fallthru
      _
    // Predicated region
    $region66: #{run_kernel.1} parent=1 // pred_check
      _
    $region67: #{run_kernel.1} parent=1 // pred_check_branch
      %91 = sbr.rel (0) target = $region69
    $region68: #{run_kernel.1} parent=1 // pred_region
      %92 = dma.done [#allocation8], 16
    $region69: #{run_kernel.1} parent=1 // pred_fallthru
      _
    // Predicated region
    $region70: #{run_kernel.1} parent=1 // pred_check
      _
    $region71: #{run_kernel.1} parent=1 // pred_check_branch
      %94 = sbr.rel (0) target = $region73
    $region72: #{run_kernel.1} parent=1 // pred_region
      %95 = dma.done [#allocation8], 16
    $region73: #{run_kernel.1} parent=1 // pred_fallthru
      _
    %96 = sfence
    %s97 = sld [smem:[#allocation3]]
    %s98 = sld [smem:[#allocation3 + $0x1]]
    %v99 = vld [vmem:[%s0] sm:$0xff]
    %v100 = vld [vmem:[%s0 + $0x8] sm:$0xff]
    %v101 = vld [vmem:[%s0 + $0x10] sm:$0xff]
    %v102 = vld [vmem:[%s0 + $0x18] sm:$0xff]
    %v103 = vld [vmem:[%s0 + $0x20] sm:$0xff]
    %v104 = vld [vmem:[%s0 + $0x28] sm:$0xff]
    %v105 = vld [vmem:[%s0 + $0x30] sm:$0xff]
    %v106 = vld [vmem:[%s0 + $0x38] sm:$0xff]
    %v107 = vld [vmem:[%s0 + $0x40] sm:$0xff]
    %v108 = vld [vmem:[%s0 + $0x48] sm:$0xff]
    %v109 = vld [vmem:[%s0 + $0x50] sm:$0xff]
    %v110 = vld [vmem:[%s0 + $0x58] sm:$0xff]
    %v111 = vld [vmem:[%s0 + $0x60] sm:$0xff]
    %v112 = vld [vmem:[%s0 + $0x68] sm:$0xff]
    %v113 = vld [vmem:[%s0 + $0x70] sm:$0xff]
    %v114 = vld [vmem:[%s0 + $0x78] sm:$0xff]
    %v115 = vld [vmem:[%s1] sm:$0xff]
    %v116 = vld [vmem:[%s1 + $0x8] sm:$0x3]
    %vm117 = vcmask 80896
    %v119 = vsel %vm117, %v99, 0
    %v122 = vsel %vm117, %v100, 0
    %v125 = vsel %vm117, %v101, 0
    %v128 = vsel %vm117, %v102, 0
    %v131 = vsel %vm117, %v103, 0
    %v134 = vsel %vm117, %v104, 0
    %v137 = vsel %vm117, %v105, 0
    %v140 = vsel %vm117, %v106, 0
    %v143 = vsel %vm117, %v107, 0
    %v146 = vsel %vm117, %v108, 0
    %v149 = vsel %vm117, %v109, 0
    %v152 = vsel %vm117, %v110, 0
    %v155 = vsel %vm117, %v111, 0
    %v158 = vsel %vm117, %v112, 0
    %v161 = vsel %vm117, %v113, 0
    %v164 = vsel %vm117, %v114, 0
    %vm166 = vcmask 1041408
    %v168 = vsel %vm166, %v116, 0
    %170 = vmatprep.subr.mxu0 0.0
    %171 = vmatpush1.msra.mxu0 %v115
    %172 = vmatprep.subr.mxu0 0.0
    %173 = vmatpush1.msra.mxu0 %v168
    %174 = vmatprep.subr.mxu0 0.0
    %175 = vmatpush1.msra.mxu0 0.0
    %176 = vmatprep.subr.mxu0 0.0
    %177 = vmatpush1.msra.mxu0 0.0
    %178 = vmatprep.subr.mxu0 0.0
    %179 = vmatpush1.msra.mxu0 0.0
    %180 = vmatprep.subr.mxu0 0.0
    %181 = vmatpush1.msra.mxu0 0.0
    %182 = vmatprep.subr.mxu0 0.0
    %183 = vmatpush1.msra.mxu0 0.0
    %184 = vmatprep.subr.mxu0 0.0
    %185 = vmatpush1.msra.mxu0 0.0
    %186 = vmatprep.subr.mxu0 0.0
    %187 = vmatpush1.msra.mxu0 0.0
    %188 = vmatprep.subr.mxu0 0.0
    %189 = vmatpush1.msra.mxu0 0.0
    %190 = vmatprep.subr.mxu0 0.0
    %191 = vmatpush1.msra.mxu0 0.0
    %192 = vmatprep.subr.mxu0 0.0
    %193 = vmatpush1.msra.mxu0 0.0
    %194 = vmatprep.subr.mxu0 0.0
    %195 = vmatpush1.msra.mxu0 0.0
    %196 = vmatprep.subr.mxu0 0.0
    %197 = vmatpush1.msra.mxu0 0.0
    %198 = vmatprep.subr.mxu0 0.0
    %199 = vmatpush1.msra.mxu0 0.0
    %200 = vmatprep.subr.mxu0 0.0
    %201 = vmatpush1.msra.mxu0 0.0
    %202 = vmatprep.subr.mxu0 0.0
    %203 = vmatpush1.msra.mxu0 0.0
    %204 = vmatprep.subr.mxu0 0.0
    %205 = vmatpush1.msra.mxu0 0.0
    %206 = vmatprep.subr.mxu0 0.0
    %207 = vmatpush1.msra.mxu0 0.0
    %208 = vmatprep.subr.mxu0 0.0
    %209 = vmatpush1.msra.mxu0 0.0
    %210 = vmatprep.subr.mxu0 0.0
    %211 = vmatpush1.msra.mxu0 0.0
    %212 = vmatprep.subr.mxu0 0.0
    %213 = vmatpush1.msra.mxu0 0.0
    %214 = vmatprep.subr.mxu0 0.0
    %215 = vmatpush1.msra.mxu0 0.0
    %216 = vmatprep.subr.mxu0 0.0
    %217 = vmatpush1.msra.mxu0 0.0
    %218 = vmatprep.subr.mxu0 0.0
    %219 = vmatpush1.msra.mxu0 0.0
    %220 = vmatprep.subr.mxu0 0.0
    %221 = vmatpush1.msra.mxu0 0.0
    %222 = vmatprep.subr.mxu0 0.0
    %223 = vmatpush1.msra.mxu0 0.0
    %224 = vmatprep.subr.mxu0 0.0
    %225 = vmatpush1.msra.mxu0 0.0
    %226 = vmatprep.subr.mxu0 0.0
    %227 = vmatpush1.msra.mxu0 0.0
    %228 = vmatprep.subr.mxu0 0.0
    %229 = vmatpush1.msra.mxu0 0.0
    %230 = vmatprep.subr.mxu0 0.0
    %231 = vmatpush1.msra.mxu0 0.0
    %232 = vmatprep.subr.mxu0 0.0
    %233 = vmatpush1.msra.mxu0 0.0
    %234 = vmatprep.mubr.f32.mxu0 0.0
    %235 = vmatmul.mubr.f32.gmra.mrb[0].mxu0 %v119
    %v236 = vpop.f32.mrb[0].mxu0
    %v237 = vadd.f32 0.0, %v236
    %v238 = vpop.f32.mrb[0].mxu0
    %239 = vmatprep.mubr.f32.mxu0 0.0
    %240 = vmatmul.mubr.f32.gmra.mrb[0].mxu0 %v122
    %v241 = vpop.f32.mrb[0].mxu0
    %v242 = vadd.f32 0.0, %v241
    %v243 = vpop.f32.mrb[0].mxu0
    %244 = vmatprep.mubr.f32.mxu0 0.0
    %245 = vmatmul.mubr.f32.gmra.mrb[0].mxu0 %v125
    %v246 = vpop.f32.mrb[0].mxu0
    %v247 = vadd.f32 0.0, %v246
    %v248 = vpop.f32.mrb[0].mxu0
    %249 = vmatprep.mubr.f32.mxu0 0.0
    %250 = vmatmul.mubr.f32.gmra.mrb[0].mxu0 %v128
    %v251 = vpop.f32.mrb[0].mxu0
    %v252 = vadd.f32 0.0, %v251
    %v253 = vpop.f32.mrb[0].mxu0
    %254 = vmatprep.mubr.f32.mxu0 0.0
    %255 = vmatmul.mubr.f32.gmra.mrb[0].mxu0 %v131
    %v256 = vpop.f32.mrb[0].mxu0
    %v257 = vadd.f32 0.0, %v256
    %v258 = vpop.f32.mrb[0].mxu0
    %259 = vmatprep.mubr.f32.mxu0 0.0
    %260 = vmatmul.mubr.f32.gmra.mrb[0].mxu0 %v134
    %v261 = vpop.f32.mrb[0].mxu0
    %v262 = vadd.f32 0.0, %v261
    %v263 = vpop.f32.mrb[0].mxu0
    %264 = vmatprep.mubr.f32.mxu0 0.0
    %265 = vmatmul.mubr.f32.gmra.mrb[0].mxu0 %v137
    %v266 = vpop.f32.mrb[0].mxu0
    %v267 = vadd.f32 0.0, %v266
    %v268 = vpop.f32.mrb[0].mxu0
    %269 = vmatprep.mubr.f32.mxu0 0.0
    %270 = vmatmul.mubr.f32.gmra.mrb[0].mxu0 %v140
    %v271 = vpop.f32.mrb[0].mxu0
    %v272 = vadd.f32 0.0, %v271
    %v273 = vpop.f32.mrb[0].mxu0
    %274 = vmatprep.mubr.f32.mxu0 0.0
    %275 = vmatmul.mubr.f32.gmra.mrb[0].mxu0 %v143
    %v276 = vpop.f32.mrb[0].mxu0
    %v277 = vadd.f32 0.0, %v276
    %v278 = vpop.f32.mrb[0].mxu0
    %279 = vmatprep.mubr.f32.mxu0 0.0
    %280 = vmatmul.mubr.f32.gmra.mrb[0].mxu0 %v146
    %v281 = vpop.f32.mrb[0].mxu0
    %v282 = vadd.f32 0.0, %v281
    %v283 = vpop.f32.mrb[0].mxu0
    %284 = vmatprep.mubr.f32.mxu0 0.0
    %285 = vmatmul.mubr.f32.gmra.mrb[0].mxu0 %v149
    %v286 = vpop.f32.mrb[0].mxu0
    %v287 = vadd.f32 0.0, %v286
    %v288 = vpop.f32.mrb[0].mxu0
    %289 = vmatprep.mubr.f32.mxu0 0.0
    %290 = vmatmul.mubr.f32.gmra.mrb[0].mxu0 %v152
    %v291 = vpop.f32.mrb[0].mxu0
    %v292 = vadd.f32 0.0, %v291
    %v293 = vpop.f32.mrb[0].mxu0
    %294 = vmatprep.mubr.f32.mxu0 0.0
    %295 = vmatmul.mubr.f32.gmra.mrb[0].mxu0 %v155
    %v296 = vpop.f32.mrb[0].mxu0
    %v297 = vadd.f32 0.0, %v296
    %v298 = vpop.f32.mrb[0].mxu0
    %299 = vmatprep.mubr.f32.mxu0 0.0
    %300 = vmatmul.mubr.f32.gmra.mrb[0].mxu0 %v158
    %v301 = vpop.f32.mrb[0].mxu0
    %v302 = vadd.f32 0.0, %v301
    %v303 = vpop.f32.mrb[0].mxu0
    %304 = vmatprep.mubr.f32.mxu0 0.0
    %305 = vmatmul.mubr.f32.gmra.mrb[0].mxu0 %v161
    %v306 = vpop.f32.mrb[0].mxu0
    %v307 = vadd.f32 0.0, %v306
    %v308 = vpop.f32.mrb[0].mxu0
    %309 = vmatprep.mubr.f32.mxu0 0.0
    %310 = vmatmul.mubr.f32.gmra.mrb[0].mxu0 %v164
    %v311 = vpop.f32.mrb[0].mxu0
    %v312 = vadd.f32 0.0, %v311
    %v313 = vpop.f32.mrb[0].mxu0
    %314 = vdwg.mxu0
    %v315 = vld [vmem:[%s3] sm:$0xff]
    %v316 = vld [vmem:[%s3 + $0x8] sm:$0xff]
    %v317 = vld [vmem:[%s3 + $0x10] sm:$0xff]
    %v318 = vld [vmem:[%s3 + $0x18] sm:$0xff]
    %v319 = vld [vmem:[%s3 + $0x20] sm:$0xff]
    %v320 = vld [vmem:[%s3 + $0x28] sm:$0xff]
    %v321 = vld [vmem:[%s3 + $0x30] sm:$0xff]
    %v322 = vld [vmem:[%s3 + $0x38] sm:$0xff]
    %v323 = vld [vmem:[%s3 + $0x40] sm:$0xff]
    %v324 = vld [vmem:[%s3 + $0x48] sm:$0xff]
    %v325 = vld [vmem:[%s3 + $0x50] sm:$0xff]
    %v326 = vld [vmem:[%s3 + $0x58] sm:$0xff]
    %v327 = vld [vmem:[%s3 + $0x60] sm:$0xff]
    %v328 = vld [vmem:[%s3 + $0x68] sm:$0xff]
    %v329 = vld [vmem:[%s3 + $0x70] sm:$0xff]
    %v330 = vld [vmem:[%s3 + $0x78] sm:$0xff]
    %v331 = vmul.f32 %v237, %v237
    %v332 = vmul.f32 %v242, %v242
    %v333 = vmul.f32 %v247, %v247
    %v334 = vmul.f32 %v252, %v252
    %v335 = vmul.f32 %v257, %v257
    %v336 = vmul.f32 %v262, %v262
    %v337 = vmul.f32 %v267, %v267
    %v338 = vmul.f32 %v272, %v272
    %v339 = vmul.f32 %v277, %v277
    %v340 = vmul.f32 %v282, %v282
    %v341 = vmul.f32 %v287, %v287
    %v342 = vmul.f32 %v292, %v292
    %v343 = vmul.f32 %v297, %v297
    %v344 = vmul.f32 %v302, %v302
    %v345 = vmul.f32 %v307, %v307
    %v346 = vmul.f32 %v312, %v312
    %363 = vrot.lane.b32.xlu0 %v331, 12
    %v364 = vpop.permute.xlu0 %363
    %365 = vrot.lane.b32.xlu0 %v332, 12
    %v366 = vpop.permute.xlu0 %365
    %367 = vrot.lane.b32.xlu0 %v333, 12
    %v368 = vpop.permute.xlu0 %367
    %369 = vrot.lane.b32.xlu0 %v334, 12
    %v370 = vpop.permute.xlu0 %369
    %371 = vrot.lane.b32.xlu0 %v335, 12
    %v372 = vpop.permute.xlu0 %371
    %373 = vrot.lane.b32.xlu0 %v336, 12
    %v374 = vpop.permute.xlu0 %373
    %375 = vrot.lane.b32.xlu0 %v337, 12
    %v376 = vpop.permute.xlu0 %375
    %377 = vrot.lane.b32.xlu0 %v338, 12
    %v378 = vpop.permute.xlu0 %377
    %379 = vrot.lane.b32.xlu0 %v339, 12
    %v380 = vpop.permute.xlu0 %379
    %381 = vrot.lane.b32.xlu0 %v340, 12
    %v382 = vpop.permute.xlu0 %381
    %383 = vrot.lane.b32.xlu0 %v341, 12
    %v384 = vpop.permute.xlu0 %383
    %385 = vrot.lane.b32.xlu0 %v342, 12
    %v386 = vpop.permute.xlu0 %385
    %387 = vrot.lane.b32.xlu0 %v343, 12
    %v388 = vpop.permute.xlu0 %387
    %389 = vrot.lane.b32.xlu0 %v344, 12
    %v390 = vpop.permute.xlu0 %389
    %391 = vrot.lane.b32.xlu0 %v345, 12
    %v392 = vpop.permute.xlu0 %391
    %393 = vrot.lane.b32.xlu0 %v346, 12
    %v394 = vpop.permute.xlu0 %393
    %vm411 = vcmask 97280
    %v412 = vsel %vm411, %v237, %v364
    %v413 = vsel %vm411, %v242, %v366
    %v414 = vsel %vm411, %v247, %v368
    %v415 = vsel %vm411, %v252, %v370
    %v416 = vsel %vm411, %v257, %v372
    %v417 = vsel %vm411, %v262, %v374
    %v418 = vsel %vm411, %v267, %v376
    %v419 = vsel %vm411, %v272, %v378
    %v420 = vsel %vm411, %v277, %v380
    %v421 = vsel %vm411, %v282, %v382
    %v422 = vsel %vm411, %v287, %v384
    %v423 = vsel %vm411, %v292, %v386
    %v424 = vsel %vm411, %v297, %v388
    %v425 = vsel %vm411, %v302, %v390
    %v426 = vsel %vm411, %v307, %v392
    %v427 = vsel %vm411, %v312, %v394
    %428 = vmatprep.subr.mxu0 0.0
    %429 = vmatpush1.msra.mxu0 %v412
    %430 = vmatprep.subr.mxu0 0.0
    %431 = vmatpush1.msra.mxu0 %v413
    %432 = vmatprep.subr.mxu0 0.0
    %433 = vmatpush1.msra.mxu0 %v414
    %434 = vmatprep.subr.mxu0 0.0
    %435 = vmatpush1.msra.mxu0 %v415
    %436 = vmatprep.subr.mxu0 0.0
    %437 = vmatpush1.msra.mxu0 %v416
    %438 = vmatprep.subr.mxu0 0.0
    %439 = vmatpush1.msra.mxu0 %v417
    %440 = vmatprep.subr.mxu0 0.0
    %441 = vmatpush1.msra.mxu0 %v418
    %442 = vmatprep.subr.mxu0 0.0
    %443 = vmatpush1.msra.mxu0 %v419
    %444 = vmatprep.subr.mxu0 0.0
    %445 = vmatpush1.msra.mxu0 %v420
    %446 = vmatprep.subr.mxu0 0.0
    %447 = vmatpush1.msra.mxu0 %v421
    %448 = vmatprep.subr.mxu0 0.0
    %449 = vmatpush1.msra.mxu0 %v422
    %450 = vmatprep.subr.mxu0 0.0
    %451 = vmatpush1.msra.mxu0 %v423
    %452 = vmatprep.subr.mxu0 0.0
    %453 = vmatpush1.msra.mxu0 %v424
    %454 = vmatprep.subr.mxu0 0.0
    %455 = vmatpush1.msra.mxu0 %v425
    %456 = vmatprep.subr.mxu0 0.0
    %457 = vmatpush1.msra.mxu0 %v426
    %458 = vmatprep.subr.mxu0 0.0
    %459 = vmatpush1.msra.mxu0 %v427
    %460 = vmatprep.subr.mxu0 0.0
    %461 = vmatpush1.msra.mxu0 0.0
    %462 = vmatprep.subr.mxu0 0.0
    %463 = vmatpush1.msra.mxu0 0.0
    %464 = vmatprep.subr.mxu0 0.0
    %465 = vmatpush1.msra.mxu0 0.0
    %466 = vmatprep.subr.mxu0 0.0
    %467 = vmatpush1.msra.mxu0 0.0
    %468 = vmatprep.subr.mxu0 0.0
    %469 = vmatpush1.msra.mxu0 0.0
    %470 = vmatprep.subr.mxu0 0.0
    %471 = vmatpush1.msra.mxu0 0.0
    %472 = vmatprep.subr.mxu0 0.0
    %473 = vmatpush1.msra.mxu0 0.0
    %474 = vmatprep.subr.mxu0 0.0
    %475 = vmatpush1.msra.mxu0 0.0
    %476 = vmatprep.subr.mxu0 0.0
    %477 = vmatpush1.msra.mxu0 0.0
    %478 = vmatprep.subr.mxu0 0.0
    %479 = vmatpush1.msra.mxu0 0.0
    %480 = vmatprep.subr.mxu0 0.0
    %481 = vmatpush1.msra.mxu0 0.0
    %482 = vmatprep.subr.mxu0 0.0
    %483 = vmatpush1.msra.mxu0 0.0
    %484 = vmatprep.subr.mxu0 0.0
    %485 = vmatpush1.msra.mxu0 0.0
    %486 = vmatprep.subr.mxu0 0.0
    %487 = vmatpush1.msra.mxu0 0.0
    %488 = vmatprep.subr.mxu0 0.0
    %489 = vmatpush1.msra.mxu0 0.0
    %490 = vmatprep.subr.mxu0 0.0
    %491 = vmatpush1.msra.mxu0 0.0
    %492 = vmatprep.mubr.f32.mxu0 0.0
    %493 = vmatmul.mubr.f32.gmra.mrb[0].mxu0 %v315
    %v494 = vpop.f32.mrb[0].mxu0
    %v495 = vadd.f32 0.0, %v494
    %v496 = vpop.f32.mrb[0].mxu0
    %497 = vmatprep.mubr.f32.mxu0 0.0
    %498 = vmatmul.mubr.f32.gmra.mrb[0].mxu0 %v316
    %v499 = vpop.f32.mrb[0].mxu0
    %v500 = vadd.f32 0.0, %v499
    %v501 = vpop.f32.mrb[0].mxu0
    %502 = vmatprep.mubr.f32.mxu0 0.0
    %503 = vmatmul.mubr.f32.gmra.mrb[0].mxu0 %v317
    %v504 = vpop.f32.mrb[0].mxu0
    %v505 = vadd.f32 0.0, %v504
    %v506 = vpop.f32.mrb[0].mxu0
    %507 = vmatprep.mubr.f32.mxu0 0.0
    %508 = vmatmul.mubr.f32.gmra.mrb[0].mxu0 %v318
    %v509 = vpop.f32.mrb[0].mxu0
    %v510 = vadd.f32 0.0, %v509
    %v511 = vpop.f32.mrb[0].mxu0
    %512 = vmatprep.mubr.f32.mxu0 0.0
    %513 = vmatmul.mubr.f32.gmra.mrb[0].mxu0 %v319
    %v514 = vpop.f32.mrb[0].mxu0
    %v515 = vadd.f32 0.0, %v514
    %v516 = vpop.f32.mrb[0].mxu0
    %517 = vmatprep.mubr.f32.mxu0 0.0
    %518 = vmatmul.mubr.f32.gmra.mrb[0].mxu0 %v320
    %v519 = vpop.f32.mrb[0].mxu0
    %v520 = vadd.f32 0.0, %v519
    %v521 = vpop.f32.mrb[0].mxu0
    %522 = vmatprep.mubr.f32.mxu0 0.0
    %523 = vmatmul.mubr.f32.gmra.mrb[0].mxu0 %v321
    %v524 = vpop.f32.mrb[0].mxu0
    %v525 = vadd.f32 0.0, %v524
    %v526 = vpop.f32.mrb[0].mxu0
    %527 = vmatprep.mubr.f32.mxu0 0.0
    %528 = vmatmul.mubr.f32.gmra.mrb[0].mxu0 %v322
    %v529 = vpop.f32.mrb[0].mxu0
    %v530 = vadd.f32 0.0, %v529
    %v531 = vpop.f32.mrb[0].mxu0
    %532 = vmatprep.mubr.f32.mxu0 0.0
    %533 = vmatmul.mubr.f32.gmra.mrb[0].mxu0 %v323
    %v534 = vpop.f32.mrb[0].mxu0
    %v535 = vadd.f32 0.0, %v534
    %v536 = vpop.f32.mrb[0].mxu0
    %537 = vmatprep.mubr.f32.mxu0 0.0
    %538 = vmatmul.mubr.f32.gmra.mrb[0].mxu0 %v324
    %v539 = vpop.f32.mrb[0].mxu0
    %v540 = vadd.f32 0.0, %v539
    %v541 = vpop.f32.mrb[0].mxu0
    %542 = vmatprep.mubr.f32.mxu0 0.0
    %543 = vmatmul.mubr.f32.gmra.mrb[0].mxu0 %v325
    %v544 = vpop.f32.mrb[0].mxu0
    %v545 = vadd.f32 0.0, %v544
    %v546 = vpop.f32.mrb[0].mxu0
    %547 = vmatprep.mubr.f32.mxu0 0.0
    %548 = vmatmul.mubr.f32.gmra.mrb[0].mxu0 %v326
    %v549 = vpop.f32.mrb[0].mxu0
    %v550 = vadd.f32 0.0, %v549
    %v551 = vpop.f32.mrb[0].mxu0
    %552 = vmatprep.mubr.f32.mxu0 0.0
    %553 = vmatmul.mubr.f32.gmra.mrb[0].mxu0 %v327
    %v554 = vpop.f32.mrb[0].mxu0
    %v555 = vadd.f32 0.0, %v554
    %v556 = vpop.f32.mrb[0].mxu0
    %557 = vmatprep.mubr.f32.mxu0 0.0
    %558 = vmatmul.mubr.f32.gmra.mrb[0].mxu0 %v328
    %v559 = vpop.f32.mrb[0].mxu0
    %v560 = vadd.f32 0.0, %v559
    %v561 = vpop.f32.mrb[0].mxu0
    %562 = vmatprep.mubr.f32.mxu0 0.0
    %563 = vmatmul.mubr.f32.gmra.mrb[0].mxu0 %v329
    %v564 = vpop.f32.mrb[0].mxu0
    %v565 = vadd.f32 0.0, %v564
    %v566 = vpop.f32.mrb[0].mxu0
    %567 = vmatprep.mubr.f32.mxu0 0.0
    %568 = vmatmul.mubr.f32.gmra.mrb[0].mxu0 %v330
    %v569 = vpop.f32.mrb[0].mxu0
    %v570 = vadd.f32 0.0, %v569
    %v571 = vpop.f32.mrb[0].mxu0
    %572 = vdwg.mxu0
    %v573 = vsel %vm411, %v495, 0.0
    %574 = vadd.xlane.f32.xlu0 %v573
    %v575 = vpop.xlane.xlu0 %574
    %v576 = vsel %vm411, %v500, 0.0
    %577 = vadd.xlane.f32.xlu0 %v576
    %v578 = vpop.xlane.xlu0 %577
    %v579 = vsel %vm411, %v505, 0.0
    %580 = vadd.xlane.f32.xlu0 %v579
    %v581 = vpop.xlane.xlu0 %580
    %v582 = vsel %vm411, %v510, 0.0
    %583 = vadd.xlane.f32.xlu0 %v582
    %v584 = vpop.xlane.xlu0 %583
    %v585 = vsel %vm411, %v515, 0.0
    %586 = vadd.xlane.f32.xlu0 %v585
    %v587 = vpop.xlane.xlu0 %586
    %v588 = vsel %vm411, %v520, 0.0
    %589 = vadd.xlane.f32.xlu0 %v588
    %v590 = vpop.xlane.xlu0 %589
    %v591 = vsel %vm411, %v525, 0.0
    %592 = vadd.xlane.f32.xlu0 %v591
    %v593 = vpop.xlane.xlu0 %592
    %v594 = vsel %vm411, %v530, 0.0
    %595 = vadd.xlane.f32.xlu0 %v594
    %v596 = vpop.xlane.xlu0 %595
    %v597 = vsel %vm411, %v535, 0.0
    %598 = vadd.xlane.f32.xlu0 %v597
    %v599 = vpop.xlane.xlu0 %598
    %v600 = vsel %vm411, %v540, 0.0
    %601 = vadd.xlane.f32.xlu0 %v600
    %v602 = vpop.xlane.xlu0 %601
    %v603 = vsel %vm411, %v545, 0.0
    %604 = vadd.xlane.f32.xlu0 %v603
    %v605 = vpop.xlane.xlu0 %604
    %v606 = vsel %vm411, %v550, 0.0
    %607 = vadd.xlane.f32.xlu0 %v606
    %v608 = vpop.xlane.xlu0 %607
    %v609 = vsel %vm411, %v555, 0.0
    %610 = vadd.xlane.f32.xlu0 %v609
    %v611 = vpop.xlane.xlu0 %610
    %v612 = vsel %vm411, %v560, 0.0
    %613 = vadd.xlane.f32.xlu0 %v612
    %v614 = vpop.xlane.xlu0 %613
    %v615 = vsel %vm411, %v565, 0.0
    %616 = vadd.xlane.f32.xlu0 %v615
    %v617 = vpop.xlane.xlu0 %616
    %v618 = vsel %vm411, %v570, 0.0
    %619 = vadd.xlane.f32.xlu0 %v618
    %v620 = vpop.xlane.xlu0 %619
    %637 = vrot.lane.b32.xlu0 %v495, 116
    %v638 = vpop.permute.xlu0 %637
    %639 = vrot.lane.b32.xlu0 %v500, 116
    %v640 = vpop.permute.xlu0 %639
    %641 = vrot.lane.b32.xlu0 %v505, 116
    %v642 = vpop.permute.xlu0 %641
    %643 = vrot.lane.b32.xlu0 %v510, 116
    %v644 = vpop.permute.xlu0 %643
    %645 = vrot.lane.b32.xlu0 %v515, 116
    %v646 = vpop.permute.xlu0 %645
    %647 = vrot.lane.b32.xlu0 %v520, 116
    %v648 = vpop.permute.xlu0 %647
    %649 = vrot.lane.b32.xlu0 %v525, 116
    %v650 = vpop.permute.xlu0 %649
    %651 = vrot.lane.b32.xlu0 %v530, 116
    %v652 = vpop.permute.xlu0 %651
    %653 = vrot.lane.b32.xlu0 %v535, 116
    %v654 = vpop.permute.xlu0 %653
    %655 = vrot.lane.b32.xlu0 %v540, 116
    %v656 = vpop.permute.xlu0 %655
    %657 = vrot.lane.b32.xlu0 %v545, 116
    %v658 = vpop.permute.xlu0 %657
    %659 = vrot.lane.b32.xlu0 %v550, 116
    %v660 = vpop.permute.xlu0 %659
    %661 = vrot.lane.b32.xlu0 %v555, 116
    %v662 = vpop.permute.xlu0 %661
    %663 = vrot.lane.b32.xlu0 %v560, 116
    %v664 = vpop.permute.xlu0 %663
    %665 = vrot.lane.b32.xlu0 %v565, 116
    %v666 = vpop.permute.xlu0 %665
    %667 = vrot.lane.b32.xlu0 %v570, 116
    %v668 = vpop.permute.xlu0 %667
    %v685 = vsel %vm411, %v638, 0.0
    %686 = vadd.xlane.f32.xlu0 %v685
    %v687 = vpop.xlane.xlu0 %686
    %v688 = vsel %vm411, %v640, 0.0
    %689 = vadd.xlane.f32.xlu0 %v688
    %v690 = vpop.xlane.xlu0 %689
    %v691 = vsel %vm411, %v642, 0.0
    %692 = vadd.xlane.f32.xlu0 %v691
    %v693 = vpop.xlane.xlu0 %692
    %v694 = vsel %vm411, %v644, 0.0
    %695 = vadd.xlane.f32.xlu0 %v694
    %v696 = vpop.xlane.xlu0 %695
    %v697 = vsel %vm411, %v646, 0.0
    %698 = vadd.xlane.f32.xlu0 %v697
    %v699 = vpop.xlane.xlu0 %698
    %v700 = vsel %vm411, %v648, 0.0
    %701 = vadd.xlane.f32.xlu0 %v700
    %v702 = vpop.xlane.xlu0 %701
    %v703 = vsel %vm411, %v650, 0.0
    %704 = vadd.xlane.f32.xlu0 %v703
    %v705 = vpop.xlane.xlu0 %704
    %v706 = vsel %vm411, %v652, 0.0
    %707 = vadd.xlane.f32.xlu0 %v706
    %v708 = vpop.xlane.xlu0 %707
    %v709 = vsel %vm411, %v654, 0.0
    %710 = vadd.xlane.f32.xlu0 %v709
    %v711 = vpop.xlane.xlu0 %710
    %v712 = vsel %vm411, %v656, 0.0
    %713 = vadd.xlane.f32.xlu0 %v712
    %v714 = vpop.xlane.xlu0 %713
    %v715 = vsel %vm411, %v658, 0.0
    %716 = vadd.xlane.f32.xlu0 %v715
    %v717 = vpop.xlane.xlu0 %716
    %v718 = vsel %vm411, %v660, 0.0
    %719 = vadd.xlane.f32.xlu0 %v718
    %v720 = vpop.xlane.xlu0 %719
    %v721 = vsel %vm411, %v662, 0.0
    %722 = vadd.xlane.f32.xlu0 %v721
    %v723 = vpop.xlane.xlu0 %722
    %v724 = vsel %vm411, %v664, 0.0
    %725 = vadd.xlane.f32.xlu0 %v724
    %v726 = vpop.xlane.xlu0 %725
    %v727 = vsel %vm411, %v666, 0.0
    %728 = vadd.xlane.f32.xlu0 %v727
    %v729 = vpop.xlane.xlu0 %728
    %v730 = vsel %vm411, %v668, 0.0
    %731 = vadd.xlane.f32.xlu0 %v730
    %v732 = vpop.xlane.xlu0 %731
    %v733 = vmul.f32 %v575, %v575
    %v734 = vmul.f32 %v578, %v578
    %v735 = vmul.f32 %v581, %v581
    %v736 = vmul.f32 %v584, %v584
    %v737 = vmul.f32 %v587, %v587
    %v738 = vmul.f32 %v590, %v590
    %v739 = vmul.f32 %v593, %v593
    %v740 = vmul.f32 %v596, %v596
    %v741 = vmul.f32 %v599, %v599
    %v742 = vmul.f32 %v602, %v602
    %v743 = vmul.f32 %v605, %v605
    %v744 = vmul.f32 %v608, %v608
    %v745 = vmul.f32 %v611, %v611
    %v746 = vmul.f32 %v614, %v614
    %v747 = vmul.f32 %v617, %v617
    %v748 = vmul.f32 %v620, %v620
    %v749 = vsub.f32 %v687, %v733
    %v750 = vsub.f32 %v690, %v734
    %v751 = vsub.f32 %v693, %v735
    %v752 = vsub.f32 %v696, %v736
    %v753 = vsub.f32 %v699, %v737
    %v754 = vsub.f32 %v702, %v738
    %v755 = vsub.f32 %v705, %v739
    %v756 = vsub.f32 %v708, %v740
    %v757 = vsub.f32 %v711, %v741
    %v758 = vsub.f32 %v714, %v742
    %v759 = vsub.f32 %v717, %v743
    %v760 = vsub.f32 %v720, %v744
    %v761 = vsub.f32 %v723, %v745
    %v762 = vsub.f32 %v726, %v746
    %v763 = vsub.f32 %v729, %v747
    %v764 = vsub.f32 %v732, %v748
    %v765 = vsub.f32 %v237, %v575
    %v766 = vsub.f32 %v242, %v578
    %v767 = vsub.f32 %v247, %v581
    %v768 = vsub.f32 %v252, %v584
    %v769 = vsub.f32 %v257, %v587
    %v770 = vsub.f32 %v262, %v590
    %v771 = vsub.f32 %v267, %v593
    %v772 = vsub.f32 %v272, %v596
    %v773 = vsub.f32 %v277, %v599
    %v774 = vsub.f32 %v282, %v602
    %v775 = vsub.f32 %v287, %v605
    %v776 = vsub.f32 %v292, %v608
    %v777 = vsub.f32 %v297, %v611
    %v778 = vsub.f32 %v302, %v614
    %v779 = vsub.f32 %v307, %v617
    %v780 = vsub.f32 %v312, %v620
    %v781 = vadd.f32 %v749, 1e-05
    %v782 = vadd.f32 %v750, 1e-05
    %v783 = vadd.f32 %v751, 1e-05
    %v784 = vadd.f32 %v752, 1e-05
    %v785 = vadd.f32 %v753, 1e-05
    %v786 = vadd.f32 %v754, 1e-05
    %v787 = vadd.f32 %v755, 1e-05
    %v788 = vadd.f32 %v756, 1e-05
    %v789 = vadd.f32 %v757, 1e-05
    %v790 = vadd.f32 %v758, 1e-05
    %v791 = vadd.f32 %v759, 1e-05
    %v792 = vadd.f32 %v760, 1e-05
    %v793 = vadd.f32 %v761, 1e-05
    %v794 = vadd.f32 %v762, 1e-05
    %v795 = vadd.f32 %v763, 1e-05
    %v796 = vadd.f32 %v764, 1e-05
    %v797 = vrsqrt.pop %v781
    %v798 = vrsqrt.pop %v782
    %v799 = vrsqrt.pop %v783
    %v800 = vrsqrt.pop %v784
    %v801 = vrsqrt.pop %v785
    %v802 = vrsqrt.pop %v786
    %v803 = vrsqrt.pop %v787
    %v804 = vrsqrt.pop %v788
    %v805 = vrsqrt.pop %v789
    %v806 = vrsqrt.pop %v790
    %v807 = vrsqrt.pop %v791
    %v808 = vrsqrt.pop %v792
    %v809 = vrsqrt.pop %v793
    %v810 = vrsqrt.pop %v794
    %v811 = vrsqrt.pop %v795
    %v812 = vrsqrt.pop %v796
    %v813 = vmul.f32 %v765, %v797
    %v814 = vmul.f32 %v766, %v798
    %v815 = vmul.f32 %v767, %v799
    %v816 = vmul.f32 %v768, %v800
    %v817 = vmul.f32 %v769, %v801
    %v818 = vmul.f32 %v770, %v802
    %v819 = vmul.f32 %v771, %v803
    %v820 = vmul.f32 %v772, %v804
    %v821 = vmul.f32 %v773, %v805
    %v822 = vmul.f32 %v774, %v806
    %v823 = vmul.f32 %v775, %v807
    %v824 = vmul.f32 %v776, %v808
    %v825 = vmul.f32 %v777, %v809
    %v826 = vmul.f32 %v778, %v810
    %v827 = vmul.f32 %v779, %v811
    %v828 = vmul.f32 %v780, %v812
    %v829 = vstv %s97
    %v830 = vmul.f32 %v813, %v829
    %v831 = vmul.f32 %v814, %v829
    %v832 = vmul.f32 %v815, %v829
    %v833 = vmul.f32 %v816, %v829
    %v834 = vmul.f32 %v817, %v829
    %v835 = vmul.f32 %v818, %v829
    %v836 = vmul.f32 %v819, %v829
    %v837 = vmul.f32 %v820, %v829
    %v838 = vmul.f32 %v821, %v829
    %v839 = vmul.f32 %v822, %v829
    %v840 = vmul.f32 %v823, %v829
    %v841 = vmul.f32 %v824, %v829
    %v842 = vmul.f32 %v825, %v829
    %v843 = vmul.f32 %v826, %v829
    %v844 = vmul.f32 %v827, %v829
    %v845 = vmul.f32 %v828, %v829
    %v846 = vstv %s98
    %v847 = vadd.f32 %v830, %v846
    %v848 = vadd.f32 %v831, %v846
    %v849 = vadd.f32 %v832, %v846
    %v850 = vadd.f32 %v833, %v846
    %v851 = vadd.f32 %v834, %v846
    %v852 = vadd.f32 %v835, %v846
    %v853 = vadd.f32 %v836, %v846
    %v854 = vadd.f32 %v837, %v846
    %v855 = vadd.f32 %v838, %v846
    %v856 = vadd.f32 %v839, %v846
    %v857 = vadd.f32 %v840, %v846
    %v858 = vadd.f32 %v841, %v846
    %v859 = vadd.f32 %v842, %v846
    %v860 = vadd.f32 %v843, %v846
    %v861 = vadd.f32 %v844, %v846
    %v862 = vadd.f32 %v845, %v846
    %vm863 = vcmp.gt.f32.partialorder %v847, 0.0
    %vm864 = vcmp.gt.f32.partialorder %v848, 0.0
    %vm865 = vcmp.gt.f32.partialorder %v849, 0.0
    %vm866 = vcmp.gt.f32.partialorder %v850, 0.0
    %vm867 = vcmp.gt.f32.partialorder %v851, 0.0
    %vm868 = vcmp.gt.f32.partialorder %v852, 0.0
    %vm869 = vcmp.gt.f32.partialorder %v853, 0.0
    %vm870 = vcmp.gt.f32.partialorder %v854, 0.0
    %vm871 = vcmp.gt.f32.partialorder %v855, 0.0
    %vm872 = vcmp.gt.f32.partialorder %v856, 0.0
    %vm873 = vcmp.gt.f32.partialorder %v857, 0.0
    %vm874 = vcmp.gt.f32.partialorder %v858, 0.0
    %vm875 = vcmp.gt.f32.partialorder %v859, 0.0
    %vm876 = vcmp.gt.f32.partialorder %v860, 0.0
    %vm877 = vcmp.gt.f32.partialorder %v861, 0.0
    %vm878 = vcmp.gt.f32.partialorder %v862, 0.0
    %v879 = vmin.f32 %v847, 0.0
    %v880 = vmin.f32 %v848, 0.0
    %v881 = vmin.f32 %v849, 0.0
    %v882 = vmin.f32 %v850, 0.0
    %v883 = vmin.f32 %v851, 0.0
    %v884 = vmin.f32 %v852, 0.0
    %v885 = vmin.f32 %v853, 0.0
    %v886 = vmin.f32 %v854, 0.0
    %v887 = vmin.f32 %v855, 0.0
    %v888 = vmin.f32 %v856, 0.0
    %v889 = vmin.f32 %v857, 0.0
    %v890 = vmin.f32 %v858, 0.0
    %v891 = vmin.f32 %v859, 0.0
    %v892 = vmin.f32 %v860, 0.0
    %v893 = vmin.f32 %v861, 0.0
    %v894 = vmin.f32 %v862, 0.0
    %v895 = vmul.f32 %v879, 1.442695
    %v896 = vpow.pop %v895
    %v897 = vmul.f32 %v880, 1.442695
    %v898 = vpow.pop %v897
    %v899 = vmul.f32 %v881, 1.442695
    %v900 = vpow.pop %v899
    %v901 = vmul.f32 %v882, 1.442695
    %v902 = vpow.pop %v901
    %v903 = vmul.f32 %v883, 1.442695
    %v904 = vpow.pop %v903
    %v905 = vmul.f32 %v884, 1.442695
    %v906 = vpow.pop %v905
    %v907 = vmul.f32 %v885, 1.442695
    %v908 = vpow.pop %v907
    %v909 = vmul.f32 %v886, 1.442695
    %v910 = vpow.pop %v909
    %v911 = vmul.f32 %v887, 1.442695
    %v912 = vpow.pop %v911
    %v913 = vmul.f32 %v888, 1.442695
    %v914 = vpow.pop %v913
    %v915 = vmul.f32 %v889, 1.442695
    %v916 = vpow.pop %v915
    %v917 = vmul.f32 %v890, 1.442695
    %v918 = vpow.pop %v917
    %v919 = vmul.f32 %v891, 1.442695
    %v920 = vpow.pop %v919
    %v921 = vmul.f32 %v892, 1.442695
    %v922 = vpow.pop %v921
    %v923 = vmul.f32 %v893, 1.442695
    %v924 = vpow.pop %v923
    %v925 = vmul.f32 %v894, 1.442695
    %v926 = vpow.pop %v925
    %v927 = vsub.f32 %v896, 1.0
    %v928 = vsub.f32 %v898, 1.0
    %v929 = vsub.f32 %v900, 1.0
    %v930 = vsub.f32 %v902, 1.0
    %v931 = vsub.f32 %v904, 1.0
    %v932 = vsub.f32 %v906, 1.0
    %v933 = vsub.f32 %v908, 1.0
    %v934 = vsub.f32 %v910, 1.0
    %v935 = vsub.f32 %v912, 1.0
    %v936 = vsub.f32 %v914, 1.0
    %v937 = vsub.f32 %v916, 1.0
    %v938 = vsub.f32 %v918, 1.0
    %v939 = vsub.f32 %v920, 1.0
    %v940 = vsub.f32 %v922, 1.0
    %v941 = vsub.f32 %v924, 1.0
    %v942 = vsub.f32 %v926, 1.0
    %v943 = vsel %vm863, %v847, %v927
    %v944 = vsel %vm864, %v848, %v928
    %v945 = vsel %vm865, %v849, %v929
    %v946 = vsel %vm866, %v850, %v930
    %v947 = vsel %vm867, %v851, %v931
    %v948 = vsel %vm868, %v852, %v932
    %v949 = vsel %vm869, %v853, %v933
    %v950 = vsel %vm870, %v854, %v934
    %v951 = vsel %vm871, %v855, %v935
    %v952 = vsel %vm872, %v856, %v936
    %v953 = vsel %vm873, %v857, %v937
    %v954 = vsel %vm874, %v858, %v938
    %v955 = vsel %vm875, %v859, %v939
    %v956 = vsel %vm876, %v860, %v940
    %v957 = vsel %vm877, %v861, %v941
    %v958 = vsel %vm878, %v862, %v942
    %v959 = vld [vmem:[#allocation6] sm:$0xff]
    %v960 = vld [vmem:[#allocation6 + $0x8] sm:$0xf]
    %v961 = vld [vmem:[%s5] sm:$0x1]
    %v963 = vlaneseq
    %v964 = vshrl.u32 %v963, 7
    %v965 = vsub.s32 0, %v964
    %v966 = vrot.slane %v961, %v965
    %v969 = vsel %vm411, %v943, 0
    %v972 = vsel %vm411, %v944, 0
    %v975 = vsel %vm411, %v945, 0
    %v978 = vsel %vm411, %v946, 0
    %v981 = vsel %vm411, %v947, 0
    %v984 = vsel %vm411, %v948, 0
    %v987 = vsel %vm411, %v949, 0
    %v990 = vsel %vm411, %v950, 0
    %v993 = vsel %vm411, %v951, 0
    %v996 = vsel %vm411, %v952, 0
    %v999 = vsel %vm411, %v953, 0
    %v1002 = vsel %vm411, %v954, 0
    %v1005 = vsel %vm411, %v955, 0
    %v1008 = vsel %vm411, %v956, 0
    %v1011 = vsel %vm411, %v957, 0
    %v1014 = vsel %vm411, %v958, 0
    %vm1016 = vcmask 1043456
    %v1018 = vsel %vm1016, %v960, 0
    %1020 = vmatprep.subr.mxu0 0.0
    %1021 = vmatpush1.msra.mxu0 %v959
    %1022 = vmatprep.subr.mxu0 0.0
    %1023 = vmatpush1.msra.mxu0 %v1018
    %1024 = vmatprep.subr.mxu0 0.0
    %1025 = vmatpush1.msra.mxu0 0.0
    %1026 = vmatprep.subr.mxu0 0.0
    %1027 = vmatpush1.msra.mxu0 0.0
    %1028 = vmatprep.subr.mxu0 0.0
    %1029 = vmatpush1.msra.mxu0 0.0
    %1030 = vmatprep.subr.mxu0 0.0
    %1031 = vmatpush1.msra.mxu0 0.0
    %1032 = vmatprep.subr.mxu0 0.0
    %1033 = vmatpush1.msra.mxu0 0.0
    %1034 = vmatprep.subr.mxu0 0.0
    %1035 = vmatpush1.msra.mxu0 0.0
    %1036 = vmatprep.subr.mxu0 0.0
    %1037 = vmatpush1.msra.mxu0 0.0
    %1038 = vmatprep.subr.mxu0 0.0
    %1039 = vmatpush1.msra.mxu0 0.0
    %1040 = vmatprep.subr.mxu0 0.0
    %1041 = vmatpush1.msra.mxu0 0.0
    %1042 = vmatprep.subr.mxu0 0.0
    %1043 = vmatpush1.msra.mxu0 0.0
    %1044 = vmatprep.subr.mxu0 0.0
    %1045 = vmatpush1.msra.mxu0 0.0
    %1046 = vmatprep.subr.mxu0 0.0
    %1047 = vmatpush1.msra.mxu0 0.0
    %1048 = vmatprep.subr.mxu0 0.0
    %1049 = vmatpush1.msra.mxu0 0.0
    %1050 = vmatprep.subr.mxu0 0.0
    %1051 = vmatpush1.msra.mxu0 0.0
    %1052 = vmatprep.subr.mxu0 0.0
    %1053 = vmatpush1.msra.mxu0 0.0
    %1054 = vmatprep.subr.mxu0 0.0
    %1055 = vmatpush1.msra.mxu0 0.0
    %1056 = vmatprep.subr.mxu0 0.0
    %1057 = vmatpush1.msra.mxu0 0.0
    %1058 = vmatprep.subr.mxu0 0.0
    %1059 = vmatpush1.msra.mxu0 0.0
    %1060 = vmatprep.subr.mxu0 0.0
    %1061 = vmatpush1.msra.mxu0 0.0
    %1062 = vmatprep.subr.mxu0 0.0
    %1063 = vmatpush1.msra.mxu0 0.0
    %1064 = vmatprep.subr.mxu0 0.0
    %1065 = vmatpush1.msra.mxu0 0.0
    %1066 = vmatprep.subr.mxu0 0.0
    %1067 = vmatpush1.msra.mxu0 0.0
    %1068 = vmatprep.subr.mxu0 0.0
    %1069 = vmatpush1.msra.mxu0 0.0
    %1070 = vmatprep.subr.mxu0 0.0
    %1071 = vmatpush1.msra.mxu0 0.0
    %1072 = vmatprep.subr.mxu0 0.0
    %1073 = vmatpush1.msra.mxu0 0.0
    %1074 = vmatprep.subr.mxu0 0.0
    %1075 = vmatpush1.msra.mxu0 0.0
    %1076 = vmatprep.subr.mxu0 0.0
    %1077 = vmatpush1.msra.mxu0 0.0
    %1078 = vmatprep.subr.mxu0 0.0
    %1079 = vmatpush1.msra.mxu0 0.0
    %1080 = vmatprep.subr.mxu0 0.0
    %1081 = vmatpush1.msra.mxu0 0.0
    %1082 = vmatprep.subr.mxu0 0.0
    %1083 = vmatpush1.msra.mxu0 0.0
    %1084 = vmatprep.mubr.f32.mxu0 0.0
    %1085 = vmatmul.mubr.f32.gmra.mrb[0].mxu0 %v969
    %v1086 = vpop.f32.mrb[0].mxu0
    %v1087 = vadd.f32 %v966, %v1086
    %v1088 = vpop.f32.mrb[0].mxu0
    %1089 = vmatprep.mubr.f32.mxu0 0.0
    %1090 = vmatmul.mubr.f32.gmra.mrb[0].mxu0 %v972
    %v1091 = vpop.f32.mrb[0].mxu0
    %v1092 = vadd.f32 %v966, %v1091
    %v1093 = vpop.f32.mrb[0].mxu0
    %1094 = vmatprep.mubr.f32.mxu0 0.0
    %1095 = vmatmul.mubr.f32.gmra.mrb[0].mxu0 %v975
    %v1096 = vpop.f32.mrb[0].mxu0
    %v1097 = vadd.f32 %v966, %v1096
    %v1098 = vpop.f32.mrb[0].mxu0
    %1099 = vmatprep.mubr.f32.mxu0 0.0
    %1100 = vmatmul.mubr.f32.gmra.mrb[0].mxu0 %v978
    %v1101 = vpop.f32.mrb[0].mxu0
    %v1102 = vadd.f32 %v966, %v1101
    %v1103 = vpop.f32.mrb[0].mxu0
    %1104 = vmatprep.mubr.f32.mxu0 0.0
    %1105 = vmatmul.mubr.f32.gmra.mrb[0].mxu0 %v981
    %v1106 = vpop.f32.mrb[0].mxu0
    %v1107 = vadd.f32 %v966, %v1106
    %v1108 = vpop.f32.mrb[0].mxu0
    %1109 = vmatprep.mubr.f32.mxu0 0.0
    %1110 = vmatmul.mubr.f32.gmra.mrb[0].mxu0 %v984
    %v1111 = vpop.f32.mrb[0].mxu0
    %v1112 = vadd.f32 %v966, %v1111
    %v1113 = vpop.f32.mrb[0].mxu0
    %1114 = vmatprep.mubr.f32.mxu0 0.0
    %1115 = vmatmul.mubr.f32.gmra.mrb[0].mxu0 %v987
    %v1116 = vpop.f32.mrb[0].mxu0
    %v1117 = vadd.f32 %v966, %v1116
    %v1118 = vpop.f32.mrb[0].mxu0
    %1119 = vmatprep.mubr.f32.mxu0 0.0
    %1120 = vmatmul.mubr.f32.gmra.mrb[0].mxu0 %v990
    %v1121 = vpop.f32.mrb[0].mxu0
    %v1122 = vadd.f32 %v966, %v1121
    %v1123 = vpop.f32.mrb[0].mxu0
    %1124 = vmatprep.mubr.f32.mxu0 0.0
    %1125 = vmatmul.mubr.f32.gmra.mrb[0].mxu0 %v993
    %v1126 = vpop.f32.mrb[0].mxu0
    %v1127 = vadd.f32 %v966, %v1126
    %v1128 = vpop.f32.mrb[0].mxu0
    %1129 = vmatprep.mubr.f32.mxu0 0.0
    %1130 = vmatmul.mubr.f32.gmra.mrb[0].mxu0 %v996
    %v1131 = vpop.f32.mrb[0].mxu0
    %v1132 = vadd.f32 %v966, %v1131
    %v1133 = vpop.f32.mrb[0].mxu0
    %1134 = vmatprep.mubr.f32.mxu0 0.0
    %1135 = vmatmul.mubr.f32.gmra.mrb[0].mxu0 %v999
    %v1136 = vpop.f32.mrb[0].mxu0
    %v1137 = vadd.f32 %v966, %v1136
    %v1138 = vpop.f32.mrb[0].mxu0
    %1139 = vmatprep.mubr.f32.mxu0 0.0
    %1140 = vmatmul.mubr.f32.gmra.mrb[0].mxu0 %v1002
    %v1141 = vpop.f32.mrb[0].mxu0
    %v1142 = vadd.f32 %v966, %v1141
    %v1143 = vpop.f32.mrb[0].mxu0
    %1144 = vmatprep.mubr.f32.mxu0 0.0
    %1145 = vmatmul.mubr.f32.gmra.mrb[0].mxu0 %v1005
    %v1146 = vpop.f32.mrb[0].mxu0
    %v1147 = vadd.f32 %v966, %v1146
    %v1148 = vpop.f32.mrb[0].mxu0
    %1149 = vmatprep.mubr.f32.mxu0 0.0
    %1150 = vmatmul.mubr.f32.gmra.mrb[0].mxu0 %v1008
    %v1151 = vpop.f32.mrb[0].mxu0
    %v1152 = vadd.f32 %v966, %v1151
    %v1153 = vpop.f32.mrb[0].mxu0
    %1154 = vmatprep.mubr.f32.mxu0 0.0
    %1155 = vmatmul.mubr.f32.gmra.mrb[0].mxu0 %v1011
    %v1156 = vpop.f32.mrb[0].mxu0
    %v1157 = vadd.f32 %v966, %v1156
    %v1158 = vpop.f32.mrb[0].mxu0
    %1159 = vmatprep.mubr.f32.mxu0 0.0
    %1160 = vmatmul.mubr.f32.gmra.mrb[0].mxu0 %v1014
    %v1161 = vpop.f32.mrb[0].mxu0
    %v1162 = vadd.f32 %v966, %v1161
    %v1163 = vpop.f32.mrb[0].mxu0
    %1164 = vdwg.mxu0
    %1181 = vrot.lane.b32.xlu0 %v1087, 122
    %v1182 = vpop.permute.xlu0 %1181
    %1183 = vrot.lane.b32.xlu0 %v1092, 122
    %v1184 = vpop.permute.xlu0 %1183
    %1185 = vrot.lane.b32.xlu0 %v1097, 122
    %v1186 = vpop.permute.xlu0 %1185
    %1187 = vrot.lane.b32.xlu0 %v1102, 122
    %v1188 = vpop.permute.xlu0 %1187
    %1189 = vrot.lane.b32.xlu0 %v1107, 122
    %v1190 = vpop.permute.xlu0 %1189
    %1191 = vrot.lane.b32.xlu0 %v1112, 122
    %v1192 = vpop.permute.xlu0 %1191
    %1193 = vrot.lane.b32.xlu0 %v1117, 122
    %v1194 = vpop.permute.xlu0 %1193
    %1195 = vrot.lane.b32.xlu0 %v1122, 122
    %v1196 = vpop.permute.xlu0 %1195
    %1197 = vrot.lane.b32.xlu0 %v1127, 122
    %v1198 = vpop.permute.xlu0 %1197
    %1199 = vrot.lane.b32.xlu0 %v1132, 122
    %v1200 = vpop.permute.xlu0 %1199
    %1201 = vrot.lane.b32.xlu0 %v1137, 122
    %v1202 = vpop.permute.xlu0 %1201
    %1203 = vrot.lane.b32.xlu0 %v1142, 122
    %v1204 = vpop.permute.xlu0 %1203
    %1205 = vrot.lane.b32.xlu0 %v1147, 122
    %v1206 = vpop.permute.xlu0 %1205
    %1207 = vrot.lane.b32.xlu0 %v1152, 122
    %v1208 = vpop.permute.xlu0 %1207
    %1209 = vrot.lane.b32.xlu0 %v1157, 122
    %v1210 = vpop.permute.xlu0 %1209
    %1211 = vrot.lane.b32.xlu0 %v1162, 122
    %v1212 = vpop.permute.xlu0 %1211
    %v1229 = vmax.f32 %v1087, %v1182
    %v1230 = vmax.f32 %v1092, %v1184
    %v1231 = vmax.f32 %v1097, %v1186
    %v1232 = vmax.f32 %v1102, %v1188
    %v1233 = vmax.f32 %v1107, %v1190
    %v1234 = vmax.f32 %v1112, %v1192
    %v1235 = vmax.f32 %v1117, %v1194
    %v1236 = vmax.f32 %v1122, %v1196
    %v1237 = vmax.f32 %v1127, %v1198
    %v1238 = vmax.f32 %v1132, %v1200
    %v1239 = vmax.f32 %v1137, %v1202
    %v1240 = vmax.f32 %v1142, %v1204
    %v1241 = vmax.f32 %v1147, %v1206
    %v1242 = vmax.f32 %v1152, %v1208
    %v1243 = vmax.f32 %v1157, %v1210
    %v1244 = vmax.f32 %v1162, %v1212
    %1245 = vrot.lane.b32.xlu0 %v1087, 116
    %v1246 = vpop.permute.xlu0 %1245
    %1247 = vrot.lane.b32.xlu0 %v1092, 116
    %v1248 = vpop.permute.xlu0 %1247
    %1249 = vrot.lane.b32.xlu0 %v1097, 116
    %v1250 = vpop.permute.xlu0 %1249
    %1251 = vrot.lane.b32.xlu0 %v1102, 116
    %v1252 = vpop.permute.xlu0 %1251
    %1253 = vrot.lane.b32.xlu0 %v1107, 116
    %v1254 = vpop.permute.xlu0 %1253
    %1255 = vrot.lane.b32.xlu0 %v1112, 116
    %v1256 = vpop.permute.xlu0 %1255
    %1257 = vrot.lane.b32.xlu0 %v1117, 116
    %v1258 = vpop.permute.xlu0 %1257
    %1259 = vrot.lane.b32.xlu0 %v1122, 116
    %v1260 = vpop.permute.xlu0 %1259
    %1261 = vrot.lane.b32.xlu0 %v1127, 116
    %v1262 = vpop.permute.xlu0 %1261
    %1263 = vrot.lane.b32.xlu0 %v1132, 116
    %v1264 = vpop.permute.xlu0 %1263
    %1265 = vrot.lane.b32.xlu0 %v1137, 116
    %v1266 = vpop.permute.xlu0 %1265
    %1267 = vrot.lane.b32.xlu0 %v1142, 116
    %v1268 = vpop.permute.xlu0 %1267
    %1269 = vrot.lane.b32.xlu0 %v1147, 116
    %v1270 = vpop.permute.xlu0 %1269
    %1271 = vrot.lane.b32.xlu0 %v1152, 116
    %v1272 = vpop.permute.xlu0 %1271
    %1273 = vrot.lane.b32.xlu0 %v1157, 116
    %v1274 = vpop.permute.xlu0 %1273
    %1275 = vrot.lane.b32.xlu0 %v1162, 116
    %v1276 = vpop.permute.xlu0 %1275
    %v1293 = vmax.f32 %v1229, %v1246
    %v1294 = vmax.f32 %v1230, %v1248
    %v1295 = vmax.f32 %v1231, %v1250
    %v1296 = vmax.f32 %v1232, %v1252
    %v1297 = vmax.f32 %v1233, %v1254
    %v1298 = vmax.f32 %v1234, %v1256
    %v1299 = vmax.f32 %v1235, %v1258
    %v1300 = vmax.f32 %v1236, %v1260
    %v1301 = vmax.f32 %v1237, %v1262
    %v1302 = vmax.f32 %v1238, %v1264
    %v1303 = vmax.f32 %v1239, %v1266
    %v1304 = vmax.f32 %v1240, %v1268
    %v1305 = vmax.f32 %v1241, %v1270
    %v1306 = vmax.f32 %v1242, %v1272
    %v1307 = vmax.f32 %v1243, %v1274
    %v1308 = vmax.f32 %v1244, %v1276
    %v1309 = vld [vmem:[%s6] sm:$0x3f]
    %v1310 = vld [vmem:[#allocation7] sm:$0x1]
    %v1312 = vlaneseq
    %v1313 = vshrl.u32 %v1312, 7
    %v1314 = vsub.s32 0, %v1313
    %v1315 = vrot.slane %v1310, %v1314
    %vm1317 = vcmask 48128
    %v1319 = vsel %vm1317, %v1293, 0
    %v1322 = vsel %vm1317, %v1294, 0
    %v1325 = vsel %vm1317, %v1295, 0
    %v1328 = vsel %vm1317, %v1296, 0
    %v1331 = vsel %vm1317, %v1297, 0
    %v1334 = vsel %vm1317, %v1298, 0
    %v1337 = vsel %vm1317, %v1299, 0
    %v1340 = vsel %vm1317, %v1300, 0
    %v1343 = vsel %vm1317, %v1301, 0
    %v1346 = vsel %vm1317, %v1302, 0
    %v1349 = vsel %vm1317, %v1303, 0
    %v1352 = vsel %vm1317, %v1304, 0
    %v1355 = vsel %vm1317, %v1305, 0
    %v1358 = vsel %vm1317, %v1306, 0
    %v1361 = vsel %vm1317, %v1307, 0
    %v1364 = vsel %vm1317, %v1308, 0
    %vm1366 = vcmask 1045504
    %v1368 = vsel %vm1366, %v1309, 0
    %1370 = vmatprep.subr.mxu0 0.0
    %1371 = vmatpush1.msra.mxu0 %v1368
    %1372 = vmatprep.subr.mxu0 0.0
    %1373 = vmatpush1.msra.mxu0 0.0
    %1374 = vmatprep.subr.mxu0 0.0
    %1375 = vmatpush1.msra.mxu0 0.0
    %1376 = vmatprep.subr.mxu0 0.0
    %1377 = vmatpush1.msra.mxu0 0.0
    %1378 = vmatprep.subr.mxu0 0.0
    %1379 = vmatpush1.msra.mxu0 0.0
    %1380 = vmatprep.subr.mxu0 0.0
    %1381 = vmatpush1.msra.mxu0 0.0
    %1382 = vmatprep.subr.mxu0 0.0
    %1383 = vmatpush1.msra.mxu0 0.0
    %1384 = vmatprep.subr.mxu0 0.0
    %1385 = vmatpush1.msra.mxu0 0.0
    %1386 = vmatprep.subr.mxu0 0.0
    %1387 = vmatpush1.msra.mxu0 0.0
    %1388 = vmatprep.subr.mxu0 0.0
    %1389 = vmatpush1.msra.mxu0 0.0
    %1390 = vmatprep.subr.mxu0 0.0
    %1391 = vmatpush1.msra.mxu0 0.0
    %1392 = vmatprep.subr.mxu0 0.0
    %1393 = vmatpush1.msra.mxu0 0.0
    %1394 = vmatprep.subr.mxu0 0.0
    %1395 = vmatpush1.msra.mxu0 0.0
    %1396 = vmatprep.subr.mxu0 0.0
    %1397 = vmatpush1.msra.mxu0 0.0
    %1398 = vmatprep.subr.mxu0 0.0
    %1399 = vmatpush1.msra.mxu0 0.0
    %1400 = vmatprep.subr.mxu0 0.0
    %1401 = vmatpush1.msra.mxu0 0.0
    %1402 = vmatprep.subr.mxu0 0.0
    %1403 = vmatpush1.msra.mxu0 0.0
    %1404 = vmatprep.subr.mxu0 0.0
    %1405 = vmatpush1.msra.mxu0 0.0
    %1406 = vmatprep.subr.mxu0 0.0
    %1407 = vmatpush1.msra.mxu0 0.0
    %1408 = vmatprep.subr.mxu0 0.0
    %1409 = vmatpush1.msra.mxu0 0.0
    %1410 = vmatprep.subr.mxu0 0.0
    %1411 = vmatpush1.msra.mxu0 0.0
    %1412 = vmatprep.subr.mxu0 0.0
    %1413 = vmatpush1.msra.mxu0 0.0
    %1414 = vmatprep.subr.mxu0 0.0
    %1415 = vmatpush1.msra.mxu0 0.0
    %1416 = vmatprep.subr.mxu0 0.0
    %1417 = vmatpush1.msra.mxu0 0.0
    %1418 = vmatprep.subr.mxu0 0.0
    %1419 = vmatpush1.msra.mxu0 0.0
    %1420 = vmatprep.subr.mxu0 0.0
    %1421 = vmatpush1.msra.mxu0 0.0
    %1422 = vmatprep.subr.mxu0 0.0
    %1423 = vmatpush1.msra.mxu0 0.0
    %1424 = vmatprep.subr.mxu0 0.0
    %1425 = vmatpush1.msra.mxu0 0.0
    %1426 = vmatprep.subr.mxu0 0.0
    %1427 = vmatpush1.msra.mxu0 0.0
    %1428 = vmatprep.subr.mxu0 0.0
    %1429 = vmatpush1.msra.mxu0 0.0
    %1430 = vmatprep.subr.mxu0 0.0
    %1431 = vmatpush1.msra.mxu0 0.0
    %1432 = vmatprep.subr.mxu0 0.0
    %1433 = vmatpush1.msra.mxu0 0.0
    %1434 = vmatprep.mubr.f32.mxu0 0.0
    %1435 = vmatmul.mubr.f32.gmra.mrb[0].mxu0 %v1319
    %v1436 = vpop.f32.mrb[0].mxu0
    %v1437 = vadd.f32 %v1315, %v1436
    %v1438 = vpop.f32.mrb[0].mxu0
    %1439 = vmatprep.mubr.f32.mxu0 0.0
    %1440 = vmatmul.mubr.f32.gmra.mrb[0].mxu0 %v1322
    %v1441 = vpop.f32.mrb[0].mxu0
    %v1442 = vadd.f32 %v1315, %v1441
    %v1443 = vpop.f32.mrb[0].mxu0
    %1444 = vmatprep.mubr.f32.mxu0 0.0
    %1445 = vmatmul.mubr.f32.gmra.mrb[0].mxu0 %v1325
    %v1446 = vpop.f32.mrb[0].mxu0
    %v1447 = vadd.f32 %v1315, %v1446
    %v1448 = vpop.f32.mrb[0].mxu0
    %1449 = vmatprep.mubr.f32.mxu0 0.0
    %1450 = vmatmul.mubr.f32.gmra.mrb[0].mxu0 %v1328
    %v1451 = vpop.f32.mrb[0].mxu0
    %v1452 = vadd.f32 %v1315, %v1451
    %v1453 = vpop.f32.mrb[0].mxu0
    %1454 = vmatprep.mubr.f32.mxu0 0.0
    %1455 = vmatmul.mubr.f32.gmra.mrb[0].mxu0 %v1331
    %v1456 = vpop.f32.mrb[0].mxu0
    %v1457 = vadd.f32 %v1315, %v1456
    %v1458 = vpop.f32.mrb[0].mxu0
    %1459 = vmatprep.mubr.f32.mxu0 0.0
    %1460 = vmatmul.mubr.f32.gmra.mrb[0].mxu0 %v1334
    %v1461 = vpop.f32.mrb[0].mxu0
    %v1462 = vadd.f32 %v1315, %v1461
    %v1463 = vpop.f32.mrb[0].mxu0
    %1464 = vmatprep.mubr.f32.mxu0 0.0
    %1465 = vmatmul.mubr.f32.gmra.mrb[0].mxu0 %v1337
    %v1466 = vpop.f32.mrb[0].mxu0
    %v1467 = vadd.f32 %v1315, %v1466
    %v1468 = vpop.f32.mrb[0].mxu0
    %1469 = vmatprep.mubr.f32.mxu0 0.0
    %1470 = vmatmul.mubr.f32.gmra.mrb[0].mxu0 %v1340
    %v1471 = vpop.f32.mrb[0].mxu0
    %v1472 = vadd.f32 %v1315, %v1471
    %v1473 = vpop.f32.mrb[0].mxu0
    %1474 = vmatprep.mubr.f32.mxu0 0.0
    %1475 = vmatmul.mubr.f32.gmra.mrb[0].mxu0 %v1343
    %v1476 = vpop.f32.mrb[0].mxu0
    %v1477 = vadd.f32 %v1315, %v1476
    %v1478 = vpop.f32.mrb[0].mxu0
    %1479 = vmatprep.mubr.f32.mxu0 0.0
    %1480 = vmatmul.mubr.f32.gmra.mrb[0].mxu0 %v1346
    %v1481 = vpop.f32.mrb[0].mxu0
    %v1482 = vadd.f32 %v1315, %v1481
    %v1483 = vpop.f32.mrb[0].mxu0
    %1484 = vmatprep.mubr.f32.mxu0 0.0
    %1485 = vmatmul.mubr.f32.gmra.mrb[0].mxu0 %v1349
    %v1486 = vpop.f32.mrb[0].mxu0
    %v1487 = vadd.f32 %v1315, %v1486
    %v1488 = vpop.f32.mrb[0].mxu0
    %1489 = vmatprep.mubr.f32.mxu0 0.0
    %1490 = vmatmul.mubr.f32.gmra.mrb[0].mxu0 %v1352
    %v1491 = vpop.f32.mrb[0].mxu0
    %v1492 = vadd.f32 %v1315, %v1491
    %v1493 = vpop.f32.mrb[0].mxu0
    %1494 = vmatprep.mubr.f32.mxu0 0.0
    %1495 = vmatmul.mubr.f32.gmra.mrb[0].mxu0 %v1355
    %v1496 = vpop.f32.mrb[0].mxu0
    %v1497 = vadd.f32 %v1315, %v1496
    %v1498 = vpop.f32.mrb[0].mxu0
    %1499 = vmatprep.mubr.f32.mxu0 0.0
    %1500 = vmatmul.mubr.f32.gmra.mrb[0].mxu0 %v1358
    %v1501 = vpop.f32.mrb[0].mxu0
    %v1502 = vadd.f32 %v1315, %v1501
    %v1503 = vpop.f32.mrb[0].mxu0
    %1504 = vmatprep.mubr.f32.mxu0 0.0
    %1505 = vmatmul.mubr.f32.gmra.mrb[0].mxu0 %v1361
    %v1506 = vpop.f32.mrb[0].mxu0
    %v1507 = vadd.f32 %v1315, %v1506
    %v1508 = vpop.f32.mrb[0].mxu0
    %1509 = vmatprep.mubr.f32.mxu0 0.0
    %1510 = vmatmul.mubr.f32.gmra.mrb[0].mxu0 %v1364
    %v1511 = vpop.f32.mrb[0].mxu0
    %v1512 = vadd.f32 %v1315, %v1511
    %v1513 = vpop.f32.mrb[0].mxu0
    %1514 = vdwg.mxu0
    %v1515 = vld [vmem:[%s8] sm:$0xff]
    %v1516 = vld [vmem:[%s8 + $0x8] sm:$0xff]
    %v1517 = vld [vmem:[%s8 + $0x10] sm:$0xff]
    %v1518 = vld [vmem:[%s8 + $0x18] sm:$0xff]
    %v1519 = vld [vmem:[%s9] sm:$0xff]
    %v1520 = vld [vmem:[%s9 + $0x8] sm:$0xff]
    %v1521 = vld [vmem:[%s9 + $0x10] sm:$0xff]
    %v1522 = vld [vmem:[%s9 + $0x18] sm:$0xff]
    %v1523 = vld [vmem:[%s10] sm:$0xff]
    %v1524 = vld [vmem:[%s10 + $0x8] sm:$0xff]
    %v1525 = vld [vmem:[%s10 + $0x10] sm:$0xff]
    %v1526 = vld [vmem:[%s10 + $0x18] sm:$0xff]
    %v1527 = vld [vmem:[%s11] sm:$0x1]
    %v1529 = vlaneseq
    %v1530 = vshrl.u32 %v1529, 7
    %v1531 = vsub.s32 0, %v1530
    %v1532 = vrot.slane %v1527, %v1531
    %vm1534 = vcmask 261120
    %v1536 = vsel %vm1534, 0.0, 0
    %1538 = vmatprep.subr.mxu0 0.0
    %1539 = vmatpush1.msra.mxu0 %v1515
    %1540 = vmatprep.subr.mxu0 0.0
    %1541 = vmatpush1.msra.mxu0 %v1516
    %1542 = vmatprep.subr.mxu0 0.0
    %1543 = vmatpush1.msra.mxu0 %v1517
    %1544 = vmatprep.subr.mxu0 0.0
    %1545 = vmatpush1.msra.mxu0 %v1518
    %1546 = vmatprep.subr.mxu0 0.0
    %1547 = vmatpush1.msra.mxu0 0.0
    %1548 = vmatprep.subr.mxu0 0.0
    %1549 = vmatpush1.msra.mxu0 0.0
    %1550 = vmatprep.subr.mxu0 0.0
    %1551 = vmatpush1.msra.mxu0 0.0
    %1552 = vmatprep.subr.mxu0 0.0
    %1553 = vmatpush1.msra.mxu0 0.0
    %1554 = vmatprep.subr.mxu0 0.0
    %1555 = vmatpush1.msra.mxu0 0.0
    %1556 = vmatprep.subr.mxu0 0.0
    %1557 = vmatpush1.msra.mxu0 0.0
    %1558 = vmatprep.subr.mxu0 0.0
    %1559 = vmatpush1.msra.mxu0 0.0
    %1560 = vmatprep.subr.mxu0 0.0
    %1561 = vmatpush1.msra.mxu0 0.0
    %1562 = vmatprep.subr.mxu0 0.0
    %1563 = vmatpush1.msra.mxu0 0.0
    %1564 = vmatprep.subr.mxu0 0.0
    %1565 = vmatpush1.msra.mxu0 0.0
    %1566 = vmatprep.subr.mxu0 0.0
    %1567 = vmatpush1.msra.mxu0 0.0
    %1568 = vmatprep.subr.mxu0 0.0
    %1569 = vmatpush1.msra.mxu0 0.0
    %1570 = vmatprep.subr.mxu0 0.0
    %1571 = vmatpush1.msra.mxu0 0.0
    %1572 = vmatprep.subr.mxu0 0.0
    %1573 = vmatpush1.msra.mxu0 0.0
    %1574 = vmatprep.subr.mxu0 0.0
    %1575 = vmatpush1.msra.mxu0 0.0
    %1576 = vmatprep.subr.mxu0 0.0
    %1577 = vmatpush1.msra.mxu0 0.0
    %1578 = vmatprep.subr.mxu0 0.0
    %1579 = vmatpush1.msra.mxu0 0.0
    %1580 = vmatprep.subr.mxu0 0.0
    %1581 = vmatpush1.msra.mxu0 0.0
    %1582 = vmatprep.subr.mxu0 0.0
    %1583 = vmatpush1.msra.mxu0 0.0
    %1584 = vmatprep.subr.mxu0 0.0
    %1585 = vmatpush1.msra.mxu0 0.0
    %1586 = vmatprep.subr.mxu0 0.0
    %1587 = vmatpush1.msra.mxu0 0.0
    %1588 = vmatprep.subr.mxu0 0.0
    %1589 = vmatpush1.msra.mxu0 0.0
    %1590 = vmatprep.subr.mxu0 0.0
    %1591 = vmatpush1.msra.mxu0 0.0
    %1592 = vmatprep.subr.mxu0 0.0
    %1593 = vmatpush1.msra.mxu0 0.0
    %1594 = vmatprep.subr.mxu0 0.0
    %1595 = vmatpush1.msra.mxu0 0.0
    %1596 = vmatprep.subr.mxu0 0.0
    %1597 = vmatpush1.msra.mxu0 0.0
    %1598 = vmatprep.subr.mxu0 0.0
    %1599 = vmatpush1.msra.mxu0 0.0
    %1600 = vmatprep.subr.mxu0 0.0
    %1601 = vmatpush1.msra.mxu0 0.0
    %1602 = vmatprep.mubr.f32.mxu0 0.0
    %1603 = vmatmul.mubr.f32.gmra.mrb[0].mxu0 %v1536
    %v1604 = vpop.f32.mrb[0].mxu0
    %v1605 = vadd.f32 0.0, %v1604
    %v1606 = vpop.f32.mrb[0].mxu0
    %1607 = vdwg.mxu0
    %v1608 = vadd.f32 %v1437, %v1605
    %v1609 = vxor.u32 %v1608, 2147483648
    %v1610 = vmul.f32 %v1609, 1.442695
    %v1611 = vpow.pop %v1610
    %v1612 = vadd.f32 %v1611, 1.0
    %v1613 = vrcp.pop %v1612
    %v1614 = vmul.f32 1.0, %v1613
    %v1615 = vmul.f32 %v1614, 2.0
    %v1616 = vsub.f32 %v1615, 1.0
    %v1617 = vmul.f32 %v1614, 0.0
    %1619 = vrot.lane.b32.xlu0 %v1616, 64
    %v1620 = vpop.permute.xlu0 %1619
    %v1622 = vmul.f32 %v1614, %v1620
    %1624 = vrot.lane.b32.xlu0 %v1622, 32
    %v1625 = vpop.permute.xlu0 %1624
    %v1627 = vadd.f32 %v1617, %v1625
    %v1628 = vtanh.pop %v1627
    %1630 = vrot.lane.b32.xlu0 %v1628, 64
    %v1631 = vpop.permute.xlu0 %1630
    %v1633 = vmul.f32 %v1614, %v1631
    %1635 = vrot.lane.b32.xlu0 %v1633, 32
    %v1636 = vpop.permute.xlu0 %1635
    %1638 = vst.msk [vmem:[#allocation2] sm:$0xff] %vm1534, %v1636
    %1639 = vmatprep.subr.mxu0 0.0
    %1640 = vmatpush1.msra.mxu0 %v1523
    %1641 = vmatprep.subr.mxu0 0.0
    %1642 = vmatpush1.msra.mxu0 %v1524
    %1643 = vmatprep.subr.mxu0 0.0
    %1644 = vmatpush1.msra.mxu0 %v1525
    %1645 = vmatprep.subr.mxu0 0.0
    %1646 = vmatpush1.msra.mxu0 %v1526
    %1647 = vmatprep.subr.mxu0 0.0
    %1648 = vmatpush1.msra.mxu0 0.0
    %1649 = vmatprep.subr.mxu0 0.0
    %1650 = vmatpush1.msra.mxu0 0.0
    %1651 = vmatprep.subr.mxu0 0.0
    %1652 = vmatpush1.msra.mxu0 0.0
    %1653 = vmatprep.subr.mxu0 0.0
    %1654 = vmatpush1.msra.mxu0 0.0
    %1655 = vmatprep.subr.mxu0 0.0
    %1656 = vmatpush1.msra.mxu0 0.0
    %1657 = vmatprep.subr.mxu0 0.0
    %1658 = vmatpush1.msra.mxu0 0.0
    %1659 = vmatprep.subr.mxu0 0.0
    %1660 = vmatpush1.msra.mxu0 0.0
    %1661 = vmatprep.subr.mxu0 0.0
    %1662 = vmatpush1.msra.mxu0 0.0
    %1663 = vmatprep.subr.mxu0 0.0
    %1664 = vmatpush1.msra.mxu0 0.0
    %1665 = vmatprep.subr.mxu0 0.0
    %1666 = vmatpush1.msra.mxu0 0.0
    %1667 = vmatprep.subr.mxu0 0.0
    %1668 = vmatpush1.msra.mxu0 0.0
    %1669 = vmatprep.subr.mxu0 0.0
    %1670 = vmatpush1.msra.mxu0 0.0
    %1671 = vmatprep.subr.mxu0 0.0
    %1672 = vmatpush1.msra.mxu0 0.0
    %1673 = vmatprep.subr.mxu0 0.0
    %1674 = vmatpush1.msra.mxu0 0.0
    %1675 = vmatprep.subr.mxu0 0.0
    %1676 = vmatpush1.msra.mxu0 0.0
    %1677 = vmatprep.subr.mxu0 0.0
    %1678 = vmatpush1.msra.mxu0 0.0
    %1679 = vmatprep.subr.mxu0 0.0
    %1680 = vmatpush1.msra.mxu0 0.0
    %1681 = vmatprep.subr.mxu0 0.0
    %1682 = vmatpush1.msra.mxu0 0.0
    %1683 = vmatprep.subr.mxu0 0.0
    %1684 = vmatpush1.msra.mxu0 0.0
    %1685 = vmatprep.subr.mxu0 0.0
    %1686 = vmatpush1.msra.mxu0 0.0
    %1687 = vmatprep.subr.mxu0 0.0
    %1688 = vmatpush1.msra.mxu0 0.0
    %1689 = vmatprep.subr.mxu0 0.0
    %1690 = vmatpush1.msra.mxu0 0.0
    %1691 = vmatprep.subr.mxu0 0.0
    %1692 = vmatpush1.msra.mxu0 0.0
    %1693 = vmatprep.subr.mxu0 0.0
    %1694 = vmatpush1.msra.mxu0 0.0
    %1695 = vmatprep.subr.mxu0 0.0
    %1696 = vmatpush1.msra.mxu0 0.0
    %1697 = vmatprep.subr.mxu0 0.0
    %1698 = vmatpush1.msra.mxu0 0.0
    %1699 = vmatprep.subr.mxu0 0.0
    %1700 = vmatpush1.msra.mxu0 0.0
    %1701 = vmatprep.subr.mxu0 0.0
    %1702 = vmatpush1.msra.mxu0 0.0
    %1703 = vmatprep.mubr.f32.mxu0 0.0
    %1704 = vmatmul.mubr.f32.gmra.mrb[0].mxu0 %v1536
    %v1705 = vpop.f32.mrb[0].mxu0
    %v1706 = vadd.f32 0.0, %v1705
    %v1707 = vpop.f32.mrb[0].mxu0
    %1708 = vdwg.mxu0
    %v1709 = vsel %vm1534, %v1636, 0
    %1711 = vmatprep.subr.mxu0 0.0
    %1712 = vmatpush1.msra.mxu0 %v1519
    %1713 = vmatprep.subr.mxu0 0.0
    %1714 = vmatpush1.msra.mxu0 %v1520
    %1715 = vmatprep.subr.mxu0 0.0
    %1716 = vmatpush1.msra.mxu0 %v1521
    %1717 = vmatprep.subr.mxu0 0.0
    %1718 = vmatpush1.msra.mxu0 %v1522
    %1719 = vmatprep.subr.mxu0 0.0
    %1720 = vmatpush1.msra.mxu0 0.0
    %1721 = vmatprep.subr.mxu0 0.0
    %1722 = vmatpush1.msra.mxu0 0.0
    %1723 = vmatprep.subr.mxu0 0.0
    %1724 = vmatpush1.msra.mxu0 0.0
    %1725 = vmatprep.subr.mxu0 0.0
    %1726 = vmatpush1.msra.mxu0 0.0
    %1727 = vmatprep.subr.mxu0 0.0
    %1728 = vmatpush1.msra.mxu0 0.0
    %1729 = vmatprep.subr.mxu0 0.0
    %1730 = vmatpush1.msra.mxu0 0.0
    %1731 = vmatprep.subr.mxu0 0.0
    %1732 = vmatpush1.msra.mxu0 0.0
    %1733 = vmatprep.subr.mxu0 0.0
    %1734 = vmatpush1.msra.mxu0 0.0
    %1735 = vmatprep.subr.mxu0 0.0
    %1736 = vmatpush1.msra.mxu0 0.0
    %1737 = vmatprep.subr.mxu0 0.0
    %1738 = vmatpush1.msra.mxu0 0.0
    %1739 = vmatprep.subr.mxu0 0.0
    %1740 = vmatpush1.msra.mxu0 0.0
    %1741 = vmatprep.subr.mxu0 0.0
    %1742 = vmatpush1.msra.mxu0 0.0
    %1743 = vmatprep.subr.mxu0 0.0
    %1744 = vmatpush1.msra.mxu0 0.0
    %1745 = vmatprep.subr.mxu0 0.0
    %1746 = vmatpush1.msra.mxu0 0.0
    %1747 = vmatprep.subr.mxu0 0.0
    %1748 = vmatpush1.msra.mxu0 0.0
    %1749 = vmatprep.subr.mxu0 0.0
    %1750 = vmatpush1.msra.mxu0 0.0
    %1751 = vmatprep.subr.mxu0 0.0
    %1752 = vmatpush1.msra.mxu0 0.0
    %1753 = vmatprep.subr.mxu0 0.0
    %1754 = vmatpush1.msra.mxu0 0.0
    %1755 = vmatprep.subr.mxu0 0.0
    %1756 = vmatpush1.msra.mxu0 0.0
    %1757 = vmatprep.subr.mxu0 0.0
    %1758 = vmatpush1.msra.mxu0 0.0
    %1759 = vmatprep.subr.mxu0 0.0
    %1760 = vmatpush1.msra.mxu0 0.0
    %1761 = vmatprep.subr.mxu0 0.0
    %1762 = vmatpush1.msra.mxu0 0.0
    %1763 = vmatprep.subr.mxu0 0.0
    %1764 = vmatpush1.msra.mxu0 0.0
    %1765 = vmatprep.subr.mxu0 0.0
    %1766 = vmatpush1.msra.mxu0 0.0
    %1767 = vmatprep.subr.mxu0 0.0
    %1768 = vmatpush1.msra.mxu0 0.0
    %1769 = vmatprep.subr.mxu0 0.0
    %1770 = vmatpush1.msra.mxu0 0.0
    %1771 = vmatprep.subr.mxu0 0.0
    %1772 = vmatpush1.msra.mxu0 0.0
    %1773 = vmatprep.subr.mxu0 0.0
    %1774 = vmatpush1.msra.mxu0 0.0
    %1775 = vmatprep.mubr.f32.mxu0 0.0
    %1776 = vmatmul.mubr.f32.gmra.mrb[0].mxu0 %v1709
    %v1777 = vpop.f32.mrb[0].mxu0
    %v1778 = vadd.f32 %v1706, %v1777
    %v1779 = vpop.f32.mrb[0].mxu0
    %1780 = vdwg.mxu0
    %v1781 = vadd.f32 %v1778, %v1532
    %v1782 = vxor.u32 %v1781, 2147483648
    %v1783 = vmul.f32 %v1782, 1.442695
    %v1784 = vpow.pop %v1783
    %v1785 = vadd.f32 %v1784, 1.0
    %v1786 = vrcp.pop %v1785
    %v1787 = vmul.f32 1.0, %v1786
    %v1788 = vmul.f32 %v1787, 2.0
    %v1789 = vsub.f32 %v1788, 1.0
    %v1790 = vmul.f32 %v1787, 0.0
    %1792 = vrot.lane.b32.xlu0 %v1789, 64
    %v1793 = vpop.permute.xlu0 %1792
    %v1795 = vmul.f32 %v1787, %v1793
    %1797 = vrot.lane.b32.xlu0 %v1795, 32
    %v1798 = vpop.permute.xlu0 %1797
    %v1800 = vadd.f32 %v1790, %v1798
    %v1801 = vtanh.pop %v1800
    %1803 = vrot.lane.b32.xlu0 %v1801, 64
    %v1804 = vpop.permute.xlu0 %1803
    %v1806 = vmul.f32 %v1787, %v1804
    %1808 = vrot.lane.b32.xlu0 %v1806, 64
    %v1809 = vpop.permute.xlu0 %1808
    %vm1811 = vcmask 523520
    %1812 = vst.msk [vmem:[#allocation2] sm:$0xff] %vm1811, %v1809
    %1813 = vmatprep.subr.mxu0 0.0
    %1814 = vmatpush1.msra.mxu0 %v1515
    %1815 = vmatprep.subr.mxu0 0.0
    %1816 = vmatpush1.msra.mxu0 %v1516
    %1817 = vmatprep.subr.mxu0 0.0
    %1818 = vmatpush1.msra.mxu0 %v1517
    %1819 = vmatprep.subr.mxu0 0.0
    %1820 = vmatpush1.msra.mxu0 %v1518
    %1821 = vmatprep.subr.mxu0 0.0
    %1822 = vmatpush1.msra.mxu0 0.0
    %1823 = vmatprep.subr.mxu0 0.0
    %1824 = vmatpush1.msra.mxu0 0.0
    %1825 = vmatprep.subr.mxu0 0.0
    %1826 = vmatpush1.msra.mxu0 0.0
    %1827 = vmatprep.subr.mxu0 0.0
    %1828 = vmatpush1.msra.mxu0 0.0
    %1829 = vmatprep.subr.mxu0 0.0
    %1830 = vmatpush1.msra.mxu0 0.0
    %1831 = vmatprep.subr.mxu0 0.0
    %1832 = vmatpush1.msra.mxu0 0.0
    %1833 = vmatprep.subr.mxu0 0.0
    %1834 = vmatpush1.msra.mxu0 0.0
    %1835 = vmatprep.subr.mxu0 0.0
    %1836 = vmatpush1.msra.mxu0 0.0
    %1837 = vmatprep.subr.mxu0 0.0
    %1838 = vmatpush1.msra.mxu0 0.0
    %1839 = vmatprep.subr.mxu0 0.0
    %1840 = vmatpush1.msra.mxu0 0.0
    %1841 = vmatprep.subr.mxu0 0.0
    %1842 = vmatpush1.msra.mxu0 0.0
    %1843 = vmatprep.subr.mxu0 0.0
    %1844 = vmatpush1.msra.mxu0 0.0
    %1845 = vmatprep.subr.mxu0 0.0
    %1846 = vmatpush1.msra.mxu0 0.0
    %1847 = vmatprep.subr.mxu0 0.0
    %1848 = vmatpush1.msra.mxu0 0.0
    %1849 = vmatprep.subr.mxu0 0.0
    %1850 = vmatpush1.msra.mxu0 0.0
    %1851 = vmatprep.subr.mxu0 0.0
    %1852 = vmatpush1.msra.mxu0 0.0
    %1853 = vmatprep.subr.mxu0 0.0
    %1854 = vmatpush1.msra.mxu0 0.0
    %1855 = vmatprep.subr.mxu0 0.0
    %1856 = vmatpush1.msra.mxu0 0.0
    %1857 = vmatprep.subr.mxu0 0.0
    %1858 = vmatpush1.msra.mxu0 0.0
    %1859 = vmatprep.subr.mxu0 0.0
    %1860 = vmatpush1.msra.mxu0 0.0
    %1861 = vmatprep.subr.mxu0 0.0
    %1862 = vmatpush1.msra.mxu0 0.0
    %1863 = vmatprep.subr.mxu0 0.0
    %1864 = vmatpush1.msra.mxu0 0.0
    %1865 = vmatprep.subr.mxu0 0.0
    %1866 = vmatpush1.msra.mxu0 0.0
    %1867 = vmatprep.subr.mxu0 0.0
    %1868 = vmatpush1.msra.mxu0 0.0
    %1869 = vmatprep.subr.mxu0 0.0
    %1870 = vmatpush1.msra.mxu0 0.0
    %1871 = vmatprep.subr.mxu0 0.0
    %1872 = vmatpush1.msra.mxu0 0.0
    %1873 = vmatprep.subr.mxu0 0.0
    %1874 = vmatpush1.msra.mxu0 0.0
    %1875 = vmatprep.subr.mxu0 0.0
    %1876 = vmatpush1.msra.mxu0 0.0
    %1877 = vmatprep.mubr.f32.mxu0 0.0
    %1878 = vmatmul.mubr.f32.gmra.mrb[0].mxu0 %v1709
    %v1879 = vpop.f32.mrb[0].mxu0
    %v1880 = vadd.f32 0.0, %v1879
    %v1881 = vpop.f32.mrb[0].mxu0
    %1882 = vdwg.mxu0
    %v1883 = vadd.f32 %v1442, %v1880
    %v1884 = vxor.u32 %v1883, 2147483648
    %v1885 = vmul.f32 %v1884, 1.442695
    %v1886 = vpow.pop %v1885
    %v1887 = vadd.f32 %v1886, 1.0
    %v1888 = vrcp.pop %v1887
    %v1889 = vmul.f32 1.0, %v1888
    %v1890 = vmul.f32 %v1889, 2.0
    %v1891 = vsub.f32 %v1890, 1.0
    %v1892 = vmul.f32 %v1889, %v1627
    %1894 = vrot.lane.b32.xlu0 %v1891, 64
    %v1895 = vpop.permute.xlu0 %1894
    %v1897 = vmul.f32 %v1889, %v1895
    %1899 = vrot.lane.b32.xlu0 %v1897, 32
    %v1900 = vpop.permute.xlu0 %1899
    %v1902 = vadd.f32 %v1892, %v1900
    %v1903 = vtanh.pop %v1902
    %1905 = vrot.lane.b32.xlu0 %v1903, 64
    %v1906 = vpop.permute.xlu0 %1905
    %v1908 = vmul.f32 %v1889, %v1906
    %1910 = vrot.lane.b32.xlu0 %v1908, 32
    %v1911 = vpop.permute.xlu0 %1910
    %1913 = vst.msk [vmem:[#allocation2 + $0x8] sm:$0xff] %vm1534, %v1911
    %1914 = vrot.lane.b32.xlu0 %v1806, 32
    %v1915 = vpop.permute.xlu0 %1914
    %v1916 = vsel %vm1534, %v1915, 0
    %1918 = vmatprep.subr.mxu0 0.0
    %1919 = vmatpush1.msra.mxu0 %v1523
    %1920 = vmatprep.subr.mxu0 0.0
    %1921 = vmatpush1.msra.mxu0 %v1524
    %1922 = vmatprep.subr.mxu0 0.0
    %1923 = vmatpush1.msra.mxu0 %v1525
    %1924 = vmatprep.subr.mxu0 0.0
    %1925 = vmatpush1.msra.mxu0 %v1526
    %1926 = vmatprep.subr.mxu0 0.0
    %1927 = vmatpush1.msra.mxu0 0.0
    %1928 = vmatprep.subr.mxu0 0.0
    %1929 = vmatpush1.msra.mxu0 0.0
    %1930 = vmatprep.subr.mxu0 0.0
    %1931 = vmatpush1.msra.mxu0 0.0
    %1932 = vmatprep.subr.mxu0 0.0
    %1933 = vmatpush1.msra.mxu0 0.0
    %1934 = vmatprep.subr.mxu0 0.0
    %1935 = vmatpush1.msra.mxu0 0.0
    %1936 = vmatprep.subr.mxu0 0.0
    %1937 = vmatpush1.msra.mxu0 0.0
    %1938 = vmatprep.subr.mxu0 0.0
    %1939 = vmatpush1.msra.mxu0 0.0
    %1940 = vmatprep.subr.mxu0 0.0
    %1941 = vmatpush1.msra.mxu0 0.0
    %1942 = vmatprep.subr.mxu0 0.0
    %1943 = vmatpush1.msra.mxu0 0.0
    %1944 = vmatprep.subr.mxu0 0.0
    %1945 = vmatpush1.msra.mxu0 0.0
    %1946 = vmatprep.subr.mxu0 0.0
    %1947 = vmatpush1.msra.mxu0 0.0
    %1948 = vmatprep.subr.mxu0 0.0
    %1949 = vmatpush1.msra.mxu0 0.0
    %1950 = vmatprep.subr.mxu0 0.0
    %1951 = vmatpush1.msra.mxu0 0.0
    %1952 = vmatprep.subr.mxu0 0.0
    %1953 = vmatpush1.msra.mxu0 0.0
    %1954 = vmatprep.subr.mxu0 0.0
    %1955 = vmatpush1.msra.mxu0 0.0
    %1956 = vmatprep.subr.mxu0 0.0
    %1957 = vmatpush1.msra.mxu0 0.0
    %1958 = vmatprep.subr.mxu0 0.0
    %1959 = vmatpush1.msra.mxu0 0.0
    %1960 = vmatprep.subr.mxu0 0.0
    %1961 = vmatpush1.msra.mxu0 0.0
    %1962 = vmatprep.subr.mxu0 0.0
    %1963 = vmatpush1.msra.mxu0 0.0
    %1964 = vmatprep.subr.mxu0 0.0
    %1965 = vmatpush1.msra.mxu0 0.0
    %1966 = vmatprep.subr.mxu0 0.0
    %1967 = vmatpush1.msra.mxu0 0.0
    %1968 = vmatprep.subr.mxu0 0.0
    %1969 = vmatpush1.msra.mxu0 0.0
    %1970 = vmatprep.subr.mxu0 0.0
    %1971 = vmatpush1.msra.mxu0 0.0
    %1972 = vmatprep.subr.mxu0 0.0
    %1973 = vmatpush1.msra.mxu0 0.0
    %1974 = vmatprep.subr.mxu0 0.0
    %1975 = vmatpush1.msra.mxu0 0.0
    %1976 = vmatprep.subr.mxu0 0.0
    %1977 = vmatpush1.msra.mxu0 0.0
    %1978 = vmatprep.subr.mxu0 0.0
    %1979 = vmatpush1.msra.mxu0 0.0
    %1980 = vmatprep.subr.mxu0 0.0
    %1981 = vmatpush1.msra.mxu0 0.0
    %1982 = vmatprep.mubr.f32.mxu0 0.0
    %1983 = vmatmul.mubr.f32.gmra.mrb[0].mxu0 %v1916
    %v1984 = vpop.f32.mrb[0].mxu0
    %v1985 = vadd.f32 0.0, %v1984
    %v1986 = vpop.f32.mrb[0].mxu0
    %1987 = vdwg.mxu0
    %v1988 = vsel %vm1534, %v1911, 0
    %1990 = vmatprep.subr.mxu0 0.0
    %1991 = vmatpush1.msra.mxu0 %v1519
    %1992 = vmatprep.subr.mxu0 0.0
    %1993 = vmatpush1.msra.mxu0 %v1520
    %1994 = vmatprep.subr.mxu0 0.0
    %1995 = vmatpush1.msra.mxu0 %v1521
    %1996 = vmatprep.subr.mxu0 0.0
    %1997 = vmatpush1.msra.mxu0 %v1522
    %1998 = vmatprep.subr.mxu0 0.0
    %1999 = vmatpush1.msra.mxu0 0.0
    %2000 = vmatprep.subr.mxu0 0.0
    %2001 = vmatpush1.msra.mxu0 0.0
    %2002 = vmatprep.subr.mxu0 0.0
    %2003 = vmatpush1.msra.mxu0 0.0
    %2004 = vmatprep.subr.mxu0 0.0
    %2005 = vmatpush1.msra.mxu0 0.0
    %2006 = vmatprep.subr.mxu0 0.0
    %2007 = vmatpush1.msra.mxu0 0.0
    %2008 = vmatprep.subr.mxu0 0.0
    %2009 = vmatpush1.msra.mxu0 0.0
    %2010 = vmatprep.subr.mxu0 0.0
    %2011 = vmatpush1.msra.mxu0 0.0
    %2012 = vmatprep.subr.mxu0 0.0
    %2013 = vmatpush1.msra.mxu0 0.0
    %2014 = vmatprep.subr.mxu0 0.0
    %2015 = vmatpush1.msra.mxu0 0.0
    %2016 = vmatprep.subr.mxu0 0.0
    %2017 = vmatpush1.msra.mxu0 0.0
    %2018 = vmatprep.subr.mxu0 0.0
    %2019 = vmatpush1.msra.mxu0 0.0
    %2020 = vmatprep.subr.mxu0 0.0
    %2021 = vmatpush1.msra.mxu0 0.0
    %2022 = vmatprep.subr.mxu0 0.0
    %2023 = vmatpush1.msra.mxu0 0.0
    %2024 = vmatprep.subr.mxu0 0.0
    %2025 = vmatpush1.msra.mxu0 0.0
    %2026 = vmatprep.subr.mxu0 0.0
    %2027 = vmatpush1.msra.mxu0 0.0
    %2028 = vmatprep.subr.mxu0 0.0
    %2029 = vmatpush1.msra.mxu0 0.0
    %2030 = vmatprep.subr.mxu0 0.0
    %2031 = vmatpush1.msra.mxu0 0.0
    %2032 = vmatprep.subr.mxu0 0.0
    %2033 = vmatpush1.msra.mxu0 0.0
    %2034 = vmatprep.subr.mxu0 0.0
    %2035 = vmatpush1.msra.mxu0 0.0
    %2036 = vmatprep.subr.mxu0 0.0
    %2037 = vmatpush1.msra.mxu0 0.0
    %2038 = vmatprep.subr.mxu0 0.0
    %2039 = vmatpush1.msra.mxu0 0.0
    %2040 = vmatprep.subr.mxu0 0.0
    %2041 = vmatpush1.msra.mxu0 0.0
    %2042 = vmatprep.subr.mxu0 0.0
    %2043 = vmatpush1.msra.mxu0 0.0
    %2044 = vmatprep.subr.mxu0 0.0
    %2045 = vmatpush1.msra.mxu0 0.0
    %2046 = vmatprep.subr.mxu0 0.0
    %2047 = vmatpush1.msra.mxu0 0.0
    %2048 = vmatprep.subr.mxu0 0.0
    %2049 = vmatpush1.msra.mxu0 0.0
    %2050 = vmatprep.subr.mxu0 0.0
    %2051 = vmatpush1.msra.mxu0 0.0
    %2052 = vmatprep.subr.mxu0 0.0
    %2053 = vmatpush1.msra.mxu0 0.0
    %2054 = vmatprep.mubr.f32.mxu0 0.0
    %2055 = vmatmul.mubr.f32.gmra.mrb[0].mxu0 %v1988
    %v2056 = vpop.f32.mrb[0].mxu0
    %v2057 = vadd.f32 %v1985, %v2056
    %v2058 = vpop.f32.mrb[0].mxu0
    %2059 = vdwg.mxu0
    %v2060 = vadd.f32 %v2057, %v1532
    %v2061 = vxor.u32 %v2060, 2147483648
    %v2062 = vmul.f32 %v2061, 1.442695
    %v2063 = vpow.pop %v2062
    %v2064 = vadd.f32 %v2063, 1.0
    %v2065 = vrcp.pop %v2064
    %v2066 = vmul.f32 1.0, %v2065
    %v2067 = vmul.f32 %v2066, 2.0
    %v2068 = vsub.f32 %v2067, 1.0
    %v2069 = vmul.f32 %v2066, %v1800
    %2071 = vrot.lane.b32.xlu0 %v2068, 64
    %v2072 = vpop.permute.xlu0 %2071
    %v2074 = vmul.f32 %v2066, %v2072
    %2076 = vrot.lane.b32.xlu0 %v2074, 32
    %v2077 = vpop.permute.xlu0 %2076
    %v2079 = vadd.f32 %v2069, %v2077
    %v2080 = vtanh.pop %v2079
    %2082 = vrot.lane.b32.xlu0 %v2080, 64
    %v2083 = vpop.permute.xlu0 %2082
    %v2085 = vmul.f32 %v2066, %v2083
    %2087 = vrot.lane.b32.xlu0 %v2085, 64
    %v2088 = vpop.permute.xlu0 %2087
    %2090 = vst.msk [vmem:[#allocation2 + $0x8] sm:$0xff] %vm1811, %v2088
    %2091 = vmatprep.subr.mxu0 0.0
    %2092 = vmatpush1.msra.mxu0 %v1515
    %2093 = vmatprep.subr.mxu0 0.0
    %2094 = vmatpush1.msra.mxu0 %v1516
    %2095 = vmatprep.subr.mxu0 0.0
    %2096 = vmatpush1.msra.mxu0 %v1517
    %2097 = vmatprep.subr.mxu0 0.0
    %2098 = vmatpush1.msra.mxu0 %v1518
    %2099 = vmatprep.subr.mxu0 0.0
    %2100 = vmatpush1.msra.mxu0 0.0
    %2101 = vmatprep.subr.mxu0 0.0
    %2102 = vmatpush1.msra.mxu0 0.0
    %2103 = vmatprep.subr.mxu0 0.0
    %2104 = vmatpush1.msra.mxu0 0.0
    %2105 = vmatprep.subr.mxu0 0.0
    %2106 = vmatpush1.msra.mxu0 0.0
    %2107 = vmatprep.subr.mxu0 0.0
    %2108 = vmatpush1.msra.mxu0 0.0
    %2109 = vmatprep.subr.mxu0 0.0
    %2110 = vmatpush1.msra.mxu0 0.0
    %2111 = vmatprep.subr.mxu0 0.0
    %2112 = vmatpush1.msra.mxu0 0.0
    %2113 = vmatprep.subr.mxu0 0.0
    %2114 = vmatpush1.msra.mxu0 0.0
    %2115 = vmatprep.subr.mxu0 0.0
    %2116 = vmatpush1.msra.mxu0 0.0
    %2117 = vmatprep.subr.mxu0 0.0
    %2118 = vmatpush1.msra.mxu0 0.0
    %2119 = vmatprep.subr.mxu0 0.0
    %2120 = vmatpush1.msra.mxu0 0.0
    %2121 = vmatprep.subr.mxu0 0.0
    %2122 = vmatpush1.msra.mxu0 0.0
    %2123 = vmatprep.subr.mxu0 0.0
    %2124 = vmatpush1.msra.mxu0 0.0
    %2125 = vmatprep.subr.mxu0 0.0
    %2126 = vmatpush1.msra.mxu0 0.0
    %2127 = vmatprep.subr.mxu0 0.0
    %2128 = vmatpush1.msra.mxu0 0.0
    %2129 = vmatprep.subr.mxu0 0.0
    %2130 = vmatpush1.msra.mxu0 0.0
    %2131 = vmatprep.subr.mxu0 0.0
    %2132 = vmatpush1.msra.mxu0 0.0
    %2133 = vmatprep.subr.mxu0 0.0
    %2134 = vmatpush1.msra.mxu0 0.0
    %2135 = vmatprep.subr.mxu0 0.0
    %2136 = vmatpush1.msra.mxu0 0.0
    %2137 = vmatprep.subr.mxu0 0.0
    %2138 = vmatpush1.msra.mxu0 0.0
    %2139 = vmatprep.subr.mxu0 0.0
    %2140 = vmatpush1.msra.mxu0 0.0
    %2141 = vmatprep.subr.mxu0 0.0
    %2142 = vmatpush1.msra.mxu0 0.0
    %2143 = vmatprep.subr.mxu0 0.0
    %2144 = vmatpush1.msra.mxu0 0.0
    %2145 = vmatprep.subr.mxu0 0.0
    %2146 = vmatpush1.msra.mxu0 0.0
    %2147 = vmatprep.subr.mxu0 0.0
    %2148 = vmatpush1.msra.mxu0 0.0
    %2149 = vmatprep.subr.mxu0 0.0
    %2150 = vmatpush1.msra.mxu0 0.0
    %2151 = vmatprep.subr.mxu0 0.0
    %2152 = vmatpush1.msra.mxu0 0.0
    %2153 = vmatprep.subr.mxu0 0.0
    %2154 = vmatpush1.msra.mxu0 0.0
    %2155 = vmatprep.mubr.f32.mxu0 0.0
    %2156 = vmatmul.mubr.f32.gmra.mrb[0].mxu0 %v1988
    %v2157 = vpop.f32.mrb[0].mxu0
    %v2158 = vadd.f32 0.0, %v2157
    %v2159 = vpop.f32.mrb[0].mxu0
    %2160 = vdwg.mxu0
    %v2161 = vadd.f32 %v1447, %v2158
    %v2162 = vxor.u32 %v2161, 2147483648
    %v2163 = vmul.f32 %v2162, 1.442695
    %v2164 = vpow.pop %v2163
    %v2165 = vadd.f32 %v2164, 1.0
    %v2166 = vrcp.pop %v2165
    %v2167 = vmul.f32 1.0, %v2166
    %v2168 = vmul.f32 %v2167, 2.0
    %v2169 = vsub.f32 %v2168, 1.0
    %v2170 = vmul.f32 %v2167, %v1902
    %2172 = vrot.lane.b32.xlu0 %v2169, 64
    %v2173 = vpop.permute.xlu0 %2172
    %v2175 = vmul.f32 %v2167, %v2173
    %2177 = vrot.lane.b32.xlu0 %v2175, 32
    %v2178 = vpop.permute.xlu0 %2177
    %v2180 = vadd.f32 %v2170, %v2178
    %v2181 = vtanh.pop %v2180
    %2183 = vrot.lane.b32.xlu0 %v2181, 64
    %v2184 = vpop.permute.xlu0 %2183
    %v2186 = vmul.f32 %v2167, %v2184
    %2188 = vrot.lane.b32.xlu0 %v2186, 32
    %v2189 = vpop.permute.xlu0 %2188
    %2191 = vst.msk [vmem:[#allocation2 + $0x10] sm:$0xff] %vm1534, %v2189
    %2192 = vrot.lane.b32.xlu0 %v2085, 32
    %v2193 = vpop.permute.xlu0 %2192
    %v2194 = vsel %vm1534, %v2193, 0
    %2196 = vmatprep.subr.mxu0 0.0
    %2197 = vmatpush1.msra.mxu0 %v1523
    %2198 = vmatprep.subr.mxu0 0.0
    %2199 = vmatpush1.msra.mxu0 %v1524
    %2200 = vmatprep.subr.mxu0 0.0
    %2201 = vmatpush1.msra.mxu0 %v1525
    %2202 = vmatprep.subr.mxu0 0.0
    %2203 = vmatpush1.msra.mxu0 %v1526
    %2204 = vmatprep.subr.mxu0 0.0
    %2205 = vmatpush1.msra.mxu0 0.0
    %2206 = vmatprep.subr.mxu0 0.0
    %2207 = vmatpush1.msra.mxu0 0.0
    %2208 = vmatprep.subr.mxu0 0.0
    %2209 = vmatpush1.msra.mxu0 0.0
    %2210 = vmatprep.subr.mxu0 0.0
    %2211 = vmatpush1.msra.mxu0 0.0
    %2212 = vmatprep.subr.mxu0 0.0
    %2213 = vmatpush1.msra.mxu0 0.0
    %2214 = vmatprep.subr.mxu0 0.0
    %2215 = vmatpush1.msra.mxu0 0.0
    %2216 = vmatprep.subr.mxu0 0.0
    %2217 = vmatpush1.msra.mxu0 0.0
    %2218 = vmatprep.subr.mxu0 0.0
    %2219 = vmatpush1.msra.mxu0 0.0
    %2220 = vmatprep.subr.mxu0 0.0
    %2221 = vmatpush1.msra.mxu0 0.0
    %2222 = vmatprep.subr.mxu0 0.0
    %2223 = vmatpush1.msra.mxu0 0.0
    %2224 = vmatprep.subr.mxu0 0.0
    %2225 = vmatpush1.msra.mxu0 0.0
    %2226 = vmatprep.subr.mxu0 0.0
    %2227 = vmatpush1.msra.mxu0 0.0
    %2228 = vmatprep.subr.mxu0 0.0
    %2229 = vmatpush1.msra.mxu0 0.0
    %2230 = vmatprep.subr.mxu0 0.0
    %2231 = vmatpush1.msra.mxu0 0.0
    %2232 = vmatprep.subr.mxu0 0.0
    %2233 = vmatpush1.msra.mxu0 0.0
    %2234 = vmatprep.subr.mxu0 0.0
    %2235 = vmatpush1.msra.mxu0 0.0
    %2236 = vmatprep.subr.mxu0 0.0
    %2237 = vmatpush1.msra.mxu0 0.0
    %2238 = vmatprep.subr.mxu0 0.0
    %2239 = vmatpush1.msra.mxu0 0.0
    %2240 = vmatprep.subr.mxu0 0.0
    %2241 = vmatpush1.msra.mxu0 0.0
    %2242 = vmatprep.subr.mxu0 0.0
    %2243 = vmatpush1.msra.mxu0 0.0
    %2244 = vmatprep.subr.mxu0 0.0
    %2245 = vmatpush1.msra.mxu0 0.0
    %2246 = vmatprep.subr.mxu0 0.0
    %2247 = vmatpush1.msra.mxu0 0.0
    %2248 = vmatprep.subr.mxu0 0.0
    %2249 = vmatpush1.msra.mxu0 0.0
    %2250 = vmatprep.subr.mxu0 0.0
    %2251 = vmatpush1.msra.mxu0 0.0
    %2252 = vmatprep.subr.mxu0 0.0
    %2253 = vmatpush1.msra.mxu0 0.0
    %2254 = vmatprep.subr.mxu0 0.0
    %2255 = vmatpush1.msra.mxu0 0.0
    %2256 = vmatprep.subr.mxu0 0.0
    %2257 = vmatpush1.msra.mxu0 0.0
    %2258 = vmatprep.subr.mxu0 0.0
    %2259 = vmatpush1.msra.mxu0 0.0
    %2260 = vmatprep.mubr.f32.mxu0 0.0
    %2261 = vmatmul.mubr.f32.gmra.mrb[0].mxu0 %v2194
    %v2262 = vpop.f32.mrb[0].mxu0
    %v2263 = vadd.f32 0.0, %v2262
    %v2264 = vpop.f32.mrb[0].mxu0
    %2265 = vdwg.mxu0
    %v2266 = vsel %vm1534, %v2189, 0
    %2268 = vmatprep.subr.mxu0 0.0
    %2269 = vmatpush1.msra.mxu0 %v1519
    %2270 = vmatprep.subr.mxu0 0.0
    %2271 = vmatpush1.msra.mxu0 %v1520
    %2272 = vmatprep.subr.mxu0 0.0
    %2273 = vmatpush1.msra.mxu0 %v1521
    %2274 = vmatprep.subr.mxu0 0.0
    %2275 = vmatpush1.msra.mxu0 %v1522
    %2276 = vmatprep.subr.mxu0 0.0
    %2277 = vmatpush1.msra.mxu0 0.0
    %2278 = vmatprep.subr.mxu0 0.0
    %2279 = vmatpush1.msra.mxu0 0.0
    %2280 = vmatprep.subr.mxu0 0.0
    %2281 = vmatpush1.msra.mxu0 0.0
    %2282 = vmatprep.subr.mxu0 0.0
    %2283 = vmatpush1.msra.mxu0 0.0
    %2284 = vmatprep.subr.mxu0 0.0
    %2285 = vmatpush1.msra.mxu0 0.0
    %2286 = vmatprep.subr.mxu0 0.0
    %2287 = vmatpush1.msra.mxu0 0.0
    %2288 = vmatprep.subr.mxu0 0.0
    %2289 = vmatpush1.msra.mxu0 0.0
    %2290 = vmatprep.subr.mxu0 0.0
    %2291 = vmatpush1.msra.mxu0 0.0
    %2292 = vmatprep.subr.mxu0 0.0
    %2293 = vmatpush1.msra.mxu0 0.0
    %2294 = vmatprep.subr.mxu0 0.0
    %2295 = vmatpush1.msra.mxu0 0.0
    %2296 = vmatprep.subr.mxu0 0.0
    %2297 = vmatpush1.msra.mxu0 0.0
    %2298 = vmatprep.subr.mxu0 0.0
    %2299 = vmatpush1.msra.mxu0 0.0
    %2300 = vmatprep.subr.mxu0 0.0
    %2301 = vmatpush1.msra.mxu0 0.0
    %2302 = vmatprep.subr.mxu0 0.0
    %2303 = vmatpush1.msra.mxu0 0.0
    %2304 = vmatprep.subr.mxu0 0.0
    %2305 = vmatpush1.msra.mxu0 0.0
    %2306 = vmatprep.subr.mxu0 0.0
    %2307 = vmatpush1.msra.mxu0 0.0
    %2308 = vmatprep.subr.mxu0 0.0
    %2309 = vmatpush1.msra.mxu0 0.0
    %2310 = vmatprep.subr.mxu0 0.0
    %2311 = vmatpush1.msra.mxu0 0.0
    %2312 = vmatprep.subr.mxu0 0.0
    %2313 = vmatpush1.msra.mxu0 0.0
    %2314 = vmatprep.subr.mxu0 0.0
    %2315 = vmatpush1.msra.mxu0 0.0
    %2316 = vmatprep.subr.mxu0 0.0
    %2317 = vmatpush1.msra.mxu0 0.0
    %2318 = vmatprep.subr.mxu0 0.0
    %2319 = vmatpush1.msra.mxu0 0.0
    %2320 = vmatprep.subr.mxu0 0.0
    %2321 = vmatpush1.msra.mxu0 0.0
    %2322 = vmatprep.subr.mxu0 0.0
    %2323 = vmatpush1.msra.mxu0 0.0
    %2324 = vmatprep.subr.mxu0 0.0
    %2325 = vmatpush1.msra.mxu0 0.0
    %2326 = vmatprep.subr.mxu0 0.0
    %2327 = vmatpush1.msra.mxu0 0.0
    %2328 = vmatprep.subr.mxu0 0.0
    %2329 = vmatpush1.msra.mxu0 0.0
    %2330 = vmatprep.subr.mxu0 0.0
    %2331 = vmatpush1.msra.mxu0 0.0
    %2332 = vmatprep.mubr.f32.mxu0 0.0
    %2333 = vmatmul.mubr.f32.gmra.mrb[0].mxu0 %v2266
    %v2334 = vpop.f32.mrb[0].mxu0
    %v2335 = vadd.f32 %v2263, %v2334
    %v2336 = vpop.f32.mrb[0].mxu0
    %2337 = vdwg.mxu0
    %v2338 = vadd.f32 %v2335, %v1532
    %v2339 = vxor.u32 %v2338, 2147483648
    %v2340 = vmul.f32 %v2339, 1.442695
    %v2341 = vpow.pop %v2340
    %v2342 = vadd.f32 %v2341, 1.0
    %v2343 = vrcp.pop %v2342
    %v2344 = vmul.f32 1.0, %v2343
    %v2345 = vmul.f32 %v2344, 2.0
    %v2346 = vsub.f32 %v2345, 1.0
    %v2347 = vmul.f32 %v2344, %v2079
    %2349 = vrot.lane.b32.xlu0 %v2346, 64
    %v2350 = vpop.permute.xlu0 %2349
    %v2352 = vmul.f32 %v2344, %v2350
    %2354 = vrot.lane.b32.xlu0 %v2352, 32
    %v2355 = vpop.permute.xlu0 %2354
    %v2357 = vadd.f32 %v2347, %v2355
    %v2358 = vtanh.pop %v2357
    %2360 = vrot.lane.b32.xlu0 %v2358, 64
    %v2361 = vpop.permute.xlu0 %2360
    %v2363 = vmul.f32 %v2344, %v2361
    %2365 = vrot.lane.b32.xlu0 %v2363, 64
    %v2366 = vpop.permute.xlu0 %2365
    %2368 = vst.msk [vmem:[#allocation2 + $0x10] sm:$0xff] %vm1811, %v2366
    %2369 = vmatprep.subr.mxu0 0.0
    %2370 = vmatpush1.msra.mxu0 %v1515
    %2371 = vmatprep.subr.mxu0 0.0
    %2372 = vmatpush1.msra.mxu0 %v1516
    %2373 = vmatprep.subr.mxu0 0.0
    %2374 = vmatpush1.msra.mxu0 %v1517
    %2375 = vmatprep.subr.mxu0 0.0
    %2376 = vmatpush1.msra.mxu0 %v1518
    %2377 = vmatprep.subr.mxu0 0.0
    %2378 = vmatpush1.msra.mxu0 0.0
    %2379 = vmatprep.subr.mxu0 0.0
    %2380 = vmatpush1.msra.mxu0 0.0
    %2381 = vmatprep.subr.mxu0 0.0
    %2382 = vmatpush1.msra.mxu0 0.0
    %2383 = vmatprep.subr.mxu0 0.0
    %2384 = vmatpush1.msra.mxu0 0.0
    %2385 = vmatprep.subr.mxu0 0.0
    %2386 = vmatpush1.msra.mxu0 0.0
    %2387 = vmatprep.subr.mxu0 0.0
    %2388 = vmatpush1.msra.mxu0 0.0
    %2389 = vmatprep.subr.mxu0 0.0
    %2390 = vmatpush1.msra.mxu0 0.0
    %2391 = vmatprep.subr.mxu0 0.0
    %2392 = vmatpush1.msra.mxu0 0.0
    %2393 = vmatprep.subr.mxu0 0.0
    %2394 = vmatpush1.msra.mxu0 0.0
    %2395 = vmatprep.subr.mxu0 0.0
    %2396 = vmatpush1.msra.mxu0 0.0
    %2397 = vmatprep.subr.mxu0 0.0
    %2398 = vmatpush1.msra.mxu0 0.0
    %2399 = vmatprep.subr.mxu0 0.0
    %2400 = vmatpush1.msra.mxu0 0.0
    %2401 = vmatprep.subr.mxu0 0.0
    %2402 = vmatpush1.msra.mxu0 0.0
    %2403 = vmatprep.subr.mxu0 0.0
    %2404 = vmatpush1.msra.mxu0 0.0
    %2405 = vmatprep.subr.mxu0 0.0
    %2406 = vmatpush1.msra.mxu0 0.0
    %2407 = vmatprep.subr.mxu0 0.0
    %2408 = vmatpush1.msra.mxu0 0.0
    %2409 = vmatprep.subr.mxu0 0.0
    %2410 = vmatpush1.msra.mxu0 0.0
    %2411 = vmatprep.subr.mxu0 0.0
    %2412 = vmatpush1.msra.mxu0 0.0
    %2413 = vmatprep.subr.mxu0 0.0
    %2414 = vmatpush1.msra.mxu0 0.0
    %2415 = vmatprep.subr.mxu0 0.0
    %2416 = vmatpush1.msra.mxu0 0.0
    %2417 = vmatprep.subr.mxu0 0.0
    %2418 = vmatpush1.msra.mxu0 0.0
    %2419 = vmatprep.subr.mxu0 0.0
    %2420 = vmatpush1.msra.mxu0 0.0
    %2421 = vmatprep.subr.mxu0 0.0
    %2422 = vmatpush1.msra.mxu0 0.0
    %2423 = vmatprep.subr.mxu0 0.0
    %2424 = vmatpush1.msra.mxu0 0.0
    %2425 = vmatprep.subr.mxu0 0.0
    %2426 = vmatpush1.msra.mxu0 0.0
    %2427 = vmatprep.subr.mxu0 0.0
    %2428 = vmatpush1.msra.mxu0 0.0
    %2429 = vmatprep.subr.mxu0 0.0
    %2430 = vmatpush1.msra.mxu0 0.0
    %2431 = vmatprep.subr.mxu0 0.0
    %2432 = vmatpush1.msra.mxu0 0.0
    %2433 = vmatprep.mubr.f32.mxu0 0.0
    %2434 = vmatmul.mubr.f32.gmra.mrb[0].mxu0 %v2266
    %v2435 = vpop.f32.mrb[0].mxu0
    %v2436 = vadd.f32 0.0, %v2435
    %v2437 = vpop.f32.mrb[0].mxu0
    %2438 = vdwg.mxu0
    %v2439 = vadd.f32 %v1452, %v2436
    %v2440 = vxor.u32 %v2439, 2147483648
    %v2441 = vmul.f32 %v2440, 1.442695
    %v2442 = vpow.pop %v2441
    %v2443 = vadd.f32 %v2442, 1.0
    %v2444 = vrcp.pop %v2443
    %v2445 = vmul.f32 1.0, %v2444
    %v2446 = vmul.f32 %v2445, 2.0
    %v2447 = vsub.f32 %v2446, 1.0
    %v2448 = vmul.f32 %v2445, %v2180
    %2450 = vrot.lane.b32.xlu0 %v2447, 64
    %v2451 = vpop.permute.xlu0 %2450
    %v2453 = vmul.f32 %v2445, %v2451
    %2455 = vrot.lane.b32.xlu0 %v2453, 32
    %v2456 = vpop.permute.xlu0 %2455
    %v2458 = vadd.f32 %v2448, %v2456
    %v2459 = vtanh.pop %v2458
    %2461 = vrot.lane.b32.xlu0 %v2459, 64
    %v2462 = vpop.permute.xlu0 %2461
    %v2464 = vmul.f32 %v2445, %v2462
    %2466 = vrot.lane.b32.xlu0 %v2464, 32
    %v2467 = vpop.permute.xlu0 %2466
    %2469 = vst.msk [vmem:[#allocation2 + $0x18] sm:$0xff] %vm1534, %v2467
    %2470 = vrot.lane.b32.xlu0 %v2363, 32
    %v2471 = vpop.permute.xlu0 %2470
    %v2472 = vsel %vm1534, %v2471, 0
    %2474 = vmatprep.subr.mxu0 0.0
    %2475 = vmatpush1.msra.mxu0 %v1523
    %2476 = vmatprep.subr.mxu0 0.0
    %2477 = vmatpush1.msra.mxu0 %v1524
    %2478 = vmatprep.subr.mxu0 0.0
    %2479 = vmatpush1.msra.mxu0 %v1525
    %2480 = vmatprep.subr.mxu0 0.0
    %2481 = vmatpush1.msra.mxu0 %v1526
    %2482 = vmatprep.subr.mxu0 0.0
    %2483 = vmatpush1.msra.mxu0 0.0
    %2484 = vmatprep.subr.mxu0 0.0
    %2485 = vmatpush1.msra.mxu0 0.0
    %2486 = vmatprep.subr.mxu0 0.0
    %2487 = vmatpush1.msra.mxu0 0.0
    %2488 = vmatprep.subr.mxu0 0.0
    %2489 = vmatpush1.msra.mxu0 0.0
    %2490 = vmatprep.subr.mxu0 0.0
    %2491 = vmatpush1.msra.mxu0 0.0
    %2492 = vmatprep.subr.mxu0 0.0
    %2493 = vmatpush1.msra.mxu0 0.0
    %2494 = vmatprep.subr.mxu0 0.0
    %2495 = vmatpush1.msra.mxu0 0.0
    %2496 = vmatprep.subr.mxu0 0.0
    %2497 = vmatpush1.msra.mxu0 0.0
    %2498 = vmatprep.subr.mxu0 0.0
    %2499 = vmatpush1.msra.mxu0 0.0
    %2500 = vmatprep.subr.mxu0 0.0
    %2501 = vmatpush1.msra.mxu0 0.0
    %2502 = vmatprep.subr.mxu0 0.0
    %2503 = vmatpush1.msra.mxu0 0.0
    %2504 = vmatprep.subr.mxu0 0.0
    %2505 = vmatpush1.msra.mxu0 0.0
    %2506 = vmatprep.subr.mxu0 0.0
    %2507 = vmatpush1.msra.mxu0 0.0
    %2508 = vmatprep.subr.mxu0 0.0
    %2509 = vmatpush1.msra.mxu0 0.0
    %2510 = vmatprep.subr.mxu0 0.0
    %2511 = vmatpush1.msra.mxu0 0.0
    %2512 = vmatprep.subr.mxu0 0.0
    %2513 = vmatpush1.msra.mxu0 0.0
    %2514 = vmatprep.subr.mxu0 0.0
    %2515 = vmatpush1.msra.mxu0 0.0
    %2516 = vmatprep.subr.mxu0 0.0
    %2517 = vmatpush1.msra.mxu0 0.0
    %2518 = vmatprep.subr.mxu0 0.0
    %2519 = vmatpush1.msra.mxu0 0.0
    %2520 = vmatprep.subr.mxu0 0.0
    %2521 = vmatpush1.msra.mxu0 0.0
    %2522 = vmatprep.subr.mxu0 0.0
    %2523 = vmatpush1.msra.mxu0 0.0
    %2524 = vmatprep.subr.mxu0 0.0
    %2525 = vmatpush1.msra.mxu0 0.0
    %2526 = vmatprep.subr.mxu0 0.0
    %2527 = vmatpush1.msra.mxu0 0.0
    %2528 = vmatprep.subr.mxu0 0.0
    %2529 = vmatpush1.msra.mxu0 0.0
    %2530 = vmatprep.subr.mxu0 0.0
    %2531 = vmatpush1.msra.mxu0 0.0
    %2532 = vmatprep.subr.mxu0 0.0
    %2533 = vmatpush1.msra.mxu0 0.0
    %2534 = vmatprep.subr.mxu0 0.0
    %2535 = vmatpush1.msra.mxu0 0.0
    %2536 = vmatprep.subr.mxu0 0.0
    %2537 = vmatpush1.msra.mxu0 0.0
    %2538 = vmatprep.mubr.f32.mxu0 0.0
    %2539 = vmatmul.mubr.f32.gmra.mrb[0].mxu0 %v2472
    %v2540 = vpop.f32.mrb[0].mxu0
    %v2541 = vadd.f32 0.0, %v2540
    %v2542 = vpop.f32.mrb[0].mxu0
    %2543 = vdwg.mxu0
    %v2544 = vsel %vm1534, %v2467, 0
    %2546 = vmatprep.subr.mxu0 0.0
    %2547 = vmatpush1.msra.mxu0 %v1519
    %2548 = vmatprep.subr.mxu0 0.0
    %2549 = vmatpush1.msra.mxu0 %v1520
    %2550 = vmatprep.subr.mxu0 0.0
    %2551 = vmatpush1.msra.mxu0 %v1521
    %2552 = vmatprep.subr.mxu0 0.0
    %2553 = vmatpush1.msra.mxu0 %v1522
    %2554 = vmatprep.subr.mxu0 0.0
    %2555 = vmatpush1.msra.mxu0 0.0
    %2556 = vmatprep.subr.mxu0 0.0
    %2557 = vmatpush1.msra.mxu0 0.0
    %2558 = vmatprep.subr.mxu0 0.0
    %2559 = vmatpush1.msra.mxu0 0.0
    %2560 = vmatprep.subr.mxu0 0.0
    %2561 = vmatpush1.msra.mxu0 0.0
    %2562 = vmatprep.subr.mxu0 0.0
    %2563 = vmatpush1.msra.mxu0 0.0
    %2564 = vmatprep.subr.mxu0 0.0
    %2565 = vmatpush1.msra.mxu0 0.0
    %2566 = vmatprep.subr.mxu0 0.0
    %2567 = vmatpush1.msra.mxu0 0.0
    %2568 = vmatprep.subr.mxu0 0.0
    %2569 = vmatpush1.msra.mxu0 0.0
    %2570 = vmatprep.subr.mxu0 0.0
    %2571 = vmatpush1.msra.mxu0 0.0
    %2572 = vmatprep.subr.mxu0 0.0
    %2573 = vmatpush1.msra.mxu0 0.0
    %2574 = vmatprep.subr.mxu0 0.0
    %2575 = vmatpush1.msra.mxu0 0.0
    %2576 = vmatprep.subr.mxu0 0.0
    %2577 = vmatpush1.msra.mxu0 0.0
    %2578 = vmatprep.subr.mxu0 0.0
    %2579 = vmatpush1.msra.mxu0 0.0
    %2580 = vmatprep.subr.mxu0 0.0
    %2581 = vmatpush1.msra.mxu0 0.0
    %2582 = vmatprep.subr.mxu0 0.0
    %2583 = vmatpush1.msra.mxu0 0.0
    %2584 = vmatprep.subr.mxu0 0.0
    %2585 = vmatpush1.msra.mxu0 0.0
    %2586 = vmatprep.subr.mxu0 0.0
    %2587 = vmatpush1.msra.mxu0 0.0
    %2588 = vmatprep.subr.mxu0 0.0
    %2589 = vmatpush1.msra.mxu0 0.0
    %2590 = vmatprep.subr.mxu0 0.0
    %2591 = vmatpush1.msra.mxu0 0.0
    %2592 = vmatprep.subr.mxu0 0.0
    %2593 = vmatpush1.msra.mxu0 0.0
    %2594 = vmatprep.subr.mxu0 0.0
    %2595 = vmatpush1.msra.mxu0 0.0
    %2596 = vmatprep.subr.mxu0 0.0
    %2597 = vmatpush1.msra.mxu0 0.0
    %2598 = vmatprep.subr.mxu0 0.0
    %2599 = vmatpush1.msra.mxu0 0.0
    %2600 = vmatprep.subr.mxu0 0.0
    %2601 = vmatpush1.msra.mxu0 0.0
    %2602 = vmatprep.subr.mxu0 0.0
    %2603 = vmatpush1.msra.mxu0 0.0
    %2604 = vmatprep.subr.mxu0 0.0
    %2605 = vmatpush1.msra.mxu0 0.0
    %2606 = vmatprep.subr.mxu0 0.0
    %2607 = vmatpush1.msra.mxu0 0.0
    %2608 = vmatprep.subr.mxu0 0.0
    %2609 = vmatpush1.msra.mxu0 0.0
    %2610 = vmatprep.mubr.f32.mxu0 0.0
    %2611 = vmatmul.mubr.f32.gmra.mrb[0].mxu0 %v2544
    %v2612 = vpop.f32.mrb[0].mxu0
    %v2613 = vadd.f32 %v2541, %v2612
    %v2614 = vpop.f32.mrb[0].mxu0
    %2615 = vdwg.mxu0
    %v2616 = vadd.f32 %v2613, %v1532
    %v2617 = vxor.u32 %v2616, 2147483648
    %v2618 = vmul.f32 %v2617, 1.442695
    %v2619 = vpow.pop %v2618
    %v2620 = vadd.f32 %v2619, 1.0
    %v2621 = vrcp.pop %v2620
    %v2622 = vmul.f32 1.0, %v2621
    %v2623 = vmul.f32 %v2622, 2.0
    %v2624 = vsub.f32 %v2623, 1.0
    %v2625 = vmul.f32 %v2622, %v2357
    %2627 = vrot.lane.b32.xlu0 %v2624, 64
    %v2628 = vpop.permute.xlu0 %2627
    %v2630 = vmul.f32 %v2622, %v2628
    %2632 = vrot.lane.b32.xlu0 %v2630, 32
    %v2633 = vpop.permute.xlu0 %2632
    %v2635 = vadd.f32 %v2625, %v2633
    %v2636 = vtanh.pop %v2635
    %2638 = vrot.lane.b32.xlu0 %v2636, 64
    %v2639 = vpop.permute.xlu0 %2638
    %v2641 = vmul.f32 %v2622, %v2639
    %2643 = vrot.lane.b32.xlu0 %v2641, 64
    %v2644 = vpop.permute.xlu0 %2643
    %2646 = vst.msk [vmem:[#allocation2 + $0x18] sm:$0xff] %vm1811, %v2644
    %2647 = vmatprep.subr.mxu0 0.0
    %2648 = vmatpush1.msra.mxu0 %v1515
    %2649 = vmatprep.subr.mxu0 0.0
    %2650 = vmatpush1.msra.mxu0 %v1516
    %2651 = vmatprep.subr.mxu0 0.0
    %2652 = vmatpush1.msra.mxu0 %v1517
    %2653 = vmatprep.subr.mxu0 0.0
    %2654 = vmatpush1.msra.mxu0 %v1518
    %2655 = vmatprep.subr.mxu0 0.0
    %2656 = vmatpush1.msra.mxu0 0.0
    %2657 = vmatprep.subr.mxu0 0.0
    %2658 = vmatpush1.msra.mxu0 0.0
    %2659 = vmatprep.subr.mxu0 0.0
    %2660 = vmatpush1.msra.mxu0 0.0
    %2661 = vmatprep.subr.mxu0 0.0
    %2662 = vmatpush1.msra.mxu0 0.0
    %2663 = vmatprep.subr.mxu0 0.0
    %2664 = vmatpush1.msra.mxu0 0.0
    %2665 = vmatprep.subr.mxu0 0.0
    %2666 = vmatpush1.msra.mxu0 0.0
    %2667 = vmatprep.subr.mxu0 0.0
    %2668 = vmatpush1.msra.mxu0 0.0
    %2669 = vmatprep.subr.mxu0 0.0
    %2670 = vmatpush1.msra.mxu0 0.0
    %2671 = vmatprep.subr.mxu0 0.0
    %2672 = vmatpush1.msra.mxu0 0.0
    %2673 = vmatprep.subr.mxu0 0.0
    %2674 = vmatpush1.msra.mxu0 0.0
    %2675 = vmatprep.subr.mxu0 0.0
    %2676 = vmatpush1.msra.mxu0 0.0
    %2677 = vmatprep.subr.mxu0 0.0
    %2678 = vmatpush1.msra.mxu0 0.0
    %2679 = vmatprep.subr.mxu0 0.0
    %2680 = vmatpush1.msra.mxu0 0.0
    %2681 = vmatprep.subr.mxu0 0.0
    %2682 = vmatpush1.msra.mxu0 0.0
    %2683 = vmatprep.subr.mxu0 0.0
    %2684 = vmatpush1.msra.mxu0 0.0
    %2685 = vmatprep.subr.mxu0 0.0
    %2686 = vmatpush1.msra.mxu0 0.0
    %2687 = vmatprep.subr.mxu0 0.0
    %2688 = vmatpush1.msra.mxu0 0.0
    %2689 = vmatprep.subr.mxu0 0.0
    %2690 = vmatpush1.msra.mxu0 0.0
    %2691 = vmatprep.subr.mxu0 0.0
    %2692 = vmatpush1.msra.mxu0 0.0
    %2693 = vmatprep.subr.mxu0 0.0
    %2694 = vmatpush1.msra.mxu0 0.0
    %2695 = vmatprep.subr.mxu0 0.0
    %2696 = vmatpush1.msra.mxu0 0.0
    %2697 = vmatprep.subr.mxu0 0.0
    %2698 = vmatpush1.msra.mxu0 0.0
    %2699 = vmatprep.subr.mxu0 0.0
    %2700 = vmatpush1.msra.mxu0 0.0
    %2701 = vmatprep.subr.mxu0 0.0
    %2702 = vmatpush1.msra.mxu0 0.0
    %2703 = vmatprep.subr.mxu0 0.0
    %2704 = vmatpush1.msra.mxu0 0.0
    %2705 = vmatprep.subr.mxu0 0.0
    %2706 = vmatpush1.msra.mxu0 0.0
    %2707 = vmatprep.subr.mxu0 0.0
    %2708 = vmatpush1.msra.mxu0 0.0
    %2709 = vmatprep.subr.mxu0 0.0
    %2710 = vmatpush1.msra.mxu0 0.0
    %2711 = vmatprep.mubr.f32.mxu0 0.0
    %2712 = vmatmul.mubr.f32.gmra.mrb[0].mxu0 %v2544
    %v2713 = vpop.f32.mrb[0].mxu0
    %v2714 = vadd.f32 0.0, %v2713
    %v2715 = vpop.f32.mrb[0].mxu0
    %2716 = vdwg.mxu0
    %v2717 = vadd.f32 %v1457, %v2714
    %v2718 = vxor.u32 %v2717, 2147483648
    %v2719 = vmul.f32 %v2718, 1.442695
    %v2720 = vpow.pop %v2719
    %v2721 = vadd.f32 %v2720, 1.0
    %v2722 = vrcp.pop %v2721
    %v2723 = vmul.f32 1.0, %v2722
    %v2724 = vmul.f32 %v2723, 2.0
    %v2725 = vsub.f32 %v2724, 1.0
    %v2726 = vmul.f32 %v2723, %v2458
    %2728 = vrot.lane.b32.xlu0 %v2725, 64
    %v2729 = vpop.permute.xlu0 %2728
    %v2731 = vmul.f32 %v2723, %v2729
    %2733 = vrot.lane.b32.xlu0 %v2731, 32
    %v2734 = vpop.permute.xlu0 %2733
    %v2736 = vadd.f32 %v2726, %v2734
    %v2737 = vtanh.pop %v2736
    %2739 = vrot.lane.b32.xlu0 %v2737, 64
    %v2740 = vpop.permute.xlu0 %2739
    %v2742 = vmul.f32 %v2723, %v2740
    %2744 = vrot.lane.b32.xlu0 %v2742, 32
    %v2745 = vpop.permute.xlu0 %2744
    %2747 = vst.msk [vmem:[#allocation2 + $0x20] sm:$0xff] %vm1534, %v2745
    %2748 = vrot.lane.b32.xlu0 %v2641, 32
    %v2749 = vpop.permute.xlu0 %2748
    %v2750 = vsel %vm1534, %v2749, 0
    %2752 = vmatprep.subr.mxu0 0.0
    %2753 = vmatpush1.msra.mxu0 %v1523
    %2754 = vmatprep.subr.mxu0 0.0
    %2755 = vmatpush1.msra.mxu0 %v1524
    %2756 = vmatprep.subr.mxu0 0.0
    %2757 = vmatpush1.msra.mxu0 %v1525
    %2758 = vmatprep.subr.mxu0 0.0
    %2759 = vmatpush1.msra.mxu0 %v1526
    %2760 = vmatprep.subr.mxu0 0.0
    %2761 = vmatpush1.msra.mxu0 0.0
    %2762 = vmatprep.subr.mxu0 0.0
    %2763 = vmatpush1.msra.mxu0 0.0
    %2764 = vmatprep.subr.mxu0 0.0
    %2765 = vmatpush1.msra.mxu0 0.0
    %2766 = vmatprep.subr.mxu0 0.0
    %2767 = vmatpush1.msra.mxu0 0.0
    %2768 = vmatprep.subr.mxu0 0.0
    %2769 = vmatpush1.msra.mxu0 0.0
    %2770 = vmatprep.subr.mxu0 0.0
    %2771 = vmatpush1.msra.mxu0 0.0
    %2772 = vmatprep.subr.mxu0 0.0
    %2773 = vmatpush1.msra.mxu0 0.0
    %2774 = vmatprep.subr.mxu0 0.0
    %2775 = vmatpush1.msra.mxu0 0.0
    %2776 = vmatprep.subr.mxu0 0.0
    %2777 = vmatpush1.msra.mxu0 0.0
    %2778 = vmatprep.subr.mxu0 0.0
    %2779 = vmatpush1.msra.mxu0 0.0
    %2780 = vmatprep.subr.mxu0 0.0
    %2781 = vmatpush1.msra.mxu0 0.0
    %2782 = vmatprep.subr.mxu0 0.0
    %2783 = vmatpush1.msra.mxu0 0.0
    %2784 = vmatprep.subr.mxu0 0.0
    %2785 = vmatpush1.msra.mxu0 0.0
    %2786 = vmatprep.subr.mxu0 0.0
    %2787 = vmatpush1.msra.mxu0 0.0
    %2788 = vmatprep.subr.mxu0 0.0
    %2789 = vmatpush1.msra.mxu0 0.0
    %2790 = vmatprep.subr.mxu0 0.0
    %2791 = vmatpush1.msra.mxu0 0.0
    %2792 = vmatprep.subr.mxu0 0.0
    %2793 = vmatpush1.msra.mxu0 0.0
    %2794 = vmatprep.subr.mxu0 0.0
    %2795 = vmatpush1.msra.mxu0 0.0
    %2796 = vmatprep.subr.mxu0 0.0
    %2797 = vmatpush1.msra.mxu0 0.0
    %2798 = vmatprep.subr.mxu0 0.0
    %2799 = vmatpush1.msra.mxu0 0.0
    %2800 = vmatprep.subr.mxu0 0.0
    %2801 = vmatpush1.msra.mxu0 0.0
    %2802 = vmatprep.subr.mxu0 0.0
    %2803 = vmatpush1.msra.mxu0 0.0
    %2804 = vmatprep.subr.mxu0 0.0
    %2805 = vmatpush1.msra.mxu0 0.0
    %2806 = vmatprep.subr.mxu0 0.0
    %2807 = vmatpush1.msra.mxu0 0.0
    %2808 = vmatprep.subr.mxu0 0.0
    %2809 = vmatpush1.msra.mxu0 0.0
    %2810 = vmatprep.subr.mxu0 0.0
    %2811 = vmatpush1.msra.mxu0 0.0
    %2812 = vmatprep.subr.mxu0 0.0
    %2813 = vmatpush1.msra.mxu0 0.0
    %2814 = vmatprep.subr.mxu0 0.0
    %2815 = vmatpush1.msra.mxu0 0.0
    %2816 = vmatprep.mubr.f32.mxu0 0.0
    %2817 = vmatmul.mubr.f32.gmra.mrb[0].mxu0 %v2750
    %v2818 = vpop.f32.mrb[0].mxu0
    %v2819 = vadd.f32 0.0, %v2818
    %v2820 = vpop.f32.mrb[0].mxu0
    %2821 = vdwg.mxu0
    %v2822 = vsel %vm1534, %v2745, 0
    %2824 = vmatprep.subr.mxu0 0.0
    %2825 = vmatpush1.msra.mxu0 %v1519
    %2826 = vmatprep.subr.mxu0 0.0
    %2827 = vmatpush1.msra.mxu0 %v1520
    %2828 = vmatprep.subr.mxu0 0.0
    %2829 = vmatpush1.msra.mxu0 %v1521
    %2830 = vmatprep.subr.mxu0 0.0
    %2831 = vmatpush1.msra.mxu0 %v1522
    %2832 = vmatprep.subr.mxu0 0.0
    %2833 = vmatpush1.msra.mxu0 0.0
    %2834 = vmatprep.subr.mxu0 0.0
    %2835 = vmatpush1.msra.mxu0 0.0
    %2836 = vmatprep.subr.mxu0 0.0
    %2837 = vmatpush1.msra.mxu0 0.0
    %2838 = vmatprep.subr.mxu0 0.0
    %2839 = vmatpush1.msra.mxu0 0.0
    %2840 = vmatprep.subr.mxu0 0.0
    %2841 = vmatpush1.msra.mxu0 0.0
    %2842 = vmatprep.subr.mxu0 0.0
    %2843 = vmatpush1.msra.mxu0 0.0
    %2844 = vmatprep.subr.mxu0 0.0
    %2845 = vmatpush1.msra.mxu0 0.0
    %2846 = vmatprep.subr.mxu0 0.0
    %2847 = vmatpush1.msra.mxu0 0.0
    %2848 = vmatprep.subr.mxu0 0.0
    %2849 = vmatpush1.msra.mxu0 0.0
    %2850 = vmatprep.subr.mxu0 0.0
    %2851 = vmatpush1.msra.mxu0 0.0
    %2852 = vmatprep.subr.mxu0 0.0
    %2853 = vmatpush1.msra.mxu0 0.0
    %2854 = vmatprep.subr.mxu0 0.0
    %2855 = vmatpush1.msra.mxu0 0.0
    %2856 = vmatprep.subr.mxu0 0.0
    %2857 = vmatpush1.msra.mxu0 0.0
    %2858 = vmatprep.subr.mxu0 0.0
    %2859 = vmatpush1.msra.mxu0 0.0
    %2860 = vmatprep.subr.mxu0 0.0
    %2861 = vmatpush1.msra.mxu0 0.0
    %2862 = vmatprep.subr.mxu0 0.0
    %2863 = vmatpush1.msra.mxu0 0.0
    %2864 = vmatprep.subr.mxu0 0.0
    %2865 = vmatpush1.msra.mxu0 0.0
    %2866 = vmatprep.subr.mxu0 0.0
    %2867 = vmatpush1.msra.mxu0 0.0
    %2868 = vmatprep.subr.mxu0 0.0
    %2869 = vmatpush1.msra.mxu0 0.0
    %2870 = vmatprep.subr.mxu0 0.0
    %2871 = vmatpush1.msra.mxu0 0.0
    %2872 = vmatprep.subr.mxu0 0.0
    %2873 = vmatpush1.msra.mxu0 0.0
    %2874 = vmatprep.subr.mxu0 0.0
    %2875 = vmatpush1.msra.mxu0 0.0
    %2876 = vmatprep.subr.mxu0 0.0
    %2877 = vmatpush1.msra.mxu0 0.0
    %2878 = vmatprep.subr.mxu0 0.0
    %2879 = vmatpush1.msra.mxu0 0.0
    %2880 = vmatprep.subr.mxu0 0.0
    %2881 = vmatpush1.msra.mxu0 0.0
    %2882 = vmatprep.subr.mxu0 0.0
    %2883 = vmatpush1.msra.mxu0 0.0
    %2884 = vmatprep.subr.mxu0 0.0
    %2885 = vmatpush1.msra.mxu0 0.0
    %2886 = vmatprep.subr.mxu0 0.0
    %2887 = vmatpush1.msra.mxu0 0.0
    %2888 = vmatprep.mubr.f32.mxu0 0.0
    %2889 = vmatmul.mubr.f32.gmra.mrb[0].mxu0 %v2822
    %v2890 = vpop.f32.mrb[0].mxu0
    %v2891 = vadd.f32 %v2819, %v2890
    %v2892 = vpop.f32.mrb[0].mxu0
    %2893 = vdwg.mxu0
    %v2894 = vadd.f32 %v2891, %v1532
    %v2895 = vxor.u32 %v2894, 2147483648
    %v2896 = vmul.f32 %v2895, 1.442695
    %v2897 = vpow.pop %v2896
    %v2898 = vadd.f32 %v2897, 1.0
    %v2899 = vrcp.pop %v2898
    %v2900 = vmul.f32 1.0, %v2899
    %v2901 = vmul.f32 %v2900, 2.0
    %v2902 = vsub.f32 %v2901, 1.0
    %v2903 = vmul.f32 %v2900, %v2635
    %2905 = vrot.lane.b32.xlu0 %v2902, 64
    %v2906 = vpop.permute.xlu0 %2905
    %v2908 = vmul.f32 %v2900, %v2906
    %2910 = vrot.lane.b32.xlu0 %v2908, 32
    %v2911 = vpop.permute.xlu0 %2910
    %v2913 = vadd.f32 %v2903, %v2911
    %v2914 = vtanh.pop %v2913
    %2916 = vrot.lane.b32.xlu0 %v2914, 64
    %v2917 = vpop.permute.xlu0 %2916
    %v2919 = vmul.f32 %v2900, %v2917
    %2921 = vrot.lane.b32.xlu0 %v2919, 64
    %v2922 = vpop.permute.xlu0 %2921
    %2924 = vst.msk [vmem:[#allocation2 + $0x20] sm:$0xff] %vm1811, %v2922
    %2925 = vmatprep.subr.mxu0 0.0
    %2926 = vmatpush1.msra.mxu0 %v1515
    %2927 = vmatprep.subr.mxu0 0.0
    %2928 = vmatpush1.msra.mxu0 %v1516
    %2929 = vmatprep.subr.mxu0 0.0
    %2930 = vmatpush1.msra.mxu0 %v1517
    %2931 = vmatprep.subr.mxu0 0.0
    %2932 = vmatpush1.msra.mxu0 %v1518
    %2933 = vmatprep.subr.mxu0 0.0
    %2934 = vmatpush1.msra.mxu0 0.0
    %2935 = vmatprep.subr.mxu0 0.0
    %2936 = vmatpush1.msra.mxu0 0.0
    %2937 = vmatprep.subr.mxu0 0.0
    %2938 = vmatpush1.msra.mxu0 0.0
    %2939 = vmatprep.subr.mxu0 0.0
    %2940 = vmatpush1.msra.mxu0 0.0
    %2941 = vmatprep.subr.mxu0 0.0
    %2942 = vmatpush1.msra.mxu0 0.0
    %2943 = vmatprep.subr.mxu0 0.0
    %2944 = vmatpush1.msra.mxu0 0.0
    %2945 = vmatprep.subr.mxu0 0.0
    %2946 = vmatpush1.msra.mxu0 0.0
    %2947 = vmatprep.subr.mxu0 0.0
    %2948 = vmatpush1.msra.mxu0 0.0
    %2949 = vmatprep.subr.mxu0 0.0
    %2950 = vmatpush1.msra.mxu0 0.0
    %2951 = vmatprep.subr.mxu0 0.0
    %2952 = vmatpush1.msra.mxu0 0.0
    %2953 = vmatprep.subr.mxu0 0.0
    %2954 = vmatpush1.msra.mxu0 0.0
    %2955 = vmatprep.subr.mxu0 0.0
    %2956 = vmatpush1.msra.mxu0 0.0
    %2957 = vmatprep.subr.mxu0 0.0
    %2958 = vmatpush1.msra.mxu0 0.0
    %2959 = vmatprep.subr.mxu0 0.0
    %2960 = vmatpush1.msra.mxu0 0.0
    %2961 = vmatprep.subr.mxu0 0.0
    %2962 = vmatpush1.msra.mxu0 0.0
    %2963 = vmatprep.subr.mxu0 0.0
    %2964 = vmatpush1.msra.mxu0 0.0
    %2965 = vmatprep.subr.mxu0 0.0
    %2966 = vmatpush1.msra.mxu0 0.0
    %2967 = vmatprep.subr.mxu0 0.0
    %2968 = vmatpush1.msra.mxu0 0.0
    %2969 = vmatprep.subr.mxu0 0.0
    %2970 = vmatpush1.msra.mxu0 0.0
    %2971 = vmatprep.subr.mxu0 0.0
    %2972 = vmatpush1.msra.mxu0 0.0
    %2973 = vmatprep.subr.mxu0 0.0
    %2974 = vmatpush1.msra.mxu0 0.0
    %2975 = vmatprep.subr.mxu0 0.0
    %2976 = vmatpush1.msra.mxu0 0.0
    %2977 = vmatprep.subr.mxu0 0.0
    %2978 = vmatpush1.msra.mxu0 0.0
    %2979 = vmatprep.subr.mxu0 0.0
    %2980 = vmatpush1.msra.mxu0 0.0
    %2981 = vmatprep.subr.mxu0 0.0
    %2982 = vmatpush1.msra.mxu0 0.0
    %2983 = vmatprep.subr.mxu0 0.0
    %2984 = vmatpush1.msra.mxu0 0.0
    %2985 = vmatprep.subr.mxu0 0.0
    %2986 = vmatpush1.msra.mxu0 0.0
    %2987 = vmatprep.subr.mxu0 0.0
    %2988 = vmatpush1.msra.mxu0 0.0
    %2989 = vmatprep.mubr.f32.mxu0 0.0
    %2990 = vmatmul.mubr.f32.gmra.mrb[0].mxu0 %v2822
    %v2991 = vpop.f32.mrb[0].mxu0
    %v2992 = vadd.f32 0.0, %v2991
    %v2993 = vpop.f32.mrb[0].mxu0
    %2994 = vdwg.mxu0
    %v2995 = vadd.f32 %v1462, %v2992
    %v2996 = vxor.u32 %v2995, 2147483648
    %v2997 = vmul.f32 %v2996, 1.442695
    %v2998 = vpow.pop %v2997
    %v2999 = vadd.f32 %v2998, 1.0
    %v3000 = vrcp.pop %v2999
    %v3001 = vmul.f32 1.0, %v3000
    %v3002 = vmul.f32 %v3001, 2.0
    %v3003 = vsub.f32 %v3002, 1.0
    %v3004 = vmul.f32 %v3001, %v2736
    %3006 = vrot.lane.b32.xlu0 %v3003, 64
    %v3007 = vpop.permute.xlu0 %3006
    %v3009 = vmul.f32 %v3001, %v3007
    %3011 = vrot.lane.b32.xlu0 %v3009, 32
    %v3012 = vpop.permute.xlu0 %3011
    %v3014 = vadd.f32 %v3004, %v3012
    %v3015 = vtanh.pop %v3014
    %3017 = vrot.lane.b32.xlu0 %v3015, 64
    %v3018 = vpop.permute.xlu0 %3017
    %v3020 = vmul.f32 %v3001, %v3018
    %3022 = vrot.lane.b32.xlu0 %v3020, 32
    %v3023 = vpop.permute.xlu0 %3022
    %3025 = vst.msk [vmem:[#allocation2 + $0x28] sm:$0xff] %vm1534, %v3023
    %3026 = vrot.lane.b32.xlu0 %v2919, 32
    %v3027 = vpop.permute.xlu0 %3026
    %v3028 = vsel %vm1534, %v3027, 0
    %3030 = vmatprep.subr.mxu0 0.0
    %3031 = vmatpush1.msra.mxu0 %v1523
    %3032 = vmatprep.subr.mxu0 0.0
    %3033 = vmatpush1.msra.mxu0 %v1524
    %3034 = vmatprep.subr.mxu0 0.0
    %3035 = vmatpush1.msra.mxu0 %v1525
    %3036 = vmatprep.subr.mxu0 0.0
    %3037 = vmatpush1.msra.mxu0 %v1526
    %3038 = vmatprep.subr.mxu0 0.0
    %3039 = vmatpush1.msra.mxu0 0.0
    %3040 = vmatprep.subr.mxu0 0.0
    %3041 = vmatpush1.msra.mxu0 0.0
    %3042 = vmatprep.subr.mxu0 0.0
    %3043 = vmatpush1.msra.mxu0 0.0
    %3044 = vmatprep.subr.mxu0 0.0
    %3045 = vmatpush1.msra.mxu0 0.0
    %3046 = vmatprep.subr.mxu0 0.0
    %3047 = vmatpush1.msra.mxu0 0.0
    %3048 = vmatprep.subr.mxu0 0.0
    %3049 = vmatpush1.msra.mxu0 0.0
    %3050 = vmatprep.subr.mxu0 0.0
    %3051 = vmatpush1.msra.mxu0 0.0
    %3052 = vmatprep.subr.mxu0 0.0
    %3053 = vmatpush1.msra.mxu0 0.0
    %3054 = vmatprep.subr.mxu0 0.0
    %3055 = vmatpush1.msra.mxu0 0.0
    %3056 = vmatprep.subr.mxu0 0.0
    %3057 = vmatpush1.msra.mxu0 0.0
    %3058 = vmatprep.subr.mxu0 0.0
    %3059 = vmatpush1.msra.mxu0 0.0
    %3060 = vmatprep.subr.mxu0 0.0
    %3061 = vmatpush1.msra.mxu0 0.0
    %3062 = vmatprep.subr.mxu0 0.0
    %3063 = vmatpush1.msra.mxu0 0.0
    %3064 = vmatprep.subr.mxu0 0.0
    %3065 = vmatpush1.msra.mxu0 0.0
    %3066 = vmatprep.subr.mxu0 0.0
    %3067 = vmatpush1.msra.mxu0 0.0
    %3068 = vmatprep.subr.mxu0 0.0
    %3069 = vmatpush1.msra.mxu0 0.0
    %3070 = vmatprep.subr.mxu0 0.0
    %3071 = vmatpush1.msra.mxu0 0.0
    %3072 = vmatprep.subr.mxu0 0.0
    %3073 = vmatpush1.msra.mxu0 0.0
    %3074 = vmatprep.subr.mxu0 0.0
    %3075 = vmatpush1.msra.mxu0 0.0
    %3076 = vmatprep.subr.mxu0 0.0
    %3077 = vmatpush1.msra.mxu0 0.0
    %3078 = vmatprep.subr.mxu0 0.0
    %3079 = vmatpush1.msra.mxu0 0.0
    %3080 = vmatprep.subr.mxu0 0.0
    %3081 = vmatpush1.msra.mxu0 0.0
    %3082 = vmatprep.subr.mxu0 0.0
    %3083 = vmatpush1.msra.mxu0 0.0
    %3084 = vmatprep.subr.mxu0 0.0
    %3085 = vmatpush1.msra.mxu0 0.0
    %3086 = vmatprep.subr.mxu0 0.0
    %3087 = vmatpush1.msra.mxu0 0.0
    %3088 = vmatprep.subr.mxu0 0.0
    %3089 = vmatpush1.msra.mxu0 0.0
    %3090 = vmatprep.subr.mxu0 0.0
    %3091 = vmatpush1.msra.mxu0 0.0
    %3092 = vmatprep.subr.mxu0 0.0
    %3093 = vmatpush1.msra.mxu0 0.0
    %3094 = vmatprep.mubr.f32.mxu0 0.0
    %3095 = vmatmul.mubr.f32.gmra.mrb[0].mxu0 %v3028
    %v3096 = vpop.f32.mrb[0].mxu0
    %v3097 = vadd.f32 0.0, %v3096
    %v3098 = vpop.f32.mrb[0].mxu0
    %3099 = vdwg.mxu0
    %v3100 = vsel %vm1534, %v3023, 0
    %3102 = vmatprep.subr.mxu0 0.0
    %3103 = vmatpush1.msra.mxu0 %v1519
    %3104 = vmatprep.subr.mxu0 0.0
    %3105 = vmatpush1.msra.mxu0 %v1520
    %3106 = vmatprep.subr.mxu0 0.0
    %3107 = vmatpush1.msra.mxu0 %v1521
    %3108 = vmatprep.subr.mxu0 0.0
    %3109 = vmatpush1.msra.mxu0 %v1522
    %3110 = vmatprep.subr.mxu0 0.0
    %3111 = vmatpush1.msra.mxu0 0.0
    %3112 = vmatprep.subr.mxu0 0.0
    %3113 = vmatpush1.msra.mxu0 0.0
    %3114 = vmatprep.subr.mxu0 0.0
    %3115 = vmatpush1.msra.mxu0 0.0
    %3116 = vmatprep.subr.mxu0 0.0
    %3117 = vmatpush1.msra.mxu0 0.0
    %3118 = vmatprep.subr.mxu0 0.0
    %3119 = vmatpush1.msra.mxu0 0.0
    %3120 = vmatprep.subr.mxu0 0.0
    %3121 = vmatpush1.msra.mxu0 0.0
    %3122 = vmatprep.subr.mxu0 0.0
    %3123 = vmatpush1.msra.mxu0 0.0
    %3124 = vmatprep.subr.mxu0 0.0
    %3125 = vmatpush1.msra.mxu0 0.0
    %3126 = vmatprep.subr.mxu0 0.0
    %3127 = vmatpush1.msra.mxu0 0.0
    %3128 = vmatprep.subr.mxu0 0.0
    %3129 = vmatpush1.msra.mxu0 0.0
    %3130 = vmatprep.subr.mxu0 0.0
    %3131 = vmatpush1.msra.mxu0 0.0
    %3132 = vmatprep.subr.mxu0 0.0
    %3133 = vmatpush1.msra.mxu0 0.0
    %3134 = vmatprep.subr.mxu0 0.0
    %3135 = vmatpush1.msra.mxu0 0.0
    %3136 = vmatprep.subr.mxu0 0.0
    %3137 = vmatpush1.msra.mxu0 0.0
    %3138 = vmatprep.subr.mxu0 0.0
    %3139 = vmatpush1.msra.mxu0 0.0
    %3140 = vmatprep.subr.mxu0 0.0
    %3141 = vmatpush1.msra.mxu0 0.0
    %3142 = vmatprep.subr.mxu0 0.0
    %3143 = vmatpush1.msra.mxu0 0.0
    %3144 = vmatprep.subr.mxu0 0.0
    %3145 = vmatpush1.msra.mxu0 0.0
    %3146 = vmatprep.subr.mxu0 0.0
    %3147 = vmatpush1.msra.mxu0 0.0
    %3148 = vmatprep.subr.mxu0 0.0
    %3149 = vmatpush1.msra.mxu0 0.0
    %3150 = vmatprep.subr.mxu0 0.0
    %3151 = vmatpush1.msra.mxu0 0.0
    %3152 = vmatprep.subr.mxu0 0.0
    %3153 = vmatpush1.msra.mxu0 0.0
    %3154 = vmatprep.subr.mxu0 0.0
    %3155 = vmatpush1.msra.mxu0 0.0
    %3156 = vmatprep.subr.mxu0 0.0
    %3157 = vmatpush1.msra.mxu0 0.0
    %3158 = vmatprep.subr.mxu0 0.0
    %3159 = vmatpush1.msra.mxu0 0.0
    %3160 = vmatprep.subr.mxu0 0.0
    %3161 = vmatpush1.msra.mxu0 0.0
    %3162 = vmatprep.subr.mxu0 0.0
    %3163 = vmatpush1.msra.mxu0 0.0
    %3164 = vmatprep.subr.mxu0 0.0
    %3165 = vmatpush1.msra.mxu0 0.0
    %3166 = vmatprep.mubr.f32.mxu0 0.0
    %3167 = vmatmul.mubr.f32.gmra.mrb[0].mxu0 %v3100
    %v3168 = vpop.f32.mrb[0].mxu0
    %v3169 = vadd.f32 %v3097, %v3168
    %v3170 = vpop.f32.mrb[0].mxu0
    %3171 = vdwg.mxu0
    %v3172 = vadd.f32 %v3169, %v1532
    %v3173 = vxor.u32 %v3172, 2147483648
    %v3174 = vmul.f32 %v3173, 1.442695
    %v3175 = vpow.pop %v3174
    %v3176 = vadd.f32 %v3175, 1.0
    %v3177 = vrcp.pop %v3176
    %v3178 = vmul.f32 1.0, %v3177
    %v3179 = vmul.f32 %v3178, 2.0
    %v3180 = vsub.f32 %v3179, 1.0
    %v3181 = vmul.f32 %v3178, %v2913
    %3183 = vrot.lane.b32.xlu0 %v3180, 64
    %v3184 = vpop.permute.xlu0 %3183
    %v3186 = vmul.f32 %v3178, %v3184
    %3188 = vrot.lane.b32.xlu0 %v3186, 32
    %v3189 = vpop.permute.xlu0 %3188
    %v3191 = vadd.f32 %v3181, %v3189
    %v3192 = vtanh.pop %v3191
    %3194 = vrot.lane.b32.xlu0 %v3192, 64
    %v3195 = vpop.permute.xlu0 %3194
    %v3197 = vmul.f32 %v3178, %v3195
    %3199 = vrot.lane.b32.xlu0 %v3197, 64
    %v3200 = vpop.permute.xlu0 %3199
    %3202 = vst.msk [vmem:[#allocation2 + $0x28] sm:$0xff] %vm1811, %v3200
    %3203 = vmatprep.subr.mxu0 0.0
    %3204 = vmatpush1.msra.mxu0 %v1515
    %3205 = vmatprep.subr.mxu0 0.0
    %3206 = vmatpush1.msra.mxu0 %v1516
    %3207 = vmatprep.subr.mxu0 0.0
    %3208 = vmatpush1.msra.mxu0 %v1517
    %3209 = vmatprep.subr.mxu0 0.0
    %3210 = vmatpush1.msra.mxu0 %v1518
    %3211 = vmatprep.subr.mxu0 0.0
    %3212 = vmatpush1.msra.mxu0 0.0
    %3213 = vmatprep.subr.mxu0 0.0
    %3214 = vmatpush1.msra.mxu0 0.0
    %3215 = vmatprep.subr.mxu0 0.0
    %3216 = vmatpush1.msra.mxu0 0.0
    %3217 = vmatprep.subr.mxu0 0.0
    %3218 = vmatpush1.msra.mxu0 0.0
    %3219 = vmatprep.subr.mxu0 0.0
    %3220 = vmatpush1.msra.mxu0 0.0
    %3221 = vmatprep.subr.mxu0 0.0
    %3222 = vmatpush1.msra.mxu0 0.0
    %3223 = vmatprep.subr.mxu0 0.0
    %3224 = vmatpush1.msra.mxu0 0.0
    %3225 = vmatprep.subr.mxu0 0.0
    %3226 = vmatpush1.msra.mxu0 0.0
    %3227 = vmatprep.subr.mxu0 0.0
    %3228 = vmatpush1.msra.mxu0 0.0
    %3229 = vmatprep.subr.mxu0 0.0
    %3230 = vmatpush1.msra.mxu0 0.0
    %3231 = vmatprep.subr.mxu0 0.0
    %3232 = vmatpush1.msra.mxu0 0.0
    %3233 = vmatprep.subr.mxu0 0.0
    %3234 = vmatpush1.msra.mxu0 0.0
    %3235 = vmatprep.subr.mxu0 0.0
    %3236 = vmatpush1.msra.mxu0 0.0
    %3237 = vmatprep.subr.mxu0 0.0
    %3238 = vmatpush1.msra.mxu0 0.0
    %3239 = vmatprep.subr.mxu0 0.0
    %3240 = vmatpush1.msra.mxu0 0.0
    %3241 = vmatprep.subr.mxu0 0.0
    %3242 = vmatpush1.msra.mxu0 0.0
    %3243 = vmatprep.subr.mxu0 0.0
    %3244 = vmatpush1.msra.mxu0 0.0
    %3245 = vmatprep.subr.mxu0 0.0
    %3246 = vmatpush1.msra.mxu0 0.0
    %3247 = vmatprep.subr.mxu0 0.0
    %3248 = vmatpush1.msra.mxu0 0.0
    %3249 = vmatprep.subr.mxu0 0.0
    %3250 = vmatpush1.msra.mxu0 0.0
    %3251 = vmatprep.subr.mxu0 0.0
    %3252 = vmatpush1.msra.mxu0 0.0
    %3253 = vmatprep.subr.mxu0 0.0
    %3254 = vmatpush1.msra.mxu0 0.0
    %3255 = vmatprep.subr.mxu0 0.0
    %3256 = vmatpush1.msra.mxu0 0.0
    %3257 = vmatprep.subr.mxu0 0.0
    %3258 = vmatpush1.msra.mxu0 0.0
    %3259 = vmatprep.subr.mxu0 0.0
    %3260 = vmatpush1.msra.mxu0 0.0
    %3261 = vmatprep.subr.mxu0 0.0
    %3262 = vmatpush1.msra.mxu0 0.0
    %3263 = vmatprep.subr.mxu0 0.0
    %3264 = vmatpush1.msra.mxu0 0.0
    %3265 = vmatprep.subr.mxu0 0.0
    %3266 = vmatpush1.msra.mxu0 0.0
    %3267 = vmatprep.mubr.f32.mxu0 0.0
    %3268 = vmatmul.mubr.f32.gmra.mrb[0].mxu0 %v3100
    %v3269 = vpop.f32.mrb[0].mxu0
    %v3270 = vadd.f32 0.0, %v3269
    %v3271 = vpop.f32.mrb[0].mxu0
    %3272 = vdwg.mxu0
    %v3273 = vadd.f32 %v1467, %v3270
    %v3274 = vxor.u32 %v3273, 2147483648
    %v3275 = vmul.f32 %v3274, 1.442695
    %v3276 = vpow.pop %v3275
    %v3277 = vadd.f32 %v3276, 1.0
    %v3278 = vrcp.pop %v3277
    %v3279 = vmul.f32 1.0, %v3278
    %v3280 = vmul.f32 %v3279, 2.0
    %v3281 = vsub.f32 %v3280, 1.0
    %v3282 = vmul.f32 %v3279, %v3014
    %3284 = vrot.lane.b32.xlu0 %v3281, 64
    %v3285 = vpop.permute.xlu0 %3284
    %v3287 = vmul.f32 %v3279, %v3285
    %3289 = vrot.lane.b32.xlu0 %v3287, 32
    %v3290 = vpop.permute.xlu0 %3289
    %v3292 = vadd.f32 %v3282, %v3290
    %v3293 = vtanh.pop %v3292
    %3295 = vrot.lane.b32.xlu0 %v3293, 64
    %v3296 = vpop.permute.xlu0 %3295
    %v3298 = vmul.f32 %v3279, %v3296
    %3300 = vrot.lane.b32.xlu0 %v3298, 32
    %v3301 = vpop.permute.xlu0 %3300
    %3303 = vst.msk [vmem:[#allocation2 + $0x30] sm:$0xff] %vm1534, %v3301
    %3304 = vrot.lane.b32.xlu0 %v3197, 32
    %v3305 = vpop.permute.xlu0 %3304
    %v3306 = vsel %vm1534, %v3305, 0
    %3308 = vmatprep.subr.mxu0 0.0
    %3309 = vmatpush1.msra.mxu0 %v1523
    %3310 = vmatprep.subr.mxu0 0.0
    %3311 = vmatpush1.msra.mxu0 %v1524
    %3312 = vmatprep.subr.mxu0 0.0
    %3313 = vmatpush1.msra.mxu0 %v1525
    %3314 = vmatprep.subr.mxu0 0.0
    %3315 = vmatpush1.msra.mxu0 %v1526
    %3316 = vmatprep.subr.mxu0 0.0
    %3317 = vmatpush1.msra.mxu0 0.0
    %3318 = vmatprep.subr.mxu0 0.0
    %3319 = vmatpush1.msra.mxu0 0.0
    %3320 = vmatprep.subr.mxu0 0.0
    %3321 = vmatpush1.msra.mxu0 0.0
    %3322 = vmatprep.subr.mxu0 0.0
    %3323 = vmatpush1.msra.mxu0 0.0
    %3324 = vmatprep.subr.mxu0 0.0
    %3325 = vmatpush1.msra.mxu0 0.0
    %3326 = vmatprep.subr.mxu0 0.0
    %3327 = vmatpush1.msra.mxu0 0.0
    %3328 = vmatprep.subr.mxu0 0.0
    %3329 = vmatpush1.msra.mxu0 0.0
    %3330 = vmatprep.subr.mxu0 0.0
    %3331 = vmatpush1.msra.mxu0 0.0
    %3332 = vmatprep.subr.mxu0 0.0
    %3333 = vmatpush1.msra.mxu0 0.0
    %3334 = vmatprep.subr.mxu0 0.0
    %3335 = vmatpush1.msra.mxu0 0.0
    %3336 = vmatprep.subr.mxu0 0.0
    %3337 = vmatpush1.msra.mxu0 0.0
    %3338 = vmatprep.subr.mxu0 0.0
    %3339 = vmatpush1.msra.mxu0 0.0
    %3340 = vmatprep.subr.mxu0 0.0
    %3341 = vmatpush1.msra.mxu0 0.0
    %3342 = vmatprep.subr.mxu0 0.0
    %3343 = vmatpush1.msra.mxu0 0.0
    %3344 = vmatprep.subr.mxu0 0.0
    %3345 = vmatpush1.msra.mxu0 0.0
    %3346 = vmatprep.subr.mxu0 0.0
    %3347 = vmatpush1.msra.mxu0 0.0
    %3348 = vmatprep.subr.mxu0 0.0
    %3349 = vmatpush1.msra.mxu0 0.0
    %3350 = vmatprep.subr.mxu0 0.0
    %3351 = vmatpush1.msra.mxu0 0.0
    %3352 = vmatprep.subr.mxu0 0.0
    %3353 = vmatpush1.msra.mxu0 0.0
    %3354 = vmatprep.subr.mxu0 0.0
    %3355 = vmatpush1.msra.mxu0 0.0
    %3356 = vmatprep.subr.mxu0 0.0
    %3357 = vmatpush1.msra.mxu0 0.0
    %3358 = vmatprep.subr.mxu0 0.0
    %3359 = vmatpush1.msra.mxu0 0.0
    %3360 = vmatprep.subr.mxu0 0.0
    %3361 = vmatpush1.msra.mxu0 0.0
    %3362 = vmatprep.subr.mxu0 0.0
    %3363 = vmatpush1.msra.mxu0 0.0
    %3364 = vmatprep.subr.mxu0 0.0
    %3365 = vmatpush1.msra.mxu0 0.0
    %3366 = vmatprep.subr.mxu0 0.0
    %3367 = vmatpush1.msra.mxu0 0.0
    %3368 = vmatprep.subr.mxu0 0.0
    %3369 = vmatpush1.msra.mxu0 0.0
    %3370 = vmatprep.subr.mxu0 0.0
    %3371 = vmatpush1.msra.mxu0 0.0
    %3372 = vmatprep.mubr.f32.mxu0 0.0
    %3373 = vmatmul.mubr.f32.gmra.mrb[0].mxu0 %v3306
    %v3374 = vpop.f32.mrb[0].mxu0
    %v3375 = vadd.f32 0.0, %v3374
    %v3376 = vpop.f32.mrb[0].mxu0
    %3377 = vdwg.mxu0
    %v3378 = vsel %vm1534, %v3301, 0
    %3380 = vmatprep.subr.mxu0 0.0
    %3381 = vmatpush1.msra.mxu0 %v1519
    %3382 = vmatprep.subr.mxu0 0.0
    %3383 = vmatpush1.msra.mxu0 %v1520
    %3384 = vmatprep.subr.mxu0 0.0
    %3385 = vmatpush1.msra.mxu0 %v1521
    %3386 = vmatprep.subr.mxu0 0.0
    %3387 = vmatpush1.msra.mxu0 %v1522
    %3388 = vmatprep.subr.mxu0 0.0
    %3389 = vmatpush1.msra.mxu0 0.0
    %3390 = vmatprep.subr.mxu0 0.0
    %3391 = vmatpush1.msra.mxu0 0.0
    %3392 = vmatprep.subr.mxu0 0.0
    %3393 = vmatpush1.msra.mxu0 0.0
    %3394 = vmatprep.subr.mxu0 0.0
    %3395 = vmatpush1.msra.mxu0 0.0
    %3396 = vmatprep.subr.mxu0 0.0
    %3397 = vmatpush1.msra.mxu0 0.0
    %3398 = vmatprep.subr.mxu0 0.0
    %3399 = vmatpush1.msra.mxu0 0.0
    %3400 = vmatprep.subr.mxu0 0.0
    %3401 = vmatpush1.msra.mxu0 0.0
    %3402 = vmatprep.subr.mxu0 0.0
    %3403 = vmatpush1.msra.mxu0 0.0
    %3404 = vmatprep.subr.mxu0 0.0
    %3405 = vmatpush1.msra.mxu0 0.0
    %3406 = vmatprep.subr.mxu0 0.0
    %3407 = vmatpush1.msra.mxu0 0.0
    %3408 = vmatprep.subr.mxu0 0.0
    %3409 = vmatpush1.msra.mxu0 0.0
    %3410 = vmatprep.subr.mxu0 0.0
    %3411 = vmatpush1.msra.mxu0 0.0
    %3412 = vmatprep.subr.mxu0 0.0
    %3413 = vmatpush1.msra.mxu0 0.0
    %3414 = vmatprep.subr.mxu0 0.0
    %3415 = vmatpush1.msra.mxu0 0.0
    %3416 = vmatprep.subr.mxu0 0.0
    %3417 = vmatpush1.msra.mxu0 0.0
    %3418 = vmatprep.subr.mxu0 0.0
    %3419 = vmatpush1.msra.mxu0 0.0
    %3420 = vmatprep.subr.mxu0 0.0
    %3421 = vmatpush1.msra.mxu0 0.0
    %3422 = vmatprep.subr.mxu0 0.0
    %3423 = vmatpush1.msra.mxu0 0.0
    %3424 = vmatprep.subr.mxu0 0.0
    %3425 = vmatpush1.msra.mxu0 0.0
    %3426 = vmatprep.subr.mxu0 0.0
    %3427 = vmatpush1.msra.mxu0 0.0
    %3428 = vmatprep.subr.mxu0 0.0
    %3429 = vmatpush1.msra.mxu0 0.0
    %3430 = vmatprep.subr.mxu0 0.0
    %3431 = vmatpush1.msra.mxu0 0.0
    %3432 = vmatprep.subr.mxu0 0.0
    %3433 = vmatpush1.msra.mxu0 0.0
    %3434 = vmatprep.subr.mxu0 0.0
    %3435 = vmatpush1.msra.mxu0 0.0
    %3436 = vmatprep.subr.mxu0 0.0
    %3437 = vmatpush1.msra.mxu0 0.0
    %3438 = vmatprep.subr.mxu0 0.0
    %3439 = vmatpush1.msra.mxu0 0.0
    %3440 = vmatprep.subr.mxu0 0.0
    %3441 = vmatpush1.msra.mxu0 0.0
    %3442 = vmatprep.subr.mxu0 0.0
    %3443 = vmatpush1.msra.mxu0 0.0
    %3444 = vmatprep.mubr.f32.mxu0 0.0
    %3445 = vmatmul.mubr.f32.gmra.mrb[0].mxu0 %v3378
    %v3446 = vpop.f32.mrb[0].mxu0
    %v3447 = vadd.f32 %v3375, %v3446
    %v3448 = vpop.f32.mrb[0].mxu0
    %3449 = vdwg.mxu0
    %v3450 = vadd.f32 %v3447, %v1532
    %v3451 = vxor.u32 %v3450, 2147483648
    %v3452 = vmul.f32 %v3451, 1.442695
    %v3453 = vpow.pop %v3452
    %v3454 = vadd.f32 %v3453, 1.0
    %v3455 = vrcp.pop %v3454
    %v3456 = vmul.f32 1.0, %v3455
    %v3457 = vmul.f32 %v3456, 2.0
    %v3458 = vsub.f32 %v3457, 1.0
    %v3459 = vmul.f32 %v3456, %v3191
    %3461 = vrot.lane.b32.xlu0 %v3458, 64
    %v3462 = vpop.permute.xlu0 %3461
    %v3464 = vmul.f32 %v3456, %v3462
    %3466 = vrot.lane.b32.xlu0 %v3464, 32
    %v3467 = vpop.permute.xlu0 %3466
    %v3469 = vadd.f32 %v3459, %v3467
    %v3470 = vtanh.pop %v3469
    %3472 = vrot.lane.b32.xlu0 %v3470, 64
    %v3473 = vpop.permute.xlu0 %3472
    %v3475 = vmul.f32 %v3456, %v3473
    %3477 = vrot.lane.b32.xlu0 %v3475, 64
    %v3478 = vpop.permute.xlu0 %3477
    %3480 = vst.msk [vmem:[#allocation2 + $0x30] sm:$0xff] %vm1811, %v3478
    %3481 = vmatprep.subr.mxu0 0.0
    %3482 = vmatpush1.msra.mxu0 %v1515
    %3483 = vmatprep.subr.mxu0 0.0
    %3484 = vmatpush1.msra.mxu0 %v1516
    %3485 = vmatprep.subr.mxu0 0.0
    %3486 = vmatpush1.msra.mxu0 %v1517
    %3487 = vmatprep.subr.mxu0 0.0
    %3488 = vmatpush1.msra.mxu0 %v1518
    %3489 = vmatprep.subr.mxu0 0.0
    %3490 = vmatpush1.msra.mxu0 0.0
    %3491 = vmatprep.subr.mxu0 0.0
    %3492 = vmatpush1.msra.mxu0 0.0
    %3493 = vmatprep.subr.mxu0 0.0
    %3494 = vmatpush1.msra.mxu0 0.0
    %3495 = vmatprep.subr.mxu0 0.0
    %3496 = vmatpush1.msra.mxu0 0.0
    %3497 = vmatprep.subr.mxu0 0.0
    %3498 = vmatpush1.msra.mxu0 0.0
    %3499 = vmatprep.subr.mxu0 0.0
    %3500 = vmatpush1.msra.mxu0 0.0
    %3501 = vmatprep.subr.mxu0 0.0
    %3502 = vmatpush1.msra.mxu0 0.0
    %3503 = vmatprep.subr.mxu0 0.0
    %3504 = vmatpush1.msra.mxu0 0.0
    %3505 = vmatprep.subr.mxu0 0.0
    %3506 = vmatpush1.msra.mxu0 0.0
    %3507 = vmatprep.subr.mxu0 0.0
    %3508 = vmatpush1.msra.mxu0 0.0
    %3509 = vmatprep.subr.mxu0 0.0
    %3510 = vmatpush1.msra.mxu0 0.0
    %3511 = vmatprep.subr.mxu0 0.0
    %3512 = vmatpush1.msra.mxu0 0.0
    %3513 = vmatprep.subr.mxu0 0.0
    %3514 = vmatpush1.msra.mxu0 0.0
    %3515 = vmatprep.subr.mxu0 0.0
    %3516 = vmatpush1.msra.mxu0 0.0
    %3517 = vmatprep.subr.mxu0 0.0
    %3518 = vmatpush1.msra.mxu0 0.0
    %3519 = vmatprep.subr.mxu0 0.0
    %3520 = vmatpush1.msra.mxu0 0.0
    %3521 = vmatprep.subr.mxu0 0.0
    %3522 = vmatpush1.msra.mxu0 0.0
    %3523 = vmatprep.subr.mxu0 0.0
    %3524 = vmatpush1.msra.mxu0 0.0
    %3525 = vmatprep.subr.mxu0 0.0
    %3526 = vmatpush1.msra.mxu0 0.0
    %3527 = vmatprep.subr.mxu0 0.0
    %3528 = vmatpush1.msra.mxu0 0.0
    %3529 = vmatprep.subr.mxu0 0.0
    %3530 = vmatpush1.msra.mxu0 0.0
    %3531 = vmatprep.subr.mxu0 0.0
    %3532 = vmatpush1.msra.mxu0 0.0
    %3533 = vmatprep.subr.mxu0 0.0
    %3534 = vmatpush1.msra.mxu0 0.0
    %3535 = vmatprep.subr.mxu0 0.0
    %3536 = vmatpush1.msra.mxu0 0.0
    %3537 = vmatprep.subr.mxu0 0.0
    %3538 = vmatpush1.msra.mxu0 0.0
    %3539 = vmatprep.subr.mxu0 0.0
    %3540 = vmatpush1.msra.mxu0 0.0
    %3541 = vmatprep.subr.mxu0 0.0
    %3542 = vmatpush1.msra.mxu0 0.0
    %3543 = vmatprep.subr.mxu0 0.0
    %3544 = vmatpush1.msra.mxu0 0.0
    %3545 = vmatprep.mubr.f32.mxu0 0.0
    %3546 = vmatmul.mubr.f32.gmra.mrb[0].mxu0 %v3378
    %v3547 = vpop.f32.mrb[0].mxu0
    %v3548 = vadd.f32 0.0, %v3547
    %v3549 = vpop.f32.mrb[0].mxu0
    %3550 = vdwg.mxu0
    %v3551 = vadd.f32 %v1472, %v3548
    %v3552 = vxor.u32 %v3551, 2147483648
    %v3553 = vmul.f32 %v3552, 1.442695
    %v3554 = vpow.pop %v3553
    %v3555 = vadd.f32 %v3554, 1.0
    %v3556 = vrcp.pop %v3555
    %v3557 = vmul.f32 1.0, %v3556
    %v3558 = vmul.f32 %v3557, 2.0
    %v3559 = vsub.f32 %v3558, 1.0
    %v3560 = vmul.f32 %v3557, %v3292
    %3562 = vrot.lane.b32.xlu0 %v3559, 64
    %v3563 = vpop.permute.xlu0 %3562
    %v3565 = vmul.f32 %v3557, %v3563
    %3567 = vrot.lane.b32.xlu0 %v3565, 32
    %v3568 = vpop.permute.xlu0 %3567
    %v3570 = vadd.f32 %v3560, %v3568
    %v3571 = vtanh.pop %v3570
    %3573 = vrot.lane.b32.xlu0 %v3571, 64
    %v3574 = vpop.permute.xlu0 %3573
    %v3576 = vmul.f32 %v3557, %v3574
    %3578 = vrot.lane.b32.xlu0 %v3576, 32
    %v3579 = vpop.permute.xlu0 %3578
    %3581 = vst.msk [vmem:[#allocation2 + $0x38] sm:$0xff] %vm1534, %v3579
    %3582 = vrot.lane.b32.xlu0 %v3475, 32
    %v3583 = vpop.permute.xlu0 %3582
    %v3584 = vsel %vm1534, %v3583, 0
    %3586 = vmatprep.subr.mxu0 0.0
    %3587 = vmatpush1.msra.mxu0 %v1523
    %3588 = vmatprep.subr.mxu0 0.0
    %3589 = vmatpush1.msra.mxu0 %v1524
    %3590 = vmatprep.subr.mxu0 0.0
    %3591 = vmatpush1.msra.mxu0 %v1525
    %3592 = vmatprep.subr.mxu0 0.0
    %3593 = vmatpush1.msra.mxu0 %v1526
    %3594 = vmatprep.subr.mxu0 0.0
    %3595 = vmatpush1.msra.mxu0 0.0
    %3596 = vmatprep.subr.mxu0 0.0
    %3597 = vmatpush1.msra.mxu0 0.0
    %3598 = vmatprep.subr.mxu0 0.0
    %3599 = vmatpush1.msra.mxu0 0.0
    %3600 = vmatprep.subr.mxu0 0.0
    %3601 = vmatpush1.msra.mxu0 0.0
    %3602 = vmatprep.subr.mxu0 0.0
    %3603 = vmatpush1.msra.mxu0 0.0
    %3604 = vmatprep.subr.mxu0 0.0
    %3605 = vmatpush1.msra.mxu0 0.0
    %3606 = vmatprep.subr.mxu0 0.0
    %3607 = vmatpush1.msra.mxu0 0.0
    %3608 = vmatprep.subr.mxu0 0.0
    %3609 = vmatpush1.msra.mxu0 0.0
    %3610 = vmatprep.subr.mxu0 0.0
    %3611 = vmatpush1.msra.mxu0 0.0
    %3612 = vmatprep.subr.mxu0 0.0
    %3613 = vmatpush1.msra.mxu0 0.0
    %3614 = vmatprep.subr.mxu0 0.0
    %3615 = vmatpush1.msra.mxu0 0.0
    %3616 = vmatprep.subr.mxu0 0.0
    %3617 = vmatpush1.msra.mxu0 0.0
    %3618 = vmatprep.subr.mxu0 0.0
    %3619 = vmatpush1.msra.mxu0 0.0
    %3620 = vmatprep.subr.mxu0 0.0
    %3621 = vmatpush1.msra.mxu0 0.0
    %3622 = vmatprep.subr.mxu0 0.0
    %3623 = vmatpush1.msra.mxu0 0.0
    %3624 = vmatprep.subr.mxu0 0.0
    %3625 = vmatpush1.msra.mxu0 0.0
    %3626 = vmatprep.subr.mxu0 0.0
    %3627 = vmatpush1.msra.mxu0 0.0
    %3628 = vmatprep.subr.mxu0 0.0
    %3629 = vmatpush1.msra.mxu0 0.0
    %3630 = vmatprep.subr.mxu0 0.0
    %3631 = vmatpush1.msra.mxu0 0.0
    %3632 = vmatprep.subr.mxu0 0.0
    %3633 = vmatpush1.msra.mxu0 0.0
    %3634 = vmatprep.subr.mxu0 0.0
    %3635 = vmatpush1.msra.mxu0 0.0
    %3636 = vmatprep.subr.mxu0 0.0
    %3637 = vmatpush1.msra.mxu0 0.0
    %3638 = vmatprep.subr.mxu0 0.0
    %3639 = vmatpush1.msra.mxu0 0.0
    %3640 = vmatprep.subr.mxu0 0.0
    %3641 = vmatpush1.msra.mxu0 0.0
    %3642 = vmatprep.subr.mxu0 0.0
    %3643 = vmatpush1.msra.mxu0 0.0
    %3644 = vmatprep.subr.mxu0 0.0
    %3645 = vmatpush1.msra.mxu0 0.0
    %3646 = vmatprep.subr.mxu0 0.0
    %3647 = vmatpush1.msra.mxu0 0.0
    %3648 = vmatprep.subr.mxu0 0.0
    %3649 = vmatpush1.msra.mxu0 0.0
    %3650 = vmatprep.mubr.f32.mxu0 0.0
    %3651 = vmatmul.mubr.f32.gmra.mrb[0].mxu0 %v3584
    %v3652 = vpop.f32.mrb[0].mxu0
    %v3653 = vadd.f32 0.0, %v3652
    %v3654 = vpop.f32.mrb[0].mxu0
    %3655 = vdwg.mxu0
    %v3656 = vsel %vm1534, %v3579, 0
    %3658 = vmatprep.subr.mxu0 0.0
    %3659 = vmatpush1.msra.mxu0 %v1519
    %3660 = vmatprep.subr.mxu0 0.0
    %3661 = vmatpush1.msra.mxu0 %v1520
    %3662 = vmatprep.subr.mxu0 0.0
    %3663 = vmatpush1.msra.mxu0 %v1521
    %3664 = vmatprep.subr.mxu0 0.0
    %3665 = vmatpush1.msra.mxu0 %v1522
    %3666 = vmatprep.subr.mxu0 0.0
    %3667 = vmatpush1.msra.mxu0 0.0
    %3668 = vmatprep.subr.mxu0 0.0
    %3669 = vmatpush1.msra.mxu0 0.0
    %3670 = vmatprep.subr.mxu0 0.0
    %3671 = vmatpush1.msra.mxu0 0.0
    %3672 = vmatprep.subr.mxu0 0.0
    %3673 = vmatpush1.msra.mxu0 0.0
    %3674 = vmatprep.subr.mxu0 0.0
    %3675 = vmatpush1.msra.mxu0 0.0
    %3676 = vmatprep.subr.mxu0 0.0
    %3677 = vmatpush1.msra.mxu0 0.0
    %3678 = vmatprep.subr.mxu0 0.0
    %3679 = vmatpush1.msra.mxu0 0.0
    %3680 = vmatprep.subr.mxu0 0.0
    %3681 = vmatpush1.msra.mxu0 0.0
    %3682 = vmatprep.subr.mxu0 0.0
    %3683 = vmatpush1.msra.mxu0 0.0
    %3684 = vmatprep.subr.mxu0 0.0
    %3685 = vmatpush1.msra.mxu0 0.0
    %3686 = vmatprep.subr.mxu0 0.0
    %3687 = vmatpush1.msra.mxu0 0.0
    %3688 = vmatprep.subr.mxu0 0.0
    %3689 = vmatpush1.msra.mxu0 0.0
    %3690 = vmatprep.subr.mxu0 0.0
    %3691 = vmatpush1.msra.mxu0 0.0
    %3692 = vmatprep.subr.mxu0 0.0
    %3693 = vmatpush1.msra.mxu0 0.0
    %3694 = vmatprep.subr.mxu0 0.0
    %3695 = vmatpush1.msra.mxu0 0.0
    %3696 = vmatprep.subr.mxu0 0.0
    %3697 = vmatpush1.msra.mxu0 0.0
    %3698 = vmatprep.subr.mxu0 0.0
    %3699 = vmatpush1.msra.mxu0 0.0
    %3700 = vmatprep.subr.mxu0 0.0
    %3701 = vmatpush1.msra.mxu0 0.0
    %3702 = vmatprep.subr.mxu0 0.0
    %3703 = vmatpush1.msra.mxu0 0.0
    %3704 = vmatprep.subr.mxu0 0.0
    %3705 = vmatpush1.msra.mxu0 0.0
    %3706 = vmatprep.subr.mxu0 0.0
    %3707 = vmatpush1.msra.mxu0 0.0
    %3708 = vmatprep.subr.mxu0 0.0
    %3709 = vmatpush1.msra.mxu0 0.0
    %3710 = vmatprep.subr.mxu0 0.0
    %3711 = vmatpush1.msra.mxu0 0.0
    %3712 = vmatprep.subr.mxu0 0.0
    %3713 = vmatpush1.msra.mxu0 0.0
    %3714 = vmatprep.subr.mxu0 0.0
    %3715 = vmatpush1.msra.mxu0 0.0
    %3716 = vmatprep.subr.mxu0 0.0
    %3717 = vmatpush1.msra.mxu0 0.0
    %3718 = vmatprep.subr.mxu0 0.0
    %3719 = vmatpush1.msra.mxu0 0.0
    %3720 = vmatprep.subr.mxu0 0.0
    %3721 = vmatpush1.msra.mxu0 0.0
    %3722 = vmatprep.mubr.f32.mxu0 0.0
    %3723 = vmatmul.mubr.f32.gmra.mrb[0].mxu0 %v3656
    %v3724 = vpop.f32.mrb[0].mxu0
    %v3725 = vadd.f32 %v3653, %v3724
    %v3726 = vpop.f32.mrb[0].mxu0
    %3727 = vdwg.mxu0
    %v3728 = vadd.f32 %v3725, %v1532
    %v3729 = vxor.u32 %v3728, 2147483648
    %v3730 = vmul.f32 %v3729, 1.442695
    %v3731 = vpow.pop %v3730
    %v3732 = vadd.f32 %v3731, 1.0
    %v3733 = vrcp.pop %v3732
    %v3734 = vmul.f32 1.0, %v3733
    %v3735 = vmul.f32 %v3734, 2.0
    %v3736 = vsub.f32 %v3735, 1.0
    %v3737 = vmul.f32 %v3734, %v3469
    %3739 = vrot.lane.b32.xlu0 %v3736, 64
    %v3740 = vpop.permute.xlu0 %3739
    %v3742 = vmul.f32 %v3734, %v3740
    %3744 = vrot.lane.b32.xlu0 %v3742, 32
    %v3745 = vpop.permute.xlu0 %3744
    %v3747 = vadd.f32 %v3737, %v3745
    %v3748 = vtanh.pop %v3747
    %3750 = vrot.lane.b32.xlu0 %v3748, 64
    %v3751 = vpop.permute.xlu0 %3750
    %v3753 = vmul.f32 %v3734, %v3751
    %3755 = vrot.lane.b32.xlu0 %v3753, 64
    %v3756 = vpop.permute.xlu0 %3755
    %3758 = vst.msk [vmem:[#allocation2 + $0x38] sm:$0xff] %vm1811, %v3756
    %3759 = vmatprep.subr.mxu0 0.0
    %3760 = vmatpush1.msra.mxu0 %v1515
    %3761 = vmatprep.subr.mxu0 0.0
    %3762 = vmatpush1.msra.mxu0 %v1516
    %3763 = vmatprep.subr.mxu0 0.0
    %3764 = vmatpush1.msra.mxu0 %v1517
    %3765 = vmatprep.subr.mxu0 0.0
    %3766 = vmatpush1.msra.mxu0 %v1518
    %3767 = vmatprep.subr.mxu0 0.0
    %3768 = vmatpush1.msra.mxu0 0.0
    %3769 = vmatprep.subr.mxu0 0.0
    %3770 = vmatpush1.msra.mxu0 0.0
    %3771 = vmatprep.subr.mxu0 0.0
    %3772 = vmatpush1.msra.mxu0 0.0
    %3773 = vmatprep.subr.mxu0 0.0
    %3774 = vmatpush1.msra.mxu0 0.0
    %3775 = vmatprep.subr.mxu0 0.0
    %3776 = vmatpush1.msra.mxu0 0.0
    %3777 = vmatprep.subr.mxu0 0.0
    %3778 = vmatpush1.msra.mxu0 0.0
    %3779 = vmatprep.subr.mxu0 0.0
    %3780 = vmatpush1.msra.mxu0 0.0
    %3781 = vmatprep.subr.mxu0 0.0
    %3782 = vmatpush1.msra.mxu0 0.0
    %3783 = vmatprep.subr.mxu0 0.0
    %3784 = vmatpush1.msra.mxu0 0.0
    %3785 = vmatprep.subr.mxu0 0.0
    %3786 = vmatpush1.msra.mxu0 0.0
    %3787 = vmatprep.subr.mxu0 0.0
    %3788 = vmatpush1.msra.mxu0 0.0
    %3789 = vmatprep.subr.mxu0 0.0
    %3790 = vmatpush1.msra.mxu0 0.0
    %3791 = vmatprep.subr.mxu0 0.0
    %3792 = vmatpush1.msra.mxu0 0.0
    %3793 = vmatprep.subr.mxu0 0.0
    %3794 = vmatpush1.msra.mxu0 0.0
    %3795 = vmatprep.subr.mxu0 0.0
    %3796 = vmatpush1.msra.mxu0 0.0
    %3797 = vmatprep.subr.mxu0 0.0
    %3798 = vmatpush1.msra.mxu0 0.0
    %3799 = vmatprep.subr.mxu0 0.0
    %3800 = vmatpush1.msra.mxu0 0.0
    %3801 = vmatprep.subr.mxu0 0.0
    %3802 = vmatpush1.msra.mxu0 0.0
    %3803 = vmatprep.subr.mxu0 0.0
    %3804 = vmatpush1.msra.mxu0 0.0
    %3805 = vmatprep.subr.mxu0 0.0
    %3806 = vmatpush1.msra.mxu0 0.0
    %3807 = vmatprep.subr.mxu0 0.0
    %3808 = vmatpush1.msra.mxu0 0.0
    %3809 = vmatprep.subr.mxu0 0.0
    %3810 = vmatpush1.msra.mxu0 0.0
    %3811 = vmatprep.subr.mxu0 0.0
    %3812 = vmatpush1.msra.mxu0 0.0
    %3813 = vmatprep.subr.mxu0 0.0
    %3814 = vmatpush1.msra.mxu0 0.0
    %3815 = vmatprep.subr.mxu0 0.0
    %3816 = vmatpush1.msra.mxu0 0.0
    %3817 = vmatprep.subr.mxu0 0.0
    %3818 = vmatpush1.msra.mxu0 0.0
    %3819 = vmatprep.subr.mxu0 0.0
    %3820 = vmatpush1.msra.mxu0 0.0
    %3821 = vmatprep.subr.mxu0 0.0
    %3822 = vmatpush1.msra.mxu0 0.0
    %3823 = vmatprep.mubr.f32.mxu0 0.0
    %3824 = vmatmul.mubr.f32.gmra.mrb[0].mxu0 %v3656
    %v3825 = vpop.f32.mrb[0].mxu0
    %v3826 = vadd.f32 0.0, %v3825
    %v3827 = vpop.f32.mrb[0].mxu0
    %3828 = vdwg.mxu0
    %v3829 = vadd.f32 %v1477, %v3826
    %v3830 = vxor.u32 %v3829, 2147483648
    %v3831 = vmul.f32 %v3830, 1.442695
    %v3832 = vpow.pop %v3831
    %v3833 = vadd.f32 %v3832, 1.0
    %v3834 = vrcp.pop %v3833
    %v3835 = vmul.f32 1.0, %v3834
    %v3836 = vmul.f32 %v3835, 2.0
    %v3837 = vsub.f32 %v3836, 1.0
    %v3838 = vmul.f32 %v3835, %v3570
    %3840 = vrot.lane.b32.xlu0 %v3837, 64
    %v3841 = vpop.permute.xlu0 %3840
    %v3843 = vmul.f32 %v3835, %v3841
    %3845 = vrot.lane.b32.xlu0 %v3843, 32
    %v3846 = vpop.permute.xlu0 %3845
    %v3848 = vadd.f32 %v3838, %v3846
    %v3849 = vtanh.pop %v3848
    %3851 = vrot.lane.b32.xlu0 %v3849, 64
    %v3852 = vpop.permute.xlu0 %3851
    %v3854 = vmul.f32 %v3835, %v3852
    %3856 = vrot.lane.b32.xlu0 %v3854, 32
    %v3857 = vpop.permute.xlu0 %3856
    %3859 = vst.msk [vmem:[#allocation2 + $0x40] sm:$0xff] %vm1534, %v3857
    %3860 = vrot.lane.b32.xlu0 %v3753, 32
    %v3861 = vpop.permute.xlu0 %3860
    %v3862 = vsel %vm1534, %v3861, 0
    %3864 = vmatprep.subr.mxu0 0.0
    %3865 = vmatpush1.msra.mxu0 %v1523
    %3866 = vmatprep.subr.mxu0 0.0
    %3867 = vmatpush1.msra.mxu0 %v1524
    %3868 = vmatprep.subr.mxu0 0.0
    %3869 = vmatpush1.msra.mxu0 %v1525
    %3870 = vmatprep.subr.mxu0 0.0
    %3871 = vmatpush1.msra.mxu0 %v1526
    %3872 = vmatprep.subr.mxu0 0.0
    %3873 = vmatpush1.msra.mxu0 0.0
    %3874 = vmatprep.subr.mxu0 0.0
    %3875 = vmatpush1.msra.mxu0 0.0
    %3876 = vmatprep.subr.mxu0 0.0
    %3877 = vmatpush1.msra.mxu0 0.0
    %3878 = vmatprep.subr.mxu0 0.0
    %3879 = vmatpush1.msra.mxu0 0.0
    %3880 = vmatprep.subr.mxu0 0.0
    %3881 = vmatpush1.msra.mxu0 0.0
    %3882 = vmatprep.subr.mxu0 0.0
    %3883 = vmatpush1.msra.mxu0 0.0
    %3884 = vmatprep.subr.mxu0 0.0
    %3885 = vmatpush1.msra.mxu0 0.0
    %3886 = vmatprep.subr.mxu0 0.0
    %3887 = vmatpush1.msra.mxu0 0.0
    %3888 = vmatprep.subr.mxu0 0.0
    %3889 = vmatpush1.msra.mxu0 0.0
    %3890 = vmatprep.subr.mxu0 0.0
    %3891 = vmatpush1.msra.mxu0 0.0
    %3892 = vmatprep.subr.mxu0 0.0
    %3893 = vmatpush1.msra.mxu0 0.0
    %3894 = vmatprep.subr.mxu0 0.0
    %3895 = vmatpush1.msra.mxu0 0.0
    %3896 = vmatprep.subr.mxu0 0.0
    %3897 = vmatpush1.msra.mxu0 0.0
    %3898 = vmatprep.subr.mxu0 0.0
    %3899 = vmatpush1.msra.mxu0 0.0
    %3900 = vmatprep.subr.mxu0 0.0
    %3901 = vmatpush1.msra.mxu0 0.0
    %3902 = vmatprep.subr.mxu0 0.0
    %3903 = vmatpush1.msra.mxu0 0.0
    %3904 = vmatprep.subr.mxu0 0.0
    %3905 = vmatpush1.msra.mxu0 0.0
    %3906 = vmatprep.subr.mxu0 0.0
    %3907 = vmatpush1.msra.mxu0 0.0
    %3908 = vmatprep.subr.mxu0 0.0
    %3909 = vmatpush1.msra.mxu0 0.0
    %3910 = vmatprep.subr.mxu0 0.0
    %3911 = vmatpush1.msra.mxu0 0.0
    %3912 = vmatprep.subr.mxu0 0.0
    %3913 = vmatpush1.msra.mxu0 0.0
    %3914 = vmatprep.subr.mxu0 0.0
    %3915 = vmatpush1.msra.mxu0 0.0
    %3916 = vmatprep.subr.mxu0 0.0
    %3917 = vmatpush1.msra.mxu0 0.0
    %3918 = vmatprep.subr.mxu0 0.0
    %3919 = vmatpush1.msra.mxu0 0.0
    %3920 = vmatprep.subr.mxu0 0.0
    %3921 = vmatpush1.msra.mxu0 0.0
    %3922 = vmatprep.subr.mxu0 0.0
    %3923 = vmatpush1.msra.mxu0 0.0
    %3924 = vmatprep.subr.mxu0 0.0
    %3925 = vmatpush1.msra.mxu0 0.0
    %3926 = vmatprep.subr.mxu0 0.0
    %3927 = vmatpush1.msra.mxu0 0.0
    %3928 = vmatprep.mubr.f32.mxu0 0.0
    %3929 = vmatmul.mubr.f32.gmra.mrb[0].mxu0 %v3862
    %v3930 = vpop.f32.mrb[0].mxu0
    %v3931 = vadd.f32 0.0, %v3930
    %v3932 = vpop.f32.mrb[0].mxu0
    %3933 = vdwg.mxu0
    %v3934 = vsel %vm1534, %v3857, 0
    %3936 = vmatprep.subr.mxu0 0.0
    %3937 = vmatpush1.msra.mxu0 %v1519
    %3938 = vmatprep.subr.mxu0 0.0
    %3939 = vmatpush1.msra.mxu0 %v1520
    %3940 = vmatprep.subr.mxu0 0.0
    %3941 = vmatpush1.msra.mxu0 %v1521
    %3942 = vmatprep.subr.mxu0 0.0
    %3943 = vmatpush1.msra.mxu0 %v1522
    %3944 = vmatprep.subr.mxu0 0.0
    %3945 = vmatpush1.msra.mxu0 0.0
    %3946 = vmatprep.subr.mxu0 0.0
    %3947 = vmatpush1.msra.mxu0 0.0
    %3948 = vmatprep.subr.mxu0 0.0
    %3949 = vmatpush1.msra.mxu0 0.0
    %3950 = vmatprep.subr.mxu0 0.0
    %3951 = vmatpush1.msra.mxu0 0.0
    %3952 = vmatprep.subr.mxu0 0.0
    %3953 = vmatpush1.msra.mxu0 0.0
    %3954 = vmatprep.subr.mxu0 0.0
    %3955 = vmatpush1.msra.mxu0 0.0
    %3956 = vmatprep.subr.mxu0 0.0
    %3957 = vmatpush1.msra.mxu0 0.0
    %3958 = vmatprep.subr.mxu0 0.0
    %3959 = vmatpush1.msra.mxu0 0.0
    %3960 = vmatprep.subr.mxu0 0.0
    %3961 = vmatpush1.msra.mxu0 0.0
    %3962 = vmatprep.subr.mxu0 0.0
    %3963 = vmatpush1.msra.mxu0 0.0
    %3964 = vmatprep.subr.mxu0 0.0
    %3965 = vmatpush1.msra.mxu0 0.0
    %3966 = vmatprep.subr.mxu0 0.0
    %3967 = vmatpush1.msra.mxu0 0.0
    %3968 = vmatprep.subr.mxu0 0.0
    %3969 = vmatpush1.msra.mxu0 0.0
    %3970 = vmatprep.subr.mxu0 0.0
    %3971 = vmatpush1.msra.mxu0 0.0
    %3972 = vmatprep.subr.mxu0 0.0
    %3973 = vmatpush1.msra.mxu0 0.0
    %3974 = vmatprep.subr.mxu0 0.0
    %3975 = vmatpush1.msra.mxu0 0.0
    %3976 = vmatprep.subr.mxu0 0.0
    %3977 = vmatpush1.msra.mxu0 0.0
    %3978 = vmatprep.subr.mxu0 0.0
    %3979 = vmatpush1.msra.mxu0 0.0
    %3980 = vmatprep.subr.mxu0 0.0
    %3981 = vmatpush1.msra.mxu0 0.0
    %3982 = vmatprep.subr.mxu0 0.0
    %3983 = vmatpush1.msra.mxu0 0.0
    %3984 = vmatprep.subr.mxu0 0.0
    %3985 = vmatpush1.msra.mxu0 0.0
    %3986 = vmatprep.subr.mxu0 0.0
    %3987 = vmatpush1.msra.mxu0 0.0
    %3988 = vmatprep.subr.mxu0 0.0
    %3989 = vmatpush1.msra.mxu0 0.0
    %3990 = vmatprep.subr.mxu0 0.0
    %3991 = vmatpush1.msra.mxu0 0.0
    %3992 = vmatprep.subr.mxu0 0.0
    %3993 = vmatpush1.msra.mxu0 0.0
    %3994 = vmatprep.subr.mxu0 0.0
    %3995 = vmatpush1.msra.mxu0 0.0
    %3996 = vmatprep.subr.mxu0 0.0
    %3997 = vmatpush1.msra.mxu0 0.0
    %3998 = vmatprep.subr.mxu0 0.0
    %3999 = vmatpush1.msra.mxu0 0.0
    %4000 = vmatprep.mubr.f32.mxu0 0.0
    %4001 = vmatmul.mubr.f32.gmra.mrb[0].mxu0 %v3934
    %v4002 = vpop.f32.mrb[0].mxu0
    %v4003 = vadd.f32 %v3931, %v4002
    %v4004 = vpop.f32.mrb[0].mxu0
    %4005 = vdwg.mxu0
    %v4006 = vadd.f32 %v4003, %v1532
    %v4007 = vxor.u32 %v4006, 2147483648
    %v4008 = vmul.f32 %v4007, 1.442695
    %v4009 = vpow.pop %v4008
    %v4010 = vadd.f32 %v4009, 1.0
    %v4011 = vrcp.pop %v4010
    %v4012 = vmul.f32 1.0, %v4011
    %v4013 = vmul.f32 %v4012, 2.0
    %v4014 = vsub.f32 %v4013, 1.0
    %v4015 = vmul.f32 %v4012, %v3747
    %4017 = vrot.lane.b32.xlu0 %v4014, 64
    %v4018 = vpop.permute.xlu0 %4017
    %v4020 = vmul.f32 %v4012, %v4018
    %4022 = vrot.lane.b32.xlu0 %v4020, 32
    %v4023 = vpop.permute.xlu0 %4022
    %v4025 = vadd.f32 %v4015, %v4023
    %v4026 = vtanh.pop %v4025
    %4028 = vrot.lane.b32.xlu0 %v4026, 64
    %v4029 = vpop.permute.xlu0 %4028
    %v4031 = vmul.f32 %v4012, %v4029
    %4033 = vrot.lane.b32.xlu0 %v4031, 64
    %v4034 = vpop.permute.xlu0 %4033
    %4036 = vst.msk [vmem:[#allocation2 + $0x40] sm:$0xff] %vm1811, %v4034
    %4037 = vmatprep.subr.mxu0 0.0
    %4038 = vmatpush1.msra.mxu0 %v1515
    %4039 = vmatprep.subr.mxu0 0.0
    %4040 = vmatpush1.msra.mxu0 %v1516
    %4041 = vmatprep.subr.mxu0 0.0
    %4042 = vmatpush1.msra.mxu0 %v1517
    %4043 = vmatprep.subr.mxu0 0.0
    %4044 = vmatpush1.msra.mxu0 %v1518
    %4045 = vmatprep.subr.mxu0 0.0
    %4046 = vmatpush1.msra.mxu0 0.0
    %4047 = vmatprep.subr.mxu0 0.0
    %4048 = vmatpush1.msra.mxu0 0.0
    %4049 = vmatprep.subr.mxu0 0.0
    %4050 = vmatpush1.msra.mxu0 0.0
    %4051 = vmatprep.subr.mxu0 0.0
    %4052 = vmatpush1.msra.mxu0 0.0
    %4053 = vmatprep.subr.mxu0 0.0
    %4054 = vmatpush1.msra.mxu0 0.0
    %4055 = vmatprep.subr.mxu0 0.0
    %4056 = vmatpush1.msra.mxu0 0.0
    %4057 = vmatprep.subr.mxu0 0.0
    %4058 = vmatpush1.msra.mxu0 0.0
    %4059 = vmatprep.subr.mxu0 0.0
    %4060 = vmatpush1.msra.mxu0 0.0
    %4061 = vmatprep.subr.mxu0 0.0
    %4062 = vmatpush1.msra.mxu0 0.0
    %4063 = vmatprep.subr.mxu0 0.0
    %4064 = vmatpush1.msra.mxu0 0.0
    %4065 = vmatprep.subr.mxu0 0.0
    %4066 = vmatpush1.msra.mxu0 0.0
    %4067 = vmatprep.subr.mxu0 0.0
    %4068 = vmatpush1.msra.mxu0 0.0
    %4069 = vmatprep.subr.mxu0 0.0
    %4070 = vmatpush1.msra.mxu0 0.0
    %4071 = vmatprep.subr.mxu0 0.0
    %4072 = vmatpush1.msra.mxu0 0.0
    %4073 = vmatprep.subr.mxu0 0.0
    %4074 = vmatpush1.msra.mxu0 0.0
    %4075 = vmatprep.subr.mxu0 0.0
    %4076 = vmatpush1.msra.mxu0 0.0
    %4077 = vmatprep.subr.mxu0 0.0
    %4078 = vmatpush1.msra.mxu0 0.0
    %4079 = vmatprep.subr.mxu0 0.0
    %4080 = vmatpush1.msra.mxu0 0.0
    %4081 = vmatprep.subr.mxu0 0.0
    %4082 = vmatpush1.msra.mxu0 0.0
    %4083 = vmatprep.subr.mxu0 0.0
    %4084 = vmatpush1.msra.mxu0 0.0
    %4085 = vmatprep.subr.mxu0 0.0
    %4086 = vmatpush1.msra.mxu0 0.0
    %4087 = vmatprep.subr.mxu0 0.0
    %4088 = vmatpush1.msra.mxu0 0.0
    %4089 = vmatprep.subr.mxu0 0.0
    %4090 = vmatpush1.msra.mxu0 0.0
    %4091 = vmatprep.subr.mxu0 0.0
    %4092 = vmatpush1.msra.mxu0 0.0
    %4093 = vmatprep.subr.mxu0 0.0
    %4094 = vmatpush1.msra.mxu0 0.0
    %4095 = vmatprep.subr.mxu0 0.0
    %4096 = vmatpush1.msra.mxu0 0.0
    %4097 = vmatprep.subr.mxu0 0.0
    %4098 = vmatpush1.msra.mxu0 0.0
    %4099 = vmatprep.subr.mxu0 0.0
    %4100 = vmatpush1.msra.mxu0 0.0
    %4101 = vmatprep.mubr.f32.mxu0 0.0
    %4102 = vmatmul.mubr.f32.gmra.mrb[0].mxu0 %v3934
    %v4103 = vpop.f32.mrb[0].mxu0
    %v4104 = vadd.f32 0.0, %v4103
    %v4105 = vpop.f32.mrb[0].mxu0
    %4106 = vdwg.mxu0
    %v4107 = vadd.f32 %v1482, %v4104
    %v4108 = vxor.u32 %v4107, 2147483648
    %v4109 = vmul.f32 %v4108, 1.442695
    %v4110 = vpow.pop %v4109
    %v4111 = vadd.f32 %v4110, 1.0
    %v4112 = vrcp.pop %v4111
    %v4113 = vmul.f32 1.0, %v4112
    %v4114 = vmul.f32 %v4113, 2.0
    %v4115 = vsub.f32 %v4114, 1.0
    %v4116 = vmul.f32 %v4113, %v3848
    %4118 = vrot.lane.b32.xlu0 %v4115, 64
    %v4119 = vpop.permute.xlu0 %4118
    %v4121 = vmul.f32 %v4113, %v4119
    %4123 = vrot.lane.b32.xlu0 %v4121, 32
    %v4124 = vpop.permute.xlu0 %4123
    %v4126 = vadd.f32 %v4116, %v4124
    %v4127 = vtanh.pop %v4126
    %4129 = vrot.lane.b32.xlu0 %v4127, 64
    %v4130 = vpop.permute.xlu0 %4129
    %v4132 = vmul.f32 %v4113, %v4130
    %4134 = vrot.lane.b32.xlu0 %v4132, 32
    %v4135 = vpop.permute.xlu0 %4134
    %4137 = vst.msk [vmem:[#allocation2 + $0x48] sm:$0xff] %vm1534, %v4135
    %4138 = vrot.lane.b32.xlu0 %v4031, 32
    %v4139 = vpop.permute.xlu0 %4138
    %v4140 = vsel %vm1534, %v4139, 0
    %4142 = vmatprep.subr.mxu0 0.0
    %4143 = vmatpush1.msra.mxu0 %v1523
    %4144 = vmatprep.subr.mxu0 0.0
    %4145 = vmatpush1.msra.mxu0 %v1524
    %4146 = vmatprep.subr.mxu0 0.0
    %4147 = vmatpush1.msra.mxu0 %v1525
    %4148 = vmatprep.subr.mxu0 0.0
    %4149 = vmatpush1.msra.mxu0 %v1526
    %4150 = vmatprep.subr.mxu0 0.0
    %4151 = vmatpush1.msra.mxu0 0.0
    %4152 = vmatprep.subr.mxu0 0.0
    %4153 = vmatpush1.msra.mxu0 0.0
    %4154 = vmatprep.subr.mxu0 0.0
    %4155 = vmatpush1.msra.mxu0 0.0
    %4156 = vmatprep.subr.mxu0 0.0
    %4157 = vmatpush1.msra.mxu0 0.0
    %4158 = vmatprep.subr.mxu0 0.0
    %4159 = vmatpush1.msra.mxu0 0.0
    %4160 = vmatprep.subr.mxu0 0.0
    %4161 = vmatpush1.msra.mxu0 0.0
    %4162 = vmatprep.subr.mxu0 0.0
    %4163 = vmatpush1.msra.mxu0 0.0
    %4164 = vmatprep.subr.mxu0 0.0
    %4165 = vmatpush1.msra.mxu0 0.0
    %4166 = vmatprep.subr.mxu0 0.0
    %4167 = vmatpush1.msra.mxu0 0.0
    %4168 = vmatprep.subr.mxu0 0.0
    %4169 = vmatpush1.msra.mxu0 0.0
    %4170 = vmatprep.subr.mxu0 0.0
    %4171 = vmatpush1.msra.mxu0 0.0
    %4172 = vmatprep.subr.mxu0 0.0
    %4173 = vmatpush1.msra.mxu0 0.0
    %4174 = vmatprep.subr.mxu0 0.0
    %4175 = vmatpush1.msra.mxu0 0.0
    %4176 = vmatprep.subr.mxu0 0.0
    %4177 = vmatpush1.msra.mxu0 0.0
    %4178 = vmatprep.subr.mxu0 0.0
    %4179 = vmatpush1.msra.mxu0 0.0
    %4180 = vmatprep.subr.mxu0 0.0
    %4181 = vmatpush1.msra.mxu0 0.0
    %4182 = vmatprep.subr.mxu0 0.0
    %4183 = vmatpush1.msra.mxu0 0.0
    %4184 = vmatprep.subr.mxu0 0.0
    %4185 = vmatpush1.msra.mxu0 0.0
    %4186 = vmatprep.subr.mxu0 0.0
    %4187 = vmatpush1.msra.mxu0 0.0
    %4188 = vmatprep.subr.mxu0 0.0
    %4189 = vmatpush1.msra.mxu0 0.0
    %4190 = vmatprep.subr.mxu0 0.0
    %4191 = vmatpush1.msra.mxu0 0.0
    %4192 = vmatprep.subr.mxu0 0.0
    %4193 = vmatpush1.msra.mxu0 0.0
    %4194 = vmatprep.subr.mxu0 0.0
    %4195 = vmatpush1.msra.mxu0 0.0
    %4196 = vmatprep.subr.mxu0 0.0
    %4197 = vmatpush1.msra.mxu0 0.0
    %4198 = vmatprep.subr.mxu0 0.0
    %4199 = vmatpush1.msra.mxu0 0.0
    %4200 = vmatprep.subr.mxu0 0.0
    %4201 = vmatpush1.msra.mxu0 0.0
    %4202 = vmatprep.subr.mxu0 0.0
    %4203 = vmatpush1.msra.mxu0 0.0
    %4204 = vmatprep.subr.mxu0 0.0
    %4205 = vmatpush1.msra.mxu0 0.0
    %4206 = vmatprep.mubr.f32.mxu0 0.0
    %4207 = vmatmul.mubr.f32.gmra.mrb[0].mxu0 %v4140
    %v4208 = vpop.f32.mrb[0].mxu0
    %v4209 = vadd.f32 0.0, %v4208
    %v4210 = vpop.f32.mrb[0].mxu0
    %4211 = vdwg.mxu0
    %v4212 = vsel %vm1534, %v4135, 0
    %4214 = vmatprep.subr.mxu0 0.0
    %4215 = vmatpush1.msra.mxu0 %v1519
    %4216 = vmatprep.subr.mxu0 0.0
    %4217 = vmatpush1.msra.mxu0 %v1520
    %4218 = vmatprep.subr.mxu0 0.0
    %4219 = vmatpush1.msra.mxu0 %v1521
    %4220 = vmatprep.subr.mxu0 0.0
    %4221 = vmatpush1.msra.mxu0 %v1522
    %4222 = vmatprep.subr.mxu0 0.0
    %4223 = vmatpush1.msra.mxu0 0.0
    %4224 = vmatprep.subr.mxu0 0.0
    %4225 = vmatpush1.msra.mxu0 0.0
    %4226 = vmatprep.subr.mxu0 0.0
    %4227 = vmatpush1.msra.mxu0 0.0
    %4228 = vmatprep.subr.mxu0 0.0
    %4229 = vmatpush1.msra.mxu0 0.0
    %4230 = vmatprep.subr.mxu0 0.0
    %4231 = vmatpush1.msra.mxu0 0.0
    %4232 = vmatprep.subr.mxu0 0.0
    %4233 = vmatpush1.msra.mxu0 0.0
    %4234 = vmatprep.subr.mxu0 0.0
    %4235 = vmatpush1.msra.mxu0 0.0
    %4236 = vmatprep.subr.mxu0 0.0
    %4237 = vmatpush1.msra.mxu0 0.0
    %4238 = vmatprep.subr.mxu0 0.0
    %4239 = vmatpush1.msra.mxu0 0.0
    %4240 = vmatprep.subr.mxu0 0.0
    %4241 = vmatpush1.msra.mxu0 0.0
    %4242 = vmatprep.subr.mxu0 0.0
    %4243 = vmatpush1.msra.mxu0 0.0
    %4244 = vmatprep.subr.mxu0 0.0
    %4245 = vmatpush1.msra.mxu0 0.0
    %4246 = vmatprep.subr.mxu0 0.0
    %4247 = vmatpush1.msra.mxu0 0.0
    %4248 = vmatprep.subr.mxu0 0.0
    %4249 = vmatpush1.msra.mxu0 0.0
    %4250 = vmatprep.subr.mxu0 0.0
    %4251 = vmatpush1.msra.mxu0 0.0
    %4252 = vmatprep.subr.mxu0 0.0
    %4253 = vmatpush1.msra.mxu0 0.0
    %4254 = vmatprep.subr.mxu0 0.0
    %4255 = vmatpush1.msra.mxu0 0.0
    %4256 = vmatprep.subr.mxu0 0.0
    %4257 = vmatpush1.msra.mxu0 0.0
    %4258 = vmatprep.subr.mxu0 0.0
    %4259 = vmatpush1.msra.mxu0 0.0
    %4260 = vmatprep.subr.mxu0 0.0
    %4261 = vmatpush1.msra.mxu0 0.0
    %4262 = vmatprep.subr.mxu0 0.0
    %4263 = vmatpush1.msra.mxu0 0.0
    %4264 = vmatprep.subr.mxu0 0.0
    %4265 = vmatpush1.msra.mxu0 0.0
    %4266 = vmatprep.subr.mxu0 0.0
    %4267 = vmatpush1.msra.mxu0 0.0
    %4268 = vmatprep.subr.mxu0 0.0
    %4269 = vmatpush1.msra.mxu0 0.0
    %4270 = vmatprep.subr.mxu0 0.0
    %4271 = vmatpush1.msra.mxu0 0.0
    %4272 = vmatprep.subr.mxu0 0.0
    %4273 = vmatpush1.msra.mxu0 0.0
    %4274 = vmatprep.subr.mxu0 0.0
    %4275 = vmatpush1.msra.mxu0 0.0
    %4276 = vmatprep.subr.mxu0 0.0
    %4277 = vmatpush1.msra.mxu0 0.0
    %4278 = vmatprep.mubr.f32.mxu0 0.0
    %4279 = vmatmul.mubr.f32.gmra.mrb[0].mxu0 %v4212
    %v4280 = vpop.f32.mrb[0].mxu0
    %v4281 = vadd.f32 %v4209, %v4280
    %v4282 = vpop.f32.mrb[0].mxu0
    %4283 = vdwg.mxu0
    %v4284 = vadd.f32 %v4281, %v1532
    %v4285 = vxor.u32 %v4284, 2147483648
    %v4286 = vmul.f32 %v4285, 1.442695
    %v4287 = vpow.pop %v4286
    %v4288 = vadd.f32 %v4287, 1.0
    %v4289 = vrcp.pop %v4288
    %v4290 = vmul.f32 1.0, %v4289
    %v4291 = vmul.f32 %v4290, 2.0
    %v4292 = vsub.f32 %v4291, 1.0
    %v4293 = vmul.f32 %v4290, %v4025
    %4295 = vrot.lane.b32.xlu0 %v4292, 64
    %v4296 = vpop.permute.xlu0 %4295
    %v4298 = vmul.f32 %v4290, %v4296
    %4300 = vrot.lane.b32.xlu0 %v4298, 32
    %v4301 = vpop.permute.xlu0 %4300
    %v4303 = vadd.f32 %v4293, %v4301
    %v4304 = vtanh.pop %v4303
    %4306 = vrot.lane.b32.xlu0 %v4304, 64
    %v4307 = vpop.permute.xlu0 %4306
    %v4309 = vmul.f32 %v4290, %v4307
    %4311 = vrot.lane.b32.xlu0 %v4309, 64
    %v4312 = vpop.permute.xlu0 %4311
    %4314 = vst.msk [vmem:[#allocation2 + $0x48] sm:$0xff] %vm1811, %v4312
    %4315 = vmatprep.subr.mxu0 0.0
    %4316 = vmatpush1.msra.mxu0 %v1515
    %4317 = vmatprep.subr.mxu0 0.0
    %4318 = vmatpush1.msra.mxu0 %v1516
    %4319 = vmatprep.subr.mxu0 0.0
    %4320 = vmatpush1.msra.mxu0 %v1517
    %4321 = vmatprep.subr.mxu0 0.0
    %4322 = vmatpush1.msra.mxu0 %v1518
    %4323 = vmatprep.subr.mxu0 0.0
    %4324 = vmatpush1.msra.mxu0 0.0
    %4325 = vmatprep.subr.mxu0 0.0
    %4326 = vmatpush1.msra.mxu0 0.0
    %4327 = vmatprep.subr.mxu0 0.0
    %4328 = vmatpush1.msra.mxu0 0.0
    %4329 = vmatprep.subr.mxu0 0.0
    %4330 = vmatpush1.msra.mxu0 0.0
    %4331 = vmatprep.subr.mxu0 0.0
    %4332 = vmatpush1.msra.mxu0 0.0
    %4333 = vmatprep.subr.mxu0 0.0
    %4334 = vmatpush1.msra.mxu0 0.0
    %4335 = vmatprep.subr.mxu0 0.0
    %4336 = vmatpush1.msra.mxu0 0.0
    %4337 = vmatprep.subr.mxu0 0.0
    %4338 = vmatpush1.msra.mxu0 0.0
    %4339 = vmatprep.subr.mxu0 0.0
    %4340 = vmatpush1.msra.mxu0 0.0
    %4341 = vmatprep.subr.mxu0 0.0
    %4342 = vmatpush1.msra.mxu0 0.0
    %4343 = vmatprep.subr.mxu0 0.0
    %4344 = vmatpush1.msra.mxu0 0.0
    %4345 = vmatprep.subr.mxu0 0.0
    %4346 = vmatpush1.msra.mxu0 0.0
    %4347 = vmatprep.subr.mxu0 0.0
    %4348 = vmatpush1.msra.mxu0 0.0
    %4349 = vmatprep.subr.mxu0 0.0
    %4350 = vmatpush1.msra.mxu0 0.0
    %4351 = vmatprep.subr.mxu0 0.0
    %4352 = vmatpush1.msra.mxu0 0.0
    %4353 = vmatprep.subr.mxu0 0.0
    %4354 = vmatpush1.msra.mxu0 0.0
    %4355 = vmatprep.subr.mxu0 0.0
    %4356 = vmatpush1.msra.mxu0 0.0
    %4357 = vmatprep.subr.mxu0 0.0
    %4358 = vmatpush1.msra.mxu0 0.0
    %4359 = vmatprep.subr.mxu0 0.0
    %4360 = vmatpush1.msra.mxu0 0.0
    %4361 = vmatprep.subr.mxu0 0.0
    %4362 = vmatpush1.msra.mxu0 0.0
    %4363 = vmatprep.subr.mxu0 0.0
    %4364 = vmatpush1.msra.mxu0 0.0
    %4365 = vmatprep.subr.mxu0 0.0
    %4366 = vmatpush1.msra.mxu0 0.0
    %4367 = vmatprep.subr.mxu0 0.0
    %4368 = vmatpush1.msra.mxu0 0.0
    %4369 = vmatprep.subr.mxu0 0.0
    %4370 = vmatpush1.msra.mxu0 0.0
    %4371 = vmatprep.subr.mxu0 0.0
    %4372 = vmatpush1.msra.mxu0 0.0
    %4373 = vmatprep.subr.mxu0 0.0
    %4374 = vmatpush1.msra.mxu0 0.0
    %4375 = vmatprep.subr.mxu0 0.0
    %4376 = vmatpush1.msra.mxu0 0.0
    %4377 = vmatprep.subr.mxu0 0.0
    %4378 = vmatpush1.msra.mxu0 0.0
    %4379 = vmatprep.mubr.f32.mxu0 0.0
    %4380 = vmatmul.mubr.f32.gmra.mrb[0].mxu0 %v4212
    %v4381 = vpop.f32.mrb[0].mxu0
    %v4382 = vadd.f32 0.0, %v4381
    %v4383 = vpop.f32.mrb[0].mxu0
    %4384 = vdwg.mxu0
    %v4385 = vadd.f32 %v1487, %v4382
    %v4386 = vxor.u32 %v4385, 2147483648
    %v4387 = vmul.f32 %v4386, 1.442695
    %v4388 = vpow.pop %v4387
    %v4389 = vadd.f32 %v4388, 1.0
    %v4390 = vrcp.pop %v4389
    %v4391 = vmul.f32 1.0, %v4390
    %v4392 = vmul.f32 %v4391, 2.0
    %v4393 = vsub.f32 %v4392, 1.0
    %v4394 = vmul.f32 %v4391, %v4126
    %4396 = vrot.lane.b32.xlu0 %v4393, 64
    %v4397 = vpop.permute.xlu0 %4396
    %v4399 = vmul.f32 %v4391, %v4397
    %4401 = vrot.lane.b32.xlu0 %v4399, 32
    %v4402 = vpop.permute.xlu0 %4401
    %v4404 = vadd.f32 %v4394, %v4402
    %v4405 = vtanh.pop %v4404
    %4407 = vrot.lane.b32.xlu0 %v4405, 64
    %v4408 = vpop.permute.xlu0 %4407
    %v4410 = vmul.f32 %v4391, %v4408
    %4412 = vrot.lane.b32.xlu0 %v4410, 32
    %v4413 = vpop.permute.xlu0 %4412
    %4415 = vst.msk [vmem:[#allocation2 + $0x50] sm:$0xff] %vm1534, %v4413
    %4416 = vrot.lane.b32.xlu0 %v4309, 32
    %v4417 = vpop.permute.xlu0 %4416
    %v4418 = vsel %vm1534, %v4417, 0
    %4420 = vmatprep.subr.mxu0 0.0
    %4421 = vmatpush1.msra.mxu0 %v1523
    %4422 = vmatprep.subr.mxu0 0.0
    %4423 = vmatpush1.msra.mxu0 %v1524
    %4424 = vmatprep.subr.mxu0 0.0
    %4425 = vmatpush1.msra.mxu0 %v1525
    %4426 = vmatprep.subr.mxu0 0.0
    %4427 = vmatpush1.msra.mxu0 %v1526
    %4428 = vmatprep.subr.mxu0 0.0
    %4429 = vmatpush1.msra.mxu0 0.0
    %4430 = vmatprep.subr.mxu0 0.0
    %4431 = vmatpush1.msra.mxu0 0.0
    %4432 = vmatprep.subr.mxu0 0.0
    %4433 = vmatpush1.msra.mxu0 0.0
    %4434 = vmatprep.subr.mxu0 0.0
    %4435 = vmatpush1.msra.mxu0 0.0
    %4436 = vmatprep.subr.mxu0 0.0
    %4437 = vmatpush1.msra.mxu0 0.0
    %4438 = vmatprep.subr.mxu0 0.0
    %4439 = vmatpush1.msra.mxu0 0.0
    %4440 = vmatprep.subr.mxu0 0.0
    %4441 = vmatpush1.msra.mxu0 0.0
    %4442 = vmatprep.subr.mxu0 0.0
    %4443 = vmatpush1.msra.mxu0 0.0
    %4444 = vmatprep.subr.mxu0 0.0
    %4445 = vmatpush1.msra.mxu0 0.0
    %4446 = vmatprep.subr.mxu0 0.0
    %4447 = vmatpush1.msra.mxu0 0.0
    %4448 = vmatprep.subr.mxu0 0.0
    %4449 = vmatpush1.msra.mxu0 0.0
    %4450 = vmatprep.subr.mxu0 0.0
    %4451 = vmatpush1.msra.mxu0 0.0
    %4452 = vmatprep.subr.mxu0 0.0
    %4453 = vmatpush1.msra.mxu0 0.0
    %4454 = vmatprep.subr.mxu0 0.0
    %4455 = vmatpush1.msra.mxu0 0.0
    %4456 = vmatprep.subr.mxu0 0.0
    %4457 = vmatpush1.msra.mxu0 0.0
    %4458 = vmatprep.subr.mxu0 0.0
    %4459 = vmatpush1.msra.mxu0 0.0
    %4460 = vmatprep.subr.mxu0 0.0
    %4461 = vmatpush1.msra.mxu0 0.0
    %4462 = vmatprep.subr.mxu0 0.0
    %4463 = vmatpush1.msra.mxu0 0.0
    %4464 = vmatprep.subr.mxu0 0.0
    %4465 = vmatpush1.msra.mxu0 0.0
    %4466 = vmatprep.subr.mxu0 0.0
    %4467 = vmatpush1.msra.mxu0 0.0
    %4468 = vmatprep.subr.mxu0 0.0
    %4469 = vmatpush1.msra.mxu0 0.0
    %4470 = vmatprep.subr.mxu0 0.0
    %4471 = vmatpush1.msra.mxu0 0.0
    %4472 = vmatprep.subr.mxu0 0.0
    %4473 = vmatpush1.msra.mxu0 0.0
    %4474 = vmatprep.subr.mxu0 0.0
    %4475 = vmatpush1.msra.mxu0 0.0
    %4476 = vmatprep.subr.mxu0 0.0
    %4477 = vmatpush1.msra.mxu0 0.0
    %4478 = vmatprep.subr.mxu0 0.0
    %4479 = vmatpush1.msra.mxu0 0.0
    %4480 = vmatprep.subr.mxu0 0.0
    %4481 = vmatpush1.msra.mxu0 0.0
    %4482 = vmatprep.subr.mxu0 0.0
    %4483 = vmatpush1.msra.mxu0 0.0
    %4484 = vmatprep.mubr.f32.mxu0 0.0
    %4485 = vmatmul.mubr.f32.gmra.mrb[0].mxu0 %v4418
    %v4486 = vpop.f32.mrb[0].mxu0
    %v4487 = vadd.f32 0.0, %v4486
    %v4488 = vpop.f32.mrb[0].mxu0
    %4489 = vdwg.mxu0
    %v4490 = vsel %vm1534, %v4413, 0
    %4492 = vmatprep.subr.mxu0 0.0
    %4493 = vmatpush1.msra.mxu0 %v1519
    %4494 = vmatprep.subr.mxu0 0.0
    %4495 = vmatpush1.msra.mxu0 %v1520
    %4496 = vmatprep.subr.mxu0 0.0
    %4497 = vmatpush1.msra.mxu0 %v1521
    %4498 = vmatprep.subr.mxu0 0.0
    %4499 = vmatpush1.msra.mxu0 %v1522
    %4500 = vmatprep.subr.mxu0 0.0
    %4501 = vmatpush1.msra.mxu0 0.0
    %4502 = vmatprep.subr.mxu0 0.0
    %4503 = vmatpush1.msra.mxu0 0.0
    %4504 = vmatprep.subr.mxu0 0.0
    %4505 = vmatpush1.msra.mxu0 0.0
    %4506 = vmatprep.subr.mxu0 0.0
    %4507 = vmatpush1.msra.mxu0 0.0
    %4508 = vmatprep.subr.mxu0 0.0
    %4509 = vmatpush1.msra.mxu0 0.0
    %4510 = vmatprep.subr.mxu0 0.0
    %4511 = vmatpush1.msra.mxu0 0.0
    %4512 = vmatprep.subr.mxu0 0.0
    %4513 = vmatpush1.msra.mxu0 0.0
    %4514 = vmatprep.subr.mxu0 0.0
    %4515 = vmatpush1.msra.mxu0 0.0
    %4516 = vmatprep.subr.mxu0 0.0
    %4517 = vmatpush1.msra.mxu0 0.0
    %4518 = vmatprep.subr.mxu0 0.0
    %4519 = vmatpush1.msra.mxu0 0.0
    %4520 = vmatprep.subr.mxu0 0.0
    %4521 = vmatpush1.msra.mxu0 0.0
    %4522 = vmatprep.subr.mxu0 0.0
    %4523 = vmatpush1.msra.mxu0 0.0
    %4524 = vmatprep.subr.mxu0 0.0
    %4525 = vmatpush1.msra.mxu0 0.0
    %4526 = vmatprep.subr.mxu0 0.0
    %4527 = vmatpush1.msra.mxu0 0.0
    %4528 = vmatprep.subr.mxu0 0.0
    %4529 = vmatpush1.msra.mxu0 0.0
    %4530 = vmatprep.subr.mxu0 0.0
    %4531 = vmatpush1.msra.mxu0 0.0
    %4532 = vmatprep.subr.mxu0 0.0
    %4533 = vmatpush1.msra.mxu0 0.0
    %4534 = vmatprep.subr.mxu0 0.0
    %4535 = vmatpush1.msra.mxu0 0.0
    %4536 = vmatprep.subr.mxu0 0.0
    %4537 = vmatpush1.msra.mxu0 0.0
    %4538 = vmatprep.subr.mxu0 0.0
    %4539 = vmatpush1.msra.mxu0 0.0
    %4540 = vmatprep.subr.mxu0 0.0
    %4541 = vmatpush1.msra.mxu0 0.0
    %4542 = vmatprep.subr.mxu0 0.0
    %4543 = vmatpush1.msra.mxu0 0.0
    %4544 = vmatprep.subr.mxu0 0.0
    %4545 = vmatpush1.msra.mxu0 0.0
    %4546 = vmatprep.subr.mxu0 0.0
    %4547 = vmatpush1.msra.mxu0 0.0
    %4548 = vmatprep.subr.mxu0 0.0
    %4549 = vmatpush1.msra.mxu0 0.0
    %4550 = vmatprep.subr.mxu0 0.0
    %4551 = vmatpush1.msra.mxu0 0.0
    %4552 = vmatprep.subr.mxu0 0.0
    %4553 = vmatpush1.msra.mxu0 0.0
    %4554 = vmatprep.subr.mxu0 0.0
    %4555 = vmatpush1.msra.mxu0 0.0
    %4556 = vmatprep.mubr.f32.mxu0 0.0
    %4557 = vmatmul.mubr.f32.gmra.mrb[0].mxu0 %v4490
    %v4558 = vpop.f32.mrb[0].mxu0
    %v4559 = vadd.f32 %v4487, %v4558
    %v4560 = vpop.f32.mrb[0].mxu0
    %4561 = vdwg.mxu0
    %v4562 = vadd.f32 %v4559, %v1532
    %v4563 = vxor.u32 %v4562, 2147483648
    %v4564 = vmul.f32 %v4563, 1.442695
    %v4565 = vpow.pop %v4564
    %v4566 = vadd.f32 %v4565, 1.0
    %v4567 = vrcp.pop %v4566
    %v4568 = vmul.f32 1.0, %v4567
    %v4569 = vmul.f32 %v4568, 2.0
    %v4570 = vsub.f32 %v4569, 1.0
    %v4571 = vmul.f32 %v4568, %v4303
    %4573 = vrot.lane.b32.xlu0 %v4570, 64
    %v4574 = vpop.permute.xlu0 %4573
    %v4576 = vmul.f32 %v4568, %v4574
    %4578 = vrot.lane.b32.xlu0 %v4576, 32
    %v4579 = vpop.permute.xlu0 %4578
    %v4581 = vadd.f32 %v4571, %v4579
    %v4582 = vtanh.pop %v4581
    %4584 = vrot.lane.b32.xlu0 %v4582, 64
    %v4585 = vpop.permute.xlu0 %4584
    %v4587 = vmul.f32 %v4568, %v4585
    %4589 = vrot.lane.b32.xlu0 %v4587, 64
    %v4590 = vpop.permute.xlu0 %4589
    %4592 = vst.msk [vmem:[#allocation2 + $0x50] sm:$0xff] %vm1811, %v4590
    %4593 = vmatprep.subr.mxu0 0.0
    %4594 = vmatpush1.msra.mxu0 %v1515
    %4595 = vmatprep.subr.mxu0 0.0
    %4596 = vmatpush1.msra.mxu0 %v1516
    %4597 = vmatprep.subr.mxu0 0.0
    %4598 = vmatpush1.msra.mxu0 %v1517
    %4599 = vmatprep.subr.mxu0 0.0
    %4600 = vmatpush1.msra.mxu0 %v1518
    %4601 = vmatprep.subr.mxu0 0.0
    %4602 = vmatpush1.msra.mxu0 0.0
    %4603 = vmatprep.subr.mxu0 0.0
    %4604 = vmatpush1.msra.mxu0 0.0
    %4605 = vmatprep.subr.mxu0 0.0
    %4606 = vmatpush1.msra.mxu0 0.0
    %4607 = vmatprep.subr.mxu0 0.0
    %4608 = vmatpush1.msra.mxu0 0.0
    %4609 = vmatprep.subr.mxu0 0.0
    %4610 = vmatpush1.msra.mxu0 0.0
    %4611 = vmatprep.subr.mxu0 0.0
    %4612 = vmatpush1.msra.mxu0 0.0
    %4613 = vmatprep.subr.mxu0 0.0
    %4614 = vmatpush1.msra.mxu0 0.0
    %4615 = vmatprep.subr.mxu0 0.0
    %4616 = vmatpush1.msra.mxu0 0.0
    %4617 = vmatprep.subr.mxu0 0.0
    %4618 = vmatpush1.msra.mxu0 0.0
    %4619 = vmatprep.subr.mxu0 0.0
    %4620 = vmatpush1.msra.mxu0 0.0
    %4621 = vmatprep.subr.mxu0 0.0
    %4622 = vmatpush1.msra.mxu0 0.0
    %4623 = vmatprep.subr.mxu0 0.0
    %4624 = vmatpush1.msra.mxu0 0.0
    %4625 = vmatprep.subr.mxu0 0.0
    %4626 = vmatpush1.msra.mxu0 0.0
    %4627 = vmatprep.subr.mxu0 0.0
    %4628 = vmatpush1.msra.mxu0 0.0
    %4629 = vmatprep.subr.mxu0 0.0
    %4630 = vmatpush1.msra.mxu0 0.0
    %4631 = vmatprep.subr.mxu0 0.0
    %4632 = vmatpush1.msra.mxu0 0.0
    %4633 = vmatprep.subr.mxu0 0.0
    %4634 = vmatpush1.msra.mxu0 0.0
    %4635 = vmatprep.subr.mxu0 0.0
    %4636 = vmatpush1.msra.mxu0 0.0
    %4637 = vmatprep.subr.mxu0 0.0
    %4638 = vmatpush1.msra.mxu0 0.0
    %4639 = vmatprep.subr.mxu0 0.0
    %4640 = vmatpush1.msra.mxu0 0.0
    %4641 = vmatprep.subr.mxu0 0.0
    %4642 = vmatpush1.msra.mxu0 0.0
    %4643 = vmatprep.subr.mxu0 0.0
    %4644 = vmatpush1.msra.mxu0 0.0
    %4645 = vmatprep.subr.mxu0 0.0
    %4646 = vmatpush1.msra.mxu0 0.0
    %4647 = vmatprep.subr.mxu0 0.0
    %4648 = vmatpush1.msra.mxu0 0.0
    %4649 = vmatprep.subr.mxu0 0.0
    %4650 = vmatpush1.msra.mxu0 0.0
    %4651 = vmatprep.subr.mxu0 0.0
    %4652 = vmatpush1.msra.mxu0 0.0
    %4653 = vmatprep.subr.mxu0 0.0
    %4654 = vmatpush1.msra.mxu0 0.0
    %4655 = vmatprep.subr.mxu0 0.0
    %4656 = vmatpush1.msra.mxu0 0.0
    %4657 = vmatprep.mubr.f32.mxu0 0.0
    %4658 = vmatmul.mubr.f32.gmra.mrb[0].mxu0 %v4490
    %v4659 = vpop.f32.mrb[0].mxu0
    %v4660 = vadd.f32 0.0, %v4659
    %v4661 = vpop.f32.mrb[0].mxu0
    %4662 = vdwg.mxu0
    %v4663 = vadd.f32 %v1492, %v4660
    %v4664 = vxor.u32 %v4663, 2147483648
    %v4665 = vmul.f32 %v4664, 1.442695
    %v4666 = vpow.pop %v4665
    %v4667 = vadd.f32 %v4666, 1.0
    %v4668 = vrcp.pop %v4667
    %v4669 = vmul.f32 1.0, %v4668
    %v4670 = vmul.f32 %v4669, 2.0
    %v4671 = vsub.f32 %v4670, 1.0
    %v4672 = vmul.f32 %v4669, %v4404
    %4674 = vrot.lane.b32.xlu0 %v4671, 64
    %v4675 = vpop.permute.xlu0 %4674
    %v4677 = vmul.f32 %v4669, %v4675
    %4679 = vrot.lane.b32.xlu0 %v4677, 32
    %v4680 = vpop.permute.xlu0 %4679
    %v4682 = vadd.f32 %v4672, %v4680
    %v4683 = vtanh.pop %v4682
    %4685 = vrot.lane.b32.xlu0 %v4683, 64
    %v4686 = vpop.permute.xlu0 %4685
    %v4688 = vmul.f32 %v4669, %v4686
    %4690 = vrot.lane.b32.xlu0 %v4688, 32
    %v4691 = vpop.permute.xlu0 %4690
    %4693 = vst.msk [vmem:[#allocation2 + $0x58] sm:$0xff] %vm1534, %v4691
    %4694 = vrot.lane.b32.xlu0 %v4587, 32
    %v4695 = vpop.permute.xlu0 %4694
    %v4696 = vsel %vm1534, %v4695, 0
    %4698 = vmatprep.subr.mxu0 0.0
    %4699 = vmatpush1.msra.mxu0 %v1523
    %4700 = vmatprep.subr.mxu0 0.0
    %4701 = vmatpush1.msra.mxu0 %v1524
    %4702 = vmatprep.subr.mxu0 0.0
    %4703 = vmatpush1.msra.mxu0 %v1525
    %4704 = vmatprep.subr.mxu0 0.0
    %4705 = vmatpush1.msra.mxu0 %v1526
    %4706 = vmatprep.subr.mxu0 0.0
    %4707 = vmatpush1.msra.mxu0 0.0
    %4708 = vmatprep.subr.mxu0 0.0
    %4709 = vmatpush1.msra.mxu0 0.0
    %4710 = vmatprep.subr.mxu0 0.0
    %4711 = vmatpush1.msra.mxu0 0.0
    %4712 = vmatprep.subr.mxu0 0.0
    %4713 = vmatpush1.msra.mxu0 0.0
    %4714 = vmatprep.subr.mxu0 0.0
    %4715 = vmatpush1.msra.mxu0 0.0
    %4716 = vmatprep.subr.mxu0 0.0
    %4717 = vmatpush1.msra.mxu0 0.0
    %4718 = vmatprep.subr.mxu0 0.0
    %4719 = vmatpush1.msra.mxu0 0.0
    %4720 = vmatprep.subr.mxu0 0.0
    %4721 = vmatpush1.msra.mxu0 0.0
    %4722 = vmatprep.subr.mxu0 0.0
    %4723 = vmatpush1.msra.mxu0 0.0
    %4724 = vmatprep.subr.mxu0 0.0
    %4725 = vmatpush1.msra.mxu0 0.0
    %4726 = vmatprep.subr.mxu0 0.0
    %4727 = vmatpush1.msra.mxu0 0.0
    %4728 = vmatprep.subr.mxu0 0.0
    %4729 = vmatpush1.msra.mxu0 0.0
    %4730 = vmatprep.subr.mxu0 0.0
    %4731 = vmatpush1.msra.mxu0 0.0
    %4732 = vmatprep.subr.mxu0 0.0
    %4733 = vmatpush1.msra.mxu0 0.0
    %4734 = vmatprep.subr.mxu0 0.0
    %4735 = vmatpush1.msra.mxu0 0.0
    %4736 = vmatprep.subr.mxu0 0.0
    %4737 = vmatpush1.msra.mxu0 0.0
    %4738 = vmatprep.subr.mxu0 0.0
    %4739 = vmatpush1.msra.mxu0 0.0
    %4740 = vmatprep.subr.mxu0 0.0
    %4741 = vmatpush1.msra.mxu0 0.0
    %4742 = vmatprep.subr.mxu0 0.0
    %4743 = vmatpush1.msra.mxu0 0.0
    %4744 = vmatprep.subr.mxu0 0.0
    %4745 = vmatpush1.msra.mxu0 0.0
    %4746 = vmatprep.subr.mxu0 0.0
    %4747 = vmatpush1.msra.mxu0 0.0
    %4748 = vmatprep.subr.mxu0 0.0
    %4749 = vmatpush1.msra.mxu0 0.0
    %4750 = vmatprep.subr.mxu0 0.0
    %4751 = vmatpush1.msra.mxu0 0.0
    %4752 = vmatprep.subr.mxu0 0.0
    %4753 = vmatpush1.msra.mxu0 0.0
    %4754 = vmatprep.subr.mxu0 0.0
    %4755 = vmatpush1.msra.mxu0 0.0
    %4756 = vmatprep.subr.mxu0 0.0
    %4757 = vmatpush1.msra.mxu0 0.0
    %4758 = vmatprep.subr.mxu0 0.0
    %4759 = vmatpush1.msra.mxu0 0.0
    %4760 = vmatprep.subr.mxu0 0.0
    %4761 = vmatpush1.msra.mxu0 0.0
    %4762 = vmatprep.mubr.f32.mxu0 0.0
    %4763 = vmatmul.mubr.f32.gmra.mrb[0].mxu0 %v4696
    %v4764 = vpop.f32.mrb[0].mxu0
    %v4765 = vadd.f32 0.0, %v4764
    %v4766 = vpop.f32.mrb[0].mxu0
    %4767 = vdwg.mxu0
    %v4768 = vsel %vm1534, %v4691, 0
    %4770 = vmatprep.subr.mxu0 0.0
    %4771 = vmatpush1.msra.mxu0 %v1519
    %4772 = vmatprep.subr.mxu0 0.0
    %4773 = vmatpush1.msra.mxu0 %v1520
    %4774 = vmatprep.subr.mxu0 0.0
    %4775 = vmatpush1.msra.mxu0 %v1521
    %4776 = vmatprep.subr.mxu0 0.0
    %4777 = vmatpush1.msra.mxu0 %v1522
    %4778 = vmatprep.subr.mxu0 0.0
    %4779 = vmatpush1.msra.mxu0 0.0
    %4780 = vmatprep.subr.mxu0 0.0
    %4781 = vmatpush1.msra.mxu0 0.0
    %4782 = vmatprep.subr.mxu0 0.0
    %4783 = vmatpush1.msra.mxu0 0.0
    %4784 = vmatprep.subr.mxu0 0.0
    %4785 = vmatpush1.msra.mxu0 0.0
    %4786 = vmatprep.subr.mxu0 0.0
    %4787 = vmatpush1.msra.mxu0 0.0
    %4788 = vmatprep.subr.mxu0 0.0
    %4789 = vmatpush1.msra.mxu0 0.0
    %4790 = vmatprep.subr.mxu0 0.0
    %4791 = vmatpush1.msra.mxu0 0.0
    %4792 = vmatprep.subr.mxu0 0.0
    %4793 = vmatpush1.msra.mxu0 0.0
    %4794 = vmatprep.subr.mxu0 0.0
    %4795 = vmatpush1.msra.mxu0 0.0
    %4796 = vmatprep.subr.mxu0 0.0
    %4797 = vmatpush1.msra.mxu0 0.0
    %4798 = vmatprep.subr.mxu0 0.0
    %4799 = vmatpush1.msra.mxu0 0.0
    %4800 = vmatprep.subr.mxu0 0.0
    %4801 = vmatpush1.msra.mxu0 0.0
    %4802 = vmatprep.subr.mxu0 0.0
    %4803 = vmatpush1.msra.mxu0 0.0
    %4804 = vmatprep.subr.mxu0 0.0
    %4805 = vmatpush1.msra.mxu0 0.0
    %4806 = vmatprep.subr.mxu0 0.0
    %4807 = vmatpush1.msra.mxu0 0.0
    %4808 = vmatprep.subr.mxu0 0.0
    %4809 = vmatpush1.msra.mxu0 0.0
    %4810 = vmatprep.subr.mxu0 0.0
    %4811 = vmatpush1.msra.mxu0 0.0
    %4812 = vmatprep.subr.mxu0 0.0
    %4813 = vmatpush1.msra.mxu0 0.0
    %4814 = vmatprep.subr.mxu0 0.0
    %4815 = vmatpush1.msra.mxu0 0.0
    %4816 = vmatprep.subr.mxu0 0.0
    %4817 = vmatpush1.msra.mxu0 0.0
    %4818 = vmatprep.subr.mxu0 0.0
    %4819 = vmatpush1.msra.mxu0 0.0
    %4820 = vmatprep.subr.mxu0 0.0
    %4821 = vmatpush1.msra.mxu0 0.0
    %4822 = vmatprep.subr.mxu0 0.0
    %4823 = vmatpush1.msra.mxu0 0.0
    %4824 = vmatprep.subr.mxu0 0.0
    %4825 = vmatpush1.msra.mxu0 0.0
    %4826 = vmatprep.subr.mxu0 0.0
    %4827 = vmatpush1.msra.mxu0 0.0
    %4828 = vmatprep.subr.mxu0 0.0
    %4829 = vmatpush1.msra.mxu0 0.0
    %4830 = vmatprep.subr.mxu0 0.0
    %4831 = vmatpush1.msra.mxu0 0.0
    %4832 = vmatprep.subr.mxu0 0.0
    %4833 = vmatpush1.msra.mxu0 0.0
    %4834 = vmatprep.mubr.f32.mxu0 0.0
    %4835 = vmatmul.mubr.f32.gmra.mrb[0].mxu0 %v4768
    %v4836 = vpop.f32.mrb[0].mxu0
    %v4837 = vadd.f32 %v4765, %v4836
    %v4838 = vpop.f32.mrb[0].mxu0
    %4839 = vdwg.mxu0
    %v4840 = vadd.f32 %v4837, %v1532
    %v4841 = vxor.u32 %v4840, 2147483648
    %v4842 = vmul.f32 %v4841, 1.442695
    %v4843 = vpow.pop %v4842
    %v4844 = vadd.f32 %v4843, 1.0
    %v4845 = vrcp.pop %v4844
    %v4846 = vmul.f32 1.0, %v4845
    %v4847 = vmul.f32 %v4846, 2.0
    %v4848 = vsub.f32 %v4847, 1.0
    %v4849 = vmul.f32 %v4846, %v4581
    %4851 = vrot.lane.b32.xlu0 %v4848, 64
    %v4852 = vpop.permute.xlu0 %4851
    %v4854 = vmul.f32 %v4846, %v4852
    %4856 = vrot.lane.b32.xlu0 %v4854, 32
    %v4857 = vpop.permute.xlu0 %4856
    %v4859 = vadd.f32 %v4849, %v4857
    %v4860 = vtanh.pop %v4859
    %4862 = vrot.lane.b32.xlu0 %v4860, 64
    %v4863 = vpop.permute.xlu0 %4862
    %v4865 = vmul.f32 %v4846, %v4863
    %4867 = vrot.lane.b32.xlu0 %v4865, 64
    %v4868 = vpop.permute.xlu0 %4867
    %4870 = vst.msk [vmem:[#allocation2 + $0x58] sm:$0xff] %vm1811, %v4868
    %4871 = vmatprep.subr.mxu0 0.0
    %4872 = vmatpush1.msra.mxu0 %v1515
    %4873 = vmatprep.subr.mxu0 0.0
    %4874 = vmatpush1.msra.mxu0 %v1516
    %4875 = vmatprep.subr.mxu0 0.0
    %4876 = vmatpush1.msra.mxu0 %v1517
    %4877 = vmatprep.subr.mxu0 0.0
    %4878 = vmatpush1.msra.mxu0 %v1518
    %4879 = vmatprep.subr.mxu0 0.0
    %4880 = vmatpush1.msra.mxu0 0.0
    %4881 = vmatprep.subr.mxu0 0.0
    %4882 = vmatpush1.msra.mxu0 0.0
    %4883 = vmatprep.subr.mxu0 0.0
    %4884 = vmatpush1.msra.mxu0 0.0
    %4885 = vmatprep.subr.mxu0 0.0
    %4886 = vmatpush1.msra.mxu0 0.0
    %4887 = vmatprep.subr.mxu0 0.0
    %4888 = vmatpush1.msra.mxu0 0.0
    %4889 = vmatprep.subr.mxu0 0.0
    %4890 = vmatpush1.msra.mxu0 0.0
    %4891 = vmatprep.subr.mxu0 0.0
    %4892 = vmatpush1.msra.mxu0 0.0
    %4893 = vmatprep.subr.mxu0 0.0
    %4894 = vmatpush1.msra.mxu0 0.0
    %4895 = vmatprep.subr.mxu0 0.0
    %4896 = vmatpush1.msra.mxu0 0.0
    %4897 = vmatprep.subr.mxu0 0.0
    %4898 = vmatpush1.msra.mxu0 0.0
    %4899 = vmatprep.subr.mxu0 0.0
    %4900 = vmatpush1.msra.mxu0 0.0
    %4901 = vmatprep.subr.mxu0 0.0
    %4902 = vmatpush1.msra.mxu0 0.0
    %4903 = vmatprep.subr.mxu0 0.0
    %4904 = vmatpush1.msra.mxu0 0.0
    %4905 = vmatprep.subr.mxu0 0.0
    %4906 = vmatpush1.msra.mxu0 0.0
    %4907 = vmatprep.subr.mxu0 0.0
    %4908 = vmatpush1.msra.mxu0 0.0
    %4909 = vmatprep.subr.mxu0 0.0
    %4910 = vmatpush1.msra.mxu0 0.0
    %4911 = vmatprep.subr.mxu0 0.0
    %4912 = vmatpush1.msra.mxu0 0.0
    %4913 = vmatprep.subr.mxu0 0.0
    %4914 = vmatpush1.msra.mxu0 0.0
    %4915 = vmatprep.subr.mxu0 0.0
    %4916 = vmatpush1.msra.mxu0 0.0
    %4917 = vmatprep.subr.mxu0 0.0
    %4918 = vmatpush1.msra.mxu0 0.0
    %4919 = vmatprep.subr.mxu0 0.0
    %4920 = vmatpush1.msra.mxu0 0.0
    %4921 = vmatprep.subr.mxu0 0.0
    %4922 = vmatpush1.msra.mxu0 0.0
    %4923 = vmatprep.subr.mxu0 0.0
    %4924 = vmatpush1.msra.mxu0 0.0
    %4925 = vmatprep.subr.mxu0 0.0
    %4926 = vmatpush1.msra.mxu0 0.0
    %4927 = vmatprep.subr.mxu0 0.0
    %4928 = vmatpush1.msra.mxu0 0.0
    %4929 = vmatprep.subr.mxu0 0.0
    %4930 = vmatpush1.msra.mxu0 0.0
    %4931 = vmatprep.subr.mxu0 0.0
    %4932 = vmatpush1.msra.mxu0 0.0
    %4933 = vmatprep.subr.mxu0 0.0
    %4934 = vmatpush1.msra.mxu0 0.0
    %4935 = vmatprep.mubr.f32.mxu0 0.0
    %4936 = vmatmul.mubr.f32.gmra.mrb[0].mxu0 %v4768
    %v4937 = vpop.f32.mrb[0].mxu0
    %v4938 = vadd.f32 0.0, %v4937
    %v4939 = vpop.f32.mrb[0].mxu0
    %4940 = vdwg.mxu0
    %v4941 = vadd.f32 %v1497, %v4938
    %v4942 = vxor.u32 %v4941, 2147483648
    %v4943 = vmul.f32 %v4942, 1.442695
    %v4944 = vpow.pop %v4943
    %v4945 = vadd.f32 %v4944, 1.0
    %v4946 = vrcp.pop %v4945
    %v4947 = vmul.f32 1.0, %v4946
    %v4948 = vmul.f32 %v4947, 2.0
    %v4949 = vsub.f32 %v4948, 1.0
    %v4950 = vmul.f32 %v4947, %v4682
    %4952 = vrot.lane.b32.xlu0 %v4949, 64
    %v4953 = vpop.permute.xlu0 %4952
    %v4955 = vmul.f32 %v4947, %v4953
    %4957 = vrot.lane.b32.xlu0 %v4955, 32
    %v4958 = vpop.permute.xlu0 %4957
    %v4960 = vadd.f32 %v4950, %v4958
    %v4961 = vtanh.pop %v4960
    %4963 = vrot.lane.b32.xlu0 %v4961, 64
    %v4964 = vpop.permute.xlu0 %4963
    %v4966 = vmul.f32 %v4947, %v4964
    %4968 = vrot.lane.b32.xlu0 %v4966, 32
    %v4969 = vpop.permute.xlu0 %4968
    %4971 = vst.msk [vmem:[#allocation2 + $0x60] sm:$0xff] %vm1534, %v4969
    %4972 = vrot.lane.b32.xlu0 %v4865, 32
    %v4973 = vpop.permute.xlu0 %4972
    %v4974 = vsel %vm1534, %v4973, 0
    %4976 = vmatprep.subr.mxu0 0.0
    %4977 = vmatpush1.msra.mxu0 %v1523
    %4978 = vmatprep.subr.mxu0 0.0
    %4979 = vmatpush1.msra.mxu0 %v1524
    %4980 = vmatprep.subr.mxu0 0.0
    %4981 = vmatpush1.msra.mxu0 %v1525
    %4982 = vmatprep.subr.mxu0 0.0
    %4983 = vmatpush1.msra.mxu0 %v1526
    %4984 = vmatprep.subr.mxu0 0.0
    %4985 = vmatpush1.msra.mxu0 0.0
    %4986 = vmatprep.subr.mxu0 0.0
    %4987 = vmatpush1.msra.mxu0 0.0
    %4988 = vmatprep.subr.mxu0 0.0
    %4989 = vmatpush1.msra.mxu0 0.0
    %4990 = vmatprep.subr.mxu0 0.0
    %4991 = vmatpush1.msra.mxu0 0.0
    %4992 = vmatprep.subr.mxu0 0.0
    %4993 = vmatpush1.msra.mxu0 0.0
    %4994 = vmatprep.subr.mxu0 0.0
    %4995 = vmatpush1.msra.mxu0 0.0
    %4996 = vmatprep.subr.mxu0 0.0
    %4997 = vmatpush1.msra.mxu0 0.0
    %4998 = vmatprep.subr.mxu0 0.0
    %4999 = vmatpush1.msra.mxu0 0.0
    %5000 = vmatprep.subr.mxu0 0.0
    %5001 = vmatpush1.msra.mxu0 0.0
    %5002 = vmatprep.subr.mxu0 0.0
    %5003 = vmatpush1.msra.mxu0 0.0
    %5004 = vmatprep.subr.mxu0 0.0
    %5005 = vmatpush1.msra.mxu0 0.0
    %5006 = vmatprep.subr.mxu0 0.0
    %5007 = vmatpush1.msra.mxu0 0.0
    %5008 = vmatprep.subr.mxu0 0.0
    %5009 = vmatpush1.msra.mxu0 0.0
    %5010 = vmatprep.subr.mxu0 0.0
    %5011 = vmatpush1.msra.mxu0 0.0
    %5012 = vmatprep.subr.mxu0 0.0
    %5013 = vmatpush1.msra.mxu0 0.0
    %5014 = vmatprep.subr.mxu0 0.0
    %5015 = vmatpush1.msra.mxu0 0.0
    %5016 = vmatprep.subr.mxu0 0.0
    %5017 = vmatpush1.msra.mxu0 0.0
    %5018 = vmatprep.subr.mxu0 0.0
    %5019 = vmatpush1.msra.mxu0 0.0
    %5020 = vmatprep.subr.mxu0 0.0
    %5021 = vmatpush1.msra.mxu0 0.0
    %5022 = vmatprep.subr.mxu0 0.0
    %5023 = vmatpush1.msra.mxu0 0.0
    %5024 = vmatprep.subr.mxu0 0.0
    %5025 = vmatpush1.msra.mxu0 0.0
    %5026 = vmatprep.subr.mxu0 0.0
    %5027 = vmatpush1.msra.mxu0 0.0
    %5028 = vmatprep.subr.mxu0 0.0
    %5029 = vmatpush1.msra.mxu0 0.0
    %5030 = vmatprep.subr.mxu0 0.0
    %5031 = vmatpush1.msra.mxu0 0.0
    %5032 = vmatprep.subr.mxu0 0.0
    %5033 = vmatpush1.msra.mxu0 0.0
    %5034 = vmatprep.subr.mxu0 0.0
    %5035 = vmatpush1.msra.mxu0 0.0
    %5036 = vmatprep.subr.mxu0 0.0
    %5037 = vmatpush1.msra.mxu0 0.0
    %5038 = vmatprep.subr.mxu0 0.0
    %5039 = vmatpush1.msra.mxu0 0.0
    %5040 = vmatprep.mubr.f32.mxu0 0.0
    %5041 = vmatmul.mubr.f32.gmra.mrb[0].mxu0 %v4974
    %v5042 = vpop.f32.mrb[0].mxu0
    %v5043 = vadd.f32 0.0, %v5042
    %v5044 = vpop.f32.mrb[0].mxu0
    %5045 = vdwg.mxu0
    %v5046 = vsel %vm1534, %v4969, 0
    %5048 = vmatprep.subr.mxu0 0.0
    %5049 = vmatpush1.msra.mxu0 %v1519
    %5050 = vmatprep.subr.mxu0 0.0
    %5051 = vmatpush1.msra.mxu0 %v1520
    %5052 = vmatprep.subr.mxu0 0.0
    %5053 = vmatpush1.msra.mxu0 %v1521
    %5054 = vmatprep.subr.mxu0 0.0
    %5055 = vmatpush1.msra.mxu0 %v1522
    %5056 = vmatprep.subr.mxu0 0.0
    %5057 = vmatpush1.msra.mxu0 0.0
    %5058 = vmatprep.subr.mxu0 0.0
    %5059 = vmatpush1.msra.mxu0 0.0
    %5060 = vmatprep.subr.mxu0 0.0
    %5061 = vmatpush1.msra.mxu0 0.0
    %5062 = vmatprep.subr.mxu0 0.0
    %5063 = vmatpush1.msra.mxu0 0.0
    %5064 = vmatprep.subr.mxu0 0.0
    %5065 = vmatpush1.msra.mxu0 0.0
    %5066 = vmatprep.subr.mxu0 0.0
    %5067 = vmatpush1.msra.mxu0 0.0
    %5068 = vmatprep.subr.mxu0 0.0
    %5069 = vmatpush1.msra.mxu0 0.0
    %5070 = vmatprep.subr.mxu0 0.0
    %5071 = vmatpush1.msra.mxu0 0.0
    %5072 = vmatprep.subr.mxu0 0.0
    %5073 = vmatpush1.msra.mxu0 0.0
    %5074 = vmatprep.subr.mxu0 0.0
    %5075 = vmatpush1.msra.mxu0 0.0
    %5076 = vmatprep.subr.mxu0 0.0
    %5077 = vmatpush1.msra.mxu0 0.0
    %5078 = vmatprep.subr.mxu0 0.0
    %5079 = vmatpush1.msra.mxu0 0.0
    %5080 = vmatprep.subr.mxu0 0.0
    %5081 = vmatpush1.msra.mxu0 0.0
    %5082 = vmatprep.subr.mxu0 0.0
    %5083 = vmatpush1.msra.mxu0 0.0
    %5084 = vmatprep.subr.mxu0 0.0
    %5085 = vmatpush1.msra.mxu0 0.0
    %5086 = vmatprep.subr.mxu0 0.0
    %5087 = vmatpush1.msra.mxu0 0.0
    %5088 = vmatprep.subr.mxu0 0.0
    %5089 = vmatpush1.msra.mxu0 0.0
    %5090 = vmatprep.subr.mxu0 0.0
    %5091 = vmatpush1.msra.mxu0 0.0
    %5092 = vmatprep.subr.mxu0 0.0
    %5093 = vmatpush1.msra.mxu0 0.0
    %5094 = vmatprep.subr.mxu0 0.0
    %5095 = vmatpush1.msra.mxu0 0.0
    %5096 = vmatprep.subr.mxu0 0.0
    %5097 = vmatpush1.msra.mxu0 0.0
    %5098 = vmatprep.subr.mxu0 0.0
    %5099 = vmatpush1.msra.mxu0 0.0
    %5100 = vmatprep.subr.mxu0 0.0
    %5101 = vmatpush1.msra.mxu0 0.0
    %5102 = vmatprep.subr.mxu0 0.0
    %5103 = vmatpush1.msra.mxu0 0.0
    %5104 = vmatprep.subr.mxu0 0.0
    %5105 = vmatpush1.msra.mxu0 0.0
    %5106 = vmatprep.subr.mxu0 0.0
    %5107 = vmatpush1.msra.mxu0 0.0
    %5108 = vmatprep.subr.mxu0 0.0
    %5109 = vmatpush1.msra.mxu0 0.0
    %5110 = vmatprep.subr.mxu0 0.0
    %5111 = vmatpush1.msra.mxu0 0.0
    %5112 = vmatprep.mubr.f32.mxu0 0.0
    %5113 = vmatmul.mubr.f32.gmra.mrb[0].mxu0 %v5046
    %v5114 = vpop.f32.mrb[0].mxu0
    %v5115 = vadd.f32 %v5043, %v5114
    %v5116 = vpop.f32.mrb[0].mxu0
    %5117 = vdwg.mxu0
    %v5118 = vadd.f32 %v5115, %v1532
    %v5119 = vxor.u32 %v5118, 2147483648
    %v5120 = vmul.f32 %v5119, 1.442695
    %v5121 = vpow.pop %v5120
    %v5122 = vadd.f32 %v5121, 1.0
    %v5123 = vrcp.pop %v5122
    %v5124 = vmul.f32 1.0, %v5123
    %v5125 = vmul.f32 %v5124, 2.0
    %v5126 = vsub.f32 %v5125, 1.0
    %v5127 = vmul.f32 %v5124, %v4859
    %5129 = vrot.lane.b32.xlu0 %v5126, 64
    %v5130 = vpop.permute.xlu0 %5129
    %v5132 = vmul.f32 %v5124, %v5130
    %5134 = vrot.lane.b32.xlu0 %v5132, 32
    %v5135 = vpop.permute.xlu0 %5134
    %v5137 = vadd.f32 %v5127, %v5135
    %v5138 = vtanh.pop %v5137
    %5140 = vrot.lane.b32.xlu0 %v5138, 64
    %v5141 = vpop.permute.xlu0 %5140
    %v5143 = vmul.f32 %v5124, %v5141
    %5145 = vrot.lane.b32.xlu0 %v5143, 64
    %v5146 = vpop.permute.xlu0 %5145
    %5148 = vst.msk [vmem:[#allocation2 + $0x60] sm:$0xff] %vm1811, %v5146
    %5149 = vmatprep.subr.mxu0 0.0
    %5150 = vmatpush1.msra.mxu0 %v1515
    %5151 = vmatprep.subr.mxu0 0.0
    %5152 = vmatpush1.msra.mxu0 %v1516
    %5153 = vmatprep.subr.mxu0 0.0
    %5154 = vmatpush1.msra.mxu0 %v1517
    %5155 = vmatprep.subr.mxu0 0.0
    %5156 = vmatpush1.msra.mxu0 %v1518
    %5157 = vmatprep.subr.mxu0 0.0
    %5158 = vmatpush1.msra.mxu0 0.0
    %5159 = vmatprep.subr.mxu0 0.0
    %5160 = vmatpush1.msra.mxu0 0.0
    %5161 = vmatprep.subr.mxu0 0.0
    %5162 = vmatpush1.msra.mxu0 0.0
    %5163 = vmatprep.subr.mxu0 0.0
    %5164 = vmatpush1.msra.mxu0 0.0
    %5165 = vmatprep.subr.mxu0 0.0
    %5166 = vmatpush1.msra.mxu0 0.0
    %5167 = vmatprep.subr.mxu0 0.0
    %5168 = vmatpush1.msra.mxu0 0.0
    %5169 = vmatprep.subr.mxu0 0.0
    %5170 = vmatpush1.msra.mxu0 0.0
    %5171 = vmatprep.subr.mxu0 0.0
    %5172 = vmatpush1.msra.mxu0 0.0
    %5173 = vmatprep.subr.mxu0 0.0
    %5174 = vmatpush1.msra.mxu0 0.0
    %5175 = vmatprep.subr.mxu0 0.0
    %5176 = vmatpush1.msra.mxu0 0.0
    %5177 = vmatprep.subr.mxu0 0.0
    %5178 = vmatpush1.msra.mxu0 0.0
    %5179 = vmatprep.subr.mxu0 0.0
    %5180 = vmatpush1.msra.mxu0 0.0
    %5181 = vmatprep.subr.mxu0 0.0
    %5182 = vmatpush1.msra.mxu0 0.0
    %5183 = vmatprep.subr.mxu0 0.0
    %5184 = vmatpush1.msra.mxu0 0.0
    %5185 = vmatprep.subr.mxu0 0.0
    %5186 = vmatpush1.msra.mxu0 0.0
    %5187 = vmatprep.subr.mxu0 0.0
    %5188 = vmatpush1.msra.mxu0 0.0
    %5189 = vmatprep.subr.mxu0 0.0
    %5190 = vmatpush1.msra.mxu0 0.0
    %5191 = vmatprep.subr.mxu0 0.0
    %5192 = vmatpush1.msra.mxu0 0.0
    %5193 = vmatprep.subr.mxu0 0.0
    %5194 = vmatpush1.msra.mxu0 0.0
    %5195 = vmatprep.subr.mxu0 0.0
    %5196 = vmatpush1.msra.mxu0 0.0
    %5197 = vmatprep.subr.mxu0 0.0
    %5198 = vmatpush1.msra.mxu0 0.0
    %5199 = vmatprep.subr.mxu0 0.0
    %5200 = vmatpush1.msra.mxu0 0.0
    %5201 = vmatprep.subr.mxu0 0.0
    %5202 = vmatpush1.msra.mxu0 0.0
    %5203 = vmatprep.subr.mxu0 0.0
    %5204 = vmatpush1.msra.mxu0 0.0
    %5205 = vmatprep.subr.mxu0 0.0
    %5206 = vmatpush1.msra.mxu0 0.0
    %5207 = vmatprep.subr.mxu0 0.0
    %5208 = vmatpush1.msra.mxu0 0.0
    %5209 = vmatprep.subr.mxu0 0.0
    %5210 = vmatpush1.msra.mxu0 0.0
    %5211 = vmatprep.subr.mxu0 0.0
    %5212 = vmatpush1.msra.mxu0 0.0
    %5213 = vmatprep.mubr.f32.mxu0 0.0
    %5214 = vmatmul.mubr.f32.gmra.mrb[0].mxu0 %v5046
    %v5215 = vpop.f32.mrb[0].mxu0
    %v5216 = vadd.f32 0.0, %v5215
    %v5217 = vpop.f32.mrb[0].mxu0
    %5218 = vdwg.mxu0
    %v5219 = vadd.f32 %v1502, %v5216
    %v5220 = vxor.u32 %v5219, 2147483648
    %v5221 = vmul.f32 %v5220, 1.442695
    %v5222 = vpow.pop %v5221
    %v5223 = vadd.f32 %v5222, 1.0
    %v5224 = vrcp.pop %v5223
    %v5225 = vmul.f32 1.0, %v5224
    %v5226 = vmul.f32 %v5225, 2.0
    %v5227 = vsub.f32 %v5226, 1.0
    %v5228 = vmul.f32 %v5225, %v4960
    %5230 = vrot.lane.b32.xlu0 %v5227, 64
    %v5231 = vpop.permute.xlu0 %5230
    %v5233 = vmul.f32 %v5225, %v5231
    %5235 = vrot.lane.b32.xlu0 %v5233, 32
    %v5236 = vpop.permute.xlu0 %5235
    %v5238 = vadd.f32 %v5228, %v5236
    %v5239 = vtanh.pop %v5238
    %5241 = vrot.lane.b32.xlu0 %v5239, 64
    %v5242 = vpop.permute.xlu0 %5241
    %v5244 = vmul.f32 %v5225, %v5242
    %5246 = vrot.lane.b32.xlu0 %v5244, 32
    %v5247 = vpop.permute.xlu0 %5246
    %5249 = vst.msk [vmem:[#allocation2 + $0x68] sm:$0xff] %vm1534, %v5247
    %5250 = vrot.lane.b32.xlu0 %v5143, 32
    %v5251 = vpop.permute.xlu0 %5250
    %v5252 = vsel %vm1534, %v5251, 0
    %5254 = vmatprep.subr.mxu0 0.0
    %5255 = vmatpush1.msra.mxu0 %v1523
    %5256 = vmatprep.subr.mxu0 0.0
    %5257 = vmatpush1.msra.mxu0 %v1524
    %5258 = vmatprep.subr.mxu0 0.0
    %5259 = vmatpush1.msra.mxu0 %v1525
    %5260 = vmatprep.subr.mxu0 0.0
    %5261 = vmatpush1.msra.mxu0 %v1526
    %5262 = vmatprep.subr.mxu0 0.0
    %5263 = vmatpush1.msra.mxu0 0.0
    %5264 = vmatprep.subr.mxu0 0.0
    %5265 = vmatpush1.msra.mxu0 0.0
    %5266 = vmatprep.subr.mxu0 0.0
    %5267 = vmatpush1.msra.mxu0 0.0
    %5268 = vmatprep.subr.mxu0 0.0
    %5269 = vmatpush1.msra.mxu0 0.0
    %5270 = vmatprep.subr.mxu0 0.0
    %5271 = vmatpush1.msra.mxu0 0.0
    %5272 = vmatprep.subr.mxu0 0.0
    %5273 = vmatpush1.msra.mxu0 0.0
    %5274 = vmatprep.subr.mxu0 0.0
    %5275 = vmatpush1.msra.mxu0 0.0
    %5276 = vmatprep.subr.mxu0 0.0
    %5277 = vmatpush1.msra.mxu0 0.0
    %5278 = vmatprep.subr.mxu0 0.0
    %5279 = vmatpush1.msra.mxu0 0.0
    %5280 = vmatprep.subr.mxu0 0.0
    %5281 = vmatpush1.msra.mxu0 0.0
    %5282 = vmatprep.subr.mxu0 0.0
    %5283 = vmatpush1.msra.mxu0 0.0
    %5284 = vmatprep.subr.mxu0 0.0
    %5285 = vmatpush1.msra.mxu0 0.0
    %5286 = vmatprep.subr.mxu0 0.0
    %5287 = vmatpush1.msra.mxu0 0.0
    %5288 = vmatprep.subr.mxu0 0.0
    %5289 = vmatpush1.msra.mxu0 0.0
    %5290 = vmatprep.subr.mxu0 0.0
    %5291 = vmatpush1.msra.mxu0 0.0
    %5292 = vmatprep.subr.mxu0 0.0
    %5293 = vmatpush1.msra.mxu0 0.0
    %5294 = vmatprep.subr.mxu0 0.0
    %5295 = vmatpush1.msra.mxu0 0.0
    %5296 = vmatprep.subr.mxu0 0.0
    %5297 = vmatpush1.msra.mxu0 0.0
    %5298 = vmatprep.subr.mxu0 0.0
    %5299 = vmatpush1.msra.mxu0 0.0
    %5300 = vmatprep.subr.mxu0 0.0
    %5301 = vmatpush1.msra.mxu0 0.0
    %5302 = vmatprep.subr.mxu0 0.0
    %5303 = vmatpush1.msra.mxu0 0.0
    %5304 = vmatprep.subr.mxu0 0.0
    %5305 = vmatpush1.msra.mxu0 0.0
    %5306 = vmatprep.subr.mxu0 0.0
    %5307 = vmatpush1.msra.mxu0 0.0
    %5308 = vmatprep.subr.mxu0 0.0
    %5309 = vmatpush1.msra.mxu0 0.0
    %5310 = vmatprep.subr.mxu0 0.0
    %5311 = vmatpush1.msra.mxu0 0.0
    %5312 = vmatprep.subr.mxu0 0.0
    %5313 = vmatpush1.msra.mxu0 0.0
    %5314 = vmatprep.subr.mxu0 0.0
    %5315 = vmatpush1.msra.mxu0 0.0
    %5316 = vmatprep.subr.mxu0 0.0
    %5317 = vmatpush1.msra.mxu0 0.0
    %5318 = vmatprep.mubr.f32.mxu0 0.0
    %5319 = vmatmul.mubr.f32.gmra.mrb[0].mxu0 %v5252
    %v5320 = vpop.f32.mrb[0].mxu0
    %v5321 = vadd.f32 0.0, %v5320
    %v5322 = vpop.f32.mrb[0].mxu0
    %5323 = vdwg.mxu0
    %v5324 = vsel %vm1534, %v5247, 0
    %5326 = vmatprep.subr.mxu0 0.0
    %5327 = vmatpush1.msra.mxu0 %v1519
    %5328 = vmatprep.subr.mxu0 0.0
    %5329 = vmatpush1.msra.mxu0 %v1520
    %5330 = vmatprep.subr.mxu0 0.0
    %5331 = vmatpush1.msra.mxu0 %v1521
    %5332 = vmatprep.subr.mxu0 0.0
    %5333 = vmatpush1.msra.mxu0 %v1522
    %5334 = vmatprep.subr.mxu0 0.0
    %5335 = vmatpush1.msra.mxu0 0.0
    %5336 = vmatprep.subr.mxu0 0.0
    %5337 = vmatpush1.msra.mxu0 0.0
    %5338 = vmatprep.subr.mxu0 0.0
    %5339 = vmatpush1.msra.mxu0 0.0
    %5340 = vmatprep.subr.mxu0 0.0
    %5341 = vmatpush1.msra.mxu0 0.0
    %5342 = vmatprep.subr.mxu0 0.0
    %5343 = vmatpush1.msra.mxu0 0.0
    %5344 = vmatprep.subr.mxu0 0.0
    %5345 = vmatpush1.msra.mxu0 0.0
    %5346 = vmatprep.subr.mxu0 0.0
    %5347 = vmatpush1.msra.mxu0 0.0
    %5348 = vmatprep.subr.mxu0 0.0
    %5349 = vmatpush1.msra.mxu0 0.0
    %5350 = vmatprep.subr.mxu0 0.0
    %5351 = vmatpush1.msra.mxu0 0.0
    %5352 = vmatprep.subr.mxu0 0.0
    %5353 = vmatpush1.msra.mxu0 0.0
    %5354 = vmatprep.subr.mxu0 0.0
    %5355 = vmatpush1.msra.mxu0 0.0
    %5356 = vmatprep.subr.mxu0 0.0
    %5357 = vmatpush1.msra.mxu0 0.0
    %5358 = vmatprep.subr.mxu0 0.0
    %5359 = vmatpush1.msra.mxu0 0.0
    %5360 = vmatprep.subr.mxu0 0.0
    %5361 = vmatpush1.msra.mxu0 0.0
    %5362 = vmatprep.subr.mxu0 0.0
    %5363 = vmatpush1.msra.mxu0 0.0
    %5364 = vmatprep.subr.mxu0 0.0
    %5365 = vmatpush1.msra.mxu0 0.0
    %5366 = vmatprep.subr.mxu0 0.0
    %5367 = vmatpush1.msra.mxu0 0.0
    %5368 = vmatprep.subr.mxu0 0.0
    %5369 = vmatpush1.msra.mxu0 0.0
    %5370 = vmatprep.subr.mxu0 0.0
    %5371 = vmatpush1.msra.mxu0 0.0
    %5372 = vmatprep.subr.mxu0 0.0
    %5373 = vmatpush1.msra.mxu0 0.0
    %5374 = vmatprep.subr.mxu0 0.0
    %5375 = vmatpush1.msra.mxu0 0.0
    %5376 = vmatprep.subr.mxu0 0.0
    %5377 = vmatpush1.msra.mxu0 0.0
    %5378 = vmatprep.subr.mxu0 0.0
    %5379 = vmatpush1.msra.mxu0 0.0
    %5380 = vmatprep.subr.mxu0 0.0
    %5381 = vmatpush1.msra.mxu0 0.0
    %5382 = vmatprep.subr.mxu0 0.0
    %5383 = vmatpush1.msra.mxu0 0.0
    %5384 = vmatprep.subr.mxu0 0.0
    %5385 = vmatpush1.msra.mxu0 0.0
    %5386 = vmatprep.subr.mxu0 0.0
    %5387 = vmatpush1.msra.mxu0 0.0
    %5388 = vmatprep.subr.mxu0 0.0
    %5389 = vmatpush1.msra.mxu0 0.0
    %5390 = vmatprep.mubr.f32.mxu0 0.0
    %5391 = vmatmul.mubr.f32.gmra.mrb[0].mxu0 %v5324
    %v5392 = vpop.f32.mrb[0].mxu0
    %v5393 = vadd.f32 %v5321, %v5392
    %v5394 = vpop.f32.mrb[0].mxu0
    %5395 = vdwg.mxu0
    %v5396 = vadd.f32 %v5393, %v1532
    %v5397 = vxor.u32 %v5396, 2147483648
    %v5398 = vmul.f32 %v5397, 1.442695
    %v5399 = vpow.pop %v5398
    %v5400 = vadd.f32 %v5399, 1.0
    %v5401 = vrcp.pop %v5400
    %v5402 = vmul.f32 1.0, %v5401
    %v5403 = vmul.f32 %v5402, 2.0
    %v5404 = vsub.f32 %v5403, 1.0
    %v5405 = vmul.f32 %v5402, %v5137
    %5407 = vrot.lane.b32.xlu0 %v5404, 64
    %v5408 = vpop.permute.xlu0 %5407
    %v5410 = vmul.f32 %v5402, %v5408
    %5412 = vrot.lane.b32.xlu0 %v5410, 32
    %v5413 = vpop.permute.xlu0 %5412
    %v5415 = vadd.f32 %v5405, %v5413
    %v5416 = vtanh.pop %v5415
    %5418 = vrot.lane.b32.xlu0 %v5416, 64
    %v5419 = vpop.permute.xlu0 %5418
    %v5421 = vmul.f32 %v5402, %v5419
    %5423 = vrot.lane.b32.xlu0 %v5421, 64
    %v5424 = vpop.permute.xlu0 %5423
    %5426 = vst.msk [vmem:[#allocation2 + $0x68] sm:$0xff] %vm1811, %v5424
    %5427 = vmatprep.subr.mxu0 0.0
    %5428 = vmatpush1.msra.mxu0 %v1515
    %5429 = vmatprep.subr.mxu0 0.0
    %5430 = vmatpush1.msra.mxu0 %v1516
    %5431 = vmatprep.subr.mxu0 0.0
    %5432 = vmatpush1.msra.mxu0 %v1517
    %5433 = vmatprep.subr.mxu0 0.0
    %5434 = vmatpush1.msra.mxu0 %v1518
    %5435 = vmatprep.subr.mxu0 0.0
    %5436 = vmatpush1.msra.mxu0 0.0
    %5437 = vmatprep.subr.mxu0 0.0
    %5438 = vmatpush1.msra.mxu0 0.0
    %5439 = vmatprep.subr.mxu0 0.0
    %5440 = vmatpush1.msra.mxu0 0.0
    %5441 = vmatprep.subr.mxu0 0.0
    %5442 = vmatpush1.msra.mxu0 0.0
    %5443 = vmatprep.subr.mxu0 0.0
    %5444 = vmatpush1.msra.mxu0 0.0
    %5445 = vmatprep.subr.mxu0 0.0
    %5446 = vmatpush1.msra.mxu0 0.0
    %5447 = vmatprep.subr.mxu0 0.0
    %5448 = vmatpush1.msra.mxu0 0.0
    %5449 = vmatprep.subr.mxu0 0.0
    %5450 = vmatpush1.msra.mxu0 0.0
    %5451 = vmatprep.subr.mxu0 0.0
    %5452 = vmatpush1.msra.mxu0 0.0
    %5453 = vmatprep.subr.mxu0 0.0
    %5454 = vmatpush1.msra.mxu0 0.0
    %5455 = vmatprep.subr.mxu0 0.0
    %5456 = vmatpush1.msra.mxu0 0.0
    %5457 = vmatprep.subr.mxu0 0.0
    %5458 = vmatpush1.msra.mxu0 0.0
    %5459 = vmatprep.subr.mxu0 0.0
    %5460 = vmatpush1.msra.mxu0 0.0
    %5461 = vmatprep.subr.mxu0 0.0
    %5462 = vmatpush1.msra.mxu0 0.0
    %5463 = vmatprep.subr.mxu0 0.0
    %5464 = vmatpush1.msra.mxu0 0.0
    %5465 = vmatprep.subr.mxu0 0.0
    %5466 = vmatpush1.msra.mxu0 0.0
    %5467 = vmatprep.subr.mxu0 0.0
    %5468 = vmatpush1.msra.mxu0 0.0
    %5469 = vmatprep.subr.mxu0 0.0
    %5470 = vmatpush1.msra.mxu0 0.0
    %5471 = vmatprep.subr.mxu0 0.0
    %5472 = vmatpush1.msra.mxu0 0.0
    %5473 = vmatprep.subr.mxu0 0.0
    %5474 = vmatpush1.msra.mxu0 0.0
    %5475 = vmatprep.subr.mxu0 0.0
    %5476 = vmatpush1.msra.mxu0 0.0
    %5477 = vmatprep.subr.mxu0 0.0
    %5478 = vmatpush1.msra.mxu0 0.0
    %5479 = vmatprep.subr.mxu0 0.0
    %5480 = vmatpush1.msra.mxu0 0.0
    %5481 = vmatprep.subr.mxu0 0.0
    %5482 = vmatpush1.msra.mxu0 0.0
    %5483 = vmatprep.subr.mxu0 0.0
    %5484 = vmatpush1.msra.mxu0 0.0
    %5485 = vmatprep.subr.mxu0 0.0
    %5486 = vmatpush1.msra.mxu0 0.0
    %5487 = vmatprep.subr.mxu0 0.0
    %5488 = vmatpush1.msra.mxu0 0.0
    %5489 = vmatprep.subr.mxu0 0.0
    %5490 = vmatpush1.msra.mxu0 0.0
    %5491 = vmatprep.mubr.f32.mxu0 0.0
    %5492 = vmatmul.mubr.f32.gmra.mrb[0].mxu0 %v5324
    %v5493 = vpop.f32.mrb[0].mxu0
    %v5494 = vadd.f32 0.0, %v5493
    %v5495 = vpop.f32.mrb[0].mxu0
    %5496 = vdwg.mxu0
    %v5497 = vadd.f32 %v1507, %v5494
    %v5498 = vxor.u32 %v5497, 2147483648
    %v5499 = vmul.f32 %v5498, 1.442695
    %v5500 = vpow.pop %v5499
    %v5501 = vadd.f32 %v5500, 1.0
    %v5502 = vrcp.pop %v5501
    %v5503 = vmul.f32 1.0, %v5502
    %v5504 = vmul.f32 %v5503, 2.0
    %v5505 = vsub.f32 %v5504, 1.0
    %v5506 = vmul.f32 %v5503, %v5238
    %5508 = vrot.lane.b32.xlu0 %v5505, 64
    %v5509 = vpop.permute.xlu0 %5508
    %v5511 = vmul.f32 %v5503, %v5509
    %5513 = vrot.lane.b32.xlu0 %v5511, 32
    %v5514 = vpop.permute.xlu0 %5513
    %v5516 = vadd.f32 %v5506, %v5514
    %v5517 = vtanh.pop %v5516
    %5519 = vrot.lane.b32.xlu0 %v5517, 64
    %v5520 = vpop.permute.xlu0 %5519
    %v5522 = vmul.f32 %v5503, %v5520
    %5524 = vrot.lane.b32.xlu0 %v5522, 32
    %v5525 = vpop.permute.xlu0 %5524
    %5527 = vst.msk [vmem:[#allocation2 + $0x70] sm:$0xff] %vm1534, %v5525
    %5528 = vrot.lane.b32.xlu0 %v5421, 32
    %v5529 = vpop.permute.xlu0 %5528
    %v5530 = vsel %vm1534, %v5529, 0
    %5532 = vmatprep.subr.mxu0 0.0
    %5533 = vmatpush1.msra.mxu0 %v1523
    %5534 = vmatprep.subr.mxu0 0.0
    %5535 = vmatpush1.msra.mxu0 %v1524
    %5536 = vmatprep.subr.mxu0 0.0
    %5537 = vmatpush1.msra.mxu0 %v1525
    %5538 = vmatprep.subr.mxu0 0.0
    %5539 = vmatpush1.msra.mxu0 %v1526
    %5540 = vmatprep.subr.mxu0 0.0
    %5541 = vmatpush1.msra.mxu0 0.0
    %5542 = vmatprep.subr.mxu0 0.0
    %5543 = vmatpush1.msra.mxu0 0.0
    %5544 = vmatprep.subr.mxu0 0.0
    %5545 = vmatpush1.msra.mxu0 0.0
    %5546 = vmatprep.subr.mxu0 0.0
    %5547 = vmatpush1.msra.mxu0 0.0
    %5548 = vmatprep.subr.mxu0 0.0
    %5549 = vmatpush1.msra.mxu0 0.0
    %5550 = vmatprep.subr.mxu0 0.0
    %5551 = vmatpush1.msra.mxu0 0.0
    %5552 = vmatprep.subr.mxu0 0.0
    %5553 = vmatpush1.msra.mxu0 0.0
    %5554 = vmatprep.subr.mxu0 0.0
    %5555 = vmatpush1.msra.mxu0 0.0
    %5556 = vmatprep.subr.mxu0 0.0
    %5557 = vmatpush1.msra.mxu0 0.0
    %5558 = vmatprep.subr.mxu0 0.0
    %5559 = vmatpush1.msra.mxu0 0.0
    %5560 = vmatprep.subr.mxu0 0.0
    %5561 = vmatpush1.msra.mxu0 0.0
    %5562 = vmatprep.subr.mxu0 0.0
    %5563 = vmatpush1.msra.mxu0 0.0
    %5564 = vmatprep.subr.mxu0 0.0
    %5565 = vmatpush1.msra.mxu0 0.0
    %5566 = vmatprep.subr.mxu0 0.0
    %5567 = vmatpush1.msra.mxu0 0.0
    %5568 = vmatprep.subr.mxu0 0.0
    %5569 = vmatpush1.msra.mxu0 0.0
    %5570 = vmatprep.subr.mxu0 0.0
    %5571 = vmatpush1.msra.mxu0 0.0
    %5572 = vmatprep.subr.mxu0 0.0
    %5573 = vmatpush1.msra.mxu0 0.0
    %5574 = vmatprep.subr.mxu0 0.0
    %5575 = vmatpush1.msra.mxu0 0.0
    %5576 = vmatprep.subr.mxu0 0.0
    %5577 = vmatpush1.msra.mxu0 0.0
    %5578 = vmatprep.subr.mxu0 0.0
    %5579 = vmatpush1.msra.mxu0 0.0
    %5580 = vmatprep.subr.mxu0 0.0
    %5581 = vmatpush1.msra.mxu0 0.0
    %5582 = vmatprep.subr.mxu0 0.0
    %5583 = vmatpush1.msra.mxu0 0.0
    %5584 = vmatprep.subr.mxu0 0.0
    %5585 = vmatpush1.msra.mxu0 0.0
    %5586 = vmatprep.subr.mxu0 0.0
    %5587 = vmatpush1.msra.mxu0 0.0
    %5588 = vmatprep.subr.mxu0 0.0
    %5589 = vmatpush1.msra.mxu0 0.0
    %5590 = vmatprep.subr.mxu0 0.0
    %5591 = vmatpush1.msra.mxu0 0.0
    %5592 = vmatprep.subr.mxu0 0.0
    %5593 = vmatpush1.msra.mxu0 0.0
    %5594 = vmatprep.subr.mxu0 0.0
    %5595 = vmatpush1.msra.mxu0 0.0
    %5596 = vmatprep.mubr.f32.mxu0 0.0
    %5597 = vmatmul.mubr.f32.gmra.mrb[0].mxu0 %v5530
    %v5598 = vpop.f32.mrb[0].mxu0
    %v5599 = vadd.f32 0.0, %v5598
    %v5600 = vpop.f32.mrb[0].mxu0
    %5601 = vdwg.mxu0
    %v5602 = vsel %vm1534, %v5525, 0
    %5604 = vmatprep.subr.mxu0 0.0
    %5605 = vmatpush1.msra.mxu0 %v1519
    %5606 = vmatprep.subr.mxu0 0.0
    %5607 = vmatpush1.msra.mxu0 %v1520
    %5608 = vmatprep.subr.mxu0 0.0
    %5609 = vmatpush1.msra.mxu0 %v1521
    %5610 = vmatprep.subr.mxu0 0.0
    %5611 = vmatpush1.msra.mxu0 %v1522
    %5612 = vmatprep.subr.mxu0 0.0
    %5613 = vmatpush1.msra.mxu0 0.0
    %5614 = vmatprep.subr.mxu0 0.0
    %5615 = vmatpush1.msra.mxu0 0.0
    %5616 = vmatprep.subr.mxu0 0.0
    %5617 = vmatpush1.msra.mxu0 0.0
    %5618 = vmatprep.subr.mxu0 0.0
    %5619 = vmatpush1.msra.mxu0 0.0
    %5620 = vmatprep.subr.mxu0 0.0
    %5621 = vmatpush1.msra.mxu0 0.0
    %5622 = vmatprep.subr.mxu0 0.0
    %5623 = vmatpush1.msra.mxu0 0.0
    %5624 = vmatprep.subr.mxu0 0.0
    %5625 = vmatpush1.msra.mxu0 0.0
    %5626 = vmatprep.subr.mxu0 0.0
    %5627 = vmatpush1.msra.mxu0 0.0
    %5628 = vmatprep.subr.mxu0 0.0
    %5629 = vmatpush1.msra.mxu0 0.0
    %5630 = vmatprep.subr.mxu0 0.0
    %5631 = vmatpush1.msra.mxu0 0.0
    %5632 = vmatprep.subr.mxu0 0.0
    %5633 = vmatpush1.msra.mxu0 0.0
    %5634 = vmatprep.subr.mxu0 0.0
    %5635 = vmatpush1.msra.mxu0 0.0
    %5636 = vmatprep.subr.mxu0 0.0
    %5637 = vmatpush1.msra.mxu0 0.0
    %5638 = vmatprep.subr.mxu0 0.0
    %5639 = vmatpush1.msra.mxu0 0.0
    %5640 = vmatprep.subr.mxu0 0.0
    %5641 = vmatpush1.msra.mxu0 0.0
    %5642 = vmatprep.subr.mxu0 0.0
    %5643 = vmatpush1.msra.mxu0 0.0
    %5644 = vmatprep.subr.mxu0 0.0
    %5645 = vmatpush1.msra.mxu0 0.0
    %5646 = vmatprep.subr.mxu0 0.0
    %5647 = vmatpush1.msra.mxu0 0.0
    %5648 = vmatprep.subr.mxu0 0.0
    %5649 = vmatpush1.msra.mxu0 0.0
    %5650 = vmatprep.subr.mxu0 0.0
    %5651 = vmatpush1.msra.mxu0 0.0
    %5652 = vmatprep.subr.mxu0 0.0
    %5653 = vmatpush1.msra.mxu0 0.0
    %5654 = vmatprep.subr.mxu0 0.0
    %5655 = vmatpush1.msra.mxu0 0.0
    %5656 = vmatprep.subr.mxu0 0.0
    %5657 = vmatpush1.msra.mxu0 0.0
    %5658 = vmatprep.subr.mxu0 0.0
    %5659 = vmatpush1.msra.mxu0 0.0
    %5660 = vmatprep.subr.mxu0 0.0
    %5661 = vmatpush1.msra.mxu0 0.0
    %5662 = vmatprep.subr.mxu0 0.0
    %5663 = vmatpush1.msra.mxu0 0.0
    %5664 = vmatprep.subr.mxu0 0.0
    %5665 = vmatpush1.msra.mxu0 0.0
    %5666 = vmatprep.subr.mxu0 0.0
    %5667 = vmatpush1.msra.mxu0 0.0
    %5668 = vmatprep.mubr.f32.mxu0 0.0
    %5669 = vmatmul.mubr.f32.gmra.mrb[0].mxu0 %v5602
    %v5670 = vpop.f32.mrb[0].mxu0
    %v5671 = vadd.f32 %v5599, %v5670
    %v5672 = vpop.f32.mrb[0].mxu0
    %5673 = vdwg.mxu0
    %v5674 = vadd.f32 %v5671, %v1532
    %v5675 = vxor.u32 %v5674, 2147483648
    %v5676 = vmul.f32 %v5675, 1.442695
    %v5677 = vpow.pop %v5676
    %v5678 = vadd.f32 %v5677, 1.0
    %v5679 = vrcp.pop %v5678
    %v5680 = vmul.f32 1.0, %v5679
    %v5681 = vmul.f32 %v5680, 2.0
    %v5682 = vsub.f32 %v5681, 1.0
    %v5683 = vmul.f32 %v5680, %v5415
    %5685 = vrot.lane.b32.xlu0 %v5682, 64
    %v5686 = vpop.permute.xlu0 %5685
    %v5688 = vmul.f32 %v5680, %v5686
    %5690 = vrot.lane.b32.xlu0 %v5688, 32
    %v5691 = vpop.permute.xlu0 %5690
    %v5693 = vadd.f32 %v5683, %v5691
    %v5694 = vtanh.pop %v5693
    %5696 = vrot.lane.b32.xlu0 %v5694, 64
    %v5697 = vpop.permute.xlu0 %5696
    %v5699 = vmul.f32 %v5680, %v5697
    %5701 = vrot.lane.b32.xlu0 %v5699, 64
    %v5702 = vpop.permute.xlu0 %5701
    %5704 = vst.msk [vmem:[#allocation2 + $0x70] sm:$0xff] %vm1811, %v5702
    %5705 = vmatprep.subr.mxu0 0.0
    %5706 = vmatpush1.msra.mxu0 %v1515
    %5707 = vmatprep.subr.mxu0 0.0
    %5708 = vmatpush1.msra.mxu0 %v1516
    %5709 = vmatprep.subr.mxu0 0.0
    %5710 = vmatpush1.msra.mxu0 %v1517
    %5711 = vmatprep.subr.mxu0 0.0
    %5712 = vmatpush1.msra.mxu0 %v1518
    %5713 = vmatprep.subr.mxu0 0.0
    %5714 = vmatpush1.msra.mxu0 0.0
    %5715 = vmatprep.subr.mxu0 0.0
    %5716 = vmatpush1.msra.mxu0 0.0
    %5717 = vmatprep.subr.mxu0 0.0
    %5718 = vmatpush1.msra.mxu0 0.0
    %5719 = vmatprep.subr.mxu0 0.0
    %5720 = vmatpush1.msra.mxu0 0.0
    %5721 = vmatprep.subr.mxu0 0.0
    %5722 = vmatpush1.msra.mxu0 0.0
    %5723 = vmatprep.subr.mxu0 0.0
    %5724 = vmatpush1.msra.mxu0 0.0
    %5725 = vmatprep.subr.mxu0 0.0
    %5726 = vmatpush1.msra.mxu0 0.0
    %5727 = vmatprep.subr.mxu0 0.0
    %5728 = vmatpush1.msra.mxu0 0.0
    %5729 = vmatprep.subr.mxu0 0.0
    %5730 = vmatpush1.msra.mxu0 0.0
    %5731 = vmatprep.subr.mxu0 0.0
    %5732 = vmatpush1.msra.mxu0 0.0
    %5733 = vmatprep.subr.mxu0 0.0
    %5734 = vmatpush1.msra.mxu0 0.0
    %5735 = vmatprep.subr.mxu0 0.0
    %5736 = vmatpush1.msra.mxu0 0.0
    %5737 = vmatprep.subr.mxu0 0.0
    %5738 = vmatpush1.msra.mxu0 0.0
    %5739 = vmatprep.subr.mxu0 0.0
    %5740 = vmatpush1.msra.mxu0 0.0
    %5741 = vmatprep.subr.mxu0 0.0
    %5742 = vmatpush1.msra.mxu0 0.0
    %5743 = vmatprep.subr.mxu0 0.0
    %5744 = vmatpush1.msra.mxu0 0.0
    %5745 = vmatprep.subr.mxu0 0.0
    %5746 = vmatpush1.msra.mxu0 0.0
    %5747 = vmatprep.subr.mxu0 0.0
    %5748 = vmatpush1.msra.mxu0 0.0
    %5749 = vmatprep.subr.mxu0 0.0
    %5750 = vmatpush1.msra.mxu0 0.0
    %5751 = vmatprep.subr.mxu0 0.0
    %5752 = vmatpush1.msra.mxu0 0.0
    %5753 = vmatprep.subr.mxu0 0.0
    %5754 = vmatpush1.msra.mxu0 0.0
    %5755 = vmatprep.subr.mxu0 0.0
    %5756 = vmatpush1.msra.mxu0 0.0
    %5757 = vmatprep.subr.mxu0 0.0
    %5758 = vmatpush1.msra.mxu0 0.0
    %5759 = vmatprep.subr.mxu0 0.0
    %5760 = vmatpush1.msra.mxu0 0.0
    %5761 = vmatprep.subr.mxu0 0.0
    %5762 = vmatpush1.msra.mxu0 0.0
    %5763 = vmatprep.subr.mxu0 0.0
    %5764 = vmatpush1.msra.mxu0 0.0
    %5765 = vmatprep.subr.mxu0 0.0
    %5766 = vmatpush1.msra.mxu0 0.0
    %5767 = vmatprep.subr.mxu0 0.0
    %5768 = vmatpush1.msra.mxu0 0.0
    %5769 = vmatprep.mubr.f32.mxu0 0.0
    %5770 = vmatmul.mubr.f32.gmra.mrb[0].mxu0 %v5602
    %v5771 = vpop.f32.mrb[0].mxu0
    %v5772 = vadd.f32 0.0, %v5771
    %v5773 = vpop.f32.mrb[0].mxu0
    %5774 = vdwg.mxu0
    %v5775 = vadd.f32 %v1512, %v5772
    %v5776 = vxor.u32 %v5775, 2147483648
    %v5777 = vmul.f32 %v5776, 1.442695
    %v5778 = vpow.pop %v5777
    %v5779 = vadd.f32 %v5778, 1.0
    %v5780 = vrcp.pop %v5779
    %v5781 = vmul.f32 1.0, %v5780
    %v5782 = vmul.f32 %v5781, 2.0
    %v5783 = vsub.f32 %v5782, 1.0
    %v5784 = vmul.f32 %v5781, %v5516
    %5786 = vrot.lane.b32.xlu0 %v5783, 64
    %v5787 = vpop.permute.xlu0 %5786
    %v5789 = vmul.f32 %v5781, %v5787
    %5791 = vrot.lane.b32.xlu0 %v5789, 32
    %v5792 = vpop.permute.xlu0 %5791
    %v5794 = vadd.f32 %v5784, %v5792
    %v5795 = vtanh.pop %v5794
    %5797 = vrot.lane.b32.xlu0 %v5795, 64
    %v5798 = vpop.permute.xlu0 %5797
    %v5800 = vmul.f32 %v5781, %v5798
    %5802 = vrot.lane.b32.xlu0 %v5800, 32
    %v5803 = vpop.permute.xlu0 %5802
    %5805 = vst.msk [vmem:[#allocation2 + $0x78] sm:$0xff] %vm1534, %v5803
    %5806 = vrot.lane.b32.xlu0 %v5699, 32
    %v5807 = vpop.permute.xlu0 %5806
    %v5808 = vsel %vm1534, %v5807, 0
    %5810 = vmatprep.subr.mxu0 0.0
    %5811 = vmatpush1.msra.mxu0 %v1523
    %5812 = vmatprep.subr.mxu0 0.0
    %5813 = vmatpush1.msra.mxu0 %v1524
    %5814 = vmatprep.subr.mxu0 0.0
    %5815 = vmatpush1.msra.mxu0 %v1525
    %5816 = vmatprep.subr.mxu0 0.0
    %5817 = vmatpush1.msra.mxu0 %v1526
    %5818 = vmatprep.subr.mxu0 0.0
    %5819 = vmatpush1.msra.mxu0 0.0
    %5820 = vmatprep.subr.mxu0 0.0
    %5821 = vmatpush1.msra.mxu0 0.0
    %5822 = vmatprep.subr.mxu0 0.0
    %5823 = vmatpush1.msra.mxu0 0.0
    %5824 = vmatprep.subr.mxu0 0.0
    %5825 = vmatpush1.msra.mxu0 0.0
    %5826 = vmatprep.subr.mxu0 0.0
    %5827 = vmatpush1.msra.mxu0 0.0
    %5828 = vmatprep.subr.mxu0 0.0
    %5829 = vmatpush1.msra.mxu0 0.0
    %5830 = vmatprep.subr.mxu0 0.0
    %5831 = vmatpush1.msra.mxu0 0.0
    %5832 = vmatprep.subr.mxu0 0.0
    %5833 = vmatpush1.msra.mxu0 0.0
    %5834 = vmatprep.subr.mxu0 0.0
    %5835 = vmatpush1.msra.mxu0 0.0
    %5836 = vmatprep.subr.mxu0 0.0
    %5837 = vmatpush1.msra.mxu0 0.0
    %5838 = vmatprep.subr.mxu0 0.0
    %5839 = vmatpush1.msra.mxu0 0.0
    %5840 = vmatprep.subr.mxu0 0.0
    %5841 = vmatpush1.msra.mxu0 0.0
    %5842 = vmatprep.subr.mxu0 0.0
    %5843 = vmatpush1.msra.mxu0 0.0
    %5844 = vmatprep.subr.mxu0 0.0
    %5845 = vmatpush1.msra.mxu0 0.0
    %5846 = vmatprep.subr.mxu0 0.0
    %5847 = vmatpush1.msra.mxu0 0.0
    %5848 = vmatprep.subr.mxu0 0.0
    %5849 = vmatpush1.msra.mxu0 0.0
    %5850 = vmatprep.subr.mxu0 0.0
    %5851 = vmatpush1.msra.mxu0 0.0
    %5852 = vmatprep.subr.mxu0 0.0
    %5853 = vmatpush1.msra.mxu0 0.0
    %5854 = vmatprep.subr.mxu0 0.0
    %5855 = vmatpush1.msra.mxu0 0.0
    %5856 = vmatprep.subr.mxu0 0.0
    %5857 = vmatpush1.msra.mxu0 0.0
    %5858 = vmatprep.subr.mxu0 0.0
    %5859 = vmatpush1.msra.mxu0 0.0
    %5860 = vmatprep.subr.mxu0 0.0
    %5861 = vmatpush1.msra.mxu0 0.0
    %5862 = vmatprep.subr.mxu0 0.0
    %5863 = vmatpush1.msra.mxu0 0.0
    %5864 = vmatprep.subr.mxu0 0.0
    %5865 = vmatpush1.msra.mxu0 0.0
    %5866 = vmatprep.subr.mxu0 0.0
    %5867 = vmatpush1.msra.mxu0 0.0
    %5868 = vmatprep.subr.mxu0 0.0
    %5869 = vmatpush1.msra.mxu0 0.0
    %5870 = vmatprep.subr.mxu0 0.0
    %5871 = vmatpush1.msra.mxu0 0.0
    %5872 = vmatprep.subr.mxu0 0.0
    %5873 = vmatpush1.msra.mxu0 0.0
    %5874 = vmatprep.mubr.f32.mxu0 0.0
    %5875 = vmatmul.mubr.f32.gmra.mrb[0].mxu0 %v5808
    %v5876 = vpop.f32.mrb[0].mxu0
    %v5877 = vadd.f32 0.0, %v5876
    %v5878 = vpop.f32.mrb[0].mxu0
    %5879 = vdwg.mxu0
    %v5880 = vsel %vm1534, %v5803, 0
    %5882 = vmatprep.subr.mxu0 0.0
    %5883 = vmatpush1.msra.mxu0 %v1519
    %5884 = vmatprep.subr.mxu0 0.0
    %5885 = vmatpush1.msra.mxu0 %v1520
    %5886 = vmatprep.subr.mxu0 0.0
    %5887 = vmatpush1.msra.mxu0 %v1521
    %5888 = vmatprep.subr.mxu0 0.0
    %5889 = vmatpush1.msra.mxu0 %v1522
    %5890 = vmatprep.subr.mxu0 0.0
    %5891 = vmatpush1.msra.mxu0 0.0
    %5892 = vmatprep.subr.mxu0 0.0
    %5893 = vmatpush1.msra.mxu0 0.0
    %5894 = vmatprep.subr.mxu0 0.0
    %5895 = vmatpush1.msra.mxu0 0.0
    %5896 = vmatprep.subr.mxu0 0.0
    %5897 = vmatpush1.msra.mxu0 0.0
    %5898 = vmatprep.subr.mxu0 0.0
    %5899 = vmatpush1.msra.mxu0 0.0
    %5900 = vmatprep.subr.mxu0 0.0
    %5901 = vmatpush1.msra.mxu0 0.0
    %5902 = vmatprep.subr.mxu0 0.0
    %5903 = vmatpush1.msra.mxu0 0.0
    %5904 = vmatprep.subr.mxu0 0.0
    %5905 = vmatpush1.msra.mxu0 0.0
    %5906 = vmatprep.subr.mxu0 0.0
    %5907 = vmatpush1.msra.mxu0 0.0
    %5908 = vmatprep.subr.mxu0 0.0
    %5909 = vmatpush1.msra.mxu0 0.0
    %5910 = vmatprep.subr.mxu0 0.0
    %5911 = vmatpush1.msra.mxu0 0.0
    %5912 = vmatprep.subr.mxu0 0.0
    %5913 = vmatpush1.msra.mxu0 0.0
    %5914 = vmatprep.subr.mxu0 0.0
    %5915 = vmatpush1.msra.mxu0 0.0
    %5916 = vmatprep.subr.mxu0 0.0
    %5917 = vmatpush1.msra.mxu0 0.0
    %5918 = vmatprep.subr.mxu0 0.0
    %5919 = vmatpush1.msra.mxu0 0.0
    %5920 = vmatprep.subr.mxu0 0.0
    %5921 = vmatpush1.msra.mxu0 0.0
    %5922 = vmatprep.subr.mxu0 0.0
    %5923 = vmatpush1.msra.mxu0 0.0
    %5924 = vmatprep.subr.mxu0 0.0
    %5925 = vmatpush1.msra.mxu0 0.0
    %5926 = vmatprep.subr.mxu0 0.0
    %5927 = vmatpush1.msra.mxu0 0.0
    %5928 = vmatprep.subr.mxu0 0.0
    %5929 = vmatpush1.msra.mxu0 0.0
    %5930 = vmatprep.subr.mxu0 0.0
    %5931 = vmatpush1.msra.mxu0 0.0
    %5932 = vmatprep.subr.mxu0 0.0
    %5933 = vmatpush1.msra.mxu0 0.0
    %5934 = vmatprep.subr.mxu0 0.0
    %5935 = vmatpush1.msra.mxu0 0.0
    %5936 = vmatprep.subr.mxu0 0.0
    %5937 = vmatpush1.msra.mxu0 0.0
    %5938 = vmatprep.subr.mxu0 0.0
    %5939 = vmatpush1.msra.mxu0 0.0
    %5940 = vmatprep.subr.mxu0 0.0
    %5941 = vmatpush1.msra.mxu0 0.0
    %5942 = vmatprep.subr.mxu0 0.0
    %5943 = vmatpush1.msra.mxu0 0.0
    %5944 = vmatprep.subr.mxu0 0.0
    %5945 = vmatpush1.msra.mxu0 0.0
    %5946 = vmatprep.mubr.f32.mxu0 0.0
    %5947 = vmatmul.mubr.f32.gmra.mrb[0].mxu0 %v5880
    %v5948 = vpop.f32.mrb[0].mxu0
    %v5949 = vadd.f32 %v5877, %v5948
    %v5950 = vpop.f32.mrb[0].mxu0
    %5951 = vdwg.mxu0
    %v5952 = vadd.f32 %v5949, %v1532
    %v5953 = vxor.u32 %v5952, 2147483648
    %v5954 = vmul.f32 %v5953, 1.442695
    %v5955 = vpow.pop %v5954
    %v5956 = vadd.f32 %v5955, 1.0
    %v5957 = vrcp.pop %v5956
    %v5958 = vmul.f32 1.0, %v5957
    %v5959 = vmul.f32 %v5958, 2.0
    %v5960 = vsub.f32 %v5959, 1.0
    %v5961 = vmul.f32 %v5958, %v5693
    %5963 = vrot.lane.b32.xlu0 %v5960, 64
    %v5964 = vpop.permute.xlu0 %5963
    %v5966 = vmul.f32 %v5958, %v5964
    %5968 = vrot.lane.b32.xlu0 %v5966, 32
    %v5969 = vpop.permute.xlu0 %5968
    %v5971 = vadd.f32 %v5961, %v5969
    %v5972 = vtanh.pop %v5971
    %5974 = vrot.lane.b32.xlu0 %v5972, 64
    %v5975 = vpop.permute.xlu0 %5974
    %v5977 = vmul.f32 %v5958, %v5975
    %5979 = vrot.lane.b32.xlu0 %v5977, 64
    %v5980 = vpop.permute.xlu0 %5979
    %5982 = vst.msk [vmem:[#allocation2 + $0x78] sm:$0xff] %vm1811, %v5980
    %v5983 = vld [vmem:[#allocation2] sm:$0xff]
    %v5984 = vld [vmem:[#allocation2 + $0x8] sm:$0xff]
    %v5985 = vld [vmem:[#allocation2 + $0x10] sm:$0xff]
    %v5986 = vld [vmem:[#allocation2 + $0x18] sm:$0xff]
    %v5987 = vld [vmem:[#allocation2 + $0x20] sm:$0xff]
    %v5988 = vld [vmem:[#allocation2 + $0x28] sm:$0xff]
    %v5989 = vld [vmem:[#allocation2 + $0x30] sm:$0xff]
    %v5990 = vld [vmem:[#allocation2 + $0x38] sm:$0xff]
    %v5991 = vld [vmem:[#allocation2 + $0x40] sm:$0xff]
    %v5992 = vld [vmem:[#allocation2 + $0x48] sm:$0xff]
    %v5993 = vld [vmem:[#allocation2 + $0x50] sm:$0xff]
    %v5994 = vld [vmem:[#allocation2 + $0x58] sm:$0xff]
    %v5995 = vld [vmem:[#allocation2 + $0x60] sm:$0xff]
    %v5996 = vld [vmem:[#allocation2 + $0x68] sm:$0xff]
    %v5997 = vld [vmem:[#allocation2 + $0x70] sm:$0xff]
    %v5998 = vld [vmem:[#allocation2 + $0x78] sm:$0xff]
    %v5999 = vld [vmem:[%s12] sm:$0xff]
    %v6000 = vld [vmem:[%s12 + $0x8] sm:$0xff]
    %v6001 = vld [vmem:[%s12 + $0x10] sm:$0xff]
    %v6002 = vld [vmem:[%s12 + $0x18] sm:$0xff]
    %v6003 = vld [vmem:[%s12 + $0x20] sm:$0xff]
    %v6004 = vld [vmem:[%s12 + $0x28] sm:$0xff]
    %v6005 = vld [vmem:[%s12 + $0x30] sm:$0xff]
    %v6006 = vld [vmem:[%s12 + $0x38] sm:$0xff]
    %v6007 = vld [vmem:[#allocation9] sm:$0x1]
    %v6009 = vlaneseq
    %v6010 = vshrl.u32 %v6009, 7
    %v6011 = vsub.s32 0, %v6010
    %v6012 = vrot.slane %v6007, %v6011
    %vm6014 = vcmask 523264
    %v6016 = vsel %vm6014, %v5983, 0
    %v6019 = vsel %vm6014, %v5984, 0
    %v6022 = vsel %vm6014, %v5985, 0
    %v6025 = vsel %vm6014, %v5986, 0
    %v6028 = vsel %vm6014, %v5987, 0
    %v6031 = vsel %vm6014, %v5988, 0
    %v6034 = vsel %vm6014, %v5989, 0
    %v6037 = vsel %vm6014, %v5990, 0
    %v6040 = vsel %vm6014, %v5991, 0
    %v6043 = vsel %vm6014, %v5992, 0
    %v6046 = vsel %vm6014, %v5993, 0
    %v6049 = vsel %vm6014, %v5994, 0
    %v6052 = vsel %vm6014, %v5995, 0
    %v6055 = vsel %vm6014, %v5996, 0
    %v6058 = vsel %vm6014, %v5997, 0
    %v6061 = vsel %vm6014, %v5998, 0
    %6063 = vmatprep.subr.mxu0 0.0
    %6064 = vmatpush1.msra.mxu0 %v5999
    %6065 = vmatprep.subr.mxu0 0.0
    %6066 = vmatpush1.msra.mxu0 %v6000
    %6067 = vmatprep.subr.mxu0 0.0
    %6068 = vmatpush1.msra.mxu0 %v6001
    %6069 = vmatprep.subr.mxu0 0.0
    %6070 = vmatpush1.msra.mxu0 %v6002
    %6071 = vmatprep.subr.mxu0 0.0
    %6072 = vmatpush1.msra.mxu0 %v6003
    %6073 = vmatprep.subr.mxu0 0.0
    %6074 = vmatpush1.msra.mxu0 %v6004
    %6075 = vmatprep.subr.mxu0 0.0
    %6076 = vmatpush1.msra.mxu0 %v6005
    %6077 = vmatprep.subr.mxu0 0.0
    %6078 = vmatpush1.msra.mxu0 %v6006
    %6079 = vmatprep.subr.mxu0 0.0
    %6080 = vmatpush1.msra.mxu0 0.0
    %6081 = vmatprep.subr.mxu0 0.0
    %6082 = vmatpush1.msra.mxu0 0.0
    %6083 = vmatprep.subr.mxu0 0.0
    %6084 = vmatpush1.msra.mxu0 0.0
    %6085 = vmatprep.subr.mxu0 0.0
    %6086 = vmatpush1.msra.mxu0 0.0
    %6087 = vmatprep.subr.mxu0 0.0
    %6088 = vmatpush1.msra.mxu0 0.0
    %6089 = vmatprep.subr.mxu0 0.0
    %6090 = vmatpush1.msra.mxu0 0.0
    %6091 = vmatprep.subr.mxu0 0.0
    %6092 = vmatpush1.msra.mxu0 0.0
    %6093 = vmatprep.subr.mxu0 0.0
    %6094 = vmatpush1.msra.mxu0 0.0
    %6095 = vmatprep.subr.mxu0 0.0
    %6096 = vmatpush1.msra.mxu0 0.0
    %6097 = vmatprep.subr.mxu0 0.0
    %6098 = vmatpush1.msra.mxu0 0.0
    %6099 = vmatprep.subr.mxu0 0.0
    %6100 = vmatpush1.msra.mxu0 0.0
    %6101 = vmatprep.subr.mxu0 0.0
    %6102 = vmatpush1.msra.mxu0 0.0
    %6103 = vmatprep.subr.mxu0 0.0
    %6104 = vmatpush1.msra.mxu0 0.0
    %6105 = vmatprep.subr.mxu0 0.0
    %6106 = vmatpush1.msra.mxu0 0.0
    %6107 = vmatprep.subr.mxu0 0.0
    %6108 = vmatpush1.msra.mxu0 0.0
    %6109 = vmatprep.subr.mxu0 0.0
    %6110 = vmatpush1.msra.mxu0 0.0
    %6111 = vmatprep.subr.mxu0 0.0
    %6112 = vmatpush1.msra.mxu0 0.0
    %6113 = vmatprep.subr.mxu0 0.0
    %6114 = vmatpush1.msra.mxu0 0.0
    %6115 = vmatprep.subr.mxu0 0.0
    %6116 = vmatpush1.msra.mxu0 0.0
    %6117 = vmatprep.subr.mxu0 0.0
    %6118 = vmatpush1.msra.mxu0 0.0
    %6119 = vmatprep.subr.mxu0 0.0
    %6120 = vmatpush1.msra.mxu0 0.0
    %6121 = vmatprep.subr.mxu0 0.0
    %6122 = vmatpush1.msra.mxu0 0.0
    %6123 = vmatprep.subr.mxu0 0.0
    %6124 = vmatpush1.msra.mxu0 0.0
    %6125 = vmatprep.subr.mxu0 0.0
    %6126 = vmatpush1.msra.mxu0 0.0
    %6127 = vmatprep.mubr.f32.mxu0 0.0
    %6128 = vmatmul.mubr.f32.gmra.mrb[0].mxu0 %v6016
    %v6129 = vpop.f32.mrb[0].mxu0
    %v6130 = vadd.f32 %v6012, %v6129
    %v6131 = vpop.f32.mrb[0].mxu0
    %6132 = vmatprep.mubr.f32.mxu0 0.0
    %6133 = vmatmul.mubr.f32.gmra.mrb[0].mxu0 %v6019
    %v6134 = vpop.f32.mrb[0].mxu0
    %v6135 = vadd.f32 %v6012, %v6134
    %v6136 = vpop.f32.mrb[0].mxu0
    %6137 = vmatprep.mubr.f32.mxu0 0.0
    %6138 = vmatmul.mubr.f32.gmra.mrb[0].mxu0 %v6022
    %v6139 = vpop.f32.mrb[0].mxu0
    %v6140 = vadd.f32 %v6012, %v6139
    %v6141 = vpop.f32.mrb[0].mxu0
    %6142 = vmatprep.mubr.f32.mxu0 0.0
    %6143 = vmatmul.mubr.f32.gmra.mrb[0].mxu0 %v6025
    %v6144 = vpop.f32.mrb[0].mxu0
    %v6145 = vadd.f32 %v6012, %v6144
    %v6146 = vpop.f32.mrb[0].mxu0
    %6147 = vmatprep.mubr.f32.mxu0 0.0
    %6148 = vmatmul.mubr.f32.gmra.mrb[0].mxu0 %v6028
    %v6149 = vpop.f32.mrb[0].mxu0
    %v6150 = vadd.f32 %v6012, %v6149
    %v6151 = vpop.f32.mrb[0].mxu0
    %6152 = vmatprep.mubr.f32.mxu0 0.0
    %6153 = vmatmul.mubr.f32.gmra.mrb[0].mxu0 %v6031
    %v6154 = vpop.f32.mrb[0].mxu0
    %v6155 = vadd.f32 %v6012, %v6154
    %v6156 = vpop.f32.mrb[0].mxu0
    %6157 = vmatprep.mubr.f32.mxu0 0.0
    %6158 = vmatmul.mubr.f32.gmra.mrb[0].mxu0 %v6034
    %v6159 = vpop.f32.mrb[0].mxu0
    %v6160 = vadd.f32 %v6012, %v6159
    %v6161 = vpop.f32.mrb[0].mxu0
    %6162 = vmatprep.mubr.f32.mxu0 0.0
    %6163 = vmatmul.mubr.f32.gmra.mrb[0].mxu0 %v6037
    %v6164 = vpop.f32.mrb[0].mxu0
    %v6165 = vadd.f32 %v6012, %v6164
    %v6166 = vpop.f32.mrb[0].mxu0
    %6167 = vmatprep.mubr.f32.mxu0 0.0
    %6168 = vmatmul.mubr.f32.gmra.mrb[0].mxu0 %v6040
    %v6169 = vpop.f32.mrb[0].mxu0
    %v6170 = vadd.f32 %v6012, %v6169
    %v6171 = vpop.f32.mrb[0].mxu0
    %6172 = vmatprep.mubr.f32.mxu0 0.0
    %6173 = vmatmul.mubr.f32.gmra.mrb[0].mxu0 %v6043
    %v6174 = vpop.f32.mrb[0].mxu0
    %v6175 = vadd.f32 %v6012, %v6174
    %v6176 = vpop.f32.mrb[0].mxu0
    %6177 = vmatprep.mubr.f32.mxu0 0.0
    %6178 = vmatmul.mubr.f32.gmra.mrb[0].mxu0 %v6046
    %v6179 = vpop.f32.mrb[0].mxu0
    %v6180 = vadd.f32 %v6012, %v6179
    %v6181 = vpop.f32.mrb[0].mxu0
    %6182 = vmatprep.mubr.f32.mxu0 0.0
    %6183 = vmatmul.mubr.f32.gmra.mrb[0].mxu0 %v6049
    %v6184 = vpop.f32.mrb[0].mxu0
    %v6185 = vadd.f32 %v6012, %v6184
    %v6186 = vpop.f32.mrb[0].mxu0
    %6187 = vmatprep.mubr.f32.mxu0 0.0
    %6188 = vmatmul.mubr.f32.gmra.mrb[0].mxu0 %v6052
    %v6189 = vpop.f32.mrb[0].mxu0
    %v6190 = vadd.f32 %v6012, %v6189
    %v6191 = vpop.f32.mrb[0].mxu0
    %6192 = vmatprep.mubr.f32.mxu0 0.0
    %6193 = vmatmul.mubr.f32.gmra.mrb[0].mxu0 %v6055
    %v6194 = vpop.f32.mrb[0].mxu0
    %v6195 = vadd.f32 %v6012, %v6194
    %v6196 = vpop.f32.mrb[0].mxu0
    %6197 = vmatprep.mubr.f32.mxu0 0.0
    %6198 = vmatmul.mubr.f32.gmra.mrb[0].mxu0 %v6058
    %v6199 = vpop.f32.mrb[0].mxu0
    %v6200 = vadd.f32 %v6012, %v6199
    %v6201 = vpop.f32.mrb[0].mxu0
    %6202 = vmatprep.mubr.f32.mxu0 0.0
    %6203 = vmatmul.mubr.f32.gmra.mrb[0].mxu0 %v6061
    %v6204 = vpop.f32.mrb[0].mxu0
    %v6205 = vadd.f32 %v6012, %v6204
    %v6206 = vpop.f32.mrb[0].mxu0
    %6207 = vdwg.mxu0
    %vm6208 = vcmp.gt.f32.partialorder %v6130, 20.0
    %vm6209 = vcmp.gt.f32.partialorder %v6135, 20.0
    %vm6210 = vcmp.gt.f32.partialorder %v6140, 20.0
    %vm6211 = vcmp.gt.f32.partialorder %v6145, 20.0
    %vm6212 = vcmp.gt.f32.partialorder %v6150, 20.0
    %vm6213 = vcmp.gt.f32.partialorder %v6155, 20.0
    %vm6214 = vcmp.gt.f32.partialorder %v6160, 20.0
    %vm6215 = vcmp.gt.f32.partialorder %v6165, 20.0
    %vm6216 = vcmp.gt.f32.partialorder %v6170, 20.0
    %vm6217 = vcmp.gt.f32.partialorder %v6175, 20.0
    %vm6218 = vcmp.gt.f32.partialorder %v6180, 20.0
    %vm6219 = vcmp.gt.f32.partialorder %v6185, 20.0
    %vm6220 = vcmp.gt.f32.partialorder %v6190, 20.0
    %vm6221 = vcmp.gt.f32.partialorder %v6195, 20.0
    %vm6222 = vcmp.gt.f32.partialorder %v6200, 20.0
    %vm6223 = vcmp.gt.f32.partialorder %v6205, 20.0
    %v6224 = vmin.f32 %v6130, 20.0
    %v6225 = vmin.f32 %v6135, 20.0
    %v6226 = vmin.f32 %v6140, 20.0
    %v6227 = vmin.f32 %v6145, 20.0
    %v6228 = vmin.f32 %v6150, 20.0
    %v6229 = vmin.f32 %v6155, 20.0
    %v6230 = vmin.f32 %v6160, 20.0
    %v6231 = vmin.f32 %v6165, 20.0
    %v6232 = vmin.f32 %v6170, 20.0
    %v6233 = vmin.f32 %v6175, 20.0
    %v6234 = vmin.f32 %v6180, 20.0
    %v6235 = vmin.f32 %v6185, 20.0
    %v6236 = vmin.f32 %v6190, 20.0
    %v6237 = vmin.f32 %v6195, 20.0
    %v6238 = vmin.f32 %v6200, 20.0
    %v6239 = vmin.f32 %v6205, 20.0
    %v6240 = vmul.f32 %v6224, 1.442695
    %v6241 = vpow.pop %v6240
    %v6242 = vmul.f32 %v6225, 1.442695
    %v6243 = vpow.pop %v6242
    %v6244 = vmul.f32 %v6226, 1.442695
    %v6245 = vpow.pop %v6244
    %v6246 = vmul.f32 %v6227, 1.442695
    %v6247 = vpow.pop %v6246
    %v6248 = vmul.f32 %v6228, 1.442695
    %v6249 = vpow.pop %v6248
    %v6250 = vmul.f32 %v6229, 1.442695
    %v6251 = vpow.pop %v6250
    %v6252 = vmul.f32 %v6230, 1.442695
    %v6253 = vpow.pop %v6252
    %v6254 = vmul.f32 %v6231, 1.442695
    %v6255 = vpow.pop %v6254
    %v6256 = vmul.f32 %v6232, 1.442695
    %v6257 = vpow.pop %v6256
    %v6258 = vmul.f32 %v6233, 1.442695
    %v6259 = vpow.pop %v6258
    %v6260 = vmul.f32 %v6234, 1.442695
    %v6261 = vpow.pop %v6260
    %v6262 = vmul.f32 %v6235, 1.442695
    %v6263 = vpow.pop %v6262
    %v6264 = vmul.f32 %v6236, 1.442695
    %v6265 = vpow.pop %v6264
    %v6266 = vmul.f32 %v6237, 1.442695
    %v6267 = vpow.pop %v6266
    %v6268 = vmul.f32 %v6238, 1.442695
    %v6269 = vpow.pop %v6268
    %v6270 = vmul.f32 %v6239, 1.442695
    %v6271 = vpow.pop %v6270
    %v6272 = vadd.f32 %v6241, 1.0
    %v6273 = vadd.f32 %v6243, 1.0
    %v6274 = vadd.f32 %v6245, 1.0
    %v6275 = vadd.f32 %v6247, 1.0
    %v6276 = vadd.f32 %v6249, 1.0
    %v6277 = vadd.f32 %v6251, 1.0
    %v6278 = vadd.f32 %v6253, 1.0
    %v6279 = vadd.f32 %v6255, 1.0
    %v6280 = vadd.f32 %v6257, 1.0
    %v6281 = vadd.f32 %v6259, 1.0
    %v6282 = vadd.f32 %v6261, 1.0
    %v6283 = vadd.f32 %v6263, 1.0
    %v6284 = vadd.f32 %v6265, 1.0
    %v6285 = vadd.f32 %v6267, 1.0
    %v6286 = vadd.f32 %v6269, 1.0
    %v6287 = vadd.f32 %v6271, 1.0
    %v6288 = vlog2.pop %v6272
    %v6289 = vmul.f32 %v6288, 0.6931472
    %v6290 = vlog2.pop %v6273
    %v6291 = vmul.f32 %v6290, 0.6931472
    %v6292 = vlog2.pop %v6274
    %v6293 = vmul.f32 %v6292, 0.6931472
    %v6294 = vlog2.pop %v6275
    %v6295 = vmul.f32 %v6294, 0.6931472
    %v6296 = vlog2.pop %v6276
    %v6297 = vmul.f32 %v6296, 0.6931472
    %v6298 = vlog2.pop %v6277
    %v6299 = vmul.f32 %v6298, 0.6931472
    %v6300 = vlog2.pop %v6278
    %v6301 = vmul.f32 %v6300, 0.6931472
    %v6302 = vlog2.pop %v6279
    %v6303 = vmul.f32 %v6302, 0.6931472
    %v6304 = vlog2.pop %v6280
    %v6305 = vmul.f32 %v6304, 0.6931472
    %v6306 = vlog2.pop %v6281
    %v6307 = vmul.f32 %v6306, 0.6931472
    %v6308 = vlog2.pop %v6282
    %v6309 = vmul.f32 %v6308, 0.6931472
    %v6310 = vlog2.pop %v6283
    %v6311 = vmul.f32 %v6310, 0.6931472
    %v6312 = vlog2.pop %v6284
    %v6313 = vmul.f32 %v6312, 0.6931472
    %v6314 = vlog2.pop %v6285
    %v6315 = vmul.f32 %v6314, 0.6931472
    %v6316 = vlog2.pop %v6286
    %v6317 = vmul.f32 %v6316, 0.6931472
    %v6318 = vlog2.pop %v6287
    %v6319 = vmul.f32 %v6318, 0.6931472
    %v6320 = vsel %vm6208, %v6130, %v6289
    %v6321 = vsel %vm6209, %v6135, %v6291
    %v6322 = vsel %vm6210, %v6140, %v6293
    %v6323 = vsel %vm6211, %v6145, %v6295
    %v6324 = vsel %vm6212, %v6150, %v6297
    %v6325 = vsel %vm6213, %v6155, %v6299
    %v6326 = vsel %vm6214, %v6160, %v6301
    %v6327 = vsel %vm6215, %v6165, %v6303
    %v6328 = vsel %vm6216, %v6170, %v6305
    %v6329 = vsel %vm6217, %v6175, %v6307
    %v6330 = vsel %vm6218, %v6180, %v6309
    %v6331 = vsel %vm6219, %v6185, %v6311
    %v6332 = vsel %vm6220, %v6190, %v6313
    %v6333 = vsel %vm6221, %v6195, %v6315
    %v6334 = vsel %vm6222, %v6200, %v6317
    %v6335 = vsel %vm6223, %v6205, %v6319
    %6336 = vst [vmem:[%s14] sm:$0xff] %v6320
    %6337 = vst [vmem:[%s14 + $0x8] sm:$0xff] %v6321
    %6338 = vst [vmem:[%s14 + $0x10] sm:$0xff] %v6322
    %6339 = vst [vmem:[%s14 + $0x18] sm:$0xff] %v6323
    %6340 = vst [vmem:[%s14 + $0x20] sm:$0xff] %v6324
    %6341 = vst [vmem:[%s14 + $0x28] sm:$0xff] %v6325
    %6342 = vst [vmem:[%s14 + $0x30] sm:$0xff] %v6326
    %6343 = vst [vmem:[%s14 + $0x38] sm:$0xff] %v6327
    %6344 = vst [vmem:[%s14 + $0x40] sm:$0xff] %v6328
    %6345 = vst [vmem:[%s14 + $0x48] sm:$0xff] %v6329
    %6346 = vst [vmem:[%s14 + $0x50] sm:$0xff] %v6330
    %6347 = vst [vmem:[%s14 + $0x58] sm:$0xff] %v6331
    %6348 = vst [vmem:[%s14 + $0x60] sm:$0xff] %v6332
    %6349 = vst [vmem:[%s14 + $0x68] sm:$0xff] %v6333
    %6350 = vst [vmem:[%s14 + $0x70] sm:$0xff] %v6334
    %6351 = vst [vmem:[%s14 + $0x78] sm:$0xff] %v6335
    // Predicated region
    $region74: #{run_kernel.1} parent=1 // pred_check
      _
    $region75: #{run_kernel.1} parent=1 // pred_check_branch
      %6353 = sbr.rel (0) target = $region77
    $region76: #{run_kernel.1} parent=1 // pred_region
      _
    $region77: #{run_kernel.1} parent=1 // pred_fallthru
      _
    // Predicated region
    $region78: #{run_kernel.1} parent=1 // pred_check
      _
    $region79: #{run_kernel.1} parent=1 // pred_check_branch
      %6355 = sbr.rel (0) target = $region81
    $region80: #{run_kernel.1} parent=1 // pred_region
      _
    $region81: #{run_kernel.1} parent=1 // pred_fallthru
      _
    %6356 = vsyncpa [#allocation4], 1
    %6357 = vsyncpa [#allocation8], 1
    %6358 = vsyncpa [#allocation5], 1

</llo_original>
